<compile_context>
chip_gen: v5e
topology: v5e:2x2
jax: 0.10.0
libtpu: 0.0.40
codegen_flags: <defaults>
</compile_context>

<pallas_src>
import functools
import math

import jax
import jax.numpy as jnp
from jax import lax
from jax.experimental import pallas as pl
from jax.experimental.pallas import tpu as pltpu

F32 = jnp.float32
EPS = 1e-5
NEG_SLOPE = 0.2

# ----------------------------- configuration -----------------------------
B = 2          # batch
N_PTS = 16     # number of points
C_IN = 3       # input coordinate channels
K_NN = 4       # EdgeConv neighbors
C_EMB = 8      # per-EdgeConv output channels
C = 2 * C_EMB  # feature width after concatenating the two EdgeConvs (=16)
P2P_HEADS = 2
FF = 32
DS_M = (8, 4)  # downsample target point counts
DS_HEADS = 1   # single-head global downsample / crossA upsample in this config
US_HEADS = 1


# ----------------------------- BlockSpec helpers -----------------------------
def _bspec(shape):
    nd = len(shape)
    return pl.BlockSpec((1,) + tuple(shape[1:]),
                        lambda b, _nd=nd: (b,) + (0,) * (_nd - 1))


def _wspec(shape):
    nd = len(shape)
    return pl.BlockSpec(tuple(shape), lambda b, _nd=nd: (0,) * _nd)


def _cparams():
    # batch axis is embarrassingly parallel -> lets v7x split it across its 2 TCs.
    return pltpu.CompilerParams(dimension_semantics=("parallel",))


# ----------------------------- in-kernel math helpers -----------------------------
def _leaky_relu(x):
    return jnp.where(x >= 0, x, NEG_SLOPE * x)


def _softmax_last(e):
    m = jnp.max(e, axis=-1, keepdims=True)
    p = jnp.exp(e - m)
    return p * pl.reciprocal(jnp.sum(p, axis=-1, keepdims=True), approx=True)


def _mm(a, b):
    return jnp.dot(a, b, preferred_element_type=F32)


def _dg(a, b, ca, cb):
    """dot_general contracting a-dim `ca` with b-dim `cb` (no transposes)."""
    return lax.dot_general(a, b, (((ca,), (cb,)), ((), ())),
                           preferred_element_type=F32)


def _edgeconv_apply(g, w1, b1, w2, b2, knn, npts):
    """Two 1x1 convs (BN scale pre-folded, bias kept) + LeakyReLU on a lane-dense
    (Cin, K*N) slab, then max over the K blocks of N lanes."""
    h = _leaky_relu(_mm(w1, g) + b1)          # (C1, K*N)
    h = _leaky_relu(_mm(w2, h) + b2)          # (C2, K*N)
    out = h[:, :npts]
    for kk in range(1, knn):
        out = jnp.maximum(out, h[:, kk * npts:(kk + 1) * npts])
    return out                                # (C2, N)


def _p2p_apply(x, p, head_scr, num_heads):
    """Point2PointAttention: MHSA + residual BN + feed-forward + residual BN.
    wq is pre-scaled by 1/sqrt(d).  Per-head results land in static slices of the
    VMEM scratch `head_scr` (no concat / transpose)."""
    wq, wk, wv, bn1s, bn1b, ff1, ff2, bn2s, bn2b = p
    n = x.shape[1]
    q = _mm(wq, x)
    k = _mm(wk, x)
    v = _mm(wv, x)
    d = q.shape[0] // num_heads
    for h in range(num_heads):
        qh = q[h * d:(h + 1) * d, :]
        kh = k[h * d:(h + 1) * d, :]
        vh = v[h * d:(h + 1) * d, :]
        a = _softmax_last(_dg(qh, kh, 0, 0))              # (n, n)
        head_scr[h * d:(h + 1) * d, :n] = _dg(vh, a, 1, 1)  # (d, n)
    xr = head_scr[:, :n]
    x1 = (x + xr) * bn1s + bn1b
    hmid = _leaky_relu(_mm(ff1, x1))
    hout = _mm(ff2, hmid)
    return (x1 + hout) * bn2s + bn2b


def _ds_scores(x, wq, wk):
    """Global DownSample point scores: column sums of softmax(q^T k)."""
    q = _mm(wq, x)                                        # wq pre-scaled
    k = _mm(wk, x)
    a = _softmax_last(_dg(q, k, 0, 0))                    # (n, n)
    return jnp.sum(a, axis=0, keepdims=True)              # (1, n)


def _ds_context(x, onehot, wq, wk, wv):
    """Context for the selected points: one-hot gather of queries -> only the
    M selected attention rows are ever formed (never the full NxN to HBM)."""
    q = _mm(wq, x)
    k = _mm(wk, x)
    v = _mm(wv, x)
    q_sel = _dg(q, onehot, 1, 1)                          # (C, M)
    a = _softmax_last(_dg(q_sel, k, 0, 0))                # (M, n)
    return _dg(v, a, 1, 1)                                # (C, M)


def _upsample_apply(xq, xkv, wq, wk, wv, wskip):
    """crossA UpSample: cross-attention (queries=xq, keys/values=xkv) + skip link."""
    q = _mm(wq, xq)
    k = _mm(wk, xkv)
    v = _mm(wv, xkv)
    a = _softmax_last(_dg(q, k, 0, 0))                    # (Nq, Nk)
    return _mm(wskip, xq) + _dg(v, a, 1, 1)               # (C, Nq)


# ----------------------------- Pallas kernels -----------------------------
def _edgeconv1_kernel(g_ref, w1_ref, b1_ref, w2_ref, b2_ref, o_ref, *, knn, npts):
    o_ref[0] = _edgeconv_apply(g_ref[0], w1_ref[...], b1_ref[...],
                               w2_ref[...], b2_ref[...], knn, npts)


def _stage1_kernel(*refs, knn, npts, num_heads):
    # EdgeConv-2 + concat + Point2Point[0] + DownSample[0] scores.
    x1_ref, g2_ref, e_w1, e_b1, e_w2, e_b2 = refs[:6]
    p0 = refs[6:15]
    d0_wq, d0_wk = refs[15:17]
    xo_ref, so_ref, head_scr = refs[17:]

    x2 = _edgeconv_apply(g2_ref[0], e_w1[...], e_b1[...], e_w2[...], e_b2[...],
                         knn, npts)
    x = jnp.concatenate([x1_ref[0], x2], axis=0)          # (C, N)
    xp = _p2p_apply(x, tuple(r[...] for r in p0), head_scr, num_heads)
    xo_ref[0] = xp
    so_ref[0] = _ds_scores(xp, d0_wq[...], d0_wk[...])


def _stage2_kernel(*refs, num_heads):
    # DownSample[0] context + Point2Point[1] + DownSample[1] scores.
    x_ref, oh_ref, d0_wq, d0_wk, d0_wv = refs[:5]
    p1 = refs[5:14]
    d1_wq, d1_wk = refs[14:16]
    xo_ref, so_ref, head_scr = refs[16:]

    x_ds = _ds_context(x_ref[0], oh_ref[0], d0_wq[...], d0_wk[...], d0_wv[...])
    xp = _p2p_apply(x_ds, tuple(r[...] for r in p1), head_scr, num_heads)
    xo_ref[0] = xp
    so_ref[0] = _ds_scores(xp, d1_wq[...], d1_wk[...])


def _stage3_kernel(*refs, num_heads):
    # DownSample[1] context + P2P[2] + UpSample[0] + P2P[3] + UpSample[1] + P2P[4].
    x0_ref, x1_ref, oh_ref, d1_wq, d1_wk, d1_wv = refs[:6]
    p2 = refs[6:15]
    u0 = refs[15:19]
    p3 = refs[19:28]
    u1 = refs[28:32]
    p4 = refs[32:41]
    o_ref, head_scr = refs[41:]

    x0 = x0_ref[0]                                        # (C, N)   after P2P[0]
    x1 = x1_ref[0]                                        # (C, M0)  after P2P[1]

    x_ds1 = _ds_context(x1, oh_ref[0], d1_wq[...], d1_wk[...], d1_wv[...])
    x_p2 = _p2p_apply(x_ds1, tuple(r[...] for r in p2), head_scr, num_heads)

    xu = _upsample_apply(x1, x_p2, *(r[...] for r in u0))          # (C, M0)
    x_u0 = _p2p_apply(xu, tuple(r[...] for r in p3), head_scr, num_heads)

    xu = _upsample_apply(x0, x_u0, *(r[...] for r in u1))          # (C, N)
    o_ref[0] = _p2p_apply(xu, tuple(r[...] for r in p4), head_scr, num_heads)


# ----------------------------- JAX glue: kNN grouping -----------------------------
def _knn_idx(x, k):
    # x: (B, C, N); negative squared pairwise distance, top-k = k nearest (incl. self)
    inner = jnp.einsum('bcm,bcn->bmn', x, x)
    xx = jnp.sum(x * x, axis=1)                           # (B, N)
    neg_dist = -(xx[:, :, None] - 2.0 * inner + xx[:, None, :])
    return jax.lax.top_k(neg_dist, k)[1]                  # (B, N, K)


def _group_lanes(x, k):
    # (B, C, N) -> lane-dense (B, 2C, K*N): cat([center, neighbor - center]) with the
    # neighbor index riding contiguous blocks of N on the lane axis.
    idx = _knn_idx(x, k)
    neighbors = jax.vmap(lambda xb, ib: xb[:, ib])(x, idx)  # (B, C, N, K)
    center = x[:, :, :, None]
    g = jnp.concatenate([jnp.broadcast_to(center, neighbors.shape),
                         neighbors - center], axis=1)       # (B, 2C, N, K)
    g = jnp.transpose(g, (0, 1, 3, 2))                      # (B, 2C, K, N)
    bsz, c2, kk, n = g.shape
    return g.reshape(bsz, c2, kk * n)                       # (B, 2C, K*N)


# ----------------------------- pallas_call wrappers -----------------------------
def _p2p_flat(p):
    return (p['wq'], p['wk'], p['wv'], p['bn1_s'], p['bn1_b'],
            p['ff1'], p['ff2'], p['bn2_s'], p['bn2_b'])


def _call_edgeconv1(g1, p):
    bsz = g1.shape[0]
    n = g1.shape[-1] // K_NN
    args = (g1, p['w1'], p['b1'], p['w2'], p['b2'])
    return pl.pallas_call(
        functools.partial(_edgeconv1_kernel, knn=K_NN, npts=n),
        grid=(bsz,),
        in_specs=[_bspec(g1.shape)] + [_wspec(a.shape) for a in args[1:]],
        out_specs=_bspec((bsz, C_EMB, n)),
        out_shape=jax.ShapeDtypeStruct((bsz, C_EMB, n), F32),
        compiler_params=_cparams(),
    )(*args)


def _call_stage1(x1, g2, params):
    bsz, _, n = x1.shape
    e = params['emb'][1]
    ds0 = params['ds'][0]
    args = ((x1, g2, e['w1'], e['b1'], e['w2'], e['b2'])
            + _p2p_flat(params['p2p'][0])
            + (ds0['wq'], ds0['wk']))
    in_specs = ([_bspec(x1.shape), _bspec(g2.shape)]
                + [_wspec(a.shape) for a in args[2:]])
    return pl.pallas_call(
        functools.partial(_stage1_kernel, knn=K_NN, npts=n, num_heads=P2P_HEADS),
        grid=(bsz,),
        in_specs=in_specs,
        out_specs=(_bspec((bsz, C, n)), _bspec((bsz, 1, n))),
        out_shape=(jax.ShapeDtypeStruct((bsz, C, n), F32),
                   jax.ShapeDtypeStruct((bsz, 1, n), F32)),
        scratch_shapes=[pltpu.VMEM((C, n), F32)],
        compiler_params=_cparams(),
    )(*args)


def _call_stage2(x_p0, oh0, params):
    bsz, _, _ = x_p0.shape
    m0 = oh0.shape[1]
    ds0, ds1 = params['ds']
    args = ((x_p0, oh0, ds0['wq'], ds0['wk'], ds0['wv'])
            + _p2p_flat(params['p2p'][1])
            + (ds1['wq'], ds1['wk']))
    in_specs = ([_bspec(x_p0.shape), _bspec(oh0.shape)]
                + [_wspec(a.shape) for a in args[2:]])
    return pl.pallas_call(
        functools.partial(_stage2_kernel, num_heads=P2P_HEADS),
        grid=(bsz,),
        in_specs=in_specs,
        out_specs=(_bspec((bsz, C, m0)), _bspec((bsz, 1, m0))),
        out_shape=(jax.ShapeDtypeStruct((bsz, C, m0), F32),
                   jax.ShapeDtypeStruct((bsz, 1, m0), F32)),
        scratch_shapes=[pltpu.VMEM((C, m0), F32)],
        compiler_params=_cparams(),
    )(*args)


def _call_stage3(x_p0, x_p1, oh1, params):
    bsz, _, n = x_p0.shape
    ds1 = params['ds'][1]
    us0, us1 = params['us']
    args = ((x_p0, x_p1, oh1, ds1['wq'], ds1['wk'], ds1['wv'])
            + _p2p_flat(params['p2p'][2])
            + (us0['wq'], us0['wk'], us0['wv'], us0['wskip'])
            + _p2p_flat(params['p2p'][3])
            + (us1['wq'], us1['wk'], us1['wv'], us1['wskip'])
            + _p2p_flat(params['p2p'][4]))
    in_specs = ([_bspec(x_p0.shape), _bspec(x_p1.shape), _bspec(oh1.shape)]
                + [_wspec(a.shape) for a in args[3:]])
    return pl.pallas_call(
        functools.partial(_stage3_kernel, num_heads=P2P_HEADS),
        grid=(bsz,),
        in_specs=in_specs,
        out_specs=_bspec((bsz, C, n)),
        out_shape=jax.ShapeDtypeStruct((bsz, C, n), F32),
        scratch_shapes=[pltpu.VMEM((C, n), F32)],
        compiler_params=_cparams(),
    )(*args)


# ----------------------------- parameters -----------------------------
def _conv_w(key, cout, cin):
    bound = 1.0 / math.sqrt(cin)
    return jax.random.uniform(key, (cout, cin), F32, -bound, bound)


def _bn_eval(c):
    gamma = jnp.ones((c, 1), F32)
    beta = jnp.zeros((c, 1), F32)
    mean = jnp.zeros((c, 1), F32)
    var = jnp.ones((c, 1), F32)
    scale = gamma / jnp.sqrt(var + EPS)
    bias = beta - mean * scale
    return scale, bias


def init_params(key):
    keys = iter(jax.random.split(key, 64))
    nk = lambda: next(keys)
    emb = []
    for cin1, cout1, cin2, cout2 in ((2 * C_IN, C_EMB, C_EMB, C_EMB),
                                     (2 * C_EMB, C_EMB, C_EMB, C_EMB)):
        s1, b1 = _bn_eval(cout1)
        s2, b2 = _bn_eval(cout2)
        # BN(eval) scale folded into the conv weight; bias kept as a (C,1) add.
        emb.append(dict(w1=_conv_w(nk(), cout1, cin1) * s1, b1=b1,
                        w2=_conv_w(nk(), cout2, cin2) * s2, b2=b2))
    p2p = []
    inv_p2p = 1.0 / math.sqrt(C // P2P_HEADS)
    for _ in range(1 + 2 * len(DS_M)):   # 1 + num_downsample + num_upsample = 5
        s1, b1 = _bn_eval(C)
        s2, b2 = _bn_eval(C)
        p2p.append(dict(wq=_conv_w(nk(), C, C) * inv_p2p,      # 1/sqrt(d) folded
                        wk=_conv_w(nk(), C, C), wv=_conv_w(nk(), C, C),
                        bn1_s=s1, bn1_b=b1,
                        ff1=_conv_w(nk(), FF, C), ff2=_conv_w(nk(), C, FF),
                        bn2_s=s2, bn2_b=b2))
    inv_ds = 1.0 / math.sqrt(C // DS_HEADS)
    ds = [dict(wq=_conv_w(nk(), C, C) * inv_ds, wk=_conv_w(nk(), C, C),
               wv=_conv_w(nk(), C, C)) for _ in DS_M]
    inv_us = 1.0 / math.sqrt(C // US_HEADS)
    us = [dict(wq=_conv_w(nk(), C, C) * inv_us, wk=_conv_w(nk(), C, C),
               wv=_conv_w(nk(), C, C), wskip=_conv_w(nk(), C, C)) for _ in DS_M]
    return dict(emb=emb, p2p=p2p, ds=ds, us=us)


# ----------------------------- full forward -----------------------------
def feature_learning_block(params, x):
    # x: (B, 3, N)
    bsz, _, n = x.shape

    # EdgeConv 1 (grouping in JAX, MLP+max in Pallas).
    g1 = _group_lanes(x, K_NN)                                     # (B, 6, K*N)
    x1 = _call_edgeconv1(g1, params['emb'][0])                     # (B, 8, N)

    # EdgeConv 2 re-groups on the EdgeConv-1 features (data-dependent -> JAX).
    g2 = _group_lanes(x1, K_NN)                                    # (B, 16, K*N)

    # Fused: EdgeConv-2 + concat + P2P[0] + DownSample[0] scores.
    x_p0, s0 = _call_stage1(x1, g2, params)                        # (B,C,N),(B,1,N)
    idx_sel0 = jax.lax.top_k(s0[:, 0, :], DS_M[0])[1]              # (B, M0)
    oh0 = jax.nn.one_hot(idx_sel0, n, dtype=F32)                   # (B, M0, N)

    # Fused: DownSample[0] context + P2P[1] + DownSample[1] scores.
    x_p1, s1 = _call_stage2(x_p0, oh0, params)                     # (B,C,M0),(B,1,M0)
    idx_sel1 = jax.lax.top_k(s1[:, 0, :], DS_M[1])[1]              # (B, M1)
    oh1 = jax.nn.one_hot(idx_sel1, DS_M[0], dtype=F32)             # (B, M1, M0)

    # Fused: DownSample[1] context + P2P[2] + UpSample[0] + P2P[3] + UpSample[1] + P2P[4].
    return _call_stage3(x_p0, x_p1, oh1, params)                   # (B, C, N)


# ----------------------------- main -----------------------------
if __name__ == "__main__":
    root = jax.random.PRNGKey(0)
    k_param, k_input = jax.random.split(root)
    params = init_params(k_param)
    x = jax.random.normal(k_input, (B, C_IN, N_PTS), F32)
    fwd = jax.jit(feature_learning_block)
    out = jax.block_until_ready(fwd(params, x))
    assert out.shape == (B, C, N_PTS), out.shape
    assert bool(jnp.all(jnp.isfinite(out)))
    print("KERNEL_OK")
</pallas_src>

<mosaic_0001>
module attributes {stable_mosaic.version = 11 : i64} {
  func.func @_edgeconv1_kernel(%arg0: i32, %arg1: memref<1x6x64xf32, #tpu.memory_space<vmem>>, %arg2: memref<8x6xf32, #tpu.memory_space<vmem>>, %arg3: memref<8x1xf32, #tpu.memory_space<vmem>>, %arg4: memref<8x8xf32, #tpu.memory_space<vmem>>, %arg5: memref<8x1xf32, #tpu.memory_space<vmem>>, %arg6: memref<1x8x16xf32, #tpu.memory_space<vmem>>) attributes {dimension_semantics = [#tpu.dimension_semantics<parallel>], iteration_bounds = array<i64: 2>, scalar_prefetch = 0 : i64, scratch_operands = 0 : i64, tpu.core_type = #tpu.core_type<tc>, window_params = [{transform_indices = @transform_0, window_bounds = array<i64: 1, 6, 64>}, {pipeline_mode = #tpu.pipeline_mode<synchronous>, transform_indices = @transform_1, window_bounds = array<i64: 8, 6>}, {pipeline_mode = #tpu.pipeline_mode<synchronous>, transform_indices = @transform_2, window_bounds = array<i64: 8, 1>}, {pipeline_mode = #tpu.pipeline_mode<synchronous>, transform_indices = @transform_3, window_bounds = array<i64: 8, 8>}, {pipeline_mode = #tpu.pipeline_mode<synchronous>, transform_indices = @transform_4, window_bounds = array<i64: 8, 1>}, {transform_indices = @transform_5, window_bounds = array<i64: 1, 8, 16>}]} {
    %c0 = arith.constant 0 : index
    %c0_0 = arith.constant 0 : index
    %c0_1 = arith.constant 0 : index
    %0 = vector.load %arg1[%c0, %c0_0, %c0_1] : memref<1x6x64xf32, #tpu.memory_space<vmem>>, vector<1x6x64xf32>
    %1 = vector.shape_cast %0 : vector<1x6x64xf32> to vector<6x64xf32>
    %c0_2 = arith.constant 0 : index
    %c0_3 = arith.constant 0 : index
    %2 = vector.load %arg2[%c0_2, %c0_3] : memref<8x6xf32, #tpu.memory_space<vmem>>, vector<8x6xf32>
    %c0_4 = arith.constant 0 : index
    %c0_5 = arith.constant 0 : index
    %3 = vector.load %arg3[%c0_4, %c0_5] : memref<8x1xf32, #tpu.memory_space<vmem>>, vector<8x1xf32>
    %c0_6 = arith.constant 0 : index
    %c0_7 = arith.constant 0 : index
    %4 = vector.load %arg4[%c0_6, %c0_7] : memref<8x8xf32, #tpu.memory_space<vmem>>, vector<8x8xf32>
    %c0_8 = arith.constant 0 : index
    %c0_9 = arith.constant 0 : index
    %5 = vector.load %arg5[%c0_8, %c0_9] : memref<8x1xf32, #tpu.memory_space<vmem>>, vector<8x1xf32>
    %cst = arith.constant dense<0.000000e+00> : vector<8x64xf32>
    %6 = tpu.matmul %2, %1, %cst {dimension_numbers = #tpu.dot_dimension_numbers<[1], [0], [0], [1], [0, 0, 1, 1], [], []>} : vector<8x6xf32>, vector<6x64xf32>, vector<8x64xf32> -> vector<8x64xf32>
    %7 = vector.broadcast %3 : vector<8x1xf32> to vector<8x64xf32>
    %8 = arith.addf %6, %7 : vector<8x64xf32>
    %cst_10 = arith.constant 0.000000e+00 : f32
    %9 = vector.broadcast %cst_10 : f32 to vector<8x64xf32>
    %10 = arith.cmpf oge, %8, %9 : vector<8x64xf32>
    %cst_11 = arith.constant 2.000000e-01 : f32
    %11 = vector.broadcast %cst_11 : f32 to vector<8x64xf32>
    %12 = arith.mulf %11, %8 : vector<8x64xf32>
    %13 = arith.select %10, %8, %12 : vector<8x64xi1>, vector<8x64xf32>
    %cst_12 = arith.constant dense<0.000000e+00> : vector<8x64xf32>
    %14 = tpu.matmul %4, %13, %cst_12 {dimension_numbers = #tpu.dot_dimension_numbers<[1], [0], [0], [1], [0, 0, 1, 1], [], []>} : vector<8x8xf32>, vector<8x64xf32>, vector<8x64xf32> -> vector<8x64xf32>
    %15 = vector.broadcast %5 : vector<8x1xf32> to vector<8x64xf32>
    %16 = arith.addf %14, %15 : vector<8x64xf32>
    %cst_13 = arith.constant 0.000000e+00 : f32
    %17 = vector.broadcast %cst_13 : f32 to vector<8x64xf32>
    %18 = arith.cmpf oge, %16, %17 : vector<8x64xf32>
    %cst_14 = arith.constant 2.000000e-01 : f32
    %19 = vector.broadcast %cst_14 : f32 to vector<8x64xf32>
    %20 = arith.mulf %19, %16 : vector<8x64xf32>
    %21 = arith.select %18, %16, %20 : vector<8x64xi1>, vector<8x64xf32>
    %22 = vector.extract_strided_slice %21 {offsets = [0, 0], sizes = [8, 16], strides = [1, 1]} : vector<8x64xf32> to vector<8x16xf32>
    %23 = vector.extract_strided_slice %21 {offsets = [0, 16], sizes = [8, 16], strides = [1, 1]} : vector<8x64xf32> to vector<8x16xf32>
    %24 = arith.maximumf %22, %23 : vector<8x16xf32>
    %25 = vector.extract_strided_slice %21 {offsets = [0, 32], sizes = [8, 16], strides = [1, 1]} : vector<8x64xf32> to vector<8x16xf32>
    %26 = arith.maximumf %24, %25 : vector<8x16xf32>
    %27 = vector.extract_strided_slice %21 {offsets = [0, 48], sizes = [8, 16], strides = [1, 1]} : vector<8x64xf32> to vector<8x16xf32>
    %28 = arith.maximumf %26, %27 : vector<8x16xf32>
    %c0_15 = arith.constant 0 : index
    %c0_16 = arith.constant 0 : index
    %c0_17 = arith.constant 0 : index
    %29 = vector.load %arg6[%c0_15, %c0_16, %c0_17] : memref<1x8x16xf32, #tpu.memory_space<vmem>>, vector<1x8x16xf32>
    %30 = vector.shape_cast %29 : vector<1x8x16xf32> to vector<8x16xf32>
    %31 = vector.shape_cast %28 : vector<8x16xf32> to vector<1x8x16xf32>
    tpu.vector_store %arg6[%c0_15, %c0_16, %c0_17], %31 {strides = array<i32>} : memref<1x8x16xf32, #tpu.memory_space<vmem>>, vector<1x8x16xf32>,
    return
  }
  func.func @transform_0(%arg0: i32) -> (i32, i32, i32) {
    %c0_i32 = arith.constant 0 : i32
    %c0_i32_0 = arith.constant 0 : i32
    %c0_i32_1 = arith.constant 0 : i32
    return %arg0, %c0_i32, %c0_i32_0 : i32, i32, i32
  }
  func.func @transform_1(%arg0: i32) -> (i32, i32) {
    %c0_i32 = arith.constant 0 : i32
    %c0_i32_0 = arith.constant 0 : i32
    %c0_i32_1 = arith.constant 0 : i32
    return %c0_i32, %c0_i32_0 : i32, i32
  }
  func.func @transform_2(%arg0: i32) -> (i32, i32) {
    %c0_i32 = arith.constant 0 : i32
    %c0_i32_0 = arith.constant 0 : i32
    %c0_i32_1 = arith.constant 0 : i32
    return %c0_i32, %c0_i32_0 : i32, i32
  }
  func.func @transform_3(%arg0: i32) -> (i32, i32) {
    %c0_i32 = arith.constant 0 : i32
    %c0_i32_0 = arith.constant 0 : i32
    %c0_i32_1 = arith.constant 0 : i32
    return %c0_i32, %c0_i32_0 : i32, i32
  }
  func.func @transform_4(%arg0: i32) -> (i32, i32) {
    %c0_i32 = arith.constant 0 : i32
    %c0_i32_0 = arith.constant 0 : i32
    %c0_i32_1 = arith.constant 0 : i32
    return %c0_i32, %c0_i32_0 : i32, i32
  }
  func.func @transform_5(%arg0: i32) -> (i32, i32, i32) {
    %c0_i32 = arith.constant 0 : i32
    %c0_i32_0 = arith.constant 0 : i32
    %c0_i32_1 = arith.constant 0 : i32
    return %arg0, %c0_i32, %c0_i32_0 : i32, i32, i32
  }
}

module attributes {stable_mosaic.version = 11 : i64} {
  func.func @_stage1_kernel(%arg0: i32, %arg1: memref<1x8x16xf32, #tpu.memory_space<vmem>>, %arg2: memref<1x16x64xf32, #tpu.memory_space<vmem>>, %arg3: memref<8x16xf32, #tpu.memory_space<vmem>>, %arg4: memref<8x1xf32, #tpu.memory_space<vmem>>, %arg5: memref<8x8xf32, #tpu.memory_space<vmem>>, %arg6: memref<8x1xf32, #tpu.memory_space<vmem>>, %arg7: memref<16x16xf32, #tpu.memory_space<vmem>>, %arg8: memref<16x16xf32, #tpu.memory_space<vmem>>, %arg9: memref<16x16xf32, #tpu.memory_space<vmem>>, %arg10: memref<16x1xf32, #tpu.memory_space<vmem>>, %arg11: memref<16x1xf32, #tpu.memory_space<vmem>>, %arg12: memref<32x16xf32, #tpu.memory_space<vmem>>, %arg13: memref<16x32xf32, #tpu.memory_space<vmem>>, %arg14: memref<16x1xf32, #tpu.memory_space<vmem>>, %arg15: memref<16x1xf32, #tpu.memory_space<vmem>>, %arg16: memref<16x16xf32, #tpu.memory_space<vmem>>, %arg17: memref<16x16xf32, #tpu.memory_space<vmem>>, %arg18: memref<1x16x16xf32, #tpu.memory_space<vmem>>, %arg19: memref<1x1x16xf32, #tpu.memory_space<vmem>>, %arg20: memref<16x16xf32, #tpu.memory_space<vmem>>) attributes {dimension_semantics = [#tpu.dimension_semantics<parallel>], iteration_bounds = array<i64: 2>, scalar_prefetch = 0 : i64, scratch_operands = 1 : i64, tpu.core_type = #tpu.core_type<tc>, window_params = [{transform_indices = @transform_0, window_bounds = array<i64: 1, 8, 16>}, {transform_indices = @transform_1, window_bounds = array<i64: 1, 16, 64>}, {pipeline_mode = #tpu.pipeline_mode<synchronous>, transform_indices = @transform_2, window_bounds = array<i64: 8, 16>}, {pipeline_mode = #tpu.pipeline_mode<synchronous>, transform_indices = @transform_3, window_bounds = array<i64: 8, 1>}, {pipeline_mode = #tpu.pipeline_mode<synchronous>, transform_indices = @transform_4, window_bounds = array<i64: 8, 8>}, {pipeline_mode = #tpu.pipeline_mode<synchronous>, transform_indices = @transform_5, window_bounds = array<i64: 8, 1>}, {pipeline_mode = #tpu.pipeline_mode<synchronous>, transform_indices = @transform_6, window_bounds = array<i64: 16, 16>}, {pipeline_mode = #tpu.pipeline_mode<synchronous>, transform_indices = @transform_7, window_bounds = array<i64: 16, 16>}, {pipeline_mode = #tpu.pipeline_mode<synchronous>, transform_indices = @transform_8, window_bounds = array<i64: 16, 16>}, {pipeline_mode = #tpu.pipeline_mode<synchronous>, transform_indices = @transform_9, window_bounds = array<i64: 16, 1>}, {pipeline_mode = #tpu.pipeline_mode<synchronous>, transform_indices = @transform_10, window_bounds = array<i64: 16, 1>}, {pipeline_mode = #tpu.pipeline_mode<synchronous>, transform_indices = @transform_11, window_bounds = array<i64: 32, 16>}, {pipeline_mode = #tpu.pipeline_mode<synchronous>, transform_indices = @transform_12, window_bounds = array<i64: 16, 32>}, {pipeline_mode = #tpu.pipeline_mode<synchronous>, transform_indices = @transform_13, window_bounds = array<i64: 16, 1>}, {pipeline_mode = #tpu.pipeline_mode<synchronous>, transform_indices = @transform_14, window_bounds = array<i64: 16, 1>}, {pipeline_mode = #tpu.pipeline_mode<synchronous>, transform_indices = @transform_15, window_bounds = array<i64: 16, 16>}, {pipeline_mode = #tpu.pipeline_mode<synchronous>, transform_indices = @transform_16, window_bounds = array<i64: 16, 16>}, {transform_indices = @transform_17, window_bounds = array<i64: 1, 16, 16>}, {transform_indices = @transform_18, window_bounds = array<i64: 1, 1, 16>}]} {
    %c0 = arith.constant 0 : index
    %c0_0 = arith.constant 0 : index
    %c0_1 = arith.constant 0 : index
    %0 = vector.load %arg2[%c0, %c0_0, %c0_1] : memref<1x16x64xf32, #tpu.memory_space<vmem>>, vector<1x16x64xf32>
    %1 = vector.shape_cast %0 : vector<1x16x64xf32> to vector<16x64xf32>
    %c0_2 = arith.constant 0 : index
    %c0_3 = arith.constant 0 : index
    %2 = vector.load %arg3[%c0_2, %c0_3] : memref<8x16xf32, #tpu.memory_space<vmem>>, vector<8x16xf32>
    %c0_4 = arith.constant 0 : index
    %c0_5 = arith.constant 0 : index
    %3 = vector.load %arg4[%c0_4, %c0_5] : memref<8x1xf32, #tpu.memory_space<vmem>>, vector<8x1xf32>
    %c0_6 = arith.constant 0 : index
    %c0_7 = arith.constant 0 : index
    %4 = vector.load %arg5[%c0_6, %c0_7] : memref<8x8xf32, #tpu.memory_space<vmem>>, vector<8x8xf32>
    %c0_8 = arith.constant 0 : index
    %c0_9 = arith.constant 0 : index
    %5 = vector.load %arg6[%c0_8, %c0_9] : memref<8x1xf32, #tpu.memory_space<vmem>>, vector<8x1xf32>
    %cst = arith.constant dense<0.000000e+00> : vector<8x64xf32>
    %6 = tpu.matmul %2, %1, %cst {dimension_numbers = #tpu.dot_dimension_numbers<[1], [0], [0], [1], [0, 0, 1, 1], [], []>} : vector<8x16xf32>, vector<16x64xf32>, vector<8x64xf32> -> vector<8x64xf32>
    %7 = vector.broadcast %3 : vector<8x1xf32> to vector<8x64xf32>
    %8 = arith.addf %6, %7 : vector<8x64xf32>
    %cst_10 = arith.constant 0.000000e+00 : f32
    %9 = vector.broadcast %cst_10 : f32 to vector<8x64xf32>
    %10 = arith.cmpf oge, %8, %9 : vector<8x64xf32>
    %cst_11 = arith.constant 2.000000e-01 : f32
    %11 = vector.broadcast %cst_11 : f32 to vector<8x64xf32>
    %12 = arith.mulf %11, %8 : vector<8x64xf32>
    %13 = arith.select %10, %8, %12 : vector<8x64xi1>, vector<8x64xf32>
    %cst_12 = arith.constant dense<0.000000e+00> : vector<8x64xf32>
    %14 = tpu.matmul %4, %13, %cst_12 {dimension_numbers = #tpu.dot_dimension_numbers<[1], [0], [0], [1], [0, 0, 1, 1], [], []>} : vector<8x8xf32>, vector<8x64xf32>, vector<8x64xf32> -> vector<8x64xf32>
    %15 = vector.broadcast %5 : vector<8x1xf32> to vector<8x64xf32>
    %16 = arith.addf %14, %15 : vector<8x64xf32>
    %cst_13 = arith.constant 0.000000e+00 : f32
    %17 = vector.broadcast %cst_13 : f32 to vector<8x64xf32>
    %18 = arith.cmpf oge, %16, %17 : vector<8x64xf32>
    %cst_14 = arith.constant 2.000000e-01 : f32
    %19 = vector.broadcast %cst_14 : f32 to vector<8x64xf32>
    %20 = arith.mulf %19, %16 : vector<8x64xf32>
    %21 = arith.select %18, %16, %20 : vector<8x64xi1>, vector<8x64xf32>
    %22 = vector.extract_strided_slice %21 {offsets = [0, 0], sizes = [8, 16], strides = [1, 1]} : vector<8x64xf32> to vector<8x16xf32>
    %23 = vector.extract_strided_slice %21 {offsets = [0, 16], sizes = [8, 16], strides = [1, 1]} : vector<8x64xf32> to vector<8x16xf32>
    %24 = arith.maximumf %22, %23 : vector<8x16xf32>
    %25 = vector.extract_strided_slice %21 {offsets = [0, 32], sizes = [8, 16], strides = [1, 1]} : vector<8x64xf32> to vector<8x16xf32>
    %26 = arith.maximumf %24, %25 : vector<8x16xf32>
    %27 = vector.extract_strided_slice %21 {offsets = [0, 48], sizes = [8, 16], strides = [1, 1]} : vector<8x64xf32> to vector<8x16xf32>
    %28 = arith.maximumf %26, %27 : vector<8x16xf32>
    %c0_15 = arith.constant 0 : index
    %c0_16 = arith.constant 0 : index
    %c0_17 = arith.constant 0 : index
    %29 = vector.load %arg1[%c0_15, %c0_16, %c0_17] : memref<1x8x16xf32, #tpu.memory_space<vmem>>, vector<1x8x16xf32>
    %30 = vector.shape_cast %29 : vector<1x8x16xf32> to vector<8x16xf32>
    %31 = tpu.concatenate %30, %28 in 0 : vector<8x16xf32>, vector<8x16xf32> -> vector<16x16xf32>
    %c0_18 = arith.constant 0 : index
    %c0_19 = arith.constant 0 : index
    %32 = vector.load %arg7[%c0_18, %c0_19] : memref<16x16xf32, #tpu.memory_space<vmem>>, vector<16x16xf32>
    %c0_20 = arith.constant 0 : index
    %c0_21 = arith.constant 0 : index
    %33 = vector.load %arg8[%c0_20, %c0_21] : memref<16x16xf32, #tpu.memory_space<vmem>>, vector<16x16xf32>
    %c0_22 = arith.constant 0 : index
    %c0_23 = arith.constant 0 : index
    %34 = vector.load %arg9[%c0_22, %c0_23] : memref<16x16xf32, #tpu.memory_space<vmem>>, vector<16x16xf32>
    %c0_24 = arith.constant 0 : index
    %c0_25 = arith.constant 0 : index
    %35 = vector.load %arg10[%c0_24, %c0_25] : memref<16x1xf32, #tpu.memory_space<vmem>>, vector<16x1xf32>
    %c0_26 = arith.constant 0 : index
    %c0_27 = arith.constant 0 : index
    %36 = vector.load %arg11[%c0_26, %c0_27] : memref<16x1xf32, #tpu.memory_space<vmem>>, vector<16x1xf32>
    %c0_28 = arith.constant 0 : index
    %c0_29 = arith.constant 0 : index
    %37 = vector.load %arg12[%c0_28, %c0_29] : memref<32x16xf32, #tpu.memory_space<vmem>>, vector<32x16xf32>
    %c0_30 = arith.constant 0 : index
    %c0_31 = arith.constant 0 : index
    %38 = vector.load %arg13[%c0_30, %c0_31] : memref<16x32xf32, #tpu.memory_space<vmem>>, vector<16x32xf32>
    %c0_32 = arith.constant 0 : index
    %c0_33 = arith.constant 0 : index
    %39 = vector.load %arg14[%c0_32, %c0_33] : memref<16x1xf32, #tpu.memory_space<vmem>>, vector<16x1xf32>
    %c0_34 = arith.constant 0 : index
    %c0_35 = arith.constant 0 : index
    %40 = vector.load %arg15[%c0_34, %c0_35] : memref<16x1xf32, #tpu.memory_space<vmem>>, vector<16x1xf32>
    %cst_36 = arith.constant dense<0.000000e+00> : vector<16x16xf32>
    %41 = tpu.matmul %32, %31, %cst_36 {dimension_numbers = #tpu.dot_dimension_numbers<[1], [0], [0], [1], [0, 0, 1, 1], [], []>} : vector<16x16xf32>, vector<16x16xf32>, vector<16x16xf32> -> vector<16x16xf32>
    %cst_37 = arith.constant dense<0.000000e+00> : vector<16x16xf32>
    %42 = tpu.matmul %33, %31, %cst_37 {dimension_numbers = #tpu.dot_dimension_numbers<[1], [0], [0], [1], [0, 0, 1, 1], [], []>} : vector<16x16xf32>, vector<16x16xf32>, vector<16x16xf32> -> vector<16x16xf32>
    %cst_38 = arith.constant dense<0.000000e+00> : vector<16x16xf32>
    %43 = tpu.matmul %34, %31, %cst_38 {dimension_numbers = #tpu.dot_dimension_numbers<[1], [0], [0], [1], [0, 0, 1, 1], [], []>} : vector<16x16xf32>, vector<16x16xf32>, vector<16x16xf32> -> vector<16x16xf32>
    %44 = vector.extract_strided_slice %41 {offsets = [0, 0], sizes = [8, 16], strides = [1, 1]} : vector<16x16xf32> to vector<8x16xf32>
    %45 = vector.extract_strided_slice %42 {offsets = [0, 0], sizes = [8, 16], strides = [1, 1]} : vector<16x16xf32> to vector<8x16xf32>
    %46 = vector.extract_strided_slice %43 {offsets = [0, 0], sizes = [8, 16], strides = [1, 1]} : vector<16x16xf32> to vector<8x16xf32>
    %cst_39 = arith.constant dense<0.000000e+00> : vector<16x16xf32>
    %47 = tpu.matmul %44, %45, %cst_39 {dimension_numbers = #tpu.dot_dimension_numbers<[0], [0], [1], [1], [0, 1, 1, 1], [], []>} : vector<8x16xf32>, vector<8x16xf32>, vector<16x16xf32> -> vector<16x16xf32>
    %cst_40 = arith.constant dense<0xFF800000> : vector<16xf32>
    %48 = vector.multi_reduction <maximumf>, %47, %cst_40 [1] : vector<16x16xf32> to vector<16xf32>
    %49 = vector.shape_cast %48 : vector<16xf32> to vector<16x1xf32>
    %50 = vector.broadcast %49 : vector<16x1xf32> to vector<16x16xf32>
    %51 = arith.subf %47, %50 : vector<16x16xf32>
    %52 = math.exp %51 : vector<16x16xf32>
    %cst_41 = arith.constant dense<0.000000e+00> : vector<16xf32>
    %53 = vector.multi_reduction <add>, %52, %cst_41 [1] : vector<16x16xf32> to vector<16xf32>
    %54 = vector.shape_cast %53 : vector<16xf32> to vector<16x1xf32>
    %55 = tpu.reciprocal %54 {approx = true} : vector<16x1xf32> -> vector<16x1xf32>
    %56 = vector.broadcast %55 : vector<16x1xf32> to vector<16x16xf32>
    %57 = arith.mulf %52, %56 : vector<16x16xf32>
    %cst_42 = arith.constant dense<0.000000e+00> : vector<8x16xf32>
    %58 = tpu.matmul %46, %57, %cst_42 {dimension_numbers = #tpu.dot_dimension_numbers<[1], [1], [0], [0], [0, 0, 1, 0], [], []>} : vector<8x16xf32>, vector<16x16xf32>, vector<8x16xf32> -> vector<8x16xf32>
    %c0_43 = arith.constant 0 : index
    %c0_44 = arith.constant 0 : index
    %59 = vector.load %arg20[%c0_43, %c0_44] : memref<16x16xf32, #tpu.memory_space<vmem>>, vector<8x16xf32>
    tpu.vector_store %arg20[%c0_43, %c0_44], %58 {strides = array<i32>} : memref<16x16xf32, #tpu.memory_space<vmem>>, vector<8x16xf32>,
    %60 = vector.extract_strided_slice %41 {offsets = [8, 0], sizes = [8, 16], strides = [1, 1]} : vector<16x16xf32> to vector<8x16xf32>
    %61 = vector.extract_strided_slice %42 {offsets = [8, 0], sizes = [8, 16], strides = [1, 1]} : vector<16x16xf32> to vector<8x16xf32>
    %62 = vector.extract_strided_slice %43 {offsets = [8, 0], sizes = [8, 16], strides = [1, 1]} : vector<16x16xf32> to vector<8x16xf32>
    %cst_45 = arith.constant dense<0.000000e+00> : vector<16x16xf32>
    %63 = tpu.matmul %60, %61, %cst_45 {dimension_numbers = #tpu.dot_dimension_numbers<[0], [0], [1], [1], [0, 1, 1, 1], [], []>} : vector<8x16xf32>, vector<8x16xf32>, vector<16x16xf32> -> vector<16x16xf32>
    %cst_46 = arith.constant dense<0xFF800000> : vector<16xf32>
    %64 = vector.multi_reduction <maximumf>, %63, %cst_46 [1] : vector<16x16xf32> to vector<16xf32>
    %65 = vector.shape_cast %64 : vector<16xf32> to vector<16x1xf32>
    %66 = vector.broadcast %65 : vector<16x1xf32> to vector<16x16xf32>
    %67 = arith.subf %63, %66 : vector<16x16xf32>
    %68 = math.exp %67 : vector<16x16xf32>
    %cst_47 = arith.constant dense<0.000000e+00> : vector<16xf32>
    %69 = vector.multi_reduction <add>, %68, %cst_47 [1] : vector<16x16xf32> to vector<16xf32>
    %70 = vector.shape_cast %69 : vector<16xf32> to vector<16x1xf32>
    %71 = tpu.reciprocal %70 {approx = true} : vector<16x1xf32> -> vector<16x1xf32>
    %72 = vector.broadcast %71 : vector<16x1xf32> to vector<16x16xf32>
    %73 = arith.mulf %68, %72 : vector<16x16xf32>
    %cst_48 = arith.constant dense<0.000000e+00> : vector<8x16xf32>
    %74 = tpu.matmul %62, %73, %cst_48 {dimension_numbers = #tpu.dot_dimension_numbers<[1], [1], [0], [0], [0, 0, 1, 0], [], []>} : vector<8x16xf32>, vector<16x16xf32>, vector<8x16xf32> -> vector<8x16xf32>
    %c8 = arith.constant 8 : index
    %c0_49 = arith.constant 0 : index
    %75 = vector.load %arg20[%c8, %c0_49] : memref<16x16xf32, #tpu.memory_space<vmem>>, vector<8x16xf32>
    tpu.vector_store %arg20[%c8, %c0_49], %74 {strides = array<i32>} : memref<16x16xf32, #tpu.memory_space<vmem>>, vector<8x16xf32>,
    %c0_50 = arith.constant 0 : index
    %c0_51 = arith.constant 0 : index
    %76 = vector.load %arg20[%c0_50, %c0_51] : memref<16x16xf32, #tpu.memory_space<vmem>>, vector<16x16xf32>
    %77 = arith.addf %31, %76 : vector<16x16xf32>
    %78 = vector.broadcast %35 : vector<16x1xf32> to vector<16x16xf32>
    %79 = arith.mulf %77, %78 : vector<16x16xf32>
    %80 = vector.broadcast %36 : vector<16x1xf32> to vector<16x16xf32>
    %81 = arith.addf %79, %80 : vector<16x16xf32>
    %cst_52 = arith.constant dense<0.000000e+00> : vector<32x16xf32>
    %82 = tpu.matmul %37, %81, %cst_52 {dimension_numbers = #tpu.dot_dimension_numbers<[1], [0], [0], [1], [0, 0, 1, 1], [], []>} : vector<32x16xf32>, vector<16x16xf32>, vector<32x16xf32> -> vector<32x16xf32>
    %cst_53 = arith.constant 0.000000e+00 : f32
    %83 = vector.broadcast %cst_53 : f32 to vector<32x16xf32>
    %84 = arith.cmpf oge, %82, %83 : vector<32x16xf32>
    %cst_54 = arith.constant 2.000000e-01 : f32
    %85 = vector.broadcast %cst_54 : f32 to vector<32x16xf32>
    %86 = arith.mulf %85, %82 : vector<32x16xf32>
    %87 = arith.select %84, %82, %86 : vector<32x16xi1>, vector<32x16xf32>
    %cst_55 = arith.constant dense<0.000000e+00> : vector<16x16xf32>
    %88 = tpu.matmul %38, %87, %cst_55 {dimension_numbers = #tpu.dot_dimension_numbers<[1], [0], [0], [1], [0, 0, 1, 1], [], []>} : vector<16x32xf32>, vector<32x16xf32>, vector<16x16xf32> -> vector<16x16xf32>
    %89 = arith.addf %81, %88 : vector<16x16xf32>
    %90 = vector.broadcast %39 : vector<16x1xf32> to vector<16x16xf32>
    %91 = arith.mulf %89, %90 : vector<16x16xf32>
    %92 = vector.broadcast %40 : vector<16x1xf32> to vector<16x16xf32>
    %93 = arith.addf %91, %92 : vector<16x16xf32>
    %c0_56 = arith.constant 0 : index
    %c0_57 = arith.constant 0 : index
    %c0_58 = arith.constant 0 : index
    %94 = vector.load %arg18[%c0_56, %c0_57, %c0_58] : memref<1x16x16xf32, #tpu.memory_space<vmem>>, vector<1x16x16xf32>
    %95 = vector.shape_cast %94 : vector<1x16x16xf32> to vector<16x16xf32>
    %96 = vector.shape_cast %93 : vector<16x16xf32> to vector<1x16x16xf32>
    tpu.vector_store %arg18[%c0_56, %c0_57, %c0_58], %96 {strides = array<i32>} : memref<1x16x16xf32, #tpu.memory_space<vmem>>, vector<1x16x16xf32>,
    %c0_59 = arith.constant 0 : index
    %c0_60 = arith.constant 0 : index
    %97 = vector.load %arg16[%c0_59, %c0_60] : memref<16x16xf32, #tpu.memory_space<vmem>>, vector<16x16xf32>
    %c0_61 = arith.constant 0 : index
    %c0_62 = arith.constant 0 : index
    %98 = vector.load %arg17[%c0_61, %c0_62] : memref<16x16xf32, #tpu.memory_space<vmem>>, vector<16x16xf32>
    %cst_63 = arith.constant dense<0.000000e+00> : vector<16x16xf32>
    %99 = tpu.matmul %97, %93, %cst_63 {dimension_numbers = #tpu.dot_dimension_numbers<[1], [0], [0], [1], [0, 0, 1, 1], [], []>} : vector<16x16xf32>, vector<16x16xf32>, vector<16x16xf32> -> vector<16x16xf32>
    %cst_64 = arith.constant dense<0.000000e+00> : vector<16x16xf32>
    %100 = tpu.matmul %98, %93, %cst_64 {dimension_numbers = #tpu.dot_dimension_numbers<[1], [0], [0], [1], [0, 0, 1, 1], [], []>} : vector<16x16xf32>, vector<16x16xf32>, vector<16x16xf32> -> vector<16x16xf32>
    %cst_65 = arith.constant dense<0.000000e+00> : vector<16x16xf32>
    %101 = tpu.matmul %99, %100, %cst_65 {dimension_numbers = #tpu.dot_dimension_numbers<[0], [0], [1], [1], [0, 1, 1, 1], [], []>} : vector<16x16xf32>, vector<16x16xf32>, vector<16x16xf32> -> vector<16x16xf32>
    %cst_66 = arith.constant dense<0xFF800000> : vector<16xf32>
    %102 = vector.multi_reduction <maximumf>, %101, %cst_66 [1] : vector<16x16xf32> to vector<16xf32>
    %103 = vector.shape_cast %102 : vector<16xf32> to vector<16x1xf32>
    %104 = vector.broadcast %103 : vector<16x1xf32> to vector<16x16xf32>
    %105 = arith.subf %101, %104 : vector<16x16xf32>
    %106 = math.exp %105 : vector<16x16xf32>
    %cst_67 = arith.constant dense<0.000000e+00> : vector<16xf32>
    %107 = vector.multi_reduction <add>, %106, %cst_67 [1] : vector<16x16xf32> to vector<16xf32>
    %108 = vector.shape_cast %107 : vector<16xf32> to vector<16x1xf32>
    %109 = tpu.reciprocal %108 {approx = true} : vector<16x1xf32> -> vector<16x1xf32>
    %110 = vector.broadcast %109 : vector<16x1xf32> to vector<16x16xf32>
    %111 = arith.mulf %106, %110 : vector<16x16xf32>
    %cst_68 = arith.constant dense<0.000000e+00> : vector<16xf32>
    %112 = vector.multi_reduction <add>, %111, %cst_68 [0] : vector<16x16xf32> to vector<16xf32>
    %113 = vector.shape_cast %112 : vector<16xf32> to vector<1x16xf32>
    %c0_69 = arith.constant 0 : index
    %c0_70 = arith.constant 0 : index
    %c0_71 = arith.constant 0 : index
    %114 = vector.load %arg19[%c0_69, %c0_70, %c0_71] : memref<1x1x16xf32, #tpu.memory_space<vmem>>, vector<1x1x16xf32>
    %115 = vector.shape_cast %114 : vector<1x1x16xf32> to vector<1x16xf32>
    %116 = vector.shape_cast %113 : vector<1x16xf32> to vector<1x1x16xf32>
    tpu.vector_store %arg19[%c0_69, %c0_70, %c0_71], %116 {strides = array<i32>} : memref<1x1x16xf32, #tpu.memory_space<vmem>>, vector<1x1x16xf32>,
    return
  }
  func.func @transform_0(%arg0: i32) -> (i32, i32, i32) {
    %c0_i32 = arith.constant 0 : i32
    %c0_i32_0 = arith.constant 0 : i32
    %c0_i32_1 = arith.constant 0 : i32
    return %arg0, %c0_i32, %c0_i32_0 : i32, i32, i32
  }
  func.func @transform_1(%arg0: i32) -> (i32, i32, i32) {
    %c0_i32 = arith.constant 0 : i32
    %c0_i32_0 = arith.constant 0 : i32
    %c0_i32_1 = arith.constant 0 : i32
    return %arg0, %c0_i32, %c0_i32_0 : i32, i32, i32
  }
  func.func @transform_2(%arg0: i32) -> (i32, i32) {
    %c0_i32 = arith.constant 0 : i32
    %c0_i32_0 = arith.constant 0 : i32
    %c0_i32_1 = arith.constant 0 : i32
    return %c0_i32, %c0_i32_0 : i32, i32
  }
  func.func @transform_3(%arg0: i32) -> (i32, i32) {
    %c0_i32 = arith.constant 0 : i32
    %c0_i32_0 = arith.constant 0 : i32
    %c0_i32_1 = arith.constant 0 : i32
    return %c0_i32, %c0_i32_0 : i32, i32
  }
  func.func @transform_4(%arg0: i32) -> (i32, i32) {
    %c0_i32 = arith.constant 0 : i32
    %c0_i32_0 = arith.constant 0 : i32
    %c0_i32_1 = arith.constant 0 : i32
    return %c0_i32, %c0_i32_0 : i32, i32
  }
  func.func @transform_5(%arg0: i32) -> (i32, i32) {
    %c0_i32 = arith.constant 0 : i32
    %c0_i32_0 = arith.constant 0 : i32
    %c0_i32_1 = arith.constant 0 : i32
    return %c0_i32, %c0_i32_0 : i32, i32
  }
  func.func @transform_6(%arg0: i32) -> (i32, i32) {
    %c0_i32 = arith.constant 0 : i32
    %c0_i32_0 = arith.constant 0 : i32
    %c0_i32_1 = arith.constant 0 : i32
    return %c0_i32, %c0_i32_0 : i32, i32
  }
  func.func @transform_7(%arg0: i32) -> (i32, i32) {
    %c0_i32 = arith.constant 0 : i32
    %c0_i32_0 = arith.constant 0 : i32
    %c0_i32_1 = arith.constant 0 : i32
    return %c0_i32, %c0_i32_0 : i32, i32
  }
  func.func @transform_8(%arg0: i32) -> (i32, i32) {
    %c0_i32 = arith.constant 0 : i32
    %c0_i32_0 = arith.constant 0 : i32
    %c0_i32_1 = arith.constant 0 : i32
    return %c0_i32, %c0_i32_0 : i32, i32
  }
  func.func @transform_9(%arg0: i32) -> (i32, i32) {
    %c0_i32 = arith.constant 0 : i32
    %c0_i32_0 = arith.constant 0 : i32
    %c0_i32_1 = arith.constant 0 : i32
    return %c0_i32, %c0_i32_0 : i32, i32
  }
  func.func @transform_10(%arg0: i32) -> (i32, i32) {
    %c0_i32 = arith.constant 0 : i32
    %c0_i32_0 = arith.constant 0 : i32
    %c0_i32_1 = arith.constant 0 : i32
    return %c0_i32, %c0_i32_0 : i32, i32
  }
  func.func @transform_11(%arg0: i32) -> (i32, i32) {
    %c0_i32 = arith.constant 0 : i32
    %c0_i32_0 = arith.constant 0 : i32
    %c0_i32_1 = arith.constant 0 : i32
    return %c0_i32, %c0_i32_0 : i32, i32
  }
  func.func @transform_12(%arg0: i32) -> (i32, i32) {
    %c0_i32 = arith.constant 0 : i32
    %c0_i32_0 = arith.constant 0 : i32
    %c0_i32_1 = arith.constant 0 : i32
    return %c0_i32, %c0_i32_0 : i32, i32
  }
  func.func @transform_13(%arg0: i32) -> (i32, i32) {
    %c0_i32 = arith.constant 0 : i32
    %c0_i32_0 = arith.constant 0 : i32
    %c0_i32_1 = arith.constant 0 : i32
    return %c0_i32, %c0_i32_0 : i32, i32
  }
  func.func @transform_14(%arg0: i32) -> (i32, i32) {
    %c0_i32 = arith.constant 0 : i32
    %c0_i32_0 = arith.constant 0 : i32
    %c0_i32_1 = arith.constant 0 : i32
    return %c0_i32, %c0_i32_0 : i32, i32
  }
  func.func @transform_15(%arg0: i32) -> (i32, i32) {
    %c0_i32 = arith.constant 0 : i32
    %c0_i32_0 = arith.constant 0 : i32
    %c0_i32_1 = arith.constant 0 : i32
    return %c0_i32, %c0_i32_0 : i32, i32
  }
  func.func @transform_16(%arg0: i32) -> (i32, i32) {
    %c0_i32 = arith.constant 0 : i32
    %c0_i32_0 = arith.constant 0 : i32
    %c0_i32_1 = arith.constant 0 : i32
    return %c0_i32, %c0_i32_0 : i32, i32
  }
  func.func @transform_17(%arg0: i32) -> (i32, i32, i32) {
    %c0_i32 = arith.constant 0 : i32
    %c0_i32_0 = arith.constant 0 : i32
    %c0_i32_1 = arith.constant 0 : i32
    return %arg0, %c0_i32, %c0_i32_0 : i32, i32, i32
  }
  func.func @transform_18(%arg0: i32) -> (i32, i32, i32) {
    %c0_i32 = arith.constant 0 : i32
    %c0_i32_0 = arith.constant 0 : i32
    %c0_i32_1 = arith.constant 0 : i32
    return %arg0, %c0_i32, %c0_i32_0 : i32, i32, i32
  }
}

module attributes {stable_mosaic.version = 11 : i64} {
  func.func @_stage2_kernel(%arg0: i32, %arg1: memref<1x16x16xf32, #tpu.memory_space<vmem>>, %arg2: memref<1x8x16xf32, #tpu.memory_space<vmem>>, %arg3: memref<16x16xf32, #tpu.memory_space<vmem>>, %arg4: memref<16x16xf32, #tpu.memory_space<vmem>>, %arg5: memref<16x16xf32, #tpu.memory_space<vmem>>, %arg6: memref<16x16xf32, #tpu.memory_space<vmem>>, %arg7: memref<16x16xf32, #tpu.memory_space<vmem>>, %arg8: memref<16x16xf32, #tpu.memory_space<vmem>>, %arg9: memref<16x1xf32, #tpu.memory_space<vmem>>, %arg10: memref<16x1xf32, #tpu.memory_space<vmem>>, %arg11: memref<32x16xf32, #tpu.memory_space<vmem>>, %arg12: memref<16x32xf32, #tpu.memory_space<vmem>>, %arg13: memref<16x1xf32, #tpu.memory_space<vmem>>, %arg14: memref<16x1xf32, #tpu.memory_space<vmem>>, %arg15: memref<16x16xf32, #tpu.memory_space<vmem>>, %arg16: memref<16x16xf32, #tpu.memory_space<vmem>>, %arg17: memref<1x16x8xf32, #tpu.memory_space<vmem>>, %arg18: memref<1x1x8xf32, #tpu.memory_space<vmem>>, %arg19: memref<16x8xf32, #tpu.memory_space<vmem>>) attributes {dimension_semantics = [#tpu.dimension_semantics<parallel>], iteration_bounds = array<i64: 2>, scalar_prefetch = 0 : i64, scratch_operands = 1 : i64, tpu.core_type = #tpu.core_type<tc>, window_params = [{transform_indices = @transform_0, window_bounds = array<i64: 1, 16, 16>}, {transform_indices = @transform_1, window_bounds = array<i64: 1, 8, 16>}, {pipeline_mode = #tpu.pipeline_mode<synchronous>, transform_indices = @transform_2, window_bounds = array<i64: 16, 16>}, {pipeline_mode = #tpu.pipeline_mode<synchronous>, transform_indices = @transform_3, window_bounds = array<i64: 16, 16>}, {pipeline_mode = #tpu.pipeline_mode<synchronous>, transform_indices = @transform_4, window_bounds = array<i64: 16, 16>}, {pipeline_mode = #tpu.pipeline_mode<synchronous>, transform_indices = @transform_5, window_bounds = array<i64: 16, 16>}, {pipeline_mode = #tpu.pipeline_mode<synchronous>, transform_indices = @transform_6, window_bounds = array<i64: 16, 16>}, {pipeline_mode = #tpu.pipeline_mode<synchronous>, transform_indices = @transform_7, window_bounds = array<i64: 16, 16>}, {pipeline_mode = #tpu.pipeline_mode<synchronous>, transform_indices = @transform_8, window_bounds = array<i64: 16, 1>}, {pipeline_mode = #tpu.pipeline_mode<synchronous>, transform_indices = @transform_9, window_bounds = array<i64: 16, 1>}, {pipeline_mode = #tpu.pipeline_mode<synchronous>, transform_indices = @transform_10, window_bounds = array<i64: 32, 16>}, {pipeline_mode = #tpu.pipeline_mode<synchronous>, transform_indices = @transform_11, window_bounds = array<i64: 16, 32>}, {pipeline_mode = #tpu.pipeline_mode<synchronous>, transform_indices = @transform_12, window_bounds = array<i64: 16, 1>}, {pipeline_mode = #tpu.pipeline_mode<synchronous>, transform_indices = @transform_13, window_bounds = array<i64: 16, 1>}, {pipeline_mode = #tpu.pipeline_mode<synchronous>, transform_indices = @transform_14, window_bounds = array<i64: 16, 16>}, {pipeline_mode = #tpu.pipeline_mode<synchronous>, transform_indices = @transform_15, window_bounds = array<i64: 16, 16>}, {transform_indices = @transform_16, window_bounds = array<i64: 1, 16, 8>}, {transform_indices = @transform_17, window_bounds = array<i64: 1, 1, 8>}]} {
    %c0 = arith.constant 0 : index
    %c0_0 = arith.constant 0 : index
    %c0_1 = arith.constant 0 : index
    %0 = vector.load %arg1[%c0, %c0_0, %c0_1] : memref<1x16x16xf32, #tpu.memory_space<vmem>>, vector<1x16x16xf32>
    %1 = vector.shape_cast %0 : vector<1x16x16xf32> to vector<16x16xf32>
    %c0_2 = arith.constant 0 : index
    %c0_3 = arith.constant 0 : index
    %c0_4 = arith.constant 0 : index
    %2 = vector.load %arg2[%c0_2, %c0_3, %c0_4] : memref<1x8x16xf32, #tpu.memory_space<vmem>>, vector<1x8x16xf32>
    %3 = vector.shape_cast %2 : vector<1x8x16xf32> to vector<8x16xf32>
    %c0_5 = arith.constant 0 : index
    %c0_6 = arith.constant 0 : index
    %4 = vector.load %arg3[%c0_5, %c0_6] : memref<16x16xf32, #tpu.memory_space<vmem>>, vector<16x16xf32>
    %c0_7 = arith.constant 0 : index
    %c0_8 = arith.constant 0 : index
    %5 = vector.load %arg4[%c0_7, %c0_8] : memref<16x16xf32, #tpu.memory_space<vmem>>, vector<16x16xf32>
    %c0_9 = arith.constant 0 : index
    %c0_10 = arith.constant 0 : index
    %6 = vector.load %arg5[%c0_9, %c0_10] : memref<16x16xf32, #tpu.memory_space<vmem>>, vector<16x16xf32>
    %cst = arith.constant dense<0.000000e+00> : vector<16x16xf32>
    %7 = tpu.matmul %4, %1, %cst {dimension_numbers = #tpu.dot_dimension_numbers<[1], [0], [0], [1], [0, 0, 1, 1], [], []>} : vector<16x16xf32>, vector<16x16xf32>, vector<16x16xf32> -> vector<16x16xf32>
    %cst_11 = arith.constant dense<0.000000e+00> : vector<16x16xf32>
    %8 = tpu.matmul %5, %1, %cst_11 {dimension_numbers = #tpu.dot_dimension_numbers<[1], [0], [0], [1], [0, 0, 1, 1], [], []>} : vector<16x16xf32>, vector<16x16xf32>, vector<16x16xf32> -> vector<16x16xf32>
    %cst_12 = arith.constant dense<0.000000e+00> : vector<16x16xf32>
    %9 = tpu.matmul %6, %1, %cst_12 {dimension_numbers = #tpu.dot_dimension_numbers<[1], [0], [0], [1], [0, 0, 1, 1], [], []>} : vector<16x16xf32>, vector<16x16xf32>, vector<16x16xf32> -> vector<16x16xf32>
    %cst_13 = arith.constant dense<0.000000e+00> : vector<16x8xf32>
    %10 = tpu.matmul %7, %3, %cst_13 {dimension_numbers = #tpu.dot_dimension_numbers<[1], [1], [0], [0], [0, 0, 1, 0], [], []>} : vector<16x16xf32>, vector<8x16xf32>, vector<16x8xf32> -> vector<16x8xf32>
    %cst_14 = arith.constant dense<0.000000e+00> : vector<8x16xf32>
    %11 = tpu.matmul %10, %8, %cst_14 {dimension_numbers = #tpu.dot_dimension_numbers<[0], [0], [1], [1], [0, 1, 1, 1], [], []>} : vector<16x8xf32>, vector<16x16xf32>, vector<8x16xf32> -> vector<8x16xf32>
    %cst_15 = arith.constant dense<0xFF800000> : vector<8xf32>
    %12 = vector.multi_reduction <maximumf>, %11, %cst_15 [1] : vector<8x16xf32> to vector<8xf32>
    %13 = vector.shape_cast %12 : vector<8xf32> to vector<8x1xf32>
    %14 = vector.broadcast %13 : vector<8x1xf32> to vector<8x16xf32>
    %15 = arith.subf %11, %14 : vector<8x16xf32>
    %16 = math.exp %15 : vector<8x16xf32>
    %cst_16 = arith.constant dense<0.000000e+00> : vector<8xf32>
    %17 = vector.multi_reduction <add>, %16, %cst_16 [1] : vector<8x16xf32> to vector<8xf32>
    %18 = vector.shape_cast %17 : vector<8xf32> to vector<8x1xf32>
    %19 = tpu.reciprocal %18 {approx = true} : vector<8x1xf32> -> vector<8x1xf32>
    %20 = vector.broadcast %19 : vector<8x1xf32> to vector<8x16xf32>
    %21 = arith.mulf %16, %20 : vector<8x16xf32>
    %cst_17 = arith.constant dense<0.000000e+00> : vector<16x8xf32>
    %22 = tpu.matmul %9, %21, %cst_17 {dimension_numbers = #tpu.dot_dimension_numbers<[1], [1], [0], [0], [0, 0, 1, 0], [], []>} : vector<16x16xf32>, vector<8x16xf32>, vector<16x8xf32> -> vector<16x8xf32>
    %c0_18 = arith.constant 0 : index
    %c0_19 = arith.constant 0 : index
    %23 = vector.load %arg6[%c0_18, %c0_19] : memref<16x16xf32, #tpu.memory_space<vmem>>, vector<16x16xf32>
    %c0_20 = arith.constant 0 : index
    %c0_21 = arith.constant 0 : index
    %24 = vector.load %arg7[%c0_20, %c0_21] : memref<16x16xf32, #tpu.memory_space<vmem>>, vector<16x16xf32>
    %c0_22 = arith.constant 0 : index
    %c0_23 = arith.constant 0 : index
    %25 = vector.load %arg8[%c0_22, %c0_23] : memref<16x16xf32, #tpu.memory_space<vmem>>, vector<16x16xf32>
    %c0_24 = arith.constant 0 : index
    %c0_25 = arith.constant 0 : index
    %26 = vector.load %arg9[%c0_24, %c0_25] : memref<16x1xf32, #tpu.memory_space<vmem>>, vector<16x1xf32>
    %c0_26 = arith.constant 0 : index
    %c0_27 = arith.constant 0 : index
    %27 = vector.load %arg10[%c0_26, %c0_27] : memref<16x1xf32, #tpu.memory_space<vmem>>, vector<16x1xf32>
    %c0_28 = arith.constant 0 : index
    %c0_29 = arith.constant 0 : index
    %28 = vector.load %arg11[%c0_28, %c0_29] : memref<32x16xf32, #tpu.memory_space<vmem>>, vector<32x16xf32>
    %c0_30 = arith.constant 0 : index
    %c0_31 = arith.constant 0 : index
    %29 = vector.load %arg12[%c0_30, %c0_31] : memref<16x32xf32, #tpu.memory_space<vmem>>, vector<16x32xf32>
    %c0_32 = arith.constant 0 : index
    %c0_33 = arith.constant 0 : index
    %30 = vector.load %arg13[%c0_32, %c0_33] : memref<16x1xf32, #tpu.memory_space<vmem>>, vector<16x1xf32>
    %c0_34 = arith.constant 0 : index
    %c0_35 = arith.constant 0 : index
    %31 = vector.load %arg14[%c0_34, %c0_35] : memref<16x1xf32, #tpu.memory_space<vmem>>, vector<16x1xf32>
    %cst_36 = arith.constant dense<0.000000e+00> : vector<16x8xf32>
    %32 = tpu.matmul %23, %22, %cst_36 {dimension_numbers = #tpu.dot_dimension_numbers<[1], [0], [0], [1], [0, 0, 1, 1], [], []>} : vector<16x16xf32>, vector<16x8xf32>, vector<16x8xf32> -> vector<16x8xf32>
    %cst_37 = arith.constant dense<0.000000e+00> : vector<16x8xf32>
    %33 = tpu.matmul %24, %22, %cst_37 {dimension_numbers = #tpu.dot_dimension_numbers<[1], [0], [0], [1], [0, 0, 1, 1], [], []>} : vector<16x16xf32>, vector<16x8xf32>, vector<16x8xf32> -> vector<16x8xf32>
    %cst_38 = arith.constant dense<0.000000e+00> : vector<16x8xf32>
    %34 = tpu.matmul %25, %22, %cst_38 {dimension_numbers = #tpu.dot_dimension_numbers<[1], [0], [0], [1], [0, 0, 1, 1], [], []>} : vector<16x16xf32>, vector<16x8xf32>, vector<16x8xf32> -> vector<16x8xf32>
    %35 = vector.extract_strided_slice %32 {offsets = [0, 0], sizes = [8, 8], strides = [1, 1]} : vector<16x8xf32> to vector<8x8xf32>
    %36 = vector.extract_strided_slice %33 {offsets = [0, 0], sizes = [8, 8], strides = [1, 1]} : vector<16x8xf32> to vector<8x8xf32>
    %37 = vector.extract_strided_slice %34 {offsets = [0, 0], sizes = [8, 8], strides = [1, 1]} : vector<16x8xf32> to vector<8x8xf32>
    %cst_39 = arith.constant dense<0.000000e+00> : vector<8x8xf32>
    %38 = tpu.matmul %35, %36, %cst_39 {dimension_numbers = #tpu.dot_dimension_numbers<[0], [0], [1], [1], [0, 1, 1, 1], [], []>} : vector<8x8xf32>, vector<8x8xf32>, vector<8x8xf32> -> vector<8x8xf32>
    %cst_40 = arith.constant dense<0xFF800000> : vector<8xf32>
    %39 = vector.multi_reduction <maximumf>, %38, %cst_40 [1] : vector<8x8xf32> to vector<8xf32>
    %40 = vector.shape_cast %39 : vector<8xf32> to vector<8x1xf32>
    %41 = vector.broadcast %40 : vector<8x1xf32> to vector<8x8xf32>
    %42 = arith.subf %38, %41 : vector<8x8xf32>
    %43 = math.exp %42 : vector<8x8xf32>
    %cst_41 = arith.constant dense<0.000000e+00> : vector<8xf32>
    %44 = vector.multi_reduction <add>, %43, %cst_41 [1] : vector<8x8xf32> to vector<8xf32>
    %45 = vector.shape_cast %44 : vector<8xf32> to vector<8x1xf32>
    %46 = tpu.reciprocal %45 {approx = true} : vector<8x1xf32> -> vector<8x1xf32>
    %47 = vector.broadcast %46 : vector<8x1xf32> to vector<8x8xf32>
    %48 = arith.mulf %43, %47 : vector<8x8xf32>
    %cst_42 = arith.constant dense<0.000000e+00> : vector<8x8xf32>
    %49 = tpu.matmul %37, %48, %cst_42 {dimension_numbers = #tpu.dot_dimension_numbers<[1], [1], [0], [0], [0, 0, 1, 0], [], []>} : vector<8x8xf32>, vector<8x8xf32>, vector<8x8xf32> -> vector<8x8xf32>
    %c0_43 = arith.constant 0 : index
    %c0_44 = arith.constant 0 : index
    %50 = vector.load %arg19[%c0_43, %c0_44] : memref<16x8xf32, #tpu.memory_space<vmem>>, vector<8x8xf32>
    tpu.vector_store %arg19[%c0_43, %c0_44], %49 {strides = array<i32>} : memref<16x8xf32, #tpu.memory_space<vmem>>, vector<8x8xf32>,
    %51 = vector.extract_strided_slice %32 {offsets = [8, 0], sizes = [8, 8], strides = [1, 1]} : vector<16x8xf32> to vector<8x8xf32>
    %52 = vector.extract_strided_slice %33 {offsets = [8, 0], sizes = [8, 8], strides = [1, 1]} : vector<16x8xf32> to vector<8x8xf32>
    %53 = vector.extract_strided_slice %34 {offsets = [8, 0], sizes = [8, 8], strides = [1, 1]} : vector<16x8xf32> to vector<8x8xf32>
    %cst_45 = arith.constant dense<0.000000e+00> : vector<8x8xf32>
    %54 = tpu.matmul %51, %52, %cst_45 {dimension_numbers = #tpu.dot_dimension_numbers<[0], [0], [1], [1], [0, 1, 1, 1], [], []>} : vector<8x8xf32>, vector<8x8xf32>, vector<8x8xf32> -> vector<8x8xf32>
    %cst_46 = arith.constant dense<0xFF800000> : vector<8xf32>
    %55 = vector.multi_reduction <maximumf>, %54, %cst_46 [1] : vector<8x8xf32> to vector<8xf32>
    %56 = vector.shape_cast %55 : vector<8xf32> to vector<8x1xf32>
    %57 = vector.broadcast %56 : vector<8x1xf32> to vector<8x8xf32>
    %58 = arith.subf %54, %57 : vector<8x8xf32>
    %59 = math.exp %58 : vector<8x8xf32>
    %cst_47 = arith.constant dense<0.000000e+00> : vector<8xf32>
    %60 = vector.multi_reduction <add>, %59, %cst_47 [1] : vector<8x8xf32> to vector<8xf32>
    %61 = vector.shape_cast %60 : vector<8xf32> to vector<8x1xf32>
    %62 = tpu.reciprocal %61 {approx = true} : vector<8x1xf32> -> vector<8x1xf32>
    %63 = vector.broadcast %62 : vector<8x1xf32> to vector<8x8xf32>
    %64 = arith.mulf %59, %63 : vector<8x8xf32>
    %cst_48 = arith.constant dense<0.000000e+00> : vector<8x8xf32>
    %65 = tpu.matmul %53, %64, %cst_48 {dimension_numbers = #tpu.dot_dimension_numbers<[1], [1], [0], [0], [0, 0, 1, 0], [], []>} : vector<8x8xf32>, vector<8x8xf32>, vector<8x8xf32> -> vector<8x8xf32>
    %c8 = arith.constant 8 : index
    %c0_49 = arith.constant 0 : index
    %66 = vector.load %arg19[%c8, %c0_49] : memref<16x8xf32, #tpu.memory_space<vmem>>, vector<8x8xf32>
    tpu.vector_store %arg19[%c8, %c0_49], %65 {strides = array<i32>} : memref<16x8xf32, #tpu.memory_space<vmem>>, vector<8x8xf32>,
    %c0_50 = arith.constant 0 : index
    %c0_51 = arith.constant 0 : index
    %67 = vector.load %arg19[%c0_50, %c0_51] : memref<16x8xf32, #tpu.memory_space<vmem>>, vector<16x8xf32>
    %68 = arith.addf %22, %67 : vector<16x8xf32>
    %69 = vector.broadcast %26 : vector<16x1xf32> to vector<16x8xf32>
    %70 = arith.mulf %68, %69 : vector<16x8xf32>
    %71 = vector.broadcast %27 : vector<16x1xf32> to vector<16x8xf32>
    %72 = arith.addf %70, %71 : vector<16x8xf32>
    %cst_52 = arith.constant dense<0.000000e+00> : vector<32x8xf32>
    %73 = tpu.matmul %28, %72, %cst_52 {dimension_numbers = #tpu.dot_dimension_numbers<[1], [0], [0], [1], [0, 0, 1, 1], [], []>} : vector<32x16xf32>, vector<16x8xf32>, vector<32x8xf32> -> vector<32x8xf32>
    %cst_53 = arith.constant 0.000000e+00 : f32
    %74 = vector.broadcast %cst_53 : f32 to vector<32x8xf32>
    %75 = arith.cmpf oge, %73, %74 : vector<32x8xf32>
    %cst_54 = arith.constant 2.000000e-01 : f32
    %76 = vector.broadcast %cst_54 : f32 to vector<32x8xf32>
    %77 = arith.mulf %76, %73 : vector<32x8xf32>
    %78 = arith.select %75, %73, %77 : vector<32x8xi1>, vector<32x8xf32>
    %cst_55 = arith.constant dense<0.000000e+00> : vector<16x8xf32>
    %79 = tpu.matmul %29, %78, %cst_55 {dimension_numbers = #tpu.dot_dimension_numbers<[1], [0], [0], [1], [0, 0, 1, 1], [], []>} : vector<16x32xf32>, vector<32x8xf32>, vector<16x8xf32> -> vector<16x8xf32>
    %80 = arith.addf %72, %79 : vector<16x8xf32>
    %81 = vector.broadcast %30 : vector<16x1xf32> to vector<16x8xf32>
    %82 = arith.mulf %80, %81 : vector<16x8xf32>
    %83 = vector.broadcast %31 : vector<16x1xf32> to vector<16x8xf32>
    %84 = arith.addf %82, %83 : vector<16x8xf32>
    %c0_56 = arith.constant 0 : index
    %c0_57 = arith.constant 0 : index
    %c0_58 = arith.constant 0 : index
    %85 = vector.load %arg17[%c0_56, %c0_57, %c0_58] : memref<1x16x8xf32, #tpu.memory_space<vmem>>, vector<1x16x8xf32>
    %86 = vector.shape_cast %85 : vector<1x16x8xf32> to vector<16x8xf32>
    %87 = vector.shape_cast %84 : vector<16x8xf32> to vector<1x16x8xf32>
    tpu.vector_store %arg17[%c0_56, %c0_57, %c0_58], %87 {strides = array<i32>} : memref<1x16x8xf32, #tpu.memory_space<vmem>>, vector<1x16x8xf32>,
    %c0_59 = arith.constant 0 : index
    %c0_60 = arith.constant 0 : index
    %88 = vector.load %arg15[%c0_59, %c0_60] : memref<16x16xf32, #tpu.memory_space<vmem>>, vector<16x16xf32>
    %c0_61 = arith.constant 0 : index
    %c0_62 = arith.constant 0 : index
    %89 = vector.load %arg16[%c0_61, %c0_62] : memref<16x16xf32, #tpu.memory_space<vmem>>, vector<16x16xf32>
    %cst_63 = arith.constant dense<0.000000e+00> : vector<16x8xf32>
    %90 = tpu.matmul %88, %84, %cst_63 {dimension_numbers = #tpu.dot_dimension_numbers<[1], [0], [0], [1], [0, 0, 1, 1], [], []>} : vector<16x16xf32>, vector<16x8xf32>, vector<16x8xf32> -> vector<16x8xf32>
    %cst_64 = arith.constant dense<0.000000e+00> : vector<16x8xf32>
    %91 = tpu.matmul %89, %84, %cst_64 {dimension_numbers = #tpu.dot_dimension_numbers<[1], [0], [0], [1], [0, 0, 1, 1], [], []>} : vector<16x16xf32>, vector<16x8xf32>, vector<16x8xf32> -> vector<16x8xf32>
    %cst_65 = arith.constant dense<0.000000e+00> : vector<8x8xf32>
    %92 = tpu.matmul %90, %91, %cst_65 {dimension_numbers = #tpu.dot_dimension_numbers<[0], [0], [1], [1], [0, 1, 1, 1], [], []>} : vector<16x8xf32>, vector<16x8xf32>, vector<8x8xf32> -> vector<8x8xf32>
    %cst_66 = arith.constant dense<0xFF800000> : vector<8xf32>
    %93 = vector.multi_reduction <maximumf>, %92, %cst_66 [1] : vector<8x8xf32> to vector<8xf32>
    %94 = vector.shape_cast %93 : vector<8xf32> to vector<8x1xf32>
    %95 = vector.broadcast %94 : vector<8x1xf32> to vector<8x8xf32>
    %96 = arith.subf %92, %95 : vector<8x8xf32>
    %97 = math.exp %96 : vector<8x8xf32>
    %cst_67 = arith.constant dense<0.000000e+00> : vector<8xf32>
    %98 = vector.multi_reduction <add>, %97, %cst_67 [1] : vector<8x8xf32> to vector<8xf32>
    %99 = vector.shape_cast %98 : vector<8xf32> to vector<8x1xf32>
    %100 = tpu.reciprocal %99 {approx = true} : vector<8x1xf32> -> vector<8x1xf32>
    %101 = vector.broadcast %100 : vector<8x1xf32> to vector<8x8xf32>
    %102 = arith.mulf %97, %101 : vector<8x8xf32>
    %cst_68 = arith.constant dense<0.000000e+00> : vector<8xf32>
    %103 = vector.multi_reduction <add>, %102, %cst_68 [0] : vector<8x8xf32> to vector<8xf32>
    %104 = vector.shape_cast %103 : vector<8xf32> to vector<1x8xf32>
    %c0_69 = arith.constant 0 : index
    %c0_70 = arith.constant 0 : index
    %c0_71 = arith.constant 0 : index
    %105 = vector.load %arg18[%c0_69, %c0_70, %c0_71] : memref<1x1x8xf32, #tpu.memory_space<vmem>>, vector<1x1x8xf32>
    %106 = vector.shape_cast %105 : vector<1x1x8xf32> to vector<1x8xf32>
    %107 = vector.shape_cast %104 : vector<1x8xf32> to vector<1x1x8xf32>
    tpu.vector_store %arg18[%c0_69, %c0_70, %c0_71], %107 {strides = array<i32>} : memref<1x1x8xf32, #tpu.memory_space<vmem>>, vector<1x1x8xf32>,
    return
  }
  func.func @transform_0(%arg0: i32) -> (i32, i32, i32) {
    %c0_i32 = arith.constant 0 : i32
    %c0_i32_0 = arith.constant 0 : i32
    %c0_i32_1 = arith.constant 0 : i32
    return %arg0, %c0_i32, %c0_i32_0 : i32, i32, i32
  }
  func.func @transform_1(%arg0: i32) -> (i32, i32, i32) {
    %c0_i32 = arith.constant 0 : i32
    %c0_i32_0 = arith.constant 0 : i32
    %c0_i32_1 = arith.constant 0 : i32
    return %arg0, %c0_i32, %c0_i32_0 : i32, i32, i32
  }
  func.func @transform_2(%arg0: i32) -> (i32, i32) {
    %c0_i32 = arith.constant 0 : i32
    %c0_i32_0 = arith.constant 0 : i32
    %c0_i32_1 = arith.constant 0 : i32
    return %c0_i32, %c0_i32_0 : i32, i32
  }
  func.func @transform_3(%arg0: i32) -> (i32, i32) {
    %c0_i32 = arith.constant 0 : i32
    %c0_i32_0 = arith.constant 0 : i32
    %c0_i32_1 = arith.constant 0 : i32
    return %c0_i32, %c0_i32_0 : i32, i32
  }
  func.func @transform_4(%arg0: i32) -> (i32, i32) {
    %c0_i32 = arith.constant 0 : i32
    %c0_i32_0 = arith.constant 0 : i32
    %c0_i32_1 = arith.constant 0 : i32
    return %c0_i32, %c0_i32_0 : i32, i32
  }
  func.func @transform_5(%arg0: i32) -> (i32, i32) {
    %c0_i32 = arith.constant 0 : i32
    %c0_i32_0 = arith.constant 0 : i32
    %c0_i32_1 = arith.constant 0 : i32
    return %c0_i32, %c0_i32_0 : i32, i32
  }
  func.func @transform_6(%arg0: i32) -> (i32, i32) {
    %c0_i32 = arith.constant 0 : i32
    %c0_i32_0 = arith.constant 0 : i32
    %c0_i32_1 = arith.constant 0 : i32
    return %c0_i32, %c0_i32_0 : i32, i32
  }
  func.func @transform_7(%arg0: i32) -> (i32, i32) {
    %c0_i32 = arith.constant 0 : i32
    %c0_i32_0 = arith.constant 0 : i32
    %c0_i32_1 = arith.constant 0 : i32
    return %c0_i32, %c0_i32_0 : i32, i32
  }
  func.func @transform_8(%arg0: i32) -> (i32, i32) {
    %c0_i32 = arith.constant 0 : i32
    %c0_i32_0 = arith.constant 0 : i32
    %c0_i32_1 = arith.constant 0 : i32
    return %c0_i32, %c0_i32_0 : i32, i32
  }
  func.func @transform_9(%arg0: i32) -> (i32, i32) {
    %c0_i32 = arith.constant 0 : i32
    %c0_i32_0 = arith.constant 0 : i32
    %c0_i32_1 = arith.constant 0 : i32
    return %c0_i32, %c0_i32_0 : i32, i32
  }
  func.func @transform_10(%arg0: i32) -> (i32, i32) {
    %c0_i32 = arith.constant 0 : i32
    %c0_i32_0 = arith.constant 0 : i32
    %c0_i32_1 = arith.constant 0 : i32
    return %c0_i32, %c0_i32_0 : i32, i32
  }
  func.func @transform_11(%arg0: i32) -> (i32, i32) {
    %c0_i32 = arith.constant 0 : i32
    %c0_i32_0 = arith.constant 0 : i32
    %c0_i32_1 = arith.constant 0 : i32
    return %c0_i32, %c0_i32_0 : i32, i32
  }
  func.func @transform_12(%arg0: i32) -> (i32, i32) {
    %c0_i32 = arith.constant 0 : i32
    %c0_i32_0 = arith.constant 0 : i32
    %c0_i32_1 = arith.constant 0 : i32
    return %c0_i32, %c0_i32_0 : i32, i32
  }
  func.func @transform_13(%arg0: i32) -> (i32, i32) {
    %c0_i32 = arith.constant 0 : i32
    %c0_i32_0 = arith.constant 0 : i32
    %c0_i32_1 = arith.constant 0 : i32
    return %c0_i32, %c0_i32_0 : i32, i32
  }
  func.func @transform_14(%arg0: i32) -> (i32, i32) {
    %c0_i32 = arith.constant 0 : i32
    %c0_i32_0 = arith.constant 0 : i32
    %c0_i32_1 = arith.constant 0 : i32
    return %c0_i32, %c0_i32_0 : i32, i32
  }
  func.func @transform_15(%arg0: i32) -> (i32, i32) {
    %c0_i32 = arith.constant 0 : i32
    %c0_i32_0 = arith.constant 0 : i32
    %c0_i32_1 = arith.constant 0 : i32
    return %c0_i32, %c0_i32_0 : i32, i32
  }
  func.func @transform_16(%arg0: i32) -> (i32, i32, i32) {
    %c0_i32 = arith.constant 0 : i32
    %c0_i32_0 = arith.constant 0 : i32
    %c0_i32_1 = arith.constant 0 : i32
    return %arg0, %c0_i32, %c0_i32_0 : i32, i32, i32
  }
  func.func @transform_17(%arg0: i32) -> (i32, i32, i32) {
    %c0_i32 = arith.constant 0 : i32
    %c0_i32_0 = arith.constant 0 : i32
    %c0_i32_1 = arith.constant 0 : i32
    return %arg0, %c0_i32, %c0_i32_0 : i32, i32, i32
  }
}

module attributes {stable_mosaic.version = 11 : i64} {
  func.func @_stage3_kernel(%arg0: i32, %arg1: memref<1x16x16xf32, #tpu.memory_space<vmem>>, %arg2: memref<1x16x8xf32, #tpu.memory_space<vmem>>, %arg3: memref<1x4x8xf32, #tpu.memory_space<vmem>>, %arg4: memref<16x16xf32, #tpu.memory_space<vmem>>, %arg5: memref<16x16xf32, #tpu.memory_space<vmem>>, %arg6: memref<16x16xf32, #tpu.memory_space<vmem>>, %arg7: memref<16x16xf32, #tpu.memory_space<vmem>>, %arg8: memref<16x16xf32, #tpu.memory_space<vmem>>, %arg9: memref<16x16xf32, #tpu.memory_space<vmem>>, %arg10: memref<16x1xf32, #tpu.memory_space<vmem>>, %arg11: memref<16x1xf32, #tpu.memory_space<vmem>>, %arg12: memref<32x16xf32, #tpu.memory_space<vmem>>, %arg13: memref<16x32xf32, #tpu.memory_space<vmem>>, %arg14: memref<16x1xf32, #tpu.memory_space<vmem>>, %arg15: memref<16x1xf32, #tpu.memory_space<vmem>>, %arg16: memref<16x16xf32, #tpu.memory_space<vmem>>, %arg17: memref<16x16xf32, #tpu.memory_space<vmem>>, %arg18: memref<16x16xf32, #tpu.memory_space<vmem>>, %arg19: memref<16x16xf32, #tpu.memory_space<vmem>>, %arg20: memref<16x16xf32, #tpu.memory_space<vmem>>, %arg21: memref<16x16xf32, #tpu.memory_space<vmem>>, %arg22: memref<16x16xf32, #tpu.memory_space<vmem>>, %arg23: memref<16x1xf32, #tpu.memory_space<vmem>>, %arg24: memref<16x1xf32, #tpu.memory_space<vmem>>, %arg25: memref<32x16xf32, #tpu.memory_space<vmem>>, %arg26: memref<16x32xf32, #tpu.memory_space<vmem>>, %arg27: memref<16x1xf32, #tpu.memory_space<vmem>>, %arg28: memref<16x1xf32, #tpu.memory_space<vmem>>, %arg29: memref<16x16xf32, #tpu.memory_space<vmem>>, %arg30: memref<16x16xf32, #tpu.memory_space<vmem>>, %arg31: memref<16x16xf32, #tpu.memory_space<vmem>>, %arg32: memref<16x16xf32, #tpu.memory_space<vmem>>, %arg33: memref<16x16xf32, #tpu.memory_space<vmem>>, %arg34: memref<16x16xf32, #tpu.memory_space<vmem>>, %arg35: memref<16x16xf32, #tpu.memory_space<vmem>>, %arg36: memref<16x1xf32, #tpu.memory_space<vmem>>, %arg37: memref<16x1xf32, #tpu.memory_space<vmem>>, %arg38: memref<32x16xf32, #tpu.memory_space<vmem>>, %arg39: memref<16x32xf32, #tpu.memory_space<vmem>>, %arg40: memref<16x1xf32, #tpu.memory_space<vmem>>, %arg41: memref<16x1xf32, #tpu.memory_space<vmem>>, %arg42: memref<1x16x16xf32, #tpu.memory_space<vmem>>, %arg43: memref<16x16xf32, #tpu.memory_space<vmem>>) attributes {dimension_semantics = [#tpu.dimension_semantics<parallel>], iteration_bounds = array<i64: 2>, scalar_prefetch = 0 : i64, scratch_operands = 1 : i64, tpu.core_type = #tpu.core_type<tc>, window_params = [{transform_indices = @transform_0, window_bounds = array<i64: 1, 16, 16>}, {transform_indices = @transform_1, window_bounds = array<i64: 1, 16, 8>}, {transform_indices = @transform_2, window_bounds = array<i64: 1, 4, 8>}, {pipeline_mode = #tpu.pipeline_mode<synchronous>, transform_indices = @transform_3, window_bounds = array<i64: 16, 16>}, {pipeline_mode = #tpu.pipeline_mode<synchronous>, transform_indices = @transform_4, window_bounds = array<i64: 16, 16>}, {pipeline_mode = #tpu.pipeline_mode<synchronous>, transform_indices = @transform_5, window_bounds = array<i64: 16, 16>}, {pipeline_mode = #tpu.pipeline_mode<synchronous>, transform_indices = @transform_6, window_bounds = array<i64: 16, 16>}, {pipeline_mode = #tpu.pipeline_mode<synchronous>, transform_indices = @transform_7, window_bounds = array<i64: 16, 16>}, {pipeline_mode = #tpu.pipeline_mode<synchronous>, transform_indices = @transform_8, window_bounds = array<i64: 16, 16>}, {pipeline_mode = #tpu.pipeline_mode<synchronous>, transform_indices = @transform_9, window_bounds = array<i64: 16, 1>}, {pipeline_mode = #tpu.pipeline_mode<synchronous>, transform_indices = @transform_10, window_bounds = array<i64: 16, 1>}, {pipeline_mode = #tpu.pipeline_mode<synchronous>, transform_indices = @transform_11, window_bounds = array<i64: 32, 16>}, {pipeline_mode = #tpu.pipeline_mode<synchronous>, transform_indices = @transform_12, window_bounds = array<i64: 16, 32>}, {pipeline_mode = #tpu.pipeline_mode<synchronous>, transform_indices = @transform_13, window_bounds = array<i64: 16, 1>}, {pipeline_mode = #tpu.pipeline_mode<synchronous>, transform_indices = @transform_14, window_bounds = array<i64: 16, 1>}, {pipeline_mode = #tpu.pipeline_mode<synchronous>, transform_indices = @transform_15, window_bounds = array<i64: 16, 16>}, {pipeline_mode = #tpu.pipeline_mode<synchronous>, transform_indices = @transform_16, window_bounds = array<i64: 16, 16>}, {pipeline_mode = #tpu.pipeline_mode<synchronous>, transform_indices = @transform_17, window_bounds = array<i64: 16, 16>}, {pipeline_mode = #tpu.pipeline_mode<synchronous>, transform_indices = @transform_18, window_bounds = array<i64: 16, 16>}, {pipeline_mode = #tpu.pipeline_mode<synchronous>, transform_indices = @transform_19, window_bounds = array<i64: 16, 16>}, {pipeline_mode = #tpu.pipeline_mode<synchronous>, transform_indices = @transform_20, window_bounds = array<i64: 16, 16>}, {pipeline_mode = #tpu.pipeline_mode<synchronous>, transform_indices = @transform_21, window_bounds = array<i64: 16, 16>}, {pipeline_mode = #tpu.pipeline_mode<synchronous>, transform_indices = @transform_22, window_bounds = array<i64: 16, 1>}, {pipeline_mode = #tpu.pipeline_mode<synchronous>, transform_indices = @transform_23, window_bounds = array<i64: 16, 1>}, {pipeline_mode = #tpu.pipeline_mode<synchronous>, transform_indices = @transform_24, window_bounds = array<i64: 32, 16>}, {pipeline_mode = #tpu.pipeline_mode<synchronous>, transform_indices = @transform_25, window_bounds = array<i64: 16, 32>}, {pipeline_mode = #tpu.pipeline_mode<synchronous>, transform_indices = @transform_26, window_bounds = array<i64: 16, 1>}, {pipeline_mode = #tpu.pipeline_mode<synchronous>, transform_indices = @transform_27, window_bounds = array<i64: 16, 1>}, {pipeline_mode = #tpu.pipeline_mode<synchronous>, transform_indices = @transform_28, window_bounds = array<i64: 16, 16>}, {pipeline_mode = #tpu.pipeline_mode<synchronous>, transform_indices = @transform_29, window_bounds = array<i64: 16, 16>}, {pipeline_mode = #tpu.pipeline_mode<synchronous>, transform_indices = @transform_30, window_bounds = array<i64: 16, 16>}, {pipeline_mode = #tpu.pipeline_mode<synchronous>, transform_indices = @transform_31, window_bounds = array<i64: 16, 16>}, {pipeline_mode = #tpu.pipeline_mode<synchronous>, transform_indices = @transform_32, window_bounds = array<i64: 16, 16>}, {pipeline_mode = #tpu.pipeline_mode<synchronous>, transform_indices = @transform_33, window_bounds = array<i64: 16, 16>}, {pipeline_mode = #tpu.pipeline_mode<synchronous>, transform_indices = @transform_34, window_bounds = array<i64: 16, 16>}, {pipeline_mode = #tpu.pipeline_mode<synchronous>, transform_indices = @transform_35, window_bounds = array<i64: 16, 1>}, {pipeline_mode = #tpu.pipeline_mode<synchronous>, transform_indices = @transform_36, window_bounds = array<i64: 16, 1>}, {pipeline_mode = #tpu.pipeline_mode<synchronous>, transform_indices = @transform_37, window_bounds = array<i64: 32, 16>}, {pipeline_mode = #tpu.pipeline_mode<synchronous>, transform_indices = @transform_38, window_bounds = array<i64: 16, 32>}, {pipeline_mode = #tpu.pipeline_mode<synchronous>, transform_indices = @transform_39, window_bounds = array<i64: 16, 1>}, {pipeline_mode = #tpu.pipeline_mode<synchronous>, transform_indices = @transform_40, window_bounds = array<i64: 16, 1>}, {transform_indices = @transform_41, window_bounds = array<i64: 1, 16, 16>}]} {
    %c0 = arith.constant 0 : index
    %c0_0 = arith.constant 0 : index
    %c0_1 = arith.constant 0 : index
    %0 = vector.load %arg1[%c0, %c0_0, %c0_1] : memref<1x16x16xf32, #tpu.memory_space<vmem>>, vector<1x16x16xf32>
    %1 = vector.shape_cast %0 : vector<1x16x16xf32> to vector<16x16xf32>
    %c0_2 = arith.constant 0 : index
    %c0_3 = arith.constant 0 : index
    %c0_4 = arith.constant 0 : index
    %2 = vector.load %arg2[%c0_2, %c0_3, %c0_4] : memref<1x16x8xf32, #tpu.memory_space<vmem>>, vector<1x16x8xf32>
    %3 = vector.shape_cast %2 : vector<1x16x8xf32> to vector<16x8xf32>
    %c0_5 = arith.constant 0 : index
    %c0_6 = arith.constant 0 : index
    %c0_7 = arith.constant 0 : index
    %4 = vector.load %arg3[%c0_5, %c0_6, %c0_7] : memref<1x4x8xf32, #tpu.memory_space<vmem>>, vector<1x4x8xf32>
    %5 = vector.shape_cast %4 : vector<1x4x8xf32> to vector<4x8xf32>
    %c0_8 = arith.constant 0 : index
    %c0_9 = arith.constant 0 : index
    %6 = vector.load %arg4[%c0_8, %c0_9] : memref<16x16xf32, #tpu.memory_space<vmem>>, vector<16x16xf32>
    %c0_10 = arith.constant 0 : index
    %c0_11 = arith.constant 0 : index
    %7 = vector.load %arg5[%c0_10, %c0_11] : memref<16x16xf32, #tpu.memory_space<vmem>>, vector<16x16xf32>
    %c0_12 = arith.constant 0 : index
    %c0_13 = arith.constant 0 : index
    %8 = vector.load %arg6[%c0_12, %c0_13] : memref<16x16xf32, #tpu.memory_space<vmem>>, vector<16x16xf32>
    %cst = arith.constant dense<0.000000e+00> : vector<16x8xf32>
    %9 = tpu.matmul %6, %3, %cst {dimension_numbers = #tpu.dot_dimension_numbers<[1], [0], [0], [1], [0, 0, 1, 1], [], []>} : vector<16x16xf32>, vector<16x8xf32>, vector<16x8xf32> -> vector<16x8xf32>
    %cst_14 = arith.constant dense<0.000000e+00> : vector<16x8xf32>
    %10 = tpu.matmul %7, %3, %cst_14 {dimension_numbers = #tpu.dot_dimension_numbers<[1], [0], [0], [1], [0, 0, 1, 1], [], []>} : vector<16x16xf32>, vector<16x8xf32>, vector<16x8xf32> -> vector<16x8xf32>
    %cst_15 = arith.constant dense<0.000000e+00> : vector<16x8xf32>
    %11 = tpu.matmul %8, %3, %cst_15 {dimension_numbers = #tpu.dot_dimension_numbers<[1], [0], [0], [1], [0, 0, 1, 1], [], []>} : vector<16x16xf32>, vector<16x8xf32>, vector<16x8xf32> -> vector<16x8xf32>
    %cst_16 = arith.constant dense<0.000000e+00> : vector<16x4xf32>
    %12 = tpu.matmul %9, %5, %cst_16 {dimension_numbers = #tpu.dot_dimension_numbers<[1], [1], [0], [0], [0, 0, 1, 0], [], []>} : vector<16x8xf32>, vector<4x8xf32>, vector<16x4xf32> -> vector<16x4xf32>
    %cst_17 = arith.constant dense<0.000000e+00> : vector<4x8xf32>
    %13 = tpu.matmul %12, %10, %cst_17 {dimension_numbers = #tpu.dot_dimension_numbers<[0], [0], [1], [1], [0, 1, 1, 1], [], []>} : vector<16x4xf32>, vector<16x8xf32>, vector<4x8xf32> -> vector<4x8xf32>
    %cst_18 = arith.constant dense<0xFF800000> : vector<4xf32>
    %14 = vector.multi_reduction <maximumf>, %13, %cst_18 [1] : vector<4x8xf32> to vector<4xf32>
    %15 = vector.shape_cast %14 : vector<4xf32> to vector<4x1xf32>
    %16 = vector.broadcast %15 : vector<4x1xf32> to vector<4x8xf32>
    %17 = arith.subf %13, %16 : vector<4x8xf32>
    %18 = math.exp %17 : vector<4x8xf32>
    %cst_19 = arith.constant dense<0.000000e+00> : vector<4xf32>
    %19 = vector.multi_reduction <add>, %18, %cst_19 [1] : vector<4x8xf32> to vector<4xf32>
    %20 = vector.shape_cast %19 : vector<4xf32> to vector<4x1xf32>
    %21 = tpu.reciprocal %20 {approx = true} : vector<4x1xf32> -> vector<4x1xf32>
    %22 = vector.broadcast %21 : vector<4x1xf32> to vector<4x8xf32>
    %23 = arith.mulf %18, %22 : vector<4x8xf32>
    %cst_20 = arith.constant dense<0.000000e+00> : vector<16x4xf32>
    %24 = tpu.matmul %11, %23, %cst_20 {dimension_numbers = #tpu.dot_dimension_numbers<[1], [1], [0], [0], [0, 0, 1, 0], [], []>} : vector<16x8xf32>, vector<4x8xf32>, vector<16x4xf32> -> vector<16x4xf32>
    %c0_21 = arith.constant 0 : index
    %c0_22 = arith.constant 0 : index
    %25 = vector.load %arg7[%c0_21, %c0_22] : memref<16x16xf32, #tpu.memory_space<vmem>>, vector<16x16xf32>
    %c0_23 = arith.constant 0 : index
    %c0_24 = arith.constant 0 : index
    %26 = vector.load %arg8[%c0_23, %c0_24] : memref<16x16xf32, #tpu.memory_space<vmem>>, vector<16x16xf32>
    %c0_25 = arith.constant 0 : index
    %c0_26 = arith.constant 0 : index
    %27 = vector.load %arg9[%c0_25, %c0_26] : memref<16x16xf32, #tpu.memory_space<vmem>>, vector<16x16xf32>
    %c0_27 = arith.constant 0 : index
    %c0_28 = arith.constant 0 : index
    %28 = vector.load %arg10[%c0_27, %c0_28] : memref<16x1xf32, #tpu.memory_space<vmem>>, vector<16x1xf32>
    %c0_29 = arith.constant 0 : index
    %c0_30 = arith.constant 0 : index
    %29 = vector.load %arg11[%c0_29, %c0_30] : memref<16x1xf32, #tpu.memory_space<vmem>>, vector<16x1xf32>
    %c0_31 = arith.constant 0 : index
    %c0_32 = arith.constant 0 : index
    %30 = vector.load %arg12[%c0_31, %c0_32] : memref<32x16xf32, #tpu.memory_space<vmem>>, vector<32x16xf32>
    %c0_33 = arith.constant 0 : index
    %c0_34 = arith.constant 0 : index
    %31 = vector.load %arg13[%c0_33, %c0_34] : memref<16x32xf32, #tpu.memory_space<vmem>>, vector<16x32xf32>
    %c0_35 = arith.constant 0 : index
    %c0_36 = arith.constant 0 : index
    %32 = vector.load %arg14[%c0_35, %c0_36] : memref<16x1xf32, #tpu.memory_space<vmem>>, vector<16x1xf32>
    %c0_37 = arith.constant 0 : index
    %c0_38 = arith.constant 0 : index
    %33 = vector.load %arg15[%c0_37, %c0_38] : memref<16x1xf32, #tpu.memory_space<vmem>>, vector<16x1xf32>
    %cst_39 = arith.constant dense<0.000000e+00> : vector<16x4xf32>
    %34 = tpu.matmul %25, %24, %cst_39 {dimension_numbers = #tpu.dot_dimension_numbers<[1], [0], [0], [1], [0, 0, 1, 1], [], []>} : vector<16x16xf32>, vector<16x4xf32>, vector<16x4xf32> -> vector<16x4xf32>
    %cst_40 = arith.constant dense<0.000000e+00> : vector<16x4xf32>
    %35 = tpu.matmul %26, %24, %cst_40 {dimension_numbers = #tpu.dot_dimension_numbers<[1], [0], [0], [1], [0, 0, 1, 1], [], []>} : vector<16x16xf32>, vector<16x4xf32>, vector<16x4xf32> -> vector<16x4xf32>
    %cst_41 = arith.constant dense<0.000000e+00> : vector<16x4xf32>
    %36 = tpu.matmul %27, %24, %cst_41 {dimension_numbers = #tpu.dot_dimension_numbers<[1], [0], [0], [1], [0, 0, 1, 1], [], []>} : vector<16x16xf32>, vector<16x4xf32>, vector<16x4xf32> -> vector<16x4xf32>
    %37 = vector.extract_strided_slice %34 {offsets = [0, 0], sizes = [8, 4], strides = [1, 1]} : vector<16x4xf32> to vector<8x4xf32>
    %38 = vector.extract_strided_slice %35 {offsets = [0, 0], sizes = [8, 4], strides = [1, 1]} : vector<16x4xf32> to vector<8x4xf32>
    %39 = vector.extract_strided_slice %36 {offsets = [0, 0], sizes = [8, 4], strides = [1, 1]} : vector<16x4xf32> to vector<8x4xf32>
    %cst_42 = arith.constant dense<0.000000e+00> : vector<4x4xf32>
    %40 = tpu.matmul %37, %38, %cst_42 {dimension_numbers = #tpu.dot_dimension_numbers<[0], [0], [1], [1], [0, 1, 1, 1], [], []>} : vector<8x4xf32>, vector<8x4xf32>, vector<4x4xf32> -> vector<4x4xf32>
    %cst_43 = arith.constant dense<0xFF800000> : vector<4xf32>
    %41 = vector.multi_reduction <maximumf>, %40, %cst_43 [1] : vector<4x4xf32> to vector<4xf32>
    %42 = vector.shape_cast %41 : vector<4xf32> to vector<4x1xf32>
    %43 = vector.broadcast %42 : vector<4x1xf32> to vector<4x4xf32>
    %44 = arith.subf %40, %43 : vector<4x4xf32>
    %45 = math.exp %44 : vector<4x4xf32>
    %cst_44 = arith.constant dense<0.000000e+00> : vector<4xf32>
    %46 = vector.multi_reduction <add>, %45, %cst_44 [1] : vector<4x4xf32> to vector<4xf32>
    %47 = vector.shape_cast %46 : vector<4xf32> to vector<4x1xf32>
    %48 = tpu.reciprocal %47 {approx = true} : vector<4x1xf32> -> vector<4x1xf32>
    %49 = vector.broadcast %48 : vector<4x1xf32> to vector<4x4xf32>
    %50 = arith.mulf %45, %49 : vector<4x4xf32>
    %cst_45 = arith.constant dense<0.000000e+00> : vector<8x4xf32>
    %51 = tpu.matmul %39, %50, %cst_45 {dimension_numbers = #tpu.dot_dimension_numbers<[1], [1], [0], [0], [0, 0, 1, 0], [], []>} : vector<8x4xf32>, vector<4x4xf32>, vector<8x4xf32> -> vector<8x4xf32>
    %c0_46 = arith.constant 0 : index
    %c0_47 = arith.constant 0 : index
    %52 = vector.load %arg43[%c0_46, %c0_47] : memref<16x16xf32, #tpu.memory_space<vmem>>, vector<8x4xf32>
    tpu.vector_store %arg43[%c0_46, %c0_47], %51 {strides = array<i32>} : memref<16x16xf32, #tpu.memory_space<vmem>>, vector<8x4xf32>,
    %53 = vector.extract_strided_slice %34 {offsets = [8, 0], sizes = [8, 4], strides = [1, 1]} : vector<16x4xf32> to vector<8x4xf32>
    %54 = vector.extract_strided_slice %35 {offsets = [8, 0], sizes = [8, 4], strides = [1, 1]} : vector<16x4xf32> to vector<8x4xf32>
    %55 = vector.extract_strided_slice %36 {offsets = [8, 0], sizes = [8, 4], strides = [1, 1]} : vector<16x4xf32> to vector<8x4xf32>
    %cst_48 = arith.constant dense<0.000000e+00> : vector<4x4xf32>
    %56 = tpu.matmul %53, %54, %cst_48 {dimension_numbers = #tpu.dot_dimension_numbers<[0], [0], [1], [1], [0, 1, 1, 1], [], []>} : vector<8x4xf32>, vector<8x4xf32>, vector<4x4xf32> -> vector<4x4xf32>
    %cst_49 = arith.constant dense<0xFF800000> : vector<4xf32>
    %57 = vector.multi_reduction <maximumf>, %56, %cst_49 [1] : vector<4x4xf32> to vector<4xf32>
    %58 = vector.shape_cast %57 : vector<4xf32> to vector<4x1xf32>
    %59 = vector.broadcast %58 : vector<4x1xf32> to vector<4x4xf32>
    %60 = arith.subf %56, %59 : vector<4x4xf32>
    %61 = math.exp %60 : vector<4x4xf32>
    %cst_50 = arith.constant dense<0.000000e+00> : vector<4xf32>
    %62 = vector.multi_reduction <add>, %61, %cst_50 [1] : vector<4x4xf32> to vector<4xf32>
    %63 = vector.shape_cast %62 : vector<4xf32> to vector<4x1xf32>
    %64 = tpu.reciprocal %63 {approx = true} : vector<4x1xf32> -> vector<4x1xf32>
    %65 = vector.broadcast %64 : vector<4x1xf32> to vector<4x4xf32>
    %66 = arith.mulf %61, %65 : vector<4x4xf32>
    %cst_51 = arith.constant dense<0.000000e+00> : vector<8x4xf32>
    %67 = tpu.matmul %55, %66, %cst_51 {dimension_numbers = #tpu.dot_dimension_numbers<[1], [1], [0], [0], [0, 0, 1, 0], [], []>} : vector<8x4xf32>, vector<4x4xf32>, vector<8x4xf32> -> vector<8x4xf32>
    %c8 = arith.constant 8 : index
    %c0_52 = arith.constant 0 : index
    %68 = vector.load %arg43[%c8, %c0_52] : memref<16x16xf32, #tpu.memory_space<vmem>>, vector<8x4xf32>
    tpu.vector_store %arg43[%c8, %c0_52], %67 {strides = array<i32>} : memref<16x16xf32, #tpu.memory_space<vmem>>, vector<8x4xf32>,
    %c0_53 = arith.constant 0 : index
    %c0_54 = arith.constant 0 : index
    %69 = vector.load %arg43[%c0_53, %c0_54] : memref<16x16xf32, #tpu.memory_space<vmem>>, vector<16x4xf32>
    %70 = arith.addf %24, %69 : vector<16x4xf32>
    %71 = vector.broadcast %28 : vector<16x1xf32> to vector<16x4xf32>
    %72 = arith.mulf %70, %71 : vector<16x4xf32>
    %73 = vector.broadcast %29 : vector<16x1xf32> to vector<16x4xf32>
    %74 = arith.addf %72, %73 : vector<16x4xf32>
    %cst_55 = arith.constant dense<0.000000e+00> : vector<32x4xf32>
    %75 = tpu.matmul %30, %74, %cst_55 {dimension_numbers = #tpu.dot_dimension_numbers<[1], [0], [0], [1], [0, 0, 1, 1], [], []>} : vector<32x16xf32>, vector<16x4xf32>, vector<32x4xf32> -> vector<32x4xf32>
    %cst_56 = arith.constant 0.000000e+00 : f32
    %76 = vector.broadcast %cst_56 : f32 to vector<32x4xf32>
    %77 = arith.cmpf oge, %75, %76 : vector<32x4xf32>
    %cst_57 = arith.constant 2.000000e-01 : f32
    %78 = vector.broadcast %cst_57 : f32 to vector<32x4xf32>
    %79 = arith.mulf %78, %75 : vector<32x4xf32>
    %80 = arith.select %77, %75, %79 : vector<32x4xi1>, vector<32x4xf32>
    %cst_58 = arith.constant dense<0.000000e+00> : vector<16x4xf32>
    %81 = tpu.matmul %31, %80, %cst_58 {dimension_numbers = #tpu.dot_dimension_numbers<[1], [0], [0], [1], [0, 0, 1, 1], [], []>} : vector<16x32xf32>, vector<32x4xf32>, vector<16x4xf32> -> vector<16x4xf32>
    %82 = arith.addf %74, %81 : vector<16x4xf32>
    %83 = vector.broadcast %32 : vector<16x1xf32> to vector<16x4xf32>
    %84 = arith.mulf %82, %83 : vector<16x4xf32>
    %85 = vector.broadcast %33 : vector<16x1xf32> to vector<16x4xf32>
    %86 = arith.addf %84, %85 : vector<16x4xf32>
    %c0_59 = arith.constant 0 : index
    %c0_60 = arith.constant 0 : index
    %87 = vector.load %arg16[%c0_59, %c0_60] : memref<16x16xf32, #tpu.memory_space<vmem>>, vector<16x16xf32>
    %c0_61 = arith.constant 0 : index
    %c0_62 = arith.constant 0 : index
    %88 = vector.load %arg17[%c0_61, %c0_62] : memref<16x16xf32, #tpu.memory_space<vmem>>, vector<16x16xf32>
    %c0_63 = arith.constant 0 : index
    %c0_64 = arith.constant 0 : index
    %89 = vector.load %arg18[%c0_63, %c0_64] : memref<16x16xf32, #tpu.memory_space<vmem>>, vector<16x16xf32>
    %c0_65 = arith.constant 0 : index
    %c0_66 = arith.constant 0 : index
    %90 = vector.load %arg19[%c0_65, %c0_66] : memref<16x16xf32, #tpu.memory_space<vmem>>, vector<16x16xf32>
    %cst_67 = arith.constant dense<0.000000e+00> : vector<16x8xf32>
    %91 = tpu.matmul %87, %3, %cst_67 {dimension_numbers = #tpu.dot_dimension_numbers<[1], [0], [0], [1], [0, 0, 1, 1], [], []>} : vector<16x16xf32>, vector<16x8xf32>, vector<16x8xf32> -> vector<16x8xf32>
    %cst_68 = arith.constant dense<0.000000e+00> : vector<16x4xf32>
    %92 = tpu.matmul %88, %86, %cst_68 {dimension_numbers = #tpu.dot_dimension_numbers<[1], [0], [0], [1], [0, 0, 1, 1], [], []>} : vector<16x16xf32>, vector<16x4xf32>, vector<16x4xf32> -> vector<16x4xf32>
    %cst_69 = arith.constant dense<0.000000e+00> : vector<16x4xf32>
    %93 = tpu.matmul %89, %86, %cst_69 {dimension_numbers = #tpu.dot_dimension_numbers<[1], [0], [0], [1], [0, 0, 1, 1], [], []>} : vector<16x16xf32>, vector<16x4xf32>, vector<16x4xf32> -> vector<16x4xf32>
    %cst_70 = arith.constant dense<0.000000e+00> : vector<8x4xf32>
    %94 = tpu.matmul %91, %92, %cst_70 {dimension_numbers = #tpu.dot_dimension_numbers<[0], [0], [1], [1], [0, 1, 1, 1], [], []>} : vector<16x8xf32>, vector<16x4xf32>, vector<8x4xf32> -> vector<8x4xf32>
    %cst_71 = arith.constant dense<0xFF800000> : vector<8xf32>
    %95 = vector.multi_reduction <maximumf>, %94, %cst_71 [1] : vector<8x4xf32> to vector<8xf32>
    %96 = vector.shape_cast %95 : vector<8xf32> to vector<8x1xf32>
    %97 = vector.broadcast %96 : vector<8x1xf32> to vector<8x4xf32>
    %98 = arith.subf %94, %97 : vector<8x4xf32>
    %99 = math.exp %98 : vector<8x4xf32>
    %cst_72 = arith.constant dense<0.000000e+00> : vector<8xf32>
    %100 = vector.multi_reduction <add>, %99, %cst_72 [1] : vector<8x4xf32> to vector<8xf32>
    %101 = vector.shape_cast %100 : vector<8xf32> to vector<8x1xf32>
    %102 = tpu.reciprocal %101 {approx = true} : vector<8x1xf32> -> vector<8x1xf32>
    %103 = vector.broadcast %102 : vector<8x1xf32> to vector<8x4xf32>
    %104 = arith.mulf %99, %103 : vector<8x4xf32>
    %cst_73 = arith.constant dense<0.000000e+00> : vector<16x8xf32>
    %105 = tpu.matmul %90, %3, %cst_73 {dimension_numbers = #tpu.dot_dimension_numbers<[1], [0], [0], [1], [0, 0, 1, 1], [], []>} : vector<16x16xf32>, vector<16x8xf32>, vector<16x8xf32> -> vector<16x8xf32>
    %cst_74 = arith.constant dense<0.000000e+00> : vector<16x8xf32>
    %106 = tpu.matmul %93, %104, %cst_74 {dimension_numbers = #tpu.dot_dimension_numbers<[1], [1], [0], [0], [0, 0, 1, 0], [], []>} : vector<16x4xf32>, vector<8x4xf32>, vector<16x8xf32> -> vector<16x8xf32>
    %107 = arith.addf %105, %106 : vector<16x8xf32>
    %c0_75 = arith.constant 0 : index
    %c0_76 = arith.constant 0 : index
    %108 = vector.load %arg20[%c0_75, %c0_76] : memref<16x16xf32, #tpu.memory_space<vmem>>, vector<16x16xf32>
    %c0_77 = arith.constant 0 : index
    %c0_78 = arith.constant 0 : index
    %109 = vector.load %arg21[%c0_77, %c0_78] : memref<16x16xf32, #tpu.memory_space<vmem>>, vector<16x16xf32>
    %c0_79 = arith.constant 0 : index
    %c0_80 = arith.constant 0 : index
    %110 = vector.load %arg22[%c0_79, %c0_80] : memref<16x16xf32, #tpu.memory_space<vmem>>, vector<16x16xf32>
    %c0_81 = arith.constant 0 : index
    %c0_82 = arith.constant 0 : index
    %111 = vector.load %arg23[%c0_81, %c0_82] : memref<16x1xf32, #tpu.memory_space<vmem>>, vector<16x1xf32>
    %c0_83 = arith.constant 0 : index
    %c0_84 = arith.constant 0 : index
    %112 = vector.load %arg24[%c0_83, %c0_84] : memref<16x1xf32, #tpu.memory_space<vmem>>, vector<16x1xf32>
    %c0_85 = arith.constant 0 : index
    %c0_86 = arith.constant 0 : index
    %113 = vector.load %arg25[%c0_85, %c0_86] : memref<32x16xf32, #tpu.memory_space<vmem>>, vector<32x16xf32>
    %c0_87 = arith.constant 0 : index
    %c0_88 = arith.constant 0 : index
    %114 = vector.load %arg26[%c0_87, %c0_88] : memref<16x32xf32, #tpu.memory_space<vmem>>, vector<16x32xf32>
    %c0_89 = arith.constant 0 : index
    %c0_90 = arith.constant 0 : index
    %115 = vector.load %arg27[%c0_89, %c0_90] : memref<16x1xf32, #tpu.memory_space<vmem>>, vector<16x1xf32>
    %c0_91 = arith.constant 0 : index
    %c0_92 = arith.constant 0 : index
    %116 = vector.load %arg28[%c0_91, %c0_92] : memref<16x1xf32, #tpu.memory_space<vmem>>, vector<16x1xf32>
    %cst_93 = arith.constant dense<0.000000e+00> : vector<16x8xf32>
    %117 = tpu.matmul %108, %107, %cst_93 {dimension_numbers = #tpu.dot_dimension_numbers<[1], [0], [0], [1], [0, 0, 1, 1], [], []>} : vector<16x16xf32>, vector<16x8xf32>, vector<16x8xf32> -> vector<16x8xf32>
    %cst_94 = arith.constant dense<0.000000e+00> : vector<16x8xf32>
    %118 = tpu.matmul %109, %107, %cst_94 {dimension_numbers = #tpu.dot_dimension_numbers<[1], [0], [0], [1], [0, 0, 1, 1], [], []>} : vector<16x16xf32>, vector<16x8xf32>, vector<16x8xf32> -> vector<16x8xf32>
    %cst_95 = arith.constant dense<0.000000e+00> : vector<16x8xf32>
    %119 = tpu.matmul %110, %107, %cst_95 {dimension_numbers = #tpu.dot_dimension_numbers<[1], [0], [0], [1], [0, 0, 1, 1], [], []>} : vector<16x16xf32>, vector<16x8xf32>, vector<16x8xf32> -> vector<16x8xf32>
    %120 = vector.extract_strided_slice %117 {offsets = [0, 0], sizes = [8, 8], strides = [1, 1]} : vector<16x8xf32> to vector<8x8xf32>
    %121 = vector.extract_strided_slice %118 {offsets = [0, 0], sizes = [8, 8], strides = [1, 1]} : vector<16x8xf32> to vector<8x8xf32>
    %122 = vector.extract_strided_slice %119 {offsets = [0, 0], sizes = [8, 8], strides = [1, 1]} : vector<16x8xf32> to vector<8x8xf32>
    %cst_96 = arith.constant dense<0.000000e+00> : vector<8x8xf32>
    %123 = tpu.matmul %120, %121, %cst_96 {dimension_numbers = #tpu.dot_dimension_numbers<[0], [0], [1], [1], [0, 1, 1, 1], [], []>} : vector<8x8xf32>, vector<8x8xf32>, vector<8x8xf32> -> vector<8x8xf32>
    %cst_97 = arith.constant dense<0xFF800000> : vector<8xf32>
    %124 = vector.multi_reduction <maximumf>, %123, %cst_97 [1] : vector<8x8xf32> to vector<8xf32>
    %125 = vector.shape_cast %124 : vector<8xf32> to vector<8x1xf32>
    %126 = vector.broadcast %125 : vector<8x1xf32> to vector<8x8xf32>
    %127 = arith.subf %123, %126 : vector<8x8xf32>
    %128 = math.exp %127 : vector<8x8xf32>
    %cst_98 = arith.constant dense<0.000000e+00> : vector<8xf32>
    %129 = vector.multi_reduction <add>, %128, %cst_98 [1] : vector<8x8xf32> to vector<8xf32>
    %130 = vector.shape_cast %129 : vector<8xf32> to vector<8x1xf32>
    %131 = tpu.reciprocal %130 {approx = true} : vector<8x1xf32> -> vector<8x1xf32>
    %132 = vector.broadcast %131 : vector<8x1xf32> to vector<8x8xf32>
    %133 = arith.mulf %128, %132 : vector<8x8xf32>
    %cst_99 = arith.constant dense<0.000000e+00> : vector<8x8xf32>
    %134 = tpu.matmul %122, %133, %cst_99 {dimension_numbers = #tpu.dot_dimension_numbers<[1], [1], [0], [0], [0, 0, 1, 0], [], []>} : vector<8x8xf32>, vector<8x8xf32>, vector<8x8xf32> -> vector<8x8xf32>
    %c0_100 = arith.constant 0 : index
    %c0_101 = arith.constant 0 : index
    %135 = vector.load %arg43[%c0_100, %c0_101] : memref<16x16xf32, #tpu.memory_space<vmem>>, vector<8x8xf32>
    tpu.vector_store %arg43[%c0_100, %c0_101], %134 {strides = array<i32>} : memref<16x16xf32, #tpu.memory_space<vmem>>, vector<8x8xf32>,
    %136 = vector.extract_strided_slice %117 {offsets = [8, 0], sizes = [8, 8], strides = [1, 1]} : vector<16x8xf32> to vector<8x8xf32>
    %137 = vector.extract_strided_slice %118 {offsets = [8, 0], sizes = [8, 8], strides = [1, 1]} : vector<16x8xf32> to vector<8x8xf32>
    %138 = vector.extract_strided_slice %119 {offsets = [8, 0], sizes = [8, 8], strides = [1, 1]} : vector<16x8xf32> to vector<8x8xf32>
    %cst_102 = arith.constant dense<0.000000e+00> : vector<8x8xf32>
    %139 = tpu.matmul %136, %137, %cst_102 {dimension_numbers = #tpu.dot_dimension_numbers<[0], [0], [1], [1], [0, 1, 1, 1], [], []>} : vector<8x8xf32>, vector<8x8xf32>, vector<8x8xf32> -> vector<8x8xf32>
    %cst_103 = arith.constant dense<0xFF800000> : vector<8xf32>
    %140 = vector.multi_reduction <maximumf>, %139, %cst_103 [1] : vector<8x8xf32> to vector<8xf32>
    %141 = vector.shape_cast %140 : vector<8xf32> to vector<8x1xf32>
    %142 = vector.broadcast %141 : vector<8x1xf32> to vector<8x8xf32>
    %143 = arith.subf %139, %142 : vector<8x8xf32>
    %144 = math.exp %143 : vector<8x8xf32>
    %cst_104 = arith.constant dense<0.000000e+00> : vector<8xf32>
    %145 = vector.multi_reduction <add>, %144, %cst_104 [1] : vector<8x8xf32> to vector<8xf32>
    %146 = vector.shape_cast %145 : vector<8xf32> to vector<8x1xf32>
    %147 = tpu.reciprocal %146 {approx = true} : vector<8x1xf32> -> vector<8x1xf32>
    %148 = vector.broadcast %147 : vector<8x1xf32> to vector<8x8xf32>
    %149 = arith.mulf %144, %148 : vector<8x8xf32>
    %cst_105 = arith.constant dense<0.000000e+00> : vector<8x8xf32>
    %150 = tpu.matmul %138, %149, %cst_105 {dimension_numbers = #tpu.dot_dimension_numbers<[1], [1], [0], [0], [0, 0, 1, 0], [], []>} : vector<8x8xf32>, vector<8x8xf32>, vector<8x8xf32> -> vector<8x8xf32>
    %c8_106 = arith.constant 8 : index
    %c0_107 = arith.constant 0 : index
    %151 = vector.load %arg43[%c8_106, %c0_107] : memref<16x16xf32, #tpu.memory_space<vmem>>, vector<8x8xf32>
    tpu.vector_store %arg43[%c8_106, %c0_107], %150 {strides = array<i32>} : memref<16x16xf32, #tpu.memory_space<vmem>>, vector<8x8xf32>,
    %c0_108 = arith.constant 0 : index
    %c0_109 = arith.constant 0 : index
    %152 = vector.load %arg43[%c0_108, %c0_109] : memref<16x16xf32, #tpu.memory_space<vmem>>, vector<16x8xf32>
    %153 = arith.addf %107, %152 : vector<16x8xf32>
    %154 = vector.broadcast %111 : vector<16x1xf32> to vector<16x8xf32>
    %155 = arith.mulf %153, %154 : vector<16x8xf32>
    %156 = vector.broadcast %112 : vector<16x1xf32> to vector<16x8xf32>
    %157 = arith.addf %155, %156 : vector<16x8xf32>
    %cst_110 = arith.constant dense<0.000000e+00> : vector<32x8xf32>
    %158 = tpu.matmul %113, %157, %cst_110 {dimension_numbers = #tpu.dot_dimension_numbers<[1], [0], [0], [1], [0, 0, 1, 1], [], []>} : vector<32x16xf32>, vector<16x8xf32>, vector<32x8xf32> -> vector<32x8xf32>
    %cst_111 = arith.constant 0.000000e+00 : f32
    %159 = vector.broadcast %cst_111 : f32 to vector<32x8xf32>
    %160 = arith.cmpf oge, %158, %159 : vector<32x8xf32>
    %cst_112 = arith.constant 2.000000e-01 : f32
    %161 = vector.broadcast %cst_112 : f32 to vector<32x8xf32>
    %162 = arith.mulf %161, %158 : vector<32x8xf32>
    %163 = arith.select %160, %158, %162 : vector<32x8xi1>, vector<32x8xf32>
    %cst_113 = arith.constant dense<0.000000e+00> : vector<16x8xf32>
    %164 = tpu.matmul %114, %163, %cst_113 {dimension_numbers = #tpu.dot_dimension_numbers<[1], [0], [0], [1], [0, 0, 1, 1], [], []>} : vector<16x32xf32>, vector<32x8xf32>, vector<16x8xf32> -> vector<16x8xf32>
    %165 = arith.addf %157, %164 : vector<16x8xf32>
    %166 = vector.broadcast %115 : vector<16x1xf32> to vector<16x8xf32>
    %167 = arith.mulf %165, %166 : vector<16x8xf32>
    %168 = vector.broadcast %116 : vector<16x1xf32> to vector<16x8xf32>
    %169 = arith.addf %167, %168 : vector<16x8xf32>
    %c0_114 = arith.constant 0 : index
    %c0_115 = arith.constant 0 : index
    %170 = vector.load %arg29[%c0_114, %c0_115] : memref<16x16xf32, #tpu.memory_space<vmem>>, vector<16x16xf32>
    %c0_116 = arith.constant 0 : index
    %c0_117 = arith.constant 0 : index
    %171 = vector.load %arg30[%c0_116, %c0_117] : memref<16x16xf32, #tpu.memory_space<vmem>>, vector<16x16xf32>
    %c0_118 = arith.constant 0 : index
    %c0_119 = arith.constant 0 : index
    %172 = vector.load %arg31[%c0_118, %c0_119] : memref<16x16xf32, #tpu.memory_space<vmem>>, vector<16x16xf32>
    %c0_120 = arith.constant 0 : index
    %c0_121 = arith.constant 0 : index
    %173 = vector.load %arg32[%c0_120, %c0_121] : memref<16x16xf32, #tpu.memory_space<vmem>>, vector<16x16xf32>
    %cst_122 = arith.constant dense<0.000000e+00> : vector<16x16xf32>
    %174 = tpu.matmul %170, %1, %cst_122 {dimension_numbers = #tpu.dot_dimension_numbers<[1], [0], [0], [1], [0, 0, 1, 1], [], []>} : vector<16x16xf32>, vector<16x16xf32>, vector<16x16xf32> -> vector<16x16xf32>
    %cst_123 = arith.constant dense<0.000000e+00> : vector<16x8xf32>
    %175 = tpu.matmul %171, %169, %cst_123 {dimension_numbers = #tpu.dot_dimension_numbers<[1], [0], [0], [1], [0, 0, 1, 1], [], []>} : vector<16x16xf32>, vector<16x8xf32>, vector<16x8xf32> -> vector<16x8xf32>
    %cst_124 = arith.constant dense<0.000000e+00> : vector<16x8xf32>
    %176 = tpu.matmul %172, %169, %cst_124 {dimension_numbers = #tpu.dot_dimension_numbers<[1], [0], [0], [1], [0, 0, 1, 1], [], []>} : vector<16x16xf32>, vector<16x8xf32>, vector<16x8xf32> -> vector<16x8xf32>
    %cst_125 = arith.constant dense<0.000000e+00> : vector<16x8xf32>
    %177 = tpu.matmul %174, %175, %cst_125 {dimension_numbers = #tpu.dot_dimension_numbers<[0], [0], [1], [1], [0, 1, 1, 1], [], []>} : vector<16x16xf32>, vector<16x8xf32>, vector<16x8xf32> -> vector<16x8xf32>
    %cst_126 = arith.constant dense<0xFF800000> : vector<16xf32>
    %178 = vector.multi_reduction <maximumf>, %177, %cst_126 [1] : vector<16x8xf32> to vector<16xf32>
    %179 = vector.shape_cast %178 : vector<16xf32> to vector<16x1xf32>
    %180 = vector.broadcast %179 : vector<16x1xf32> to vector<16x8xf32>
    %181 = arith.subf %177, %180 : vector<16x8xf32>
    %182 = math.exp %181 : vector<16x8xf32>
    %cst_127 = arith.constant dense<0.000000e+00> : vector<16xf32>
    %183 = vector.multi_reduction <add>, %182, %cst_127 [1] : vector<16x8xf32> to vector<16xf32>
    %184 = vector.shape_cast %183 : vector<16xf32> to vector<16x1xf32>
    %185 = tpu.reciprocal %184 {approx = true} : vector<16x1xf32> -> vector<16x1xf32>
    %186 = vector.broadcast %185 : vector<16x1xf32> to vector<16x8xf32>
    %187 = arith.mulf %182, %186 : vector<16x8xf32>
    %cst_128 = arith.constant dense<0.000000e+00> : vector<16x16xf32>
    %188 = tpu.matmul %173, %1, %cst_128 {dimension_numbers = #tpu.dot_dimension_numbers<[1], [0], [0], [1], [0, 0, 1, 1], [], []>} : vector<16x16xf32>, vector<16x16xf32>, vector<16x16xf32> -> vector<16x16xf32>
    %cst_129 = arith.constant dense<0.000000e+00> : vector<16x16xf32>
    %189 = tpu.matmul %176, %187, %cst_129 {dimension_numbers = #tpu.dot_dimension_numbers<[1], [1], [0], [0], [0, 0, 1, 0], [], []>} : vector<16x8xf32>, vector<16x8xf32>, vector<16x16xf32> -> vector<16x16xf32>
    %190 = arith.addf %188, %189 : vector<16x16xf32>
    %c0_130 = arith.constant 0 : index
    %c0_131 = arith.constant 0 : index
    %191 = vector.load %arg33[%c0_130, %c0_131] : memref<16x16xf32, #tpu.memory_space<vmem>>, vector<16x16xf32>
    %c0_132 = arith.constant 0 : index
    %c0_133 = arith.constant 0 : index
    %192 = vector.load %arg34[%c0_132, %c0_133] : memref<16x16xf32, #tpu.memory_space<vmem>>, vector<16x16xf32>
    %c0_134 = arith.constant 0 : index
    %c0_135 = arith.constant 0 : index
    %193 = vector.load %arg35[%c0_134, %c0_135] : memref<16x16xf32, #tpu.memory_space<vmem>>, vector<16x16xf32>
    %c0_136 = arith.constant 0 : index
    %c0_137 = arith.constant 0 : index
    %194 = vector.load %arg36[%c0_136, %c0_137] : memref<16x1xf32, #tpu.memory_space<vmem>>, vector<16x1xf32>
    %c0_138 = arith.constant 0 : index
    %c0_139 = arith.constant 0 : index
    %195 = vector.load %arg37[%c0_138, %c0_139] : memref<16x1xf32, #tpu.memory_space<vmem>>, vector<16x1xf32>
    %c0_140 = arith.constant 0 : index
    %c0_141 = arith.constant 0 : index
    %196 = vector.load %arg38[%c0_140, %c0_141] : memref<32x16xf32, #tpu.memory_space<vmem>>, vector<32x16xf32>
    %c0_142 = arith.constant 0 : index
    %c0_143 = arith.constant 0 : index
    %197 = vector.load %arg39[%c0_142, %c0_143] : memref<16x32xf32, #tpu.memory_space<vmem>>, vector<16x32xf32>
    %c0_144 = arith.constant 0 : index
    %c0_145 = arith.constant 0 : index
    %198 = vector.load %arg40[%c0_144, %c0_145] : memref<16x1xf32, #tpu.memory_space<vmem>>, vector<16x1xf32>
    %c0_146 = arith.constant 0 : index
    %c0_147 = arith.constant 0 : index
    %199 = vector.load %arg41[%c0_146, %c0_147] : memref<16x1xf32, #tpu.memory_space<vmem>>, vector<16x1xf32>
    %cst_148 = arith.constant dense<0.000000e+00> : vector<16x16xf32>
    %200 = tpu.matmul %191, %190, %cst_148 {dimension_numbers = #tpu.dot_dimension_numbers<[1], [0], [0], [1], [0, 0, 1, 1], [], []>} : vector<16x16xf32>, vector<16x16xf32>, vector<16x16xf32> -> vector<16x16xf32>
    %cst_149 = arith.constant dense<0.000000e+00> : vector<16x16xf32>
    %201 = tpu.matmul %192, %190, %cst_149 {dimension_numbers = #tpu.dot_dimension_numbers<[1], [0], [0], [1], [0, 0, 1, 1], [], []>} : vector<16x16xf32>, vector<16x16xf32>, vector<16x16xf32> -> vector<16x16xf32>
    %cst_150 = arith.constant dense<0.000000e+00> : vector<16x16xf32>
    %202 = tpu.matmul %193, %190, %cst_150 {dimension_numbers = #tpu.dot_dimension_numbers<[1], [0], [0], [1], [0, 0, 1, 1], [], []>} : vector<16x16xf32>, vector<16x16xf32>, vector<16x16xf32> -> vector<16x16xf32>
    %203 = vector.extract_strided_slice %200 {offsets = [0, 0], sizes = [8, 16], strides = [1, 1]} : vector<16x16xf32> to vector<8x16xf32>
    %204 = vector.extract_strided_slice %201 {offsets = [0, 0], sizes = [8, 16], strides = [1, 1]} : vector<16x16xf32> to vector<8x16xf32>
    %205 = vector.extract_strided_slice %202 {offsets = [0, 0], sizes = [8, 16], strides = [1, 1]} : vector<16x16xf32> to vector<8x16xf32>
    %cst_151 = arith.constant dense<0.000000e+00> : vector<16x16xf32>
    %206 = tpu.matmul %203, %204, %cst_151 {dimension_numbers = #tpu.dot_dimension_numbers<[0], [0], [1], [1], [0, 1, 1, 1], [], []>} : vector<8x16xf32>, vector<8x16xf32>, vector<16x16xf32> -> vector<16x16xf32>
    %cst_152 = arith.constant dense<0xFF800000> : vector<16xf32>
    %207 = vector.multi_reduction <maximumf>, %206, %cst_152 [1] : vector<16x16xf32> to vector<16xf32>
    %208 = vector.shape_cast %207 : vector<16xf32> to vector<16x1xf32>
    %209 = vector.broadcast %208 : vector<16x1xf32> to vector<16x16xf32>
    %210 = arith.subf %206, %209 : vector<16x16xf32>
    %211 = math.exp %210 : vector<16x16xf32>
    %cst_153 = arith.constant dense<0.000000e+00> : vector<16xf32>
    %212 = vector.multi_reduction <add>, %211, %cst_153 [1] : vector<16x16xf32> to vector<16xf32>
    %213 = vector.shape_cast %212 : vector<16xf32> to vector<16x1xf32>
    %214 = tpu.reciprocal %213 {approx = true} : vector<16x1xf32> -> vector<16x1xf32>
    %215 = vector.broadcast %214 : vector<16x1xf32> to vector<16x16xf32>
    %216 = arith.mulf %211, %215 : vector<16x16xf32>
    %cst_154 = arith.constant dense<0.000000e+00> : vector<8x16xf32>
    %217 = tpu.matmul %205, %216, %cst_154 {dimension_numbers = #tpu.dot_dimension_numbers<[1], [1], [0], [0], [0, 0, 1, 0], [], []>} : vector<8x16xf32>, vector<16x16xf32>, vector<8x16xf32> -> vector<8x16xf32>
    %c0_155 = arith.constant 0 : index
    %c0_156 = arith.constant 0 : index
    %218 = vector.load %arg43[%c0_155, %c0_156] : memref<16x16xf32, #tpu.memory_space<vmem>>, vector<8x16xf32>
    tpu.vector_store %arg43[%c0_155, %c0_156], %217 {strides = array<i32>} : memref<16x16xf32, #tpu.memory_space<vmem>>, vector<8x16xf32>,
    %219 = vector.extract_strided_slice %200 {offsets = [8, 0], sizes = [8, 16], strides = [1, 1]} : vector<16x16xf32> to vector<8x16xf32>
    %220 = vector.extract_strided_slice %201 {offsets = [8, 0], sizes = [8, 16], strides = [1, 1]} : vector<16x16xf32> to vector<8x16xf32>
    %221 = vector.extract_strided_slice %202 {offsets = [8, 0], sizes = [8, 16], strides = [1, 1]} : vector<16x16xf32> to vector<8x16xf32>
    %cst_157 = arith.constant dense<0.000000e+00> : vector<16x16xf32>
    %222 = tpu.matmul %219, %220, %cst_157 {dimension_numbers = #tpu.dot_dimension_numbers<[0], [0], [1], [1], [0, 1, 1, 1], [], []>} : vector<8x16xf32>, vector<8x16xf32>, vector<16x16xf32> -> vector<16x16xf32>
    %cst_158 = arith.constant dense<0xFF800000> : vector<16xf32>
    %223 = vector.multi_reduction <maximumf>, %222, %cst_158 [1] : vector<16x16xf32> to vector<16xf32>
    %224 = vector.shape_cast %223 : vector<16xf32> to vector<16x1xf32>
    %225 = vector.broadcast %224 : vector<16x1xf32> to vector<16x16xf32>
    %226 = arith.subf %222, %225 : vector<16x16xf32>
    %227 = math.exp %226 : vector<16x16xf32>
    %cst_159 = arith.constant dense<0.000000e+00> : vector<16xf32>
    %228 = vector.multi_reduction <add>, %227, %cst_159 [1] : vector<16x16xf32> to vector<16xf32>
    %229 = vector.shape_cast %228 : vector<16xf32> to vector<16x1xf32>
    %230 = tpu.reciprocal %229 {approx = true} : vector<16x1xf32> -> vector<16x1xf32>
    %231 = vector.broadcast %230 : vector<16x1xf32> to vector<16x16xf32>
    %232 = arith.mulf %227, %231 : vector<16x16xf32>
    %cst_160 = arith.constant dense<0.000000e+00> : vector<8x16xf32>
    %233 = tpu.matmul %221, %232, %cst_160 {dimension_numbers = #tpu.dot_dimension_numbers<[1], [1], [0], [0], [0, 0, 1, 0], [], []>} : vector<8x16xf32>, vector<16x16xf32>, vector<8x16xf32> -> vector<8x16xf32>
    %c8_161 = arith.constant 8 : index
    %c0_162 = arith.constant 0 : index
    %234 = vector.load %arg43[%c8_161, %c0_162] : memref<16x16xf32, #tpu.memory_space<vmem>>, vector<8x16xf32>
    tpu.vector_store %arg43[%c8_161, %c0_162], %233 {strides = array<i32>} : memref<16x16xf32, #tpu.memory_space<vmem>>, vector<8x16xf32>,
    %c0_163 = arith.constant 0 : index
    %c0_164 = arith.constant 0 : index
    %235 = vector.load %arg43[%c0_163, %c0_164] : memref<16x16xf32, #tpu.memory_space<vmem>>, vector<16x16xf32>
    %236 = arith.addf %190, %235 : vector<16x16xf32>
    %237 = vector.broadcast %194 : vector<16x1xf32> to vector<16x16xf32>
    %238 = arith.mulf %236, %237 : vector<16x16xf32>
    %239 = vector.broadcast %195 : vector<16x1xf32> to vector<16x16xf32>
    %240 = arith.addf %238, %239 : vector<16x16xf32>
    %cst_165 = arith.constant dense<0.000000e+00> : vector<32x16xf32>
    %241 = tpu.matmul %196, %240, %cst_165 {dimension_numbers = #tpu.dot_dimension_numbers<[1], [0], [0], [1], [0, 0, 1, 1], [], []>} : vector<32x16xf32>, vector<16x16xf32>, vector<32x16xf32> -> vector<32x16xf32>
    %cst_166 = arith.constant 0.000000e+00 : f32
    %242 = vector.broadcast %cst_166 : f32 to vector<32x16xf32>
    %243 = arith.cmpf oge, %241, %242 : vector<32x16xf32>
    %cst_167 = arith.constant 2.000000e-01 : f32
    %244 = vector.broadcast %cst_167 : f32 to vector<32x16xf32>
    %245 = arith.mulf %244, %241 : vector<32x16xf32>
    %246 = arith.select %243, %241, %245 : vector<32x16xi1>, vector<32x16xf32>
    %cst_168 = arith.constant dense<0.000000e+00> : vector<16x16xf32>
    %247 = tpu.matmul %197, %246, %cst_168 {dimension_numbers = #tpu.dot_dimension_numbers<[1], [0], [0], [1], [0, 0, 1, 1], [], []>} : vector<16x32xf32>, vector<32x16xf32>, vector<16x16xf32> -> vector<16x16xf32>
    %248 = arith.addf %240, %247 : vector<16x16xf32>
    %249 = vector.broadcast %198 : vector<16x1xf32> to vector<16x16xf32>
    %250 = arith.mulf %248, %249 : vector<16x16xf32>
    %251 = vector.broadcast %199 : vector<16x1xf32> to vector<16x16xf32>
    %252 = arith.addf %250, %251 : vector<16x16xf32>
    %c0_169 = arith.constant 0 : index
    %c0_170 = arith.constant 0 : index
    %c0_171 = arith.constant 0 : index
    %253 = vector.load %arg42[%c0_169, %c0_170, %c0_171] : memref<1x16x16xf32, #tpu.memory_space<vmem>>, vector<1x16x16xf32>
    %254 = vector.shape_cast %253 : vector<1x16x16xf32> to vector<16x16xf32>
    %255 = vector.shape_cast %252 : vector<16x16xf32> to vector<1x16x16xf32>
    tpu.vector_store %arg42[%c0_169, %c0_170, %c0_171], %255 {strides = array<i32>} : memref<1x16x16xf32, #tpu.memory_space<vmem>>, vector<1x16x16xf32>,
    return
  }
  func.func @transform_0(%arg0: i32) -> (i32, i32, i32) {
    %c0_i32 = arith.constant 0 : i32
    %c0_i32_0 = arith.constant 0 : i32
    %c0_i32_1 = arith.constant 0 : i32
    return %arg0, %c0_i32, %c0_i32_0 : i32, i32, i32
  }
  func.func @transform_1(%arg0: i32) -> (i32, i32, i32) {
    %c0_i32 = arith.constant 0 : i32
    %c0_i32_0 = arith.constant 0 : i32
    %c0_i32_1 = arith.constant 0 : i32
    return %arg0, %c0_i32, %c0_i32_0 : i32, i32, i32
  }
  func.func @transform_2(%arg0: i32) -> (i32, i32, i32) {
    %c0_i32 = arith.constant 0 : i32
    %c0_i32_0 = arith.constant 0 : i32
    %c0_i32_1 = arith.constant 0 : i32
    return %arg0, %c0_i32, %c0_i32_0 : i32, i32, i32
  }
  func.func @transform_3(%arg0: i32) -> (i32, i32) {
    %c0_i32 = arith.constant 0 : i32
    %c0_i32_0 = arith.constant 0 : i32
    %c0_i32_1 = arith.constant 0 : i32
    return %c0_i32, %c0_i32_0 : i32, i32
  }
  func.func @transform_4(%arg0: i32) -> (i32, i32) {
    %c0_i32 = arith.constant 0 : i32
    %c0_i32_0 = arith.constant 0 : i32
    %c0_i32_1 = arith.constant 0 : i32
    return %c0_i32, %c0_i32_0 : i32, i32
  }
  func.func @transform_5(%arg0: i32) -> (i32, i32) {
    %c0_i32 = arith.constant 0 : i32
    %c0_i32_0 = arith.constant 0 : i32
    %c0_i32_1 = arith.constant 0 : i32
    return %c0_i32, %c0_i32_0 : i32, i32
  }
  func.func @transform_6(%arg0: i32) -> (i32, i32) {
    %c0_i32 = arith.constant 0 : i32
    %c0_i32_0 = arith.constant 0 : i32
    %c0_i32_1 = arith.constant 0 : i32
    return %c0_i32, %c0_i32_0 : i32, i32
  }
  func.func @transform_7(%arg0: i32) -> (i32, i32) {
    %c0_i32 = arith.constant 0 : i32
    %c0_i32_0 = arith.constant 0 : i32
    %c0_i32_1 = arith.constant 0 : i32
    return %c0_i32, %c0_i32_0 : i32, i32
  }
  func.func @transform_8(%arg0: i32) -> (i32, i32) {
    %c0_i32 = arith.constant 0 : i32
    %c0_i32_0 = arith.constant 0 : i32
    %c0_i32_1 = arith.constant 0 : i32
    return %c0_i32, %c0_i32_0 : i32, i32
  }
  func.func @transform_9(%arg0: i32) -> (i32, i32) {
    %c0_i32 = arith.constant 0 : i32
    %c0_i32_0 = arith.constant 0 : i32
    %c0_i32_1 = arith.constant 0 : i32
    return %c0_i32, %c0_i32_0 : i32, i32
  }
  func.func @transform_10(%arg0: i32) -> (i32, i32) {
    %c0_i32 = arith.constant 0 : i32
    %c0_i32_0 = arith.constant 0 : i32
    %c0_i32_1 = arith.constant 0 : i32
    return %c0_i32, %c0_i32_0 : i32, i32
  }
  func.func @transform_11(%arg0: i32) -> (i32, i32) {
    %c0_i32 = arith.constant 0 : i32
    %c0_i32_0 = arith.constant 0 : i32
    %c0_i32_1 = arith.constant 0 : i32
    return %c0_i32, %c0_i32_0 : i32, i32
  }
  func.func @transform_12(%arg0: i32) -> (i32, i32) {
    %c0_i32 = arith.constant 0 : i32
    %c0_i32_0 = arith.constant 0 : i32
    %c0_i32_1 = arith.constant 0 : i32
    return %c0_i32, %c0_i32_0 : i32, i32
  }
  func.func @transform_13(%arg0: i32) -> (i32, i32) {
    %c0_i32 = arith.constant 0 : i32
    %c0_i32_0 = arith.constant 0 : i32
    %c0_i32_1 = arith.constant 0 : i32
    return %c0_i32, %c0_i32_0 : i32, i32
  }
  func.func @transform_14(%arg0: i32) -> (i32, i32) {
    %c0_i32 = arith.constant 0 : i32
    %c0_i32_0 = arith.constant 0 : i32
    %c0_i32_1 = arith.constant 0 : i32
    return %c0_i32, %c0_i32_0 : i32, i32
  }
  func.func @transform_15(%arg0: i32) -> (i32, i32) {
    %c0_i32 = arith.constant 0 : i32
    %c0_i32_0 = arith.constant 0 : i32
    %c0_i32_1 = arith.constant 0 : i32
    return %c0_i32, %c0_i32_0 : i32, i32
  }
  func.func @transform_16(%arg0: i32) -> (i32, i32) {
    %c0_i32 = arith.constant 0 : i32
    %c0_i32_0 = arith.constant 0 : i32
    %c0_i32_1 = arith.constant 0 : i32
    return %c0_i32, %c0_i32_0 : i32, i32
  }
  func.func @transform_17(%arg0: i32) -> (i32, i32) {
    %c0_i32 = arith.constant 0 : i32
    %c0_i32_0 = arith.constant 0 : i32
    %c0_i32_1 = arith.constant 0 : i32
    return %c0_i32, %c0_i32_0 : i32, i32
  }
  func.func @transform_18(%arg0: i32) -> (i32, i32) {
    %c0_i32 = arith.constant 0 : i32
    %c0_i32_0 = arith.constant 0 : i32
    %c0_i32_1 = arith.constant 0 : i32
    return %c0_i32, %c0_i32_0 : i32, i32
  }
  func.func @transform_19(%arg0: i32) -> (i32, i32) {
    %c0_i32 = arith.constant 0 : i32
    %c0_i32_0 = arith.constant 0 : i32
    %c0_i32_1 = arith.constant 0 : i32
    return %c0_i32, %c0_i32_0 : i32, i32
  }
  func.func @transform_20(%arg0: i32) -> (i32, i32) {
    %c0_i32 = arith.constant 0 : i32
    %c0_i32_0 = arith.constant 0 : i32
    %c0_i32_1 = arith.constant 0 : i32
    return %c0_i32, %c0_i32_0 : i32, i32
  }
  func.func @transform_21(%arg0: i32) -> (i32, i32) {
    %c0_i32 = arith.constant 0 : i32
    %c0_i32_0 = arith.constant 0 : i32
    %c0_i32_1 = arith.constant 0 : i32
    return %c0_i32, %c0_i32_0 : i32, i32
  }
  func.func @transform_22(%arg0: i32) -> (i32, i32) {
    %c0_i32 = arith.constant 0 : i32
    %c0_i32_0 = arith.constant 0 : i32
    %c0_i32_1 = arith.constant 0 : i32
    return %c0_i32, %c0_i32_0 : i32, i32
  }
  func.func @transform_23(%arg0: i32) -> (i32, i32) {
    %c0_i32 = arith.constant 0 : i32
    %c0_i32_0 = arith.constant 0 : i32
    %c0_i32_1 = arith.constant 0 : i32
    return %c0_i32, %c0_i32_0 : i32, i32
  }
  func.func @transform_24(%arg0: i32) -> (i32, i32) {
    %c0_i32 = arith.constant 0 : i32
    %c0_i32_0 = arith.constant 0 : i32
    %c0_i32_1 = arith.constant 0 : i32
    return %c0_i32, %c0_i32_0 : i32, i32
  }
  func.func @transform_25(%arg0: i32) -> (i32, i32) {
    %c0_i32 = arith.constant 0 : i32
    %c0_i32_0 = arith.constant 0 : i32
    %c0_i32_1 = arith.constant 0 : i32
    return %c0_i32, %c0_i32_0 : i32, i32
  }
  func.func @transform_26(%arg0: i32) -> (i32, i32) {
    %c0_i32 = arith.constant 0 : i32
    %c0_i32_0 = arith.constant 0 : i32
    %c0_i32_1 = arith.constant 0 : i32
    return %c0_i32, %c0_i32_0 : i32, i32
  }
  func.func @transform_27(%arg0: i32) -> (i32, i32) {
    %c0_i32 = arith.constant 0 : i32
    %c0_i32_0 = arith.constant 0 : i32
    %c0_i32_1 = arith.constant 0 : i32
    return %c0_i32, %c0_i32_0 : i32, i32
  }
  func.func @transform_28(%arg0: i32) -> (i32, i32) {
    %c0_i32 = arith.constant 0 : i32
    %c0_i32_0 = arith.constant 0 : i32
    %c0_i32_1 = arith.constant 0 : i32
    return %c0_i32, %c0_i32_0 : i32, i32
  }
  func.func @transform_29(%arg0: i32) -> (i32, i32) {
    %c0_i32 = arith.constant 0 : i32
    %c0_i32_0 = arith.constant 0 : i32
    %c0_i32_1 = arith.constant 0 : i32
    return %c0_i32, %c0_i32_0 : i32, i32
  }
  func.func @transform_30(%arg0: i32) -> (i32, i32) {
    %c0_i32 = arith.constant 0 : i32
    %c0_i32_0 = arith.constant 0 : i32
    %c0_i32_1 = arith.constant 0 : i32
    return %c0_i32, %c0_i32_0 : i32, i32
  }
  func.func @transform_31(%arg0: i32) -> (i32, i32) {
    %c0_i32 = arith.constant 0 : i32
    %c0_i32_0 = arith.constant 0 : i32
    %c0_i32_1 = arith.constant 0 : i32
    return %c0_i32, %c0_i32_0 : i32, i32
  }
  func.func @transform_32(%arg0: i32) -> (i32, i32) {
    %c0_i32 = arith.constant 0 : i32
    %c0_i32_0 = arith.constant 0 : i32
    %c0_i32_1 = arith.constant 0 : i32
    return %c0_i32, %c0_i32_0 : i32, i32
  }
  func.func @transform_33(%arg0: i32) -> (i32, i32) {
    %c0_i32 = arith.constant 0 : i32
    %c0_i32_0 = arith.constant 0 : i32
    %c0_i32_1 = arith.constant 0 : i32
    return %c0_i32, %c0_i32_0 : i32, i32
  }
  func.func @transform_34(%arg0: i32) -> (i32, i32) {
    %c0_i32 = arith.constant 0 : i32
    %c0_i32_0 = arith.constant 0 : i32
    %c0_i32_1 = arith.constant 0 : i32
    return %c0_i32, %c0_i32_0 : i32, i32
  }
  func.func @transform_35(%arg0: i32) -> (i32, i32) {
    %c0_i32 = arith.constant 0 : i32
    %c0_i32_0 = arith.constant 0 : i32
    %c0_i32_1 = arith.constant 0 : i32
    return %c0_i32, %c0_i32_0 : i32, i32
  }
  func.func @transform_36(%arg0: i32) -> (i32, i32) {
    %c0_i32 = arith.constant 0 : i32
    %c0_i32_0 = arith.constant 0 : i32
    %c0_i32_1 = arith.constant 0 : i32
    return %c0_i32, %c0_i32_0 : i32, i32
  }
  func.func @transform_37(%arg0: i32) -> (i32, i32) {
    %c0_i32 = arith.constant 0 : i32
    %c0_i32_0 = arith.constant 0 : i32
    %c0_i32_1 = arith.constant 0 : i32
    return %c0_i32, %c0_i32_0 : i32, i32
  }
  func.func @transform_38(%arg0: i32) -> (i32, i32) {
    %c0_i32 = arith.constant 0 : i32
    %c0_i32_0 = arith.constant 0 : i32
    %c0_i32_1 = arith.constant 0 : i32
    return %c0_i32, %c0_i32_0 : i32, i32
  }
  func.func @transform_39(%arg0: i32) -> (i32, i32) {
    %c0_i32 = arith.constant 0 : i32
    %c0_i32_0 = arith.constant 0 : i32
    %c0_i32_1 = arith.constant 0 : i32
    return %c0_i32, %c0_i32_0 : i32, i32
  }
  func.func @transform_40(%arg0: i32) -> (i32, i32) {
    %c0_i32 = arith.constant 0 : i32
    %c0_i32_0 = arith.constant 0 : i32
    %c0_i32_1 = arith.constant 0 : i32
    return %c0_i32, %c0_i32_0 : i32, i32
  }
  func.func @transform_41(%arg0: i32) -> (i32, i32, i32) {
    %c0_i32 = arith.constant 0 : i32
    %c0_i32_0 = arith.constant 0 : i32
    %c0_i32_1 = arith.constant 0 : i32
    return %arg0, %c0_i32, %c0_i32_0 : i32, i32, i32
  }
}

</mosaic_0001>

<llo_original>
// kernel: feature_learning_block.4
$region0: #{feature_learning_block.4}
  #allocation0 [shape = 'u32[]', space=smem, size = 0x4, offset = 0x4, fixed_abs, tag = 'smem constant byte address 0x4 - core index']
  #allocation1 [shape = 'u32[72,128]{1,0:T(1,128)}', space=vmem, size = 0x9000, scoped, tag = 'internal scratch']
  %s0 = inlined_call_operand.vmem [shape: f32[2,6,64], index: 0, kind: input, shape index: {}]
  %s1 = inlined_call_operand.vmem [shape: f32[8,6], index: 1, kind: input, shape index: {}]
  %s2 = inlined_call_operand.vmem [shape: f32[8,1], index: 2, kind: input, shape index: {}]
  %s3 = inlined_call_operand.vmem [shape: f32[8,8], index: 3, kind: input, shape index: {}]
  %s4 = inlined_call_operand.vmem [shape: f32[8,1], index: 4, kind: input, shape index: {}]
  %s5 = inlined_call_operand.vmem [shape: f32[2,8,16], index: 5, kind: output, shape index: {}]
  %s6 = sld [smem:[#allocation0]]
  $region53: #{feature_learning_block.4} parent=0
    _
  %s8 = ssub.s32 1, %s6
  %s9 = scalar_select 0, %s8, %s6
  loop: start=0, step=1, limit=4
  $region2: #{feature_learning_block.4} parent=0 // loop_pre_header
    _
  $region3: #{feature_learning_block.4} parent=0 // loop_header
    %s11 = sphi 0, %s15
    %p12 = scmp.ge.s32.totalorder %s11, 4
    %s21 = sphi 0, %s23
    %s24 = sphi 0, %s21
    %s25 = sphi 0, %s24
    %s41 = sphi 0, %s25
    %s45 = sphi 0, %s45
    %s47 = sphi 0, %s45
    %s48 = sphi 0, %s47
    %s62 = sphi 0, %s48
    %s66 = sphi 0, %s66
    %s68 = sphi 0, %s66
    %s69 = sphi 0, %s68
    %s83 = sphi 0, %s69
    %s87 = sphi 0, %s87
    %s89 = sphi 0, %s87
    %s90 = sphi 0, %s89
    %s104 = sphi 0, %s90
    %s108 = sphi 0, %s108
    %s110 = sphi 0, %s108
    %s111 = sphi 0, %s110
    %s125 = sphi 0, %s111
    %s131 = sphi 0, %s133
    %s134 = sphi 0, %s131
    %s135 = sphi 0, %s134
    %s151 = sphi 0, %s135
  $region4: #{feature_learning_block.4} parent=0 // loop_header_branch
    %14 = sbr.rel (%p12) target = $region8
  $region5: #{feature_learning_block.4} parent=0 // loop_body
    %s16 = ssub.s32 %s11, 1
    %s17 = ssub.s32 %s11, 2
    %s18 = sadd.s32 %s11, 1
    %s19 = ssub.s32 %s11, %s18
    %p20 = scmp.eq.s32.totalorder %s19, 0
    %s22 = sadd.s32 %s21, 1
    %s23 = scalar_select %p20, %s21, %s22
    %p26 = pneg %p20
    %p27 = scmp.eq.s32.totalorder %s11, 1
    %p28 = por %p26, %p27
    %p29 = scmp.ne.s32.totalorder %s21, %s24
    %p30 = scmp.eq.s32.totalorder %s11, 0
    %p31 = por %p29, %p30
    %p32 = scmp.ne.s32.totalorder %s21, %s24
    %p33 = scmp.eq.s32.totalorder %s16, 1
    %p34 = por %p32, %p33
    %p35 = scmp.ne.s32.totalorder %s24, %s25
    %p36 = scmp.eq.s32.totalorder %s16, 0
    %p37 = por %p35, %p36
    %p38 = scmp.ne.s32.totalorder %s24, %s25
    %p39 = scmp.eq.s32.totalorder %s17, 1
    %p40 = por %p38, %p39
    %p42 = scmp.ne.s32.totalorder %s25, %s41
    %p43 = scmp.eq.s32.totalorder %s17, 0
    %p44 = por %p42, %p43
    %s46 = sadd.s32 %s45, 1
    %p49 = scmp.eq.s32.totalorder %s11, 1
    %p50 = scmp.ne.s32.totalorder %s45, %s47
    %p51 = scmp.eq.s32.totalorder %s11, 0
    %p52 = por %p50, %p51
    %p53 = scmp.ne.s32.totalorder %s45, %s47
    %p54 = scmp.eq.s32.totalorder %s16, 1
    %p55 = por %p53, %p54
    %p56 = scmp.ne.s32.totalorder %s47, %s48
    %p57 = scmp.eq.s32.totalorder %s16, 0
    %p58 = por %p56, %p57
    %p59 = scmp.ne.s32.totalorder %s47, %s48
    %p60 = scmp.eq.s32.totalorder %s17, 1
    %p61 = por %p59, %p60
    %p63 = scmp.ne.s32.totalorder %s48, %s62
    %p64 = scmp.eq.s32.totalorder %s17, 0
    %p65 = por %p63, %p64
    %s67 = sadd.s32 %s66, 1
    %p70 = scmp.eq.s32.totalorder %s11, 1
    %p71 = scmp.ne.s32.totalorder %s66, %s68
    %p72 = scmp.eq.s32.totalorder %s11, 0
    %p73 = por %p71, %p72
    %p74 = scmp.ne.s32.totalorder %s66, %s68
    %p75 = scmp.eq.s32.totalorder %s16, 1
    %p76 = por %p74, %p75
    %p77 = scmp.ne.s32.totalorder %s68, %s69
    %p78 = scmp.eq.s32.totalorder %s16, 0
    %p79 = por %p77, %p78
    %p80 = scmp.ne.s32.totalorder %s68, %s69
    %p81 = scmp.eq.s32.totalorder %s17, 1
    %p82 = por %p80, %p81
    %p84 = scmp.ne.s32.totalorder %s69, %s83
    %p85 = scmp.eq.s32.totalorder %s17, 0
    %p86 = por %p84, %p85
    %s88 = sadd.s32 %s87, 1
    %p91 = scmp.eq.s32.totalorder %s11, 1
    %p92 = scmp.ne.s32.totalorder %s87, %s89
    %p93 = scmp.eq.s32.totalorder %s11, 0
    %p94 = por %p92, %p93
    %p95 = scmp.ne.s32.totalorder %s87, %s89
    %p96 = scmp.eq.s32.totalorder %s16, 1
    %p97 = por %p95, %p96
    %p98 = scmp.ne.s32.totalorder %s89, %s90
    %p99 = scmp.eq.s32.totalorder %s16, 0
    %p100 = por %p98, %p99
    %p101 = scmp.ne.s32.totalorder %s89, %s90
    %p102 = scmp.eq.s32.totalorder %s17, 1
    %p103 = por %p101, %p102
    %p105 = scmp.ne.s32.totalorder %s90, %s104
    %p106 = scmp.eq.s32.totalorder %s17, 0
    %p107 = por %p105, %p106
    %s109 = sadd.s32 %s108, 1
    %p112 = scmp.eq.s32.totalorder %s11, 1
    %p113 = scmp.ne.s32.totalorder %s108, %s110
    %p114 = scmp.eq.s32.totalorder %s11, 0
    %p115 = por %p113, %p114
    %p116 = scmp.ne.s32.totalorder %s108, %s110
    %p117 = scmp.eq.s32.totalorder %s16, 1
    %p118 = por %p116, %p117
    %p119 = scmp.ne.s32.totalorder %s110, %s111
    %p120 = scmp.eq.s32.totalorder %s16, 0
    %p121 = por %p119, %p120
    %p122 = scmp.ne.s32.totalorder %s110, %s111
    %p123 = scmp.eq.s32.totalorder %s17, 1
    %p124 = por %p122, %p123
    %p126 = scmp.ne.s32.totalorder %s111, %s125
    %p127 = scmp.eq.s32.totalorder %s17, 0
    %p128 = por %p126, %p127
    %s129 = ssub.s32 %s11, %s18
    %p130 = scmp.eq.s32.totalorder %s129, 0
    %s132 = sadd.s32 %s131, 1
    %s133 = scalar_select %p130, %s131, %s132
    %p136 = pneg %p130
    %p137 = scmp.eq.s32.totalorder %s11, 1
    %p138 = por %p136, %p137
    %p139 = scmp.ne.s32.totalorder %s131, %s134
    %p140 = scmp.eq.s32.totalorder %s11, 0
    %p141 = por %p139, %p140
    %p142 = scmp.ne.s32.totalorder %s131, %s134
    %p143 = scmp.eq.s32.totalorder %s16, 1
    %p144 = por %p142, %p143
    %p145 = scmp.ne.s32.totalorder %s134, %s135
    %p146 = scmp.eq.s32.totalorder %s16, 0
    %p147 = por %p145, %p146
    %p148 = scmp.ne.s32.totalorder %s134, %s135
    %p149 = scmp.eq.s32.totalorder %s17, 1
    %p150 = por %p148, %p149
    %p152 = scmp.ne.s32.totalorder %s135, %s151
    %p153 = scmp.eq.s32.totalorder %s17, 0
    %p154 = por %p152, %p153
    %p155 = scmp.le.s32.totalorder 1, %s11
    %p156 = scmp.lt.s32.totalorder %s11, 3
    %p157 = pnand %p155, %p156
    %p158 = pneg %p157
    // Predicated region
    $region9: #{feature_learning_block.4} parent=5 // pred_check
      _
    $region10: #{feature_learning_block.4} parent=5 // pred_check_branch
      %160 = sbr.rel (%p157) target = $region12
    $region11: #{feature_learning_block.4} parent=5 // pred_region
      %s161 = ssub.s32 %s11, 1
      // Predicated region
      $region13: #{feature_learning_block.4} parent=11 // pred_check
        %p162 = pneg %p58
      $region14: #{feature_learning_block.4} parent=11 // pred_check_branch
        %164 = sbr.rel (%p162) target = $region16
      $region15: #{feature_learning_block.4} parent=11 // pred_region
        _
      $region16: #{feature_learning_block.4} parent=11 // pred_fallthru
        _
      // Predicated region
      $region17: #{feature_learning_block.4} parent=11 // pred_check
        %p165 = pneg %p79
      $region18: #{feature_learning_block.4} parent=11 // pred_check_branch
        %167 = sbr.rel (%p165) target = $region20
      $region19: #{feature_learning_block.4} parent=11 // pred_region
        _
      $region20: #{feature_learning_block.4} parent=11 // pred_fallthru
        _
      // Predicated region
      $region21: #{feature_learning_block.4} parent=11 // pred_check
        %p168 = pneg %p100
      $region22: #{feature_learning_block.4} parent=11 // pred_check_branch
        %170 = sbr.rel (%p168) target = $region24
      $region23: #{feature_learning_block.4} parent=11 // pred_region
        _
      $region24: #{feature_learning_block.4} parent=11 // pred_fallthru
        _
      // Predicated region
      $region25: #{feature_learning_block.4} parent=11 // pred_check
        %p171 = pneg %p121
      $region26: #{feature_learning_block.4} parent=11 // pred_check_branch
        %173 = sbr.rel (%p171) target = $region28
      $region27: #{feature_learning_block.4} parent=11 // pred_region
        _
      $region28: #{feature_learning_block.4} parent=11 // pred_fallthru
        _
    $region12: #{feature_learning_block.4} parent=5 // pred_fallthru
      _
    %p174 = scmp.lt.s32.totalorder %s11, 2
    // Predicated region
    $region29: #{feature_learning_block.4} parent=5 // pred_check
      %p175 = pneg %p174
    $region30: #{feature_learning_block.4} parent=5 // pred_check_branch
      %177 = sbr.rel (%p175) target = $region32
    $region31: #{feature_learning_block.4} parent=5 // pred_region
      // Predicated region
      $region33: #{feature_learning_block.4} parent=31 // pred_check
        %p178 = pneg %p31
      $region34: #{feature_learning_block.4} parent=31 // pred_check_branch
        %180 = sbr.rel (%p178) target = $region36
      $region35: #{feature_learning_block.4} parent=31 // pred_region
        %p181 = scmp.lt.s32.totalorder %s11, 1
        %s182 = scalar_select %p181, %s11, 1
        %s183 = smul.addr %s182, 8
        %s184 = scalar_lea.vmem %s0, %s183
      $region36: #{feature_learning_block.4} parent=31 // pred_fallthru
        _
    $region32: #{feature_learning_block.4} parent=5 // pred_fallthru
      _
    %p185 = scmp.le.s32.totalorder 1, %s11
    %p186 = scmp.lt.s32.totalorder %s11, 3
    %p187 = pnand %p185, %p186
    %p188 = pneg %p187
    // Predicated region
    $region37: #{feature_learning_block.4} parent=5 // pred_check
      _
    $region38: #{feature_learning_block.4} parent=5 // pred_check_branch
      %190 = sbr.rel (%p187) target = $region40
    $region39: #{feature_learning_block.4} parent=5 // pred_region
      %s191 = ssub.s32 %s11, 1
      %p192 = scmp.lt.s32.totalorder %s16, 1
      %s193 = scalar_select %p192, %s16, 1
      %s194 = smul.addr %s193, 8
      %s195 = scalar_lea.vmem %s0, %s194
      %p196 = pneg %p37
      %p197 = pneg %p34
      %p198 = pneg %p58
      %p199 = pneg %p55
      %p200 = pneg %p79
      %p201 = pneg %p76
      %p202 = pneg %p100
      %p203 = pneg %p97
      %p204 = pneg %p121
      %p205 = pneg %p118
      %p206 = pneg %p147
      %p207 = pneg %p144
      %p208 = scmp.lt.s32.totalorder %s16, 1
      %s209 = scalar_select %p208, %s16, 1
      %s210 = smul.addr %s209, 8
      %s211 = scalar_lea.vmem %s5, %s210
      %p212 = scmp.lt.s32.totalorder %s16, 1
      %s213 = scalar_select %p212, %s16, 1
      %s214 = smul.addr %s213, 8
      %s215 = scalar_lea.vmem %s0, %s214
      %p216 = scmp.lt.s32.totalorder %s16, 1
      %s217 = scalar_select %p216, %s16, 1
      %s218 = smul.addr %s217, 8
      %s219 = scalar_lea.vmem %s5, %s218
      %v220 = vld [vmem:[%s215] sm:$0x3f]
      %v221 = vld [vmem:[%s1] sm:$0xff]
      %v222 = vld [vmem:[%s2] sm:$0xff]
      %v223 = vld [vmem:[%s3] sm:$0xff]
      %v224 = vld [vmem:[%s4] sm:$0xff]
      %226 = vset.pattern.permute.xlu0 0
      %227 = vperm.xlu0 %226, %v222
      %v228 = vpop.permute.xlu0 %227
      %vm230 = vcmask 48128
      %v232 = vsel %vm230, %v221, 0
      %vm234 = vcmask 1045504
      %v236 = vsel %vm234, %v220, 0
      %238 = vmatpush.msra.mxu0 0.0
      %239 = vmatpush.msra.mxu0 0.0
      %240 = vmatpush.msra.mxu0 0.0
      %241 = vmatpush.msra.mxu0 0.0
      %242 = vmatpush.msra.mxu0 0.0
      %243 = vmatpush.msra.mxu0 0.0
      %244 = vmatpush.msra.mxu0 0.0
      %245 = vmatpush.msra.mxu0 0.0
      %246 = vmatpush.msra.mxu0 0.0
      %247 = vmatpush.msra.mxu0 0.0
      %248 = vmatpush.msra.mxu0 0.0
      %249 = vmatpush.msra.mxu0 0.0
      %250 = vmatpush.msra.mxu0 0.0
      %251 = vmatpush.msra.mxu0 0.0
      %252 = vmatpush.msra.mxu0 0.0
      %253 = vmatpush.msra.mxu0 %v236
      %254 = vmatmul.f32.gmra.mxu0 %v232
      %v255 = vpop.f32.mrf.mxu0
      %v256 = vadd.f32 %v228, %v255
      %257 = vdwg.mxu0
      %vm258 = vcmp.ge.f32.partialorder %v256, 0.0
      %v259 = vmul.f32 %v256, 0.2
      %v260 = vsel %vm258, %v256, %v259
      %262 = vset.pattern.permute.xlu0 0
      %263 = vperm.xlu0 %262, %v224
      %v264 = vpop.permute.xlu0 %263
      %vm266 = vcmask 64512
      %v268 = vsel %vm266, %v223, 0
      %270 = vmatpush.msra.mxu0 0.0
      %271 = vmatpush.msra.mxu0 0.0
      %272 = vmatpush.msra.mxu0 0.0
      %273 = vmatpush.msra.mxu0 0.0
      %274 = vmatpush.msra.mxu0 0.0
      %275 = vmatpush.msra.mxu0 0.0
      %276 = vmatpush.msra.mxu0 0.0
      %277 = vmatpush.msra.mxu0 0.0
      %278 = vmatpush.msra.mxu0 0.0
      %279 = vmatpush.msra.mxu0 0.0
      %280 = vmatpush.msra.mxu0 0.0
      %281 = vmatpush.msra.mxu0 0.0
      %282 = vmatpush.msra.mxu0 0.0
      %283 = vmatpush.msra.mxu0 0.0
      %284 = vmatpush.msra.mxu0 0.0
      %285 = vmatpush.msra.mxu0 %v260
      %286 = vmatmul.f32.gmra.mxu0 %v268
      %v287 = vpop.f32.mrf.mxu0
      %v288 = vadd.f32 %v264, %v287
      %289 = vdwg.mxu0
      %vm290 = vcmp.ge.f32.partialorder %v288, 0.0
      %v291 = vmul.f32 %v288, 0.2
      %v292 = vsel %vm290, %v288, %v291
      %294 = vrot.lane.b32.xlu0 %v292, 112
      %v295 = vpop.permute.xlu0 %294
      %v297 = vmax.f32 %v292, %v295
      %298 = vrot.lane.b32.xlu0 %v292, 96
      %v299 = vpop.permute.xlu0 %298
      %v301 = vmax.f32 %v297, %v299
      %302 = vrot.lane.b32.xlu0 %v292, 80
      %v303 = vpop.permute.xlu0 %302
      %v305 = vmax.f32 %v301, %v303
      %vm306 = vcmask 130048
      %307 = vst.msk [vmem:[%s219] sm:$0xff] %vm306, %v305
      %p308 = scmp.lt.s32.totalorder %s16, 1
      %s309 = scalar_select %p308, %s16, 1
      %s310 = smul.addr %s309, 8
      %s311 = scalar_lea.vmem %s5, %s310
      // Predicated region
      $region41: #{feature_learning_block.4} parent=39 // pred_check
        %p312 = pneg %p144
      $region42: #{feature_learning_block.4} parent=39 // pred_check_branch
        %314 = sbr.rel (%p312) target = $region44
      $region43: #{feature_learning_block.4} parent=39 // pred_region
        _
      $region44: #{feature_learning_block.4} parent=39 // pred_fallthru
        _
    $region40: #{feature_learning_block.4} parent=5 // pred_fallthru
      _
    %p315 = scmp.le.s32.totalorder 2, %s11
    // Predicated region
    $region45: #{feature_learning_block.4} parent=5 // pred_check
      %p316 = pneg %p315
    $region46: #{feature_learning_block.4} parent=5 // pred_check_branch
      %318 = sbr.rel (%p316) target = $region48
    $region47: #{feature_learning_block.4} parent=5 // pred_region
      %s319 = ssub.s32 %s11, 2
      // Predicated region
      $region49: #{feature_learning_block.4} parent=47 // pred_check
        %p320 = pneg %p150
      $region50: #{feature_learning_block.4} parent=47 // pred_check_branch
        %322 = sbr.rel (%p320) target = $region52
      $region51: #{feature_learning_block.4} parent=47 // pred_region
        %p323 = scmp.lt.s32.totalorder %s17, 1
        %s324 = scalar_select %p323, %s17, 1
        %s325 = smul.addr %s324, 8
        %s326 = scalar_lea.vmem %s5, %s325
      $region52: #{feature_learning_block.4} parent=47 // pred_fallthru
        _
    $region48: #{feature_learning_block.4} parent=5 // pred_fallthru
      _
  $region6: #{feature_learning_block.4} parent=0 // loop_footer
    %s15 = sadd.s32 1, %s11
  $region7: #{feature_learning_block.4} parent=0 // loop_footer_branch
    %10 = sbr.rel target = $region3
  $region8: #{feature_learning_block.4} parent=0 // loop_exit
    _

// kernel: feature_learning_block.5
$region0: #{feature_learning_block.5}
  #allocation0 [shape = 'u32[]', space=smem, size = 0x4, offset = 0x4, fixed_abs, tag = 'smem constant byte address 0x4 - core index']
  #allocation1 [shape = 'u32[72,128]{1,0:T(1,128)}', space=vmem, size = 0x9000, scoped, tag = 'internal scratch']
  #allocation2 [shape = 'f32[16,16]{1,0:T(8,128)}', space=vmem, size = 0x2000, scoped, tag = 'scratch operand']
  %s0 = inlined_call_operand.vmem [shape: f32[2,8,16], index: 0, kind: input, shape index: {}]
  %s1 = inlined_call_operand.vmem [shape: f32[2,16,64], index: 1, kind: input, shape index: {}]
  %s2 = inlined_call_operand.vmem [shape: f32[8,16], index: 2, kind: input, shape index: {}]
  %s3 = inlined_call_operand.vmem [shape: f32[8,1], index: 3, kind: input, shape index: {}]
  %s4 = inlined_call_operand.vmem [shape: f32[8,8], index: 4, kind: input, shape index: {}]
  %s5 = inlined_call_operand.vmem [shape: f32[8,1], index: 5, kind: input, shape index: {}]
  %s6 = inlined_call_operand.vmem [shape: f32[16,16], index: 6, kind: input, shape index: {}]
  %s7 = inlined_call_operand.vmem [shape: f32[16,16], index: 7, kind: input, shape index: {}]
  %s8 = inlined_call_operand.vmem [shape: f32[16,16], index: 8, kind: input, shape index: {}]
  %s9 = inlined_call_operand.vmem [shape: f32[16,1], index: 9, kind: input, shape index: {}]
  %s10 = inlined_call_operand.vmem [shape: f32[16,1], index: 10, kind: input, shape index: {}]
  %s11 = inlined_call_operand.vmem [shape: f32[32,16], index: 11, kind: input, shape index: {}]
  %s12 = inlined_call_operand.vmem [shape: f32[16,32], index: 12, kind: input, shape index: {}]
  %s13 = inlined_call_operand.vmem [shape: f32[16,1], index: 13, kind: input, shape index: {}]
  %s14 = inlined_call_operand.vmem [shape: f32[16,1], index: 14, kind: input, shape index: {}]
  %s15 = inlined_call_operand.vmem [shape: f32[16,16], index: 15, kind: input, shape index: {}]
  %s16 = inlined_call_operand.vmem [shape: f32[16,16], index: 16, kind: input, shape index: {}]
  %s17 = inlined_call_operand.vmem [shape: f32[2,16,16], index: 17, kind: output, shape index: {0}]
  %s18 = inlined_call_operand.vmem [shape: f32[2,1,16], index: 18, kind: output, shape index: {1}]
  %19 = xla_tuple %s17, %s18
  %s20 = sld [smem:[#allocation0]]
  $region109: #{feature_learning_block.5} parent=0
    _
  %s22 = ssub.s32 1, %s20
  %s23 = scalar_select 0, %s22, %s20
  loop: start=0, step=1, limit=4
  $region2: #{feature_learning_block.5} parent=0 // loop_pre_header
    _
  $region3: #{feature_learning_block.5} parent=0 // loop_header
    %s25 = sphi 0, %s29
    %p26 = scmp.ge.s32.totalorder %s25, 4
    %s35 = sphi 0, %s37
    %s38 = sphi 0, %s35
    %s39 = sphi 0, %s38
    %s55 = sphi 0, %s39
    %s61 = sphi 0, %s63
    %s64 = sphi 0, %s61
    %s65 = sphi 0, %s64
    %s81 = sphi 0, %s65
    %s85 = sphi 0, %s85
    %s87 = sphi 0, %s85
    %s88 = sphi 0, %s87
    %s102 = sphi 0, %s88
    %s106 = sphi 0, %s106
    %s108 = sphi 0, %s106
    %s109 = sphi 0, %s108
    %s123 = sphi 0, %s109
    %s127 = sphi 0, %s127
    %s129 = sphi 0, %s127
    %s130 = sphi 0, %s129
    %s144 = sphi 0, %s130
    %s148 = sphi 0, %s148
    %s150 = sphi 0, %s148
    %s151 = sphi 0, %s150
    %s165 = sphi 0, %s151
    %s169 = sphi 0, %s169
    %s171 = sphi 0, %s169
    %s172 = sphi 0, %s171
    %s186 = sphi 0, %s172
    %s190 = sphi 0, %s190
    %s192 = sphi 0, %s190
    %s193 = sphi 0, %s192
    %s207 = sphi 0, %s193
    %s211 = sphi 0, %s211
    %s213 = sphi 0, %s211
    %s214 = sphi 0, %s213
    %s228 = sphi 0, %s214
    %s232 = sphi 0, %s232
    %s234 = sphi 0, %s232
    %s235 = sphi 0, %s234
    %s249 = sphi 0, %s235
    %s253 = sphi 0, %s253
    %s255 = sphi 0, %s253
    %s256 = sphi 0, %s255
    %s270 = sphi 0, %s256
    %s274 = sphi 0, %s274
    %s276 = sphi 0, %s274
    %s277 = sphi 0, %s276
    %s291 = sphi 0, %s277
    %s295 = sphi 0, %s295
    %s297 = sphi 0, %s295
    %s298 = sphi 0, %s297
    %s312 = sphi 0, %s298
    %s316 = sphi 0, %s316
    %s318 = sphi 0, %s316
    %s319 = sphi 0, %s318
    %s333 = sphi 0, %s319
    %s337 = sphi 0, %s337
    %s339 = sphi 0, %s337
    %s340 = sphi 0, %s339
    %s354 = sphi 0, %s340
    %s358 = sphi 0, %s358
    %s360 = sphi 0, %s358
    %s361 = sphi 0, %s360
    %s375 = sphi 0, %s361
    %s379 = sphi 0, %s379
    %s381 = sphi 0, %s379
    %s382 = sphi 0, %s381
    %s396 = sphi 0, %s382
    %s402 = sphi 0, %s404
    %s405 = sphi 0, %s402
    %s406 = sphi 0, %s405
    %s422 = sphi 0, %s406
    %s428 = sphi 0, %s430
    %s431 = sphi 0, %s428
    %s432 = sphi 0, %s431
    %s448 = sphi 0, %s432
  $region4: #{feature_learning_block.5} parent=0 // loop_header_branch
    %28 = sbr.rel (%p26) target = $region8
  $region5: #{feature_learning_block.5} parent=0 // loop_body
    %s30 = ssub.s32 %s25, 1
    %s31 = ssub.s32 %s25, 2
    %s32 = sadd.s32 %s25, 1
    %s33 = ssub.s32 %s25, %s32
    %p34 = scmp.eq.s32.totalorder %s33, 0
    %s36 = sadd.s32 %s35, 1
    %s37 = scalar_select %p34, %s35, %s36
    %p40 = pneg %p34
    %p41 = scmp.eq.s32.totalorder %s25, 1
    %p42 = por %p40, %p41
    %p43 = scmp.ne.s32.totalorder %s35, %s38
    %p44 = scmp.eq.s32.totalorder %s25, 0
    %p45 = por %p43, %p44
    %p46 = scmp.ne.s32.totalorder %s35, %s38
    %p47 = scmp.eq.s32.totalorder %s30, 1
    %p48 = por %p46, %p47
    %p49 = scmp.ne.s32.totalorder %s38, %s39
    %p50 = scmp.eq.s32.totalorder %s30, 0
    %p51 = por %p49, %p50
    %p52 = scmp.ne.s32.totalorder %s38, %s39
    %p53 = scmp.eq.s32.totalorder %s31, 1
    %p54 = por %p52, %p53
    %p56 = scmp.ne.s32.totalorder %s39, %s55
    %p57 = scmp.eq.s32.totalorder %s31, 0
    %p58 = por %p56, %p57
    %s59 = ssub.s32 %s25, %s32
    %p60 = scmp.eq.s32.totalorder %s59, 0
    %s62 = sadd.s32 %s61, 1
    %s63 = scalar_select %p60, %s61, %s62
    %p66 = pneg %p60
    %p67 = scmp.eq.s32.totalorder %s25, 1
    %p68 = por %p66, %p67
    %p69 = scmp.ne.s32.totalorder %s61, %s64
    %p70 = scmp.eq.s32.totalorder %s25, 0
    %p71 = por %p69, %p70
    %p72 = scmp.ne.s32.totalorder %s61, %s64
    %p73 = scmp.eq.s32.totalorder %s30, 1
    %p74 = por %p72, %p73
    %p75 = scmp.ne.s32.totalorder %s64, %s65
    %p76 = scmp.eq.s32.totalorder %s30, 0
    %p77 = por %p75, %p76
    %p78 = scmp.ne.s32.totalorder %s64, %s65
    %p79 = scmp.eq.s32.totalorder %s31, 1
    %p80 = por %p78, %p79
    %p82 = scmp.ne.s32.totalorder %s65, %s81
    %p83 = scmp.eq.s32.totalorder %s31, 0
    %p84 = por %p82, %p83
    %s86 = sadd.s32 %s85, 1
    %p89 = scmp.eq.s32.totalorder %s25, 1
    %p90 = scmp.ne.s32.totalorder %s85, %s87
    %p91 = scmp.eq.s32.totalorder %s25, 0
    %p92 = por %p90, %p91
    %p93 = scmp.ne.s32.totalorder %s85, %s87
    %p94 = scmp.eq.s32.totalorder %s30, 1
    %p95 = por %p93, %p94
    %p96 = scmp.ne.s32.totalorder %s87, %s88
    %p97 = scmp.eq.s32.totalorder %s30, 0
    %p98 = por %p96, %p97
    %p99 = scmp.ne.s32.totalorder %s87, %s88
    %p100 = scmp.eq.s32.totalorder %s31, 1
    %p101 = por %p99, %p100
    %p103 = scmp.ne.s32.totalorder %s88, %s102
    %p104 = scmp.eq.s32.totalorder %s31, 0
    %p105 = por %p103, %p104
    %s107 = sadd.s32 %s106, 1
    %p110 = scmp.eq.s32.totalorder %s25, 1
    %p111 = scmp.ne.s32.totalorder %s106, %s108
    %p112 = scmp.eq.s32.totalorder %s25, 0
    %p113 = por %p111, %p112
    %p114 = scmp.ne.s32.totalorder %s106, %s108
    %p115 = scmp.eq.s32.totalorder %s30, 1
    %p116 = por %p114, %p115
    %p117 = scmp.ne.s32.totalorder %s108, %s109
    %p118 = scmp.eq.s32.totalorder %s30, 0
    %p119 = por %p117, %p118
    %p120 = scmp.ne.s32.totalorder %s108, %s109
    %p121 = scmp.eq.s32.totalorder %s31, 1
    %p122 = por %p120, %p121
    %p124 = scmp.ne.s32.totalorder %s109, %s123
    %p125 = scmp.eq.s32.totalorder %s31, 0
    %p126 = por %p124, %p125
    %s128 = sadd.s32 %s127, 1
    %p131 = scmp.eq.s32.totalorder %s25, 1
    %p132 = scmp.ne.s32.totalorder %s127, %s129
    %p133 = scmp.eq.s32.totalorder %s25, 0
    %p134 = por %p132, %p133
    %p135 = scmp.ne.s32.totalorder %s127, %s129
    %p136 = scmp.eq.s32.totalorder %s30, 1
    %p137 = por %p135, %p136
    %p138 = scmp.ne.s32.totalorder %s129, %s130
    %p139 = scmp.eq.s32.totalorder %s30, 0
    %p140 = por %p138, %p139
    %p141 = scmp.ne.s32.totalorder %s129, %s130
    %p142 = scmp.eq.s32.totalorder %s31, 1
    %p143 = por %p141, %p142
    %p145 = scmp.ne.s32.totalorder %s130, %s144
    %p146 = scmp.eq.s32.totalorder %s31, 0
    %p147 = por %p145, %p146
    %s149 = sadd.s32 %s148, 1
    %p152 = scmp.eq.s32.totalorder %s25, 1
    %p153 = scmp.ne.s32.totalorder %s148, %s150
    %p154 = scmp.eq.s32.totalorder %s25, 0
    %p155 = por %p153, %p154
    %p156 = scmp.ne.s32.totalorder %s148, %s150
    %p157 = scmp.eq.s32.totalorder %s30, 1
    %p158 = por %p156, %p157
    %p159 = scmp.ne.s32.totalorder %s150, %s151
    %p160 = scmp.eq.s32.totalorder %s30, 0
    %p161 = por %p159, %p160
    %p162 = scmp.ne.s32.totalorder %s150, %s151
    %p163 = scmp.eq.s32.totalorder %s31, 1
    %p164 = por %p162, %p163
    %p166 = scmp.ne.s32.totalorder %s151, %s165
    %p167 = scmp.eq.s32.totalorder %s31, 0
    %p168 = por %p166, %p167
    %s170 = sadd.s32 %s169, 1
    %p173 = scmp.eq.s32.totalorder %s25, 1
    %p174 = scmp.ne.s32.totalorder %s169, %s171
    %p175 = scmp.eq.s32.totalorder %s25, 0
    %p176 = por %p174, %p175
    %p177 = scmp.ne.s32.totalorder %s169, %s171
    %p178 = scmp.eq.s32.totalorder %s30, 1
    %p179 = por %p177, %p178
    %p180 = scmp.ne.s32.totalorder %s171, %s172
    %p181 = scmp.eq.s32.totalorder %s30, 0
    %p182 = por %p180, %p181
    %p183 = scmp.ne.s32.totalorder %s171, %s172
    %p184 = scmp.eq.s32.totalorder %s31, 1
    %p185 = por %p183, %p184
    %p187 = scmp.ne.s32.totalorder %s172, %s186
    %p188 = scmp.eq.s32.totalorder %s31, 0
    %p189 = por %p187, %p188
    %s191 = sadd.s32 %s190, 1
    %p194 = scmp.eq.s32.totalorder %s25, 1
    %p195 = scmp.ne.s32.totalorder %s190, %s192
    %p196 = scmp.eq.s32.totalorder %s25, 0
    %p197 = por %p195, %p196
    %p198 = scmp.ne.s32.totalorder %s190, %s192
    %p199 = scmp.eq.s32.totalorder %s30, 1
    %p200 = por %p198, %p199
    %p201 = scmp.ne.s32.totalorder %s192, %s193
    %p202 = scmp.eq.s32.totalorder %s30, 0
    %p203 = por %p201, %p202
    %p204 = scmp.ne.s32.totalorder %s192, %s193
    %p205 = scmp.eq.s32.totalorder %s31, 1
    %p206 = por %p204, %p205
    %p208 = scmp.ne.s32.totalorder %s193, %s207
    %p209 = scmp.eq.s32.totalorder %s31, 0
    %p210 = por %p208, %p209
    %s212 = sadd.s32 %s211, 1
    %p215 = scmp.eq.s32.totalorder %s25, 1
    %p216 = scmp.ne.s32.totalorder %s211, %s213
    %p217 = scmp.eq.s32.totalorder %s25, 0
    %p218 = por %p216, %p217
    %p219 = scmp.ne.s32.totalorder %s211, %s213
    %p220 = scmp.eq.s32.totalorder %s30, 1
    %p221 = por %p219, %p220
    %p222 = scmp.ne.s32.totalorder %s213, %s214
    %p223 = scmp.eq.s32.totalorder %s30, 0
    %p224 = por %p222, %p223
    %p225 = scmp.ne.s32.totalorder %s213, %s214
    %p226 = scmp.eq.s32.totalorder %s31, 1
    %p227 = por %p225, %p226
    %p229 = scmp.ne.s32.totalorder %s214, %s228
    %p230 = scmp.eq.s32.totalorder %s31, 0
    %p231 = por %p229, %p230
    %s233 = sadd.s32 %s232, 1
    %p236 = scmp.eq.s32.totalorder %s25, 1
    %p237 = scmp.ne.s32.totalorder %s232, %s234
    %p238 = scmp.eq.s32.totalorder %s25, 0
    %p239 = por %p237, %p238
    %p240 = scmp.ne.s32.totalorder %s232, %s234
    %p241 = scmp.eq.s32.totalorder %s30, 1
    %p242 = por %p240, %p241
    %p243 = scmp.ne.s32.totalorder %s234, %s235
    %p244 = scmp.eq.s32.totalorder %s30, 0
    %p245 = por %p243, %p244
    %p246 = scmp.ne.s32.totalorder %s234, %s235
    %p247 = scmp.eq.s32.totalorder %s31, 1
    %p248 = por %p246, %p247
    %p250 = scmp.ne.s32.totalorder %s235, %s249
    %p251 = scmp.eq.s32.totalorder %s31, 0
    %p252 = por %p250, %p251
    %s254 = sadd.s32 %s253, 1
    %p257 = scmp.eq.s32.totalorder %s25, 1
    %p258 = scmp.ne.s32.totalorder %s253, %s255
    %p259 = scmp.eq.s32.totalorder %s25, 0
    %p260 = por %p258, %p259
    %p261 = scmp.ne.s32.totalorder %s253, %s255
    %p262 = scmp.eq.s32.totalorder %s30, 1
    %p263 = por %p261, %p262
    %p264 = scmp.ne.s32.totalorder %s255, %s256
    %p265 = scmp.eq.s32.totalorder %s30, 0
    %p266 = por %p264, %p265
    %p267 = scmp.ne.s32.totalorder %s255, %s256
    %p268 = scmp.eq.s32.totalorder %s31, 1
    %p269 = por %p267, %p268
    %p271 = scmp.ne.s32.totalorder %s256, %s270
    %p272 = scmp.eq.s32.totalorder %s31, 0
    %p273 = por %p271, %p272
    %s275 = sadd.s32 %s274, 1
    %p278 = scmp.eq.s32.totalorder %s25, 1
    %p279 = scmp.ne.s32.totalorder %s274, %s276
    %p280 = scmp.eq.s32.totalorder %s25, 0
    %p281 = por %p279, %p280
    %p282 = scmp.ne.s32.totalorder %s274, %s276
    %p283 = scmp.eq.s32.totalorder %s30, 1
    %p284 = por %p282, %p283
    %p285 = scmp.ne.s32.totalorder %s276, %s277
    %p286 = scmp.eq.s32.totalorder %s30, 0
    %p287 = por %p285, %p286
    %p288 = scmp.ne.s32.totalorder %s276, %s277
    %p289 = scmp.eq.s32.totalorder %s31, 1
    %p290 = por %p288, %p289
    %p292 = scmp.ne.s32.totalorder %s277, %s291
    %p293 = scmp.eq.s32.totalorder %s31, 0
    %p294 = por %p292, %p293
    %s296 = sadd.s32 %s295, 1
    %p299 = scmp.eq.s32.totalorder %s25, 1
    %p300 = scmp.ne.s32.totalorder %s295, %s297
    %p301 = scmp.eq.s32.totalorder %s25, 0
    %p302 = por %p300, %p301
    %p303 = scmp.ne.s32.totalorder %s295, %s297
    %p304 = scmp.eq.s32.totalorder %s30, 1
    %p305 = por %p303, %p304
    %p306 = scmp.ne.s32.totalorder %s297, %s298
    %p307 = scmp.eq.s32.totalorder %s30, 0
    %p308 = por %p306, %p307
    %p309 = scmp.ne.s32.totalorder %s297, %s298
    %p310 = scmp.eq.s32.totalorder %s31, 1
    %p311 = por %p309, %p310
    %p313 = scmp.ne.s32.totalorder %s298, %s312
    %p314 = scmp.eq.s32.totalorder %s31, 0
    %p315 = por %p313, %p314
    %s317 = sadd.s32 %s316, 1
    %p320 = scmp.eq.s32.totalorder %s25, 1
    %p321 = scmp.ne.s32.totalorder %s316, %s318
    %p322 = scmp.eq.s32.totalorder %s25, 0
    %p323 = por %p321, %p322
    %p324 = scmp.ne.s32.totalorder %s316, %s318
    %p325 = scmp.eq.s32.totalorder %s30, 1
    %p326 = por %p324, %p325
    %p327 = scmp.ne.s32.totalorder %s318, %s319
    %p328 = scmp.eq.s32.totalorder %s30, 0
    %p329 = por %p327, %p328
    %p330 = scmp.ne.s32.totalorder %s318, %s319
    %p331 = scmp.eq.s32.totalorder %s31, 1
    %p332 = por %p330, %p331
    %p334 = scmp.ne.s32.totalorder %s319, %s333
    %p335 = scmp.eq.s32.totalorder %s31, 0
    %p336 = por %p334, %p335
    %s338 = sadd.s32 %s337, 1
    %p341 = scmp.eq.s32.totalorder %s25, 1
    %p342 = scmp.ne.s32.totalorder %s337, %s339
    %p343 = scmp.eq.s32.totalorder %s25, 0
    %p344 = por %p342, %p343
    %p345 = scmp.ne.s32.totalorder %s337, %s339
    %p346 = scmp.eq.s32.totalorder %s30, 1
    %p347 = por %p345, %p346
    %p348 = scmp.ne.s32.totalorder %s339, %s340
    %p349 = scmp.eq.s32.totalorder %s30, 0
    %p350 = por %p348, %p349
    %p351 = scmp.ne.s32.totalorder %s339, %s340
    %p352 = scmp.eq.s32.totalorder %s31, 1
    %p353 = por %p351, %p352
    %p355 = scmp.ne.s32.totalorder %s340, %s354
    %p356 = scmp.eq.s32.totalorder %s31, 0
    %p357 = por %p355, %p356
    %s359 = sadd.s32 %s358, 1
    %p362 = scmp.eq.s32.totalorder %s25, 1
    %p363 = scmp.ne.s32.totalorder %s358, %s360
    %p364 = scmp.eq.s32.totalorder %s25, 0
    %p365 = por %p363, %p364
    %p366 = scmp.ne.s32.totalorder %s358, %s360
    %p367 = scmp.eq.s32.totalorder %s30, 1
    %p368 = por %p366, %p367
    %p369 = scmp.ne.s32.totalorder %s360, %s361
    %p370 = scmp.eq.s32.totalorder %s30, 0
    %p371 = por %p369, %p370
    %p372 = scmp.ne.s32.totalorder %s360, %s361
    %p373 = scmp.eq.s32.totalorder %s31, 1
    %p374 = por %p372, %p373
    %p376 = scmp.ne.s32.totalorder %s361, %s375
    %p377 = scmp.eq.s32.totalorder %s31, 0
    %p378 = por %p376, %p377
    %s380 = sadd.s32 %s379, 1
    %p383 = scmp.eq.s32.totalorder %s25, 1
    %p384 = scmp.ne.s32.totalorder %s379, %s381
    %p385 = scmp.eq.s32.totalorder %s25, 0
    %p386 = por %p384, %p385
    %p387 = scmp.ne.s32.totalorder %s379, %s381
    %p388 = scmp.eq.s32.totalorder %s30, 1
    %p389 = por %p387, %p388
    %p390 = scmp.ne.s32.totalorder %s381, %s382
    %p391 = scmp.eq.s32.totalorder %s30, 0
    %p392 = por %p390, %p391
    %p393 = scmp.ne.s32.totalorder %s381, %s382
    %p394 = scmp.eq.s32.totalorder %s31, 1
    %p395 = por %p393, %p394
    %p397 = scmp.ne.s32.totalorder %s382, %s396
    %p398 = scmp.eq.s32.totalorder %s31, 0
    %p399 = por %p397, %p398
    %s400 = ssub.s32 %s25, %s32
    %p401 = scmp.eq.s32.totalorder %s400, 0
    %s403 = sadd.s32 %s402, 1
    %s404 = scalar_select %p401, %s402, %s403
    %p407 = pneg %p401
    %p408 = scmp.eq.s32.totalorder %s25, 1
    %p409 = por %p407, %p408
    %p410 = scmp.ne.s32.totalorder %s402, %s405
    %p411 = scmp.eq.s32.totalorder %s25, 0
    %p412 = por %p410, %p411
    %p413 = scmp.ne.s32.totalorder %s402, %s405
    %p414 = scmp.eq.s32.totalorder %s30, 1
    %p415 = por %p413, %p414
    %p416 = scmp.ne.s32.totalorder %s405, %s406
    %p417 = scmp.eq.s32.totalorder %s30, 0
    %p418 = por %p416, %p417
    %p419 = scmp.ne.s32.totalorder %s405, %s406
    %p420 = scmp.eq.s32.totalorder %s31, 1
    %p421 = por %p419, %p420
    %p423 = scmp.ne.s32.totalorder %s406, %s422
    %p424 = scmp.eq.s32.totalorder %s31, 0
    %p425 = por %p423, %p424
    %s426 = ssub.s32 %s25, %s32
    %p427 = scmp.eq.s32.totalorder %s426, 0
    %s429 = sadd.s32 %s428, 1
    %s430 = scalar_select %p427, %s428, %s429
    %p433 = pneg %p427
    %p434 = scmp.eq.s32.totalorder %s25, 1
    %p435 = por %p433, %p434
    %p436 = scmp.ne.s32.totalorder %s428, %s431
    %p437 = scmp.eq.s32.totalorder %s25, 0
    %p438 = por %p436, %p437
    %p439 = scmp.ne.s32.totalorder %s428, %s431
    %p440 = scmp.eq.s32.totalorder %s30, 1
    %p441 = por %p439, %p440
    %p442 = scmp.ne.s32.totalorder %s431, %s432
    %p443 = scmp.eq.s32.totalorder %s30, 0
    %p444 = por %p442, %p443
    %p445 = scmp.ne.s32.totalorder %s431, %s432
    %p446 = scmp.eq.s32.totalorder %s31, 1
    %p447 = por %p445, %p446
    %p449 = scmp.ne.s32.totalorder %s432, %s448
    %p450 = scmp.eq.s32.totalorder %s31, 0
    %p451 = por %p449, %p450
    %p452 = scmp.le.s32.totalorder 1, %s25
    %p453 = scmp.lt.s32.totalorder %s25, 3
    %p454 = pnand %p452, %p453
    %p455 = pneg %p454
    // Predicated region
    $region9: #{feature_learning_block.5} parent=5 // pred_check
      _
    $region10: #{feature_learning_block.5} parent=5 // pred_check_branch
      %457 = sbr.rel (%p454) target = $region12
    $region11: #{feature_learning_block.5} parent=5 // pred_region
      %s458 = ssub.s32 %s25, 1
      // Predicated region
      $region13: #{feature_learning_block.5} parent=11 // pred_check
        %p459 = pneg %p98
      $region14: #{feature_learning_block.5} parent=11 // pred_check_branch
        %461 = sbr.rel (%p459) target = $region16
      $region15: #{feature_learning_block.5} parent=11 // pred_region
        _
      $region16: #{feature_learning_block.5} parent=11 // pred_fallthru
        _
      // Predicated region
      $region17: #{feature_learning_block.5} parent=11 // pred_check
        %p462 = pneg %p119
      $region18: #{feature_learning_block.5} parent=11 // pred_check_branch
        %464 = sbr.rel (%p462) target = $region20
      $region19: #{feature_learning_block.5} parent=11 // pred_region
        _
      $region20: #{feature_learning_block.5} parent=11 // pred_fallthru
        _
      // Predicated region
      $region21: #{feature_learning_block.5} parent=11 // pred_check
        %p465 = pneg %p140
      $region22: #{feature_learning_block.5} parent=11 // pred_check_branch
        %467 = sbr.rel (%p465) target = $region24
      $region23: #{feature_learning_block.5} parent=11 // pred_region
        _
      $region24: #{feature_learning_block.5} parent=11 // pred_fallthru
        _
      // Predicated region
      $region25: #{feature_learning_block.5} parent=11 // pred_check
        %p468 = pneg %p161
      $region26: #{feature_learning_block.5} parent=11 // pred_check_branch
        %470 = sbr.rel (%p468) target = $region28
      $region27: #{feature_learning_block.5} parent=11 // pred_region
        _
      $region28: #{feature_learning_block.5} parent=11 // pred_fallthru
        _
      // Predicated region
      $region29: #{feature_learning_block.5} parent=11 // pred_check
        %p471 = pneg %p182
      $region30: #{feature_learning_block.5} parent=11 // pred_check_branch
        %473 = sbr.rel (%p471) target = $region32
      $region31: #{feature_learning_block.5} parent=11 // pred_region
        _
      $region32: #{feature_learning_block.5} parent=11 // pred_fallthru
        _
      // Predicated region
      $region33: #{feature_learning_block.5} parent=11 // pred_check
        %p474 = pneg %p203
      $region34: #{feature_learning_block.5} parent=11 // pred_check_branch
        %476 = sbr.rel (%p474) target = $region36
      $region35: #{feature_learning_block.5} parent=11 // pred_region
        _
      $region36: #{feature_learning_block.5} parent=11 // pred_fallthru
        _
      // Predicated region
      $region37: #{feature_learning_block.5} parent=11 // pred_check
        %p477 = pneg %p224
      $region38: #{feature_learning_block.5} parent=11 // pred_check_branch
        %479 = sbr.rel (%p477) target = $region40
      $region39: #{feature_learning_block.5} parent=11 // pred_region
        _
      $region40: #{feature_learning_block.5} parent=11 // pred_fallthru
        _
      // Predicated region
      $region41: #{feature_learning_block.5} parent=11 // pred_check
        %p480 = pneg %p245
      $region42: #{feature_learning_block.5} parent=11 // pred_check_branch
        %482 = sbr.rel (%p480) target = $region44
      $region43: #{feature_learning_block.5} parent=11 // pred_region
        _
      $region44: #{feature_learning_block.5} parent=11 // pred_fallthru
        _
      // Predicated region
      $region45: #{feature_learning_block.5} parent=11 // pred_check
        %p483 = pneg %p266
      $region46: #{feature_learning_block.5} parent=11 // pred_check_branch
        %485 = sbr.rel (%p483) target = $region48
      $region47: #{feature_learning_block.5} parent=11 // pred_region
        _
      $region48: #{feature_learning_block.5} parent=11 // pred_fallthru
        _
      // Predicated region
      $region49: #{feature_learning_block.5} parent=11 // pred_check
        %p486 = pneg %p287
      $region50: #{feature_learning_block.5} parent=11 // pred_check_branch
        %488 = sbr.rel (%p486) target = $region52
      $region51: #{feature_learning_block.5} parent=11 // pred_region
        _
      $region52: #{feature_learning_block.5} parent=11 // pred_fallthru
        _
      // Predicated region
      $region53: #{feature_learning_block.5} parent=11 // pred_check
        %p489 = pneg %p308
      $region54: #{feature_learning_block.5} parent=11 // pred_check_branch
        %491 = sbr.rel (%p489) target = $region56
      $region55: #{feature_learning_block.5} parent=11 // pred_region
        _
      $region56: #{feature_learning_block.5} parent=11 // pred_fallthru
        _
      // Predicated region
      $region57: #{feature_learning_block.5} parent=11 // pred_check
        %p492 = pneg %p329
      $region58: #{feature_learning_block.5} parent=11 // pred_check_branch
        %494 = sbr.rel (%p492) target = $region60
      $region59: #{feature_learning_block.5} parent=11 // pred_region
        _
      $region60: #{feature_learning_block.5} parent=11 // pred_fallthru
        _
      // Predicated region
      $region61: #{feature_learning_block.5} parent=11 // pred_check
        %p495 = pneg %p350
      $region62: #{feature_learning_block.5} parent=11 // pred_check_branch
        %497 = sbr.rel (%p495) target = $region64
      $region63: #{feature_learning_block.5} parent=11 // pred_region
        _
      $region64: #{feature_learning_block.5} parent=11 // pred_fallthru
        _
      // Predicated region
      $region65: #{feature_learning_block.5} parent=11 // pred_check
        %p498 = pneg %p371
      $region66: #{feature_learning_block.5} parent=11 // pred_check_branch
        %500 = sbr.rel (%p498) target = $region68
      $region67: #{feature_learning_block.5} parent=11 // pred_region
        _
      $region68: #{feature_learning_block.5} parent=11 // pred_fallthru
        _
      // Predicated region
      $region69: #{feature_learning_block.5} parent=11 // pred_check
        %p501 = pneg %p392
      $region70: #{feature_learning_block.5} parent=11 // pred_check_branch
        %503 = sbr.rel (%p501) target = $region72
      $region71: #{feature_learning_block.5} parent=11 // pred_region
        _
      $region72: #{feature_learning_block.5} parent=11 // pred_fallthru
        _
    $region12: #{feature_learning_block.5} parent=5 // pred_fallthru
      _
    %p504 = scmp.lt.s32.totalorder %s25, 2
    // Predicated region
    $region73: #{feature_learning_block.5} parent=5 // pred_check
      %p505 = pneg %p504
    $region74: #{feature_learning_block.5} parent=5 // pred_check_branch
      %507 = sbr.rel (%p505) target = $region76
    $region75: #{feature_learning_block.5} parent=5 // pred_region
      // Predicated region
      $region77: #{feature_learning_block.5} parent=75 // pred_check
        %p508 = pneg %p45
      $region78: #{feature_learning_block.5} parent=75 // pred_check_branch
        %510 = sbr.rel (%p508) target = $region80
      $region79: #{feature_learning_block.5} parent=75 // pred_region
        %p511 = scmp.lt.s32.totalorder %s25, 1
        %s512 = scalar_select %p511, %s25, 1
        %s513 = smul.addr %s512, 8
        %s514 = scalar_lea.vmem %s0, %s513
      $region80: #{feature_learning_block.5} parent=75 // pred_fallthru
        _
      // Predicated region
      $region81: #{feature_learning_block.5} parent=75 // pred_check
        %p515 = pneg %p71
      $region82: #{feature_learning_block.5} parent=75 // pred_check_branch
        %517 = sbr.rel (%p515) target = $region84
      $region83: #{feature_learning_block.5} parent=75 // pred_region
        %p518 = scmp.lt.s32.totalorder %s25, 1
        %s519 = scalar_select %p518, %s25, 1
        %s520 = smul.addr %s519, 2
        %s521 = smul.addr %s520, 8
        %s522 = scalar_lea.vmem %s1, %s521
      $region84: #{feature_learning_block.5} parent=75 // pred_fallthru
        _
    $region76: #{feature_learning_block.5} parent=5 // pred_fallthru
      _
    %p523 = scmp.le.s32.totalorder 1, %s25
    %p524 = scmp.lt.s32.totalorder %s25, 3
    %p525 = pnand %p523, %p524
    %p526 = pneg %p525
    // Predicated region
    $region85: #{feature_learning_block.5} parent=5 // pred_check
      _
    $region86: #{feature_learning_block.5} parent=5 // pred_check_branch
      %528 = sbr.rel (%p525) target = $region88
    $region87: #{feature_learning_block.5} parent=5 // pred_region
      %s529 = ssub.s32 %s25, 1
      %p530 = scmp.lt.s32.totalorder %s30, 1
      %s531 = scalar_select %p530, %s30, 1
      %s532 = smul.addr %s531, 8
      %s533 = scalar_lea.vmem %s0, %s532
      %p534 = pneg %p51
      %p535 = pneg %p48
      %p536 = scmp.lt.s32.totalorder %s30, 1
      %s537 = scalar_select %p536, %s30, 1
      %s538 = smul.addr %s537, 2
      %s539 = smul.addr %s538, 8
      %s540 = scalar_lea.vmem %s1, %s539
      %p541 = pneg %p77
      %p542 = pneg %p74
      %p543 = pneg %p98
      %p544 = pneg %p95
      %p545 = pneg %p119
      %p546 = pneg %p116
      %p547 = pneg %p140
      %p548 = pneg %p137
      %p549 = pneg %p161
      %p550 = pneg %p158
      %p551 = pneg %p182
      %p552 = pneg %p179
      %p553 = pneg %p203
      %p554 = pneg %p200
      %p555 = pneg %p224
      %p556 = pneg %p221
      %p557 = pneg %p245
      %p558 = pneg %p242
      %p559 = pneg %p266
      %p560 = pneg %p263
      %p561 = pneg %p287
      %p562 = pneg %p284
      %p563 = pneg %p308
      %p564 = pneg %p305
      %p565 = pneg %p329
      %p566 = pneg %p326
      %p567 = pneg %p350
      %p568 = pneg %p347
      %p569 = pneg %p371
      %p570 = pneg %p368
      %p571 = pneg %p392
      %p572 = pneg %p389
      %p573 = pneg %p418
      %p574 = pneg %p415
      %p575 = scmp.lt.s32.totalorder %s30, 1
      %s576 = scalar_select %p575, %s30, 1
      %s577 = smul.addr %s576, 2
      %s578 = smul.addr %s577, 8
      %s579 = scalar_lea.vmem %s17, %s578
      %p580 = pneg %p444
      %p581 = pneg %p441
      %p582 = scmp.lt.s32.totalorder %s30, 1
      %s583 = scalar_select %p582, %s30, 1
      %s584 = scalar_lea.vmem %s18, %s583
      %p585 = scmp.lt.s32.totalorder %s30, 1
      %s586 = scalar_select %p585, %s30, 1
      %s587 = smul.addr %s586, 8
      %s588 = scalar_lea.vmem %s0, %s587
      %p589 = scmp.lt.s32.totalorder %s30, 1
      %s590 = scalar_select %p589, %s30, 1
      %s591 = smul.addr %s590, 2
      %s592 = smul.addr %s591, 8
      %s593 = scalar_lea.vmem %s1, %s592
      %p594 = scmp.lt.s32.totalorder %s30, 1
      %s595 = scalar_select %p594, %s30, 1
      %s596 = smul.addr %s595, 2
      %s597 = smul.addr %s596, 8
      %s598 = scalar_lea.vmem %s17, %s597
      %p599 = scmp.lt.s32.totalorder %s30, 1
      %s600 = scalar_select %p599, %s30, 1
      %s601 = scalar_lea.vmem %s18, %s600
      %v602 = vld [vmem:[%s593] sm:$0xff]
      %v603 = vld [vmem:[%s593 + $0x8] sm:$0xff]
      %v604 = vld [vmem:[%s2] sm:$0xff]
      %v605 = vld [vmem:[%s3] sm:$0xff]
      %v606 = vld [vmem:[%s4] sm:$0xff]
      %v607 = vld [vmem:[%s5] sm:$0xff]
      %609 = vset.pattern.permute.xlu0 0
      %610 = vperm.xlu0 %609, %v605
      %v611 = vpop.permute.xlu0 %610
      %vm613 = vcmask 130048
      %v615 = vsel %vm613, %v604, 0
      %617 = vmatpush.msra.mxu0 0.0
      %618 = vmatpush.msra.mxu0 0.0
      %619 = vmatpush.msra.mxu0 0.0
      %620 = vmatpush.msra.mxu0 0.0
      %621 = vmatpush.msra.mxu0 0.0
      %622 = vmatpush.msra.mxu0 0.0
      %623 = vmatpush.msra.mxu0 0.0
      %624 = vmatpush.msra.mxu0 0.0
      %625 = vmatpush.msra.mxu0 0.0
      %626 = vmatpush.msra.mxu0 0.0
      %627 = vmatpush.msra.mxu0 0.0
      %628 = vmatpush.msra.mxu0 0.0
      %629 = vmatpush.msra.mxu0 0.0
      %630 = vmatpush.msra.mxu0 0.0
      %631 = vmatpush.msra.mxu0 %v603
      %632 = vmatpush.msra.mxu0 %v602
      %633 = vmatmul.f32.gmra.mxu0 %v615
      %v634 = vpop.f32.mrf.mxu0
      %v635 = vadd.f32 %v611, %v634
      %636 = vdwg.mxu0
      %vm637 = vcmp.ge.f32.partialorder %v635, 0.0
      %v638 = vmul.f32 %v635, 0.2
      %v639 = vsel %vm637, %v635, %v638
      %641 = vset.pattern.permute.xlu0 0
      %642 = vperm.xlu0 %641, %v607
      %v643 = vpop.permute.xlu0 %642
      %vm645 = vcmask 64512
      %v647 = vsel %vm645, %v606, 0
      %649 = vmatpush.msra.mxu0 0.0
      %650 = vmatpush.msra.mxu0 0.0
      %651 = vmatpush.msra.mxu0 0.0
      %652 = vmatpush.msra.mxu0 0.0
      %653 = vmatpush.msra.mxu0 0.0
      %654 = vmatpush.msra.mxu0 0.0
      %655 = vmatpush.msra.mxu0 0.0
      %656 = vmatpush.msra.mxu0 0.0
      %657 = vmatpush.msra.mxu0 0.0
      %658 = vmatpush.msra.mxu0 0.0
      %659 = vmatpush.msra.mxu0 0.0
      %660 = vmatpush.msra.mxu0 0.0
      %661 = vmatpush.msra.mxu0 0.0
      %662 = vmatpush.msra.mxu0 0.0
      %663 = vmatpush.msra.mxu0 0.0
      %664 = vmatpush.msra.mxu0 %v639
      %665 = vmatmul.f32.gmra.mxu0 %v647
      %v666 = vpop.f32.mrf.mxu0
      %v667 = vadd.f32 %v643, %v666
      %668 = vdwg.mxu0
      %vm669 = vcmp.ge.f32.partialorder %v667, 0.0
      %v670 = vmul.f32 %v667, 0.2
      %v671 = vsel %vm669, %v667, %v670
      %673 = vrot.lane.b32.xlu0 %v671, 112
      %v674 = vpop.permute.xlu0 %673
      %v676 = vmax.f32 %v671, %v674
      %677 = vrot.lane.b32.xlu0 %v671, 96
      %v678 = vpop.permute.xlu0 %677
      %v680 = vmax.f32 %v676, %v678
      %681 = vrot.lane.b32.xlu0 %v671, 80
      %v682 = vpop.permute.xlu0 %681
      %v684 = vmax.f32 %v680, %v682
      %v685 = vld [vmem:[%s588] sm:$0xff]
      %v686 = vld [vmem:[%s6] sm:$0xff]
      %v687 = vld [vmem:[%s6 + $0x8] sm:$0xff]
      %v688 = vld [vmem:[%s7] sm:$0xff]
      %v689 = vld [vmem:[%s7 + $0x8] sm:$0xff]
      %v690 = vld [vmem:[%s8] sm:$0xff]
      %v691 = vld [vmem:[%s8 + $0x8] sm:$0xff]
      %v692 = vld [vmem:[%s9] sm:$0xff]
      %v693 = vld [vmem:[%s9 + $0x8] sm:$0xff]
      %v694 = vld [vmem:[%s10] sm:$0xff]
      %v695 = vld [vmem:[%s10 + $0x8] sm:$0xff]
      %v696 = vld [vmem:[%s11] sm:$0xff]
      %v697 = vld [vmem:[%s11 + $0x8] sm:$0xff]
      %v698 = vld [vmem:[%s11 + $0x10] sm:$0xff]
      %v699 = vld [vmem:[%s11 + $0x18] sm:$0xff]
      %v700 = vld [vmem:[%s12] sm:$0xff]
      %v701 = vld [vmem:[%s12 + $0x8] sm:$0xff]
      %v702 = vld [vmem:[%s13] sm:$0xff]
      %v703 = vld [vmem:[%s13 + $0x8] sm:$0xff]
      %v704 = vld [vmem:[%s14] sm:$0xff]
      %v705 = vld [vmem:[%s14 + $0x8] sm:$0xff]
      %v707 = vsel %vm613, %v686, 0
      %v710 = vsel %vm613, %v687, 0
      %712 = vmatpush.msra.mxu0 0.0
      %713 = vmatpush.msra.mxu0 0.0
      %714 = vmatpush.msra.mxu0 0.0
      %715 = vmatpush.msra.mxu0 0.0
      %716 = vmatpush.msra.mxu0 0.0
      %717 = vmatpush.msra.mxu0 0.0
      %718 = vmatpush.msra.mxu0 0.0
      %719 = vmatpush.msra.mxu0 0.0
      %720 = vmatpush.msra.mxu0 0.0
      %721 = vmatpush.msra.mxu0 0.0
      %722 = vmatpush.msra.mxu0 0.0
      %723 = vmatpush.msra.mxu0 0.0
      %724 = vmatpush.msra.mxu0 0.0
      %725 = vmatpush.msra.mxu0 0.0
      %726 = vmatpush.msra.mxu0 %v684
      %727 = vmatpush.msra.mxu0 %v685
      %728 = vmatmul.f32.gmra.mxu0 %v707
      %v729 = vpop.f32.mrf.mxu0
      %v730 = vadd.f32 0.0, %v729
      %731 = vmatmul.f32.gmra.mxu0 %v710
      %v732 = vpop.f32.mrf.mxu0
      %v733 = vadd.f32 0.0, %v732
      %734 = vdwg.mxu0
      %v736 = vsel %vm613, %v688, 0
      %v739 = vsel %vm613, %v689, 0
      %741 = vmatpush.msra.mxu0 0.0
      %742 = vmatpush.msra.mxu0 0.0
      %743 = vmatpush.msra.mxu0 0.0
      %744 = vmatpush.msra.mxu0 0.0
      %745 = vmatpush.msra.mxu0 0.0
      %746 = vmatpush.msra.mxu0 0.0
      %747 = vmatpush.msra.mxu0 0.0
      %748 = vmatpush.msra.mxu0 0.0
      %749 = vmatpush.msra.mxu0 0.0
      %750 = vmatpush.msra.mxu0 0.0
      %751 = vmatpush.msra.mxu0 0.0
      %752 = vmatpush.msra.mxu0 0.0
      %753 = vmatpush.msra.mxu0 0.0
      %754 = vmatpush.msra.mxu0 0.0
      %755 = vmatpush.msra.mxu0 %v684
      %756 = vmatpush.msra.mxu0 %v685
      %757 = vmatmul.f32.gmra.mxu0 %v736
      %v758 = vpop.f32.mrf.mxu0
      %v759 = vadd.f32 0.0, %v758
      %760 = vmatmul.f32.gmra.mxu0 %v739
      %v761 = vpop.f32.mrf.mxu0
      %v762 = vadd.f32 0.0, %v761
      %763 = vdwg.mxu0
      %v765 = vsel %vm613, %v690, 0
      %v768 = vsel %vm613, %v691, 0
      %770 = vmatpush.msra.mxu0 0.0
      %771 = vmatpush.msra.mxu0 0.0
      %772 = vmatpush.msra.mxu0 0.0
      %773 = vmatpush.msra.mxu0 0.0
      %774 = vmatpush.msra.mxu0 0.0
      %775 = vmatpush.msra.mxu0 0.0
      %776 = vmatpush.msra.mxu0 0.0
      %777 = vmatpush.msra.mxu0 0.0
      %778 = vmatpush.msra.mxu0 0.0
      %779 = vmatpush.msra.mxu0 0.0
      %780 = vmatpush.msra.mxu0 0.0
      %781 = vmatpush.msra.mxu0 0.0
      %782 = vmatpush.msra.mxu0 0.0
      %783 = vmatpush.msra.mxu0 0.0
      %784 = vmatpush.msra.mxu0 %v684
      %785 = vmatpush.msra.mxu0 %v685
      %786 = vmatmul.f32.gmra.mxu0 %v765
      %v787 = vpop.f32.mrf.mxu0
      %v788 = vadd.f32 0.0, %v787
      %789 = vmatmul.f32.gmra.mxu0 %v768
      %v790 = vpop.f32.mrf.mxu0
      %v791 = vadd.f32 0.0, %v790
      %792 = vdwg.mxu0
      %793 = vxpose.xlu0.b32.start [1/16] %v730, 128
      %794 = vxpose.xlu0.b32.cont [2/16] 0.0, 128
      %795 = vxpose.xlu0.b32.cont [3/16] 0.0, 128
      %796 = vxpose.xlu0.b32.cont [4/16] 0.0, 128
      %797 = vxpose.xlu0.b32.cont [5/16] 0.0, 128
      %798 = vxpose.xlu0.b32.cont [6/16] 0.0, 128
      %799 = vxpose.xlu0.b32.cont [7/16] 0.0, 128
      %800 = vxpose.xlu0.b32.cont [8/16] 0.0, 128
      %801 = vxpose.xlu0.b32.cont [9/16] 0.0, 128
      %802 = vxpose.xlu0.b32.cont [10/16] 0.0, 128
      %803 = vxpose.xlu0.b32.cont [11/16] 0.0, 128
      %804 = vxpose.xlu0.b32.cont [12/16] 0.0, 128
      %805 = vxpose.xlu0.b32.cont [13/16] 0.0, 128
      %806 = vxpose.xlu0.b32.cont [14/16] 0.0, 128
      %807 = vxpose.xlu0.b32.cont [15/16] 0.0, 128
      %808 = vxpose.xlu0.b32.end [16/16] 0.0, 128
      %v809 = vpop.trf.xlu0
      %v810 = vpop.trf.xlu0
      %v811 = vpop.trf.xlu0
      %v812 = vpop.trf.xlu0
      %v813 = vpop.trf.xlu0
      %v814 = vpop.trf.xlu0
      %v815 = vpop.trf.xlu0
      %v816 = vpop.trf.xlu0
      %v817 = vpop.trf.xlu0
      %v818 = vpop.trf.xlu0
      %v819 = vpop.trf.xlu0
      %v820 = vpop.trf.xlu0
      %v821 = vpop.trf.xlu0
      %v822 = vpop.trf.xlu0
      %v823 = vpop.trf.xlu0
      %v824 = vpop.trf.xlu0
      %v826 = vsel %vm645, %v809, 0
      %v829 = vsel %vm645, %v810, 0
      %831 = vmatpush.msra.mxu0 0.0
      %832 = vmatpush.msra.mxu0 0.0
      %833 = vmatpush.msra.mxu0 0.0
      %834 = vmatpush.msra.mxu0 0.0
      %835 = vmatpush.msra.mxu0 0.0
      %836 = vmatpush.msra.mxu0 0.0
      %837 = vmatpush.msra.mxu0 0.0
      %838 = vmatpush.msra.mxu0 0.0
      %839 = vmatpush.msra.mxu0 0.0
      %840 = vmatpush.msra.mxu0 0.0
      %841 = vmatpush.msra.mxu0 0.0
      %842 = vmatpush.msra.mxu0 0.0
      %843 = vmatpush.msra.mxu0 0.0
      %844 = vmatpush.msra.mxu0 0.0
      %845 = vmatpush.msra.mxu0 0.0
      %846 = vmatpush.msra.mxu0 %v759
      %847 = vmatmul.f32.gmra.mxu0 %v826
      %v848 = vpop.f32.mrf.mxu0
      %v849 = vadd.f32 0.0, %v848
      %850 = vmatmul.f32.gmra.mxu0 %v829
      %v851 = vpop.f32.mrf.mxu0
      %v852 = vadd.f32 0.0, %v851
      %853 = vdwg.mxu0
      %v854 = vsel %vm613, %v849, -inf
      %855 = vmax.xlane.f32.xlu0 %v854
      %v856 = vpop.xlane.xlu0 %855
      %v857 = vsel %vm613, %v852, -inf
      %858 = vmax.xlane.f32.xlu0 %v857
      %v859 = vpop.xlane.xlu0 %858
      %v860 = vsub.f32 %v849, %v856
      %v861 = vsub.f32 %v852, %v859
      %v862 = vmul.f32 %v860, 1.442695
      %v863 = vpow.pop %v862
      %v864 = vmul.f32 %v861, 1.442695
      %v865 = vpow.pop %v864
      %v866 = vsel %vm613, %v863, 0.0
      %867 = vadd.xlane.f32.xlu0 %v866
      %v868 = vpop.xlane.xlu0 %867
      %v869 = vsel %vm613, %v865, 0.0
      %870 = vadd.xlane.f32.xlu0 %v869
      %v871 = vpop.xlane.xlu0 %870
      %v872 = vrcp.pop %v868
      %v873 = vrcp.pop %v871
      %v874 = vmul.f32 %v863, %v872
      %v875 = vmul.f32 %v865, %v873
      %v877 = vsel %vm613, %v788, 0
      %v880 = vsel %vm613, %v874, 0
      %v883 = vsel %vm613, %v875, 0
      %885 = vmatpush.xpose.msra.mxu0 0.0
      %886 = vmatpush.xpose.msra.mxu0 0.0
      %887 = vmatpush.xpose.msra.mxu0 0.0
      %888 = vmatpush.xpose.msra.mxu0 0.0
      %889 = vmatpush.xpose.msra.mxu0 0.0
      %890 = vmatpush.xpose.msra.mxu0 0.0
      %891 = vmatpush.xpose.msra.mxu0 0.0
      %892 = vmatpush.xpose.msra.mxu0 0.0
      %893 = vmatpush.xpose.msra.mxu0 0.0
      %894 = vmatpush.xpose.msra.mxu0 0.0
      %895 = vmatpush.xpose.msra.mxu0 0.0
      %896 = vmatpush.xpose.msra.mxu0 0.0
      %897 = vmatpush.xpose.msra.mxu0 0.0
      %898 = vmatpush.xpose.msra.mxu0 0.0
      %899 = vmatpush.xpose.msra.mxu0 %v883
      %900 = vmatpush.xpose.msra.mxu0 %v880
      %901 = vmatmul.f32.gmra.mxu0 %v877
      %v902 = vpop.f32.mrf.mxu0
      %v903 = vadd.f32 0.0, %v902
      %904 = vdwg.mxu0
      %905 = vst.msk [vmem:[#allocation2] sm:$0xff] %vm613, %v903
      %906 = vxpose.xlu0.b32.start [1/16] %v733, 128
      %907 = vxpose.xlu0.b32.cont [2/16] 0.0, 128
      %908 = vxpose.xlu0.b32.cont [3/16] 0.0, 128
      %909 = vxpose.xlu0.b32.cont [4/16] 0.0, 128
      %910 = vxpose.xlu0.b32.cont [5/16] 0.0, 128
      %911 = vxpose.xlu0.b32.cont [6/16] 0.0, 128
      %912 = vxpose.xlu0.b32.cont [7/16] 0.0, 128
      %913 = vxpose.xlu0.b32.cont [8/16] 0.0, 128
      %914 = vxpose.xlu0.b32.cont [9/16] 0.0, 128
      %915 = vxpose.xlu0.b32.cont [10/16] 0.0, 128
      %916 = vxpose.xlu0.b32.cont [11/16] 0.0, 128
      %917 = vxpose.xlu0.b32.cont [12/16] 0.0, 128
      %918 = vxpose.xlu0.b32.cont [13/16] 0.0, 128
      %919 = vxpose.xlu0.b32.cont [14/16] 0.0, 128
      %920 = vxpose.xlu0.b32.cont [15/16] 0.0, 128
      %921 = vxpose.xlu0.b32.end [16/16] 0.0, 128
      %v922 = vpop.trf.xlu0
      %v923 = vpop.trf.xlu0
      %v924 = vpop.trf.xlu0
      %v925 = vpop.trf.xlu0
      %v926 = vpop.trf.xlu0
      %v927 = vpop.trf.xlu0
      %v928 = vpop.trf.xlu0
      %v929 = vpop.trf.xlu0
      %v930 = vpop.trf.xlu0
      %v931 = vpop.trf.xlu0
      %v932 = vpop.trf.xlu0
      %v933 = vpop.trf.xlu0
      %v934 = vpop.trf.xlu0
      %v935 = vpop.trf.xlu0
      %v936 = vpop.trf.xlu0
      %v937 = vpop.trf.xlu0
      %v939 = vsel %vm645, %v922, 0
      %v942 = vsel %vm645, %v923, 0
      %944 = vmatpush.msra.mxu0 0.0
      %945 = vmatpush.msra.mxu0 0.0
      %946 = vmatpush.msra.mxu0 0.0
      %947 = vmatpush.msra.mxu0 0.0
      %948 = vmatpush.msra.mxu0 0.0
      %949 = vmatpush.msra.mxu0 0.0
      %950 = vmatpush.msra.mxu0 0.0
      %951 = vmatpush.msra.mxu0 0.0
      %952 = vmatpush.msra.mxu0 0.0
      %953 = vmatpush.msra.mxu0 0.0
      %954 = vmatpush.msra.mxu0 0.0
      %955 = vmatpush.msra.mxu0 0.0
      %956 = vmatpush.msra.mxu0 0.0
      %957 = vmatpush.msra.mxu0 0.0
      %958 = vmatpush.msra.mxu0 0.0
      %959 = vmatpush.msra.mxu0 %v762
      %960 = vmatmul.f32.gmra.mxu0 %v939
      %v961 = vpop.f32.mrf.mxu0
      %v962 = vadd.f32 0.0, %v961
      %963 = vmatmul.f32.gmra.mxu0 %v942
      %v964 = vpop.f32.mrf.mxu0
      %v965 = vadd.f32 0.0, %v964
      %966 = vdwg.mxu0
      %v967 = vsel %vm613, %v962, -inf
      %968 = vmax.xlane.f32.xlu0 %v967
      %v969 = vpop.xlane.xlu0 %968
      %v970 = vsel %vm613, %v965, -inf
      %971 = vmax.xlane.f32.xlu0 %v970
      %v972 = vpop.xlane.xlu0 %971
      %v973 = vsub.f32 %v962, %v969
      %v974 = vsub.f32 %v965, %v972
      %v975 = vmul.f32 %v973, 1.442695
      %v976 = vpow.pop %v975
      %v977 = vmul.f32 %v974, 1.442695
      %v978 = vpow.pop %v977
      %v979 = vsel %vm613, %v976, 0.0
      %980 = vadd.xlane.f32.xlu0 %v979
      %v981 = vpop.xlane.xlu0 %980
      %v982 = vsel %vm613, %v978, 0.0
      %983 = vadd.xlane.f32.xlu0 %v982
      %v984 = vpop.xlane.xlu0 %983
      %v985 = vrcp.pop %v981
      %v986 = vrcp.pop %v984
      %v987 = vmul.f32 %v976, %v985
      %v988 = vmul.f32 %v978, %v986
      %v990 = vsel %vm613, %v791, 0
      %v993 = vsel %vm613, %v987, 0
      %v996 = vsel %vm613, %v988, 0
      %998 = vmatpush.xpose.msra.mxu0 0.0
      %999 = vmatpush.xpose.msra.mxu0 0.0
      %1000 = vmatpush.xpose.msra.mxu0 0.0
      %1001 = vmatpush.xpose.msra.mxu0 0.0
      %1002 = vmatpush.xpose.msra.mxu0 0.0
      %1003 = vmatpush.xpose.msra.mxu0 0.0
      %1004 = vmatpush.xpose.msra.mxu0 0.0
      %1005 = vmatpush.xpose.msra.mxu0 0.0
      %1006 = vmatpush.xpose.msra.mxu0 0.0
      %1007 = vmatpush.xpose.msra.mxu0 0.0
      %1008 = vmatpush.xpose.msra.mxu0 0.0
      %1009 = vmatpush.xpose.msra.mxu0 0.0
      %1010 = vmatpush.xpose.msra.mxu0 0.0
      %1011 = vmatpush.xpose.msra.mxu0 0.0
      %1012 = vmatpush.xpose.msra.mxu0 %v996
      %1013 = vmatpush.xpose.msra.mxu0 %v993
      %1014 = vmatmul.f32.gmra.mxu0 %v990
      %v1015 = vpop.f32.mrf.mxu0
      %v1016 = vadd.f32 0.0, %v1015
      %1017 = vdwg.mxu0
      %1018 = vst.msk [vmem:[#allocation2 + $0x8] sm:$0xff] %vm613, %v1016
      %v1019 = vld [vmem:[#allocation2] sm:$0xff]
      %v1020 = vld [vmem:[#allocation2 + $0x8] sm:$0xff]
      %v1021 = vadd.f32 %v685, %v1019
      %v1022 = vadd.f32 %v684, %v1020
      %1024 = vset.pattern.permute.xlu0 0
      %1025 = vperm.xlu0 %1024, %v692
      %v1026 = vpop.permute.xlu0 %1025
      %1029 = vset.pattern.permute.xlu0 0
      %1030 = vperm.xlu0 %1029, %v693
      %v1031 = vpop.permute.xlu0 %1030
      %v1033 = vmul.f32 %v1021, %v1026
      %v1034 = vmul.f32 %v1022, %v1031
      %1036 = vset.pattern.permute.xlu0 0
      %1037 = vperm.xlu0 %1036, %v694
      %v1038 = vpop.permute.xlu0 %1037
      %1041 = vset.pattern.permute.xlu0 0
      %1042 = vperm.xlu0 %1041, %v695
      %v1043 = vpop.permute.xlu0 %1042
      %v1045 = vadd.f32 %v1033, %v1038
      %v1046 = vadd.f32 %v1034, %v1043
      %v1048 = vsel %vm613, %v696, 0
      %v1051 = vsel %vm613, %v697, 0
      %v1054 = vsel %vm613, %v698, 0
      %v1057 = vsel %vm613, %v699, 0
      %1059 = vmatpush.msra.mxu0 0.0
      %1060 = vmatpush.msra.mxu0 0.0
      %1061 = vmatpush.msra.mxu0 0.0
      %1062 = vmatpush.msra.mxu0 0.0
      %1063 = vmatpush.msra.mxu0 0.0
      %1064 = vmatpush.msra.mxu0 0.0
      %1065 = vmatpush.msra.mxu0 0.0
      %1066 = vmatpush.msra.mxu0 0.0
      %1067 = vmatpush.msra.mxu0 0.0
      %1068 = vmatpush.msra.mxu0 0.0
      %1069 = vmatpush.msra.mxu0 0.0
      %1070 = vmatpush.msra.mxu0 0.0
      %1071 = vmatpush.msra.mxu0 0.0
      %1072 = vmatpush.msra.mxu0 0.0
      %1073 = vmatpush.msra.mxu0 %v1046
      %1074 = vmatpush.msra.mxu0 %v1045
      %1075 = vmatmul.f32.gmra.mxu0 %v1048
      %v1076 = vpop.f32.mrf.mxu0
      %v1077 = vadd.f32 0.0, %v1076
      %1078 = vmatmul.f32.gmra.mxu0 %v1051
      %v1079 = vpop.f32.mrf.mxu0
      %v1080 = vadd.f32 0.0, %v1079
      %1081 = vmatmul.f32.gmra.mxu0 %v1054
      %v1082 = vpop.f32.mrf.mxu0
      %v1083 = vadd.f32 0.0, %v1082
      %1084 = vmatmul.f32.gmra.mxu0 %v1057
      %v1085 = vpop.f32.mrf.mxu0
      %v1086 = vadd.f32 0.0, %v1085
      %1087 = vdwg.mxu0
      %vm1088 = vcmp.ge.f32.partialorder %v1077, 0.0
      %vm1089 = vcmp.ge.f32.partialorder %v1080, 0.0
      %vm1090 = vcmp.ge.f32.partialorder %v1083, 0.0
      %vm1091 = vcmp.ge.f32.partialorder %v1086, 0.0
      %v1092 = vmul.f32 %v1077, 0.2
      %v1093 = vmul.f32 %v1080, 0.2
      %v1094 = vmul.f32 %v1083, 0.2
      %v1095 = vmul.f32 %v1086, 0.2
      %v1096 = vsel %vm1088, %v1077, %v1092
      %v1097 = vsel %vm1089, %v1080, %v1093
      %v1098 = vsel %vm1090, %v1083, %v1094
      %v1099 = vsel %vm1091, %v1086, %v1095
      %vm1100 = vcmask 261120
      %v1102 = vsel %vm1100, %v700, 0
      %v1105 = vsel %vm1100, %v701, 0
      %1107 = vmatpush.msra.mxu0 0.0
      %1108 = vmatpush.msra.mxu0 0.0
      %1109 = vmatpush.msra.mxu0 0.0
      %1110 = vmatpush.msra.mxu0 0.0
      %1111 = vmatpush.msra.mxu0 0.0
      %1112 = vmatpush.msra.mxu0 0.0
      %1113 = vmatpush.msra.mxu0 0.0
      %1114 = vmatpush.msra.mxu0 0.0
      %1115 = vmatpush.msra.mxu0 0.0
      %1116 = vmatpush.msra.mxu0 0.0
      %1117 = vmatpush.msra.mxu0 0.0
      %1118 = vmatpush.msra.mxu0 0.0
      %1119 = vmatpush.msra.mxu0 %v1099
      %1120 = vmatpush.msra.mxu0 %v1098
      %1121 = vmatpush.msra.mxu0 %v1097
      %1122 = vmatpush.msra.mxu0 %v1096
      %1123 = vmatmul.f32.gmra.mxu0 %v1102
      %v1124 = vpop.f32.mrf.mxu0
      %v1125 = vadd.f32 0.0, %v1124
      %1126 = vmatmul.f32.gmra.mxu0 %v1105
      %v1127 = vpop.f32.mrf.mxu0
      %v1128 = vadd.f32 0.0, %v1127
      %1129 = vdwg.mxu0
      %v1130 = vadd.f32 %v1045, %v1125
      %v1131 = vadd.f32 %v1046, %v1128
      %1133 = vset.pattern.permute.xlu0 0
      %1134 = vperm.xlu0 %1133, %v702
      %v1135 = vpop.permute.xlu0 %1134
      %1138 = vset.pattern.permute.xlu0 0
      %1139 = vperm.xlu0 %1138, %v703
      %v1140 = vpop.permute.xlu0 %1139
      %v1142 = vmul.f32 %v1130, %v1135
      %v1143 = vmul.f32 %v1131, %v1140
      %1145 = vset.pattern.permute.xlu0 0
      %1146 = vperm.xlu0 %1145, %v704
      %v1147 = vpop.permute.xlu0 %1146
      %1150 = vset.pattern.permute.xlu0 0
      %1151 = vperm.xlu0 %1150, %v705
      %v1152 = vpop.permute.xlu0 %1151
      %v1154 = vadd.f32 %v1142, %v1147
      %v1155 = vadd.f32 %v1143, %v1152
      %1156 = vst.msk [vmem:[%s598] sm:$0xff] %vm613, %v1154
      %1157 = vst.msk [vmem:[%s598 + $0x8] sm:$0xff] %vm613, %v1155
      %v1158 = vld [vmem:[%s15] sm:$0xff]
      %v1159 = vld [vmem:[%s15 + $0x8] sm:$0xff]
      %v1160 = vld [vmem:[%s16] sm:$0xff]
      %v1161 = vld [vmem:[%s16 + $0x8] sm:$0xff]
      %v1163 = vsel %vm613, %v1158, 0
      %v1166 = vsel %vm613, %v1159, 0
      %1168 = vmatpush.msra.mxu0 0.0
      %1169 = vmatpush.msra.mxu0 0.0
      %1170 = vmatpush.msra.mxu0 0.0
      %1171 = vmatpush.msra.mxu0 0.0
      %1172 = vmatpush.msra.mxu0 0.0
      %1173 = vmatpush.msra.mxu0 0.0
      %1174 = vmatpush.msra.mxu0 0.0
      %1175 = vmatpush.msra.mxu0 0.0
      %1176 = vmatpush.msra.mxu0 0.0
      %1177 = vmatpush.msra.mxu0 0.0
      %1178 = vmatpush.msra.mxu0 0.0
      %1179 = vmatpush.msra.mxu0 0.0
      %1180 = vmatpush.msra.mxu0 0.0
      %1181 = vmatpush.msra.mxu0 0.0
      %1182 = vmatpush.msra.mxu0 %v1155
      %1183 = vmatpush.msra.mxu0 %v1154
      %1184 = vmatmul.f32.gmra.mxu0 %v1163
      %v1185 = vpop.f32.mrf.mxu0
      %v1186 = vadd.f32 0.0, %v1185
      %1187 = vmatmul.f32.gmra.mxu0 %v1166
      %v1188 = vpop.f32.mrf.mxu0
      %v1189 = vadd.f32 0.0, %v1188
      %1190 = vdwg.mxu0
      %v1192 = vsel %vm613, %v1160, 0
      %v1195 = vsel %vm613, %v1161, 0
      %1197 = vmatpush.msra.mxu0 0.0
      %1198 = vmatpush.msra.mxu0 0.0
      %1199 = vmatpush.msra.mxu0 0.0
      %1200 = vmatpush.msra.mxu0 0.0
      %1201 = vmatpush.msra.mxu0 0.0
      %1202 = vmatpush.msra.mxu0 0.0
      %1203 = vmatpush.msra.mxu0 0.0
      %1204 = vmatpush.msra.mxu0 0.0
      %1205 = vmatpush.msra.mxu0 0.0
      %1206 = vmatpush.msra.mxu0 0.0
      %1207 = vmatpush.msra.mxu0 0.0
      %1208 = vmatpush.msra.mxu0 0.0
      %1209 = vmatpush.msra.mxu0 0.0
      %1210 = vmatpush.msra.mxu0 0.0
      %1211 = vmatpush.msra.mxu0 %v1155
      %1212 = vmatpush.msra.mxu0 %v1154
      %1213 = vmatmul.f32.gmra.mxu0 %v1192
      %v1214 = vpop.f32.mrf.mxu0
      %v1215 = vadd.f32 0.0, %v1214
      %1216 = vmatmul.f32.gmra.mxu0 %v1195
      %v1217 = vpop.f32.mrf.mxu0
      %v1218 = vadd.f32 0.0, %v1217
      %1219 = vdwg.mxu0
      %1220 = vxpose.xlu0.b32.start [1/16] %v1186, 128
      %1221 = vxpose.xlu0.b32.cont [2/16] %v1189, 128
      %1222 = vxpose.xlu0.b32.cont [3/16] 0.0, 128
      %1223 = vxpose.xlu0.b32.cont [4/16] 0.0, 128
      %1224 = vxpose.xlu0.b32.cont [5/16] 0.0, 128
      %1225 = vxpose.xlu0.b32.cont [6/16] 0.0, 128
      %1226 = vxpose.xlu0.b32.cont [7/16] 0.0, 128
      %1227 = vxpose.xlu0.b32.cont [8/16] 0.0, 128
      %1228 = vxpose.xlu0.b32.cont [9/16] 0.0, 128
      %1229 = vxpose.xlu0.b32.cont [10/16] 0.0, 128
      %1230 = vxpose.xlu0.b32.cont [11/16] 0.0, 128
      %1231 = vxpose.xlu0.b32.cont [12/16] 0.0, 128
      %1232 = vxpose.xlu0.b32.cont [13/16] 0.0, 128
      %1233 = vxpose.xlu0.b32.cont [14/16] 0.0, 128
      %1234 = vxpose.xlu0.b32.cont [15/16] 0.0, 128
      %1235 = vxpose.xlu0.b32.end [16/16] 0.0, 128
      %v1236 = vpop.trf.xlu0
      %v1237 = vpop.trf.xlu0
      %v1238 = vpop.trf.xlu0
      %v1239 = vpop.trf.xlu0
      %v1240 = vpop.trf.xlu0
      %v1241 = vpop.trf.xlu0
      %v1242 = vpop.trf.xlu0
      %v1243 = vpop.trf.xlu0
      %v1244 = vpop.trf.xlu0
      %v1245 = vpop.trf.xlu0
      %v1246 = vpop.trf.xlu0
      %v1247 = vpop.trf.xlu0
      %v1248 = vpop.trf.xlu0
      %v1249 = vpop.trf.xlu0
      %v1250 = vpop.trf.xlu0
      %v1251 = vpop.trf.xlu0
      %v1253 = vsel %vm613, %v1236, 0
      %v1256 = vsel %vm613, %v1237, 0
      %1258 = vmatpush.msra.mxu0 0.0
      %1259 = vmatpush.msra.mxu0 0.0
      %1260 = vmatpush.msra.mxu0 0.0
      %1261 = vmatpush.msra.mxu0 0.0
      %1262 = vmatpush.msra.mxu0 0.0
      %1263 = vmatpush.msra.mxu0 0.0
      %1264 = vmatpush.msra.mxu0 0.0
      %1265 = vmatpush.msra.mxu0 0.0
      %1266 = vmatpush.msra.mxu0 0.0
      %1267 = vmatpush.msra.mxu0 0.0
      %1268 = vmatpush.msra.mxu0 0.0
      %1269 = vmatpush.msra.mxu0 0.0
      %1270 = vmatpush.msra.mxu0 0.0
      %1271 = vmatpush.msra.mxu0 0.0
      %1272 = vmatpush.msra.mxu0 %v1218
      %1273 = vmatpush.msra.mxu0 %v1215
      %1274 = vmatmul.f32.gmra.mxu0 %v1253
      %v1275 = vpop.f32.mrf.mxu0
      %v1276 = vadd.f32 0.0, %v1275
      %1277 = vmatmul.f32.gmra.mxu0 %v1256
      %v1278 = vpop.f32.mrf.mxu0
      %v1279 = vadd.f32 0.0, %v1278
      %1280 = vdwg.mxu0
      %v1281 = vsel %vm613, %v1276, -inf
      %1282 = vmax.xlane.f32.xlu0 %v1281
      %v1283 = vpop.xlane.xlu0 %1282
      %v1284 = vsel %vm613, %v1279, -inf
      %1285 = vmax.xlane.f32.xlu0 %v1284
      %v1286 = vpop.xlane.xlu0 %1285
      %v1287 = vsub.f32 %v1276, %v1283
      %v1288 = vsub.f32 %v1279, %v1286
      %v1289 = vmul.f32 %v1287, 1.442695
      %v1290 = vpow.pop %v1289
      %v1291 = vmul.f32 %v1288, 1.442695
      %v1292 = vpow.pop %v1291
      %v1293 = vsel %vm613, %v1290, 0.0
      %1294 = vadd.xlane.f32.xlu0 %v1293
      %v1295 = vpop.xlane.xlu0 %1294
      %v1296 = vsel %vm613, %v1292, 0.0
      %1297 = vadd.xlane.f32.xlu0 %v1296
      %v1298 = vpop.xlane.xlu0 %1297
      %v1299 = vrcp.pop %v1295
      %v1300 = vrcp.pop %v1298
      %v1301 = vmul.f32 %v1290, %v1299
      %v1302 = vmul.f32 %v1292, %v1300
      %v1303 = vsel %vm613, %v1301, 0.0
      %v1304 = vsel %vm613, %v1302, 0.0
      %v1305 = vadd.f32 %v1303, %v1304
      %v1306 = vrot.slane %v1305, 4
      %v1307 = vadd.f32 %v1305, %v1306
      %v1308 = vrot.slane %v1307, 2
      %v1309 = vadd.f32 %v1307, %v1308
      %v1310 = vrot.slane %v1309, 1
      %v1311 = vadd.f32 %v1309, %v1310
      %vm1312 = vcmask 122880
      %1313 = vst.msk [vmem:[%s601] sm:$0x1] %vm1312, %v1311
      %p1314 = scmp.lt.s32.totalorder %s30, 1
      %s1315 = scalar_select %p1314, %s30, 1
      %s1316 = smul.addr %s1315, 2
      %s1317 = smul.addr %s1316, 8
      %s1318 = scalar_lea.vmem %s17, %s1317
      %p1319 = scmp.lt.s32.totalorder %s30, 1
      %s1320 = scalar_select %p1319, %s30, 1
      %s1321 = scalar_lea.vmem %s18, %s1320
      // Predicated region
      $region89: #{feature_learning_block.5} parent=87 // pred_check
        %p1322 = pneg %p415
      $region90: #{feature_learning_block.5} parent=87 // pred_check_branch
        %1324 = sbr.rel (%p1322) target = $region92
      $region91: #{feature_learning_block.5} parent=87 // pred_region
        _
      $region92: #{feature_learning_block.5} parent=87 // pred_fallthru
        _
      // Predicated region
      $region93: #{feature_learning_block.5} parent=87 // pred_check
        %p1325 = pneg %p441
      $region94: #{feature_learning_block.5} parent=87 // pred_check_branch
        %1327 = sbr.rel (%p1325) target = $region96
      $region95: #{feature_learning_block.5} parent=87 // pred_region
        _
      $region96: #{feature_learning_block.5} parent=87 // pred_fallthru
        _
    $region88: #{feature_learning_block.5} parent=5 // pred_fallthru
      _
    %p1328 = scmp.le.s32.totalorder 2, %s25
    // Predicated region
    $region97: #{feature_learning_block.5} parent=5 // pred_check
      %p1329 = pneg %p1328
    $region98: #{feature_learning_block.5} parent=5 // pred_check_branch
      %1331 = sbr.rel (%p1329) target = $region100
    $region99: #{feature_learning_block.5} parent=5 // pred_region
      %s1332 = ssub.s32 %s25, 2
      // Predicated region
      $region101: #{feature_learning_block.5} parent=99 // pred_check
        %p1333 = pneg %p421
      $region102: #{feature_learning_block.5} parent=99 // pred_check_branch
        %1335 = sbr.rel (%p1333) target = $region104
      $region103: #{feature_learning_block.5} parent=99 // pred_region
        %p1336 = scmp.lt.s32.totalorder %s31, 1
        %s1337 = scalar_select %p1336, %s31, 1
        %s1338 = smul.addr %s1337, 2
        %s1339 = smul.addr %s1338, 8
        %s1340 = scalar_lea.vmem %s17, %s1339
      $region104: #{feature_learning_block.5} parent=99 // pred_fallthru
        _
      // Predicated region
      $region105: #{feature_learning_block.5} parent=99 // pred_check
        %p1341 = pneg %p447
      $region106: #{feature_learning_block.5} parent=99 // pred_check_branch
        %1343 = sbr.rel (%p1341) target = $region108
      $region107: #{feature_learning_block.5} parent=99 // pred_region
        %p1344 = scmp.lt.s32.totalorder %s31, 1
        %s1345 = scalar_select %p1344, %s31, 1
        %s1346 = scalar_lea.vmem %s18, %s1345
      $region108: #{feature_learning_block.5} parent=99 // pred_fallthru
        _
    $region100: #{feature_learning_block.5} parent=5 // pred_fallthru
      _
  $region6: #{feature_learning_block.5} parent=0 // loop_footer
    %s29 = sadd.s32 1, %s25
  $region7: #{feature_learning_block.5} parent=0 // loop_footer_branch
    %24 = sbr.rel target = $region3
  $region8: #{feature_learning_block.5} parent=0 // loop_exit
    _

// kernel: feature_learning_block.6
$region0: #{feature_learning_block.6}
  #allocation0 [shape = 'u32[]', space=smem, size = 0x4, offset = 0x4, fixed_abs, tag = 'smem constant byte address 0x4 - core index']
  #allocation1 [shape = 'u32[72,128]{1,0:T(1,128)}', space=vmem, size = 0x9000, scoped, tag = 'internal scratch']
  #allocation2 [shape = 'f32[16,8]{1,0:T(8,128)}', space=vmem, size = 0x2000, scoped, tag = 'scratch operand']
  %s0 = inlined_call_operand.vmem [shape: f32[2,16,16], index: 0, kind: input, shape index: {}]
  %s1 = inlined_call_operand.vmem [shape: f32[2,8,16], index: 1, kind: input, shape index: {}]
  %s2 = inlined_call_operand.vmem [shape: f32[16,16], index: 2, kind: input, shape index: {}]
  %s3 = inlined_call_operand.vmem [shape: f32[16,16], index: 3, kind: input, shape index: {}]
  %s4 = inlined_call_operand.vmem [shape: f32[16,16], index: 4, kind: input, shape index: {}]
  %s5 = inlined_call_operand.vmem [shape: f32[16,16], index: 5, kind: input, shape index: {}]
  %s6 = inlined_call_operand.vmem [shape: f32[16,16], index: 6, kind: input, shape index: {}]
  %s7 = inlined_call_operand.vmem [shape: f32[16,16], index: 7, kind: input, shape index: {}]
  %s8 = inlined_call_operand.vmem [shape: f32[16,1], index: 8, kind: input, shape index: {}]
  %s9 = inlined_call_operand.vmem [shape: f32[16,1], index: 9, kind: input, shape index: {}]
  %s10 = inlined_call_operand.vmem [shape: f32[32,16], index: 10, kind: input, shape index: {}]
  %s11 = inlined_call_operand.vmem [shape: f32[16,32], index: 11, kind: input, shape index: {}]
  %s12 = inlined_call_operand.vmem [shape: f32[16,1], index: 12, kind: input, shape index: {}]
  %s13 = inlined_call_operand.vmem [shape: f32[16,1], index: 13, kind: input, shape index: {}]
  %s14 = inlined_call_operand.vmem [shape: f32[16,16], index: 14, kind: input, shape index: {}]
  %s15 = inlined_call_operand.vmem [shape: f32[16,16], index: 15, kind: input, shape index: {}]
  %s16 = inlined_call_operand.vmem [shape: f32[2,16,8], index: 16, kind: output, shape index: {0}]
  %s17 = inlined_call_operand.vmem [shape: f32[2,1,8], index: 17, kind: output, shape index: {1}]
  %18 = xla_tuple %s16, %s17
  %s19 = sld [smem:[#allocation0]]
  $region105: #{feature_learning_block.6} parent=0
    _
  %s21 = ssub.s32 1, %s19
  %s22 = scalar_select 0, %s21, %s19
  loop: start=0, step=1, limit=4
  $region2: #{feature_learning_block.6} parent=0 // loop_pre_header
    _
  $region3: #{feature_learning_block.6} parent=0 // loop_header
    %s24 = sphi 0, %s28
    %p25 = scmp.ge.s32.totalorder %s24, 4
    %s34 = sphi 0, %s36
    %s37 = sphi 0, %s34
    %s38 = sphi 0, %s37
    %s54 = sphi 0, %s38
    %s60 = sphi 0, %s62
    %s63 = sphi 0, %s60
    %s64 = sphi 0, %s63
    %s80 = sphi 0, %s64
    %s84 = sphi 0, %s84
    %s86 = sphi 0, %s84
    %s87 = sphi 0, %s86
    %s101 = sphi 0, %s87
    %s105 = sphi 0, %s105
    %s107 = sphi 0, %s105
    %s108 = sphi 0, %s107
    %s122 = sphi 0, %s108
    %s126 = sphi 0, %s126
    %s128 = sphi 0, %s126
    %s129 = sphi 0, %s128
    %s143 = sphi 0, %s129
    %s147 = sphi 0, %s147
    %s149 = sphi 0, %s147
    %s150 = sphi 0, %s149
    %s164 = sphi 0, %s150
    %s168 = sphi 0, %s168
    %s170 = sphi 0, %s168
    %s171 = sphi 0, %s170
    %s185 = sphi 0, %s171
    %s189 = sphi 0, %s189
    %s191 = sphi 0, %s189
    %s192 = sphi 0, %s191
    %s206 = sphi 0, %s192
    %s210 = sphi 0, %s210
    %s212 = sphi 0, %s210
    %s213 = sphi 0, %s212
    %s227 = sphi 0, %s213
    %s231 = sphi 0, %s231
    %s233 = sphi 0, %s231
    %s234 = sphi 0, %s233
    %s248 = sphi 0, %s234
    %s252 = sphi 0, %s252
    %s254 = sphi 0, %s252
    %s255 = sphi 0, %s254
    %s269 = sphi 0, %s255
    %s273 = sphi 0, %s273
    %s275 = sphi 0, %s273
    %s276 = sphi 0, %s275
    %s290 = sphi 0, %s276
    %s294 = sphi 0, %s294
    %s296 = sphi 0, %s294
    %s297 = sphi 0, %s296
    %s311 = sphi 0, %s297
    %s315 = sphi 0, %s315
    %s317 = sphi 0, %s315
    %s318 = sphi 0, %s317
    %s332 = sphi 0, %s318
    %s336 = sphi 0, %s336
    %s338 = sphi 0, %s336
    %s339 = sphi 0, %s338
    %s353 = sphi 0, %s339
    %s357 = sphi 0, %s357
    %s359 = sphi 0, %s357
    %s360 = sphi 0, %s359
    %s374 = sphi 0, %s360
    %s380 = sphi 0, %s382
    %s383 = sphi 0, %s380
    %s384 = sphi 0, %s383
    %s400 = sphi 0, %s384
    %s406 = sphi 0, %s408
    %s409 = sphi 0, %s406
    %s410 = sphi 0, %s409
    %s426 = sphi 0, %s410
  $region4: #{feature_learning_block.6} parent=0 // loop_header_branch
    %27 = sbr.rel (%p25) target = $region8
  $region5: #{feature_learning_block.6} parent=0 // loop_body
    %s29 = ssub.s32 %s24, 1
    %s30 = ssub.s32 %s24, 2
    %s31 = sadd.s32 %s24, 1
    %s32 = ssub.s32 %s24, %s31
    %p33 = scmp.eq.s32.totalorder %s32, 0
    %s35 = sadd.s32 %s34, 1
    %s36 = scalar_select %p33, %s34, %s35
    %p39 = pneg %p33
    %p40 = scmp.eq.s32.totalorder %s24, 1
    %p41 = por %p39, %p40
    %p42 = scmp.ne.s32.totalorder %s34, %s37
    %p43 = scmp.eq.s32.totalorder %s24, 0
    %p44 = por %p42, %p43
    %p45 = scmp.ne.s32.totalorder %s34, %s37
    %p46 = scmp.eq.s32.totalorder %s29, 1
    %p47 = por %p45, %p46
    %p48 = scmp.ne.s32.totalorder %s37, %s38
    %p49 = scmp.eq.s32.totalorder %s29, 0
    %p50 = por %p48, %p49
    %p51 = scmp.ne.s32.totalorder %s37, %s38
    %p52 = scmp.eq.s32.totalorder %s30, 1
    %p53 = por %p51, %p52
    %p55 = scmp.ne.s32.totalorder %s38, %s54
    %p56 = scmp.eq.s32.totalorder %s30, 0
    %p57 = por %p55, %p56
    %s58 = ssub.s32 %s24, %s31
    %p59 = scmp.eq.s32.totalorder %s58, 0
    %s61 = sadd.s32 %s60, 1
    %s62 = scalar_select %p59, %s60, %s61
    %p65 = pneg %p59
    %p66 = scmp.eq.s32.totalorder %s24, 1
    %p67 = por %p65, %p66
    %p68 = scmp.ne.s32.totalorder %s60, %s63
    %p69 = scmp.eq.s32.totalorder %s24, 0
    %p70 = por %p68, %p69
    %p71 = scmp.ne.s32.totalorder %s60, %s63
    %p72 = scmp.eq.s32.totalorder %s29, 1
    %p73 = por %p71, %p72
    %p74 = scmp.ne.s32.totalorder %s63, %s64
    %p75 = scmp.eq.s32.totalorder %s29, 0
    %p76 = por %p74, %p75
    %p77 = scmp.ne.s32.totalorder %s63, %s64
    %p78 = scmp.eq.s32.totalorder %s30, 1
    %p79 = por %p77, %p78
    %p81 = scmp.ne.s32.totalorder %s64, %s80
    %p82 = scmp.eq.s32.totalorder %s30, 0
    %p83 = por %p81, %p82
    %s85 = sadd.s32 %s84, 1
    %p88 = scmp.eq.s32.totalorder %s24, 1
    %p89 = scmp.ne.s32.totalorder %s84, %s86
    %p90 = scmp.eq.s32.totalorder %s24, 0
    %p91 = por %p89, %p90
    %p92 = scmp.ne.s32.totalorder %s84, %s86
    %p93 = scmp.eq.s32.totalorder %s29, 1
    %p94 = por %p92, %p93
    %p95 = scmp.ne.s32.totalorder %s86, %s87
    %p96 = scmp.eq.s32.totalorder %s29, 0
    %p97 = por %p95, %p96
    %p98 = scmp.ne.s32.totalorder %s86, %s87
    %p99 = scmp.eq.s32.totalorder %s30, 1
    %p100 = por %p98, %p99
    %p102 = scmp.ne.s32.totalorder %s87, %s101
    %p103 = scmp.eq.s32.totalorder %s30, 0
    %p104 = por %p102, %p103
    %s106 = sadd.s32 %s105, 1
    %p109 = scmp.eq.s32.totalorder %s24, 1
    %p110 = scmp.ne.s32.totalorder %s105, %s107
    %p111 = scmp.eq.s32.totalorder %s24, 0
    %p112 = por %p110, %p111
    %p113 = scmp.ne.s32.totalorder %s105, %s107
    %p114 = scmp.eq.s32.totalorder %s29, 1
    %p115 = por %p113, %p114
    %p116 = scmp.ne.s32.totalorder %s107, %s108
    %p117 = scmp.eq.s32.totalorder %s29, 0
    %p118 = por %p116, %p117
    %p119 = scmp.ne.s32.totalorder %s107, %s108
    %p120 = scmp.eq.s32.totalorder %s30, 1
    %p121 = por %p119, %p120
    %p123 = scmp.ne.s32.totalorder %s108, %s122
    %p124 = scmp.eq.s32.totalorder %s30, 0
    %p125 = por %p123, %p124
    %s127 = sadd.s32 %s126, 1
    %p130 = scmp.eq.s32.totalorder %s24, 1
    %p131 = scmp.ne.s32.totalorder %s126, %s128
    %p132 = scmp.eq.s32.totalorder %s24, 0
    %p133 = por %p131, %p132
    %p134 = scmp.ne.s32.totalorder %s126, %s128
    %p135 = scmp.eq.s32.totalorder %s29, 1
    %p136 = por %p134, %p135
    %p137 = scmp.ne.s32.totalorder %s128, %s129
    %p138 = scmp.eq.s32.totalorder %s29, 0
    %p139 = por %p137, %p138
    %p140 = scmp.ne.s32.totalorder %s128, %s129
    %p141 = scmp.eq.s32.totalorder %s30, 1
    %p142 = por %p140, %p141
    %p144 = scmp.ne.s32.totalorder %s129, %s143
    %p145 = scmp.eq.s32.totalorder %s30, 0
    %p146 = por %p144, %p145
    %s148 = sadd.s32 %s147, 1
    %p151 = scmp.eq.s32.totalorder %s24, 1
    %p152 = scmp.ne.s32.totalorder %s147, %s149
    %p153 = scmp.eq.s32.totalorder %s24, 0
    %p154 = por %p152, %p153
    %p155 = scmp.ne.s32.totalorder %s147, %s149
    %p156 = scmp.eq.s32.totalorder %s29, 1
    %p157 = por %p155, %p156
    %p158 = scmp.ne.s32.totalorder %s149, %s150
    %p159 = scmp.eq.s32.totalorder %s29, 0
    %p160 = por %p158, %p159
    %p161 = scmp.ne.s32.totalorder %s149, %s150
    %p162 = scmp.eq.s32.totalorder %s30, 1
    %p163 = por %p161, %p162
    %p165 = scmp.ne.s32.totalorder %s150, %s164
    %p166 = scmp.eq.s32.totalorder %s30, 0
    %p167 = por %p165, %p166
    %s169 = sadd.s32 %s168, 1
    %p172 = scmp.eq.s32.totalorder %s24, 1
    %p173 = scmp.ne.s32.totalorder %s168, %s170
    %p174 = scmp.eq.s32.totalorder %s24, 0
    %p175 = por %p173, %p174
    %p176 = scmp.ne.s32.totalorder %s168, %s170
    %p177 = scmp.eq.s32.totalorder %s29, 1
    %p178 = por %p176, %p177
    %p179 = scmp.ne.s32.totalorder %s170, %s171
    %p180 = scmp.eq.s32.totalorder %s29, 0
    %p181 = por %p179, %p180
    %p182 = scmp.ne.s32.totalorder %s170, %s171
    %p183 = scmp.eq.s32.totalorder %s30, 1
    %p184 = por %p182, %p183
    %p186 = scmp.ne.s32.totalorder %s171, %s185
    %p187 = scmp.eq.s32.totalorder %s30, 0
    %p188 = por %p186, %p187
    %s190 = sadd.s32 %s189, 1
    %p193 = scmp.eq.s32.totalorder %s24, 1
    %p194 = scmp.ne.s32.totalorder %s189, %s191
    %p195 = scmp.eq.s32.totalorder %s24, 0
    %p196 = por %p194, %p195
    %p197 = scmp.ne.s32.totalorder %s189, %s191
    %p198 = scmp.eq.s32.totalorder %s29, 1
    %p199 = por %p197, %p198
    %p200 = scmp.ne.s32.totalorder %s191, %s192
    %p201 = scmp.eq.s32.totalorder %s29, 0
    %p202 = por %p200, %p201
    %p203 = scmp.ne.s32.totalorder %s191, %s192
    %p204 = scmp.eq.s32.totalorder %s30, 1
    %p205 = por %p203, %p204
    %p207 = scmp.ne.s32.totalorder %s192, %s206
    %p208 = scmp.eq.s32.totalorder %s30, 0
    %p209 = por %p207, %p208
    %s211 = sadd.s32 %s210, 1
    %p214 = scmp.eq.s32.totalorder %s24, 1
    %p215 = scmp.ne.s32.totalorder %s210, %s212
    %p216 = scmp.eq.s32.totalorder %s24, 0
    %p217 = por %p215, %p216
    %p218 = scmp.ne.s32.totalorder %s210, %s212
    %p219 = scmp.eq.s32.totalorder %s29, 1
    %p220 = por %p218, %p219
    %p221 = scmp.ne.s32.totalorder %s212, %s213
    %p222 = scmp.eq.s32.totalorder %s29, 0
    %p223 = por %p221, %p222
    %p224 = scmp.ne.s32.totalorder %s212, %s213
    %p225 = scmp.eq.s32.totalorder %s30, 1
    %p226 = por %p224, %p225
    %p228 = scmp.ne.s32.totalorder %s213, %s227
    %p229 = scmp.eq.s32.totalorder %s30, 0
    %p230 = por %p228, %p229
    %s232 = sadd.s32 %s231, 1
    %p235 = scmp.eq.s32.totalorder %s24, 1
    %p236 = scmp.ne.s32.totalorder %s231, %s233
    %p237 = scmp.eq.s32.totalorder %s24, 0
    %p238 = por %p236, %p237
    %p239 = scmp.ne.s32.totalorder %s231, %s233
    %p240 = scmp.eq.s32.totalorder %s29, 1
    %p241 = por %p239, %p240
    %p242 = scmp.ne.s32.totalorder %s233, %s234
    %p243 = scmp.eq.s32.totalorder %s29, 0
    %p244 = por %p242, %p243
    %p245 = scmp.ne.s32.totalorder %s233, %s234
    %p246 = scmp.eq.s32.totalorder %s30, 1
    %p247 = por %p245, %p246
    %p249 = scmp.ne.s32.totalorder %s234, %s248
    %p250 = scmp.eq.s32.totalorder %s30, 0
    %p251 = por %p249, %p250
    %s253 = sadd.s32 %s252, 1
    %p256 = scmp.eq.s32.totalorder %s24, 1
    %p257 = scmp.ne.s32.totalorder %s252, %s254
    %p258 = scmp.eq.s32.totalorder %s24, 0
    %p259 = por %p257, %p258
    %p260 = scmp.ne.s32.totalorder %s252, %s254
    %p261 = scmp.eq.s32.totalorder %s29, 1
    %p262 = por %p260, %p261
    %p263 = scmp.ne.s32.totalorder %s254, %s255
    %p264 = scmp.eq.s32.totalorder %s29, 0
    %p265 = por %p263, %p264
    %p266 = scmp.ne.s32.totalorder %s254, %s255
    %p267 = scmp.eq.s32.totalorder %s30, 1
    %p268 = por %p266, %p267
    %p270 = scmp.ne.s32.totalorder %s255, %s269
    %p271 = scmp.eq.s32.totalorder %s30, 0
    %p272 = por %p270, %p271
    %s274 = sadd.s32 %s273, 1
    %p277 = scmp.eq.s32.totalorder %s24, 1
    %p278 = scmp.ne.s32.totalorder %s273, %s275
    %p279 = scmp.eq.s32.totalorder %s24, 0
    %p280 = por %p278, %p279
    %p281 = scmp.ne.s32.totalorder %s273, %s275
    %p282 = scmp.eq.s32.totalorder %s29, 1
    %p283 = por %p281, %p282
    %p284 = scmp.ne.s32.totalorder %s275, %s276
    %p285 = scmp.eq.s32.totalorder %s29, 0
    %p286 = por %p284, %p285
    %p287 = scmp.ne.s32.totalorder %s275, %s276
    %p288 = scmp.eq.s32.totalorder %s30, 1
    %p289 = por %p287, %p288
    %p291 = scmp.ne.s32.totalorder %s276, %s290
    %p292 = scmp.eq.s32.totalorder %s30, 0
    %p293 = por %p291, %p292
    %s295 = sadd.s32 %s294, 1
    %p298 = scmp.eq.s32.totalorder %s24, 1
    %p299 = scmp.ne.s32.totalorder %s294, %s296
    %p300 = scmp.eq.s32.totalorder %s24, 0
    %p301 = por %p299, %p300
    %p302 = scmp.ne.s32.totalorder %s294, %s296
    %p303 = scmp.eq.s32.totalorder %s29, 1
    %p304 = por %p302, %p303
    %p305 = scmp.ne.s32.totalorder %s296, %s297
    %p306 = scmp.eq.s32.totalorder %s29, 0
    %p307 = por %p305, %p306
    %p308 = scmp.ne.s32.totalorder %s296, %s297
    %p309 = scmp.eq.s32.totalorder %s30, 1
    %p310 = por %p308, %p309
    %p312 = scmp.ne.s32.totalorder %s297, %s311
    %p313 = scmp.eq.s32.totalorder %s30, 0
    %p314 = por %p312, %p313
    %s316 = sadd.s32 %s315, 1
    %p319 = scmp.eq.s32.totalorder %s24, 1
    %p320 = scmp.ne.s32.totalorder %s315, %s317
    %p321 = scmp.eq.s32.totalorder %s24, 0
    %p322 = por %p320, %p321
    %p323 = scmp.ne.s32.totalorder %s315, %s317
    %p324 = scmp.eq.s32.totalorder %s29, 1
    %p325 = por %p323, %p324
    %p326 = scmp.ne.s32.totalorder %s317, %s318
    %p327 = scmp.eq.s32.totalorder %s29, 0
    %p328 = por %p326, %p327
    %p329 = scmp.ne.s32.totalorder %s317, %s318
    %p330 = scmp.eq.s32.totalorder %s30, 1
    %p331 = por %p329, %p330
    %p333 = scmp.ne.s32.totalorder %s318, %s332
    %p334 = scmp.eq.s32.totalorder %s30, 0
    %p335 = por %p333, %p334
    %s337 = sadd.s32 %s336, 1
    %p340 = scmp.eq.s32.totalorder %s24, 1
    %p341 = scmp.ne.s32.totalorder %s336, %s338
    %p342 = scmp.eq.s32.totalorder %s24, 0
    %p343 = por %p341, %p342
    %p344 = scmp.ne.s32.totalorder %s336, %s338
    %p345 = scmp.eq.s32.totalorder %s29, 1
    %p346 = por %p344, %p345
    %p347 = scmp.ne.s32.totalorder %s338, %s339
    %p348 = scmp.eq.s32.totalorder %s29, 0
    %p349 = por %p347, %p348
    %p350 = scmp.ne.s32.totalorder %s338, %s339
    %p351 = scmp.eq.s32.totalorder %s30, 1
    %p352 = por %p350, %p351
    %p354 = scmp.ne.s32.totalorder %s339, %s353
    %p355 = scmp.eq.s32.totalorder %s30, 0
    %p356 = por %p354, %p355
    %s358 = sadd.s32 %s357, 1
    %p361 = scmp.eq.s32.totalorder %s24, 1
    %p362 = scmp.ne.s32.totalorder %s357, %s359
    %p363 = scmp.eq.s32.totalorder %s24, 0
    %p364 = por %p362, %p363
    %p365 = scmp.ne.s32.totalorder %s357, %s359
    %p366 = scmp.eq.s32.totalorder %s29, 1
    %p367 = por %p365, %p366
    %p368 = scmp.ne.s32.totalorder %s359, %s360
    %p369 = scmp.eq.s32.totalorder %s29, 0
    %p370 = por %p368, %p369
    %p371 = scmp.ne.s32.totalorder %s359, %s360
    %p372 = scmp.eq.s32.totalorder %s30, 1
    %p373 = por %p371, %p372
    %p375 = scmp.ne.s32.totalorder %s360, %s374
    %p376 = scmp.eq.s32.totalorder %s30, 0
    %p377 = por %p375, %p376
    %s378 = ssub.s32 %s24, %s31
    %p379 = scmp.eq.s32.totalorder %s378, 0
    %s381 = sadd.s32 %s380, 1
    %s382 = scalar_select %p379, %s380, %s381
    %p385 = pneg %p379
    %p386 = scmp.eq.s32.totalorder %s24, 1
    %p387 = por %p385, %p386
    %p388 = scmp.ne.s32.totalorder %s380, %s383
    %p389 = scmp.eq.s32.totalorder %s24, 0
    %p390 = por %p388, %p389
    %p391 = scmp.ne.s32.totalorder %s380, %s383
    %p392 = scmp.eq.s32.totalorder %s29, 1
    %p393 = por %p391, %p392
    %p394 = scmp.ne.s32.totalorder %s383, %s384
    %p395 = scmp.eq.s32.totalorder %s29, 0
    %p396 = por %p394, %p395
    %p397 = scmp.ne.s32.totalorder %s383, %s384
    %p398 = scmp.eq.s32.totalorder %s30, 1
    %p399 = por %p397, %p398
    %p401 = scmp.ne.s32.totalorder %s384, %s400
    %p402 = scmp.eq.s32.totalorder %s30, 0
    %p403 = por %p401, %p402
    %s404 = ssub.s32 %s24, %s31
    %p405 = scmp.eq.s32.totalorder %s404, 0
    %s407 = sadd.s32 %s406, 1
    %s408 = scalar_select %p405, %s406, %s407
    %p411 = pneg %p405
    %p412 = scmp.eq.s32.totalorder %s24, 1
    %p413 = por %p411, %p412
    %p414 = scmp.ne.s32.totalorder %s406, %s409
    %p415 = scmp.eq.s32.totalorder %s24, 0
    %p416 = por %p414, %p415
    %p417 = scmp.ne.s32.totalorder %s406, %s409
    %p418 = scmp.eq.s32.totalorder %s29, 1
    %p419 = por %p417, %p418
    %p420 = scmp.ne.s32.totalorder %s409, %s410
    %p421 = scmp.eq.s32.totalorder %s29, 0
    %p422 = por %p420, %p421
    %p423 = scmp.ne.s32.totalorder %s409, %s410
    %p424 = scmp.eq.s32.totalorder %s30, 1
    %p425 = por %p423, %p424
    %p427 = scmp.ne.s32.totalorder %s410, %s426
    %p428 = scmp.eq.s32.totalorder %s30, 0
    %p429 = por %p427, %p428
    %p430 = scmp.le.s32.totalorder 1, %s24
    %p431 = scmp.lt.s32.totalorder %s24, 3
    %p432 = pnand %p430, %p431
    %p433 = pneg %p432
    // Predicated region
    $region9: #{feature_learning_block.6} parent=5 // pred_check
      _
    $region10: #{feature_learning_block.6} parent=5 // pred_check_branch
      %435 = sbr.rel (%p432) target = $region12
    $region11: #{feature_learning_block.6} parent=5 // pred_region
      %s436 = ssub.s32 %s24, 1
      // Predicated region
      $region13: #{feature_learning_block.6} parent=11 // pred_check
        %p437 = pneg %p97
      $region14: #{feature_learning_block.6} parent=11 // pred_check_branch
        %439 = sbr.rel (%p437) target = $region16
      $region15: #{feature_learning_block.6} parent=11 // pred_region
        _
      $region16: #{feature_learning_block.6} parent=11 // pred_fallthru
        _
      // Predicated region
      $region17: #{feature_learning_block.6} parent=11 // pred_check
        %p440 = pneg %p118
      $region18: #{feature_learning_block.6} parent=11 // pred_check_branch
        %442 = sbr.rel (%p440) target = $region20
      $region19: #{feature_learning_block.6} parent=11 // pred_region
        _
      $region20: #{feature_learning_block.6} parent=11 // pred_fallthru
        _
      // Predicated region
      $region21: #{feature_learning_block.6} parent=11 // pred_check
        %p443 = pneg %p139
      $region22: #{feature_learning_block.6} parent=11 // pred_check_branch
        %445 = sbr.rel (%p443) target = $region24
      $region23: #{feature_learning_block.6} parent=11 // pred_region
        _
      $region24: #{feature_learning_block.6} parent=11 // pred_fallthru
        _
      // Predicated region
      $region25: #{feature_learning_block.6} parent=11 // pred_check
        %p446 = pneg %p160
      $region26: #{feature_learning_block.6} parent=11 // pred_check_branch
        %448 = sbr.rel (%p446) target = $region28
      $region27: #{feature_learning_block.6} parent=11 // pred_region
        _
      $region28: #{feature_learning_block.6} parent=11 // pred_fallthru
        _
      // Predicated region
      $region29: #{feature_learning_block.6} parent=11 // pred_check
        %p449 = pneg %p181
      $region30: #{feature_learning_block.6} parent=11 // pred_check_branch
        %451 = sbr.rel (%p449) target = $region32
      $region31: #{feature_learning_block.6} parent=11 // pred_region
        _
      $region32: #{feature_learning_block.6} parent=11 // pred_fallthru
        _
      // Predicated region
      $region33: #{feature_learning_block.6} parent=11 // pred_check
        %p452 = pneg %p202
      $region34: #{feature_learning_block.6} parent=11 // pred_check_branch
        %454 = sbr.rel (%p452) target = $region36
      $region35: #{feature_learning_block.6} parent=11 // pred_region
        _
      $region36: #{feature_learning_block.6} parent=11 // pred_fallthru
        _
      // Predicated region
      $region37: #{feature_learning_block.6} parent=11 // pred_check
        %p455 = pneg %p223
      $region38: #{feature_learning_block.6} parent=11 // pred_check_branch
        %457 = sbr.rel (%p455) target = $region40
      $region39: #{feature_learning_block.6} parent=11 // pred_region
        _
      $region40: #{feature_learning_block.6} parent=11 // pred_fallthru
        _
      // Predicated region
      $region41: #{feature_learning_block.6} parent=11 // pred_check
        %p458 = pneg %p244
      $region42: #{feature_learning_block.6} parent=11 // pred_check_branch
        %460 = sbr.rel (%p458) target = $region44
      $region43: #{feature_learning_block.6} parent=11 // pred_region
        _
      $region44: #{feature_learning_block.6} parent=11 // pred_fallthru
        _
      // Predicated region
      $region45: #{feature_learning_block.6} parent=11 // pred_check
        %p461 = pneg %p265
      $region46: #{feature_learning_block.6} parent=11 // pred_check_branch
        %463 = sbr.rel (%p461) target = $region48
      $region47: #{feature_learning_block.6} parent=11 // pred_region
        _
      $region48: #{feature_learning_block.6} parent=11 // pred_fallthru
        _
      // Predicated region
      $region49: #{feature_learning_block.6} parent=11 // pred_check
        %p464 = pneg %p286
      $region50: #{feature_learning_block.6} parent=11 // pred_check_branch
        %466 = sbr.rel (%p464) target = $region52
      $region51: #{feature_learning_block.6} parent=11 // pred_region
        _
      $region52: #{feature_learning_block.6} parent=11 // pred_fallthru
        _
      // Predicated region
      $region53: #{feature_learning_block.6} parent=11 // pred_check
        %p467 = pneg %p307
      $region54: #{feature_learning_block.6} parent=11 // pred_check_branch
        %469 = sbr.rel (%p467) target = $region56
      $region55: #{feature_learning_block.6} parent=11 // pred_region
        _
      $region56: #{feature_learning_block.6} parent=11 // pred_fallthru
        _
      // Predicated region
      $region57: #{feature_learning_block.6} parent=11 // pred_check
        %p470 = pneg %p328
      $region58: #{feature_learning_block.6} parent=11 // pred_check_branch
        %472 = sbr.rel (%p470) target = $region60
      $region59: #{feature_learning_block.6} parent=11 // pred_region
        _
      $region60: #{feature_learning_block.6} parent=11 // pred_fallthru
        _
      // Predicated region
      $region61: #{feature_learning_block.6} parent=11 // pred_check
        %p473 = pneg %p349
      $region62: #{feature_learning_block.6} parent=11 // pred_check_branch
        %475 = sbr.rel (%p473) target = $region64
      $region63: #{feature_learning_block.6} parent=11 // pred_region
        _
      $region64: #{feature_learning_block.6} parent=11 // pred_fallthru
        _
      // Predicated region
      $region65: #{feature_learning_block.6} parent=11 // pred_check
        %p476 = pneg %p370
      $region66: #{feature_learning_block.6} parent=11 // pred_check_branch
        %478 = sbr.rel (%p476) target = $region68
      $region67: #{feature_learning_block.6} parent=11 // pred_region
        _
      $region68: #{feature_learning_block.6} parent=11 // pred_fallthru
        _
    $region12: #{feature_learning_block.6} parent=5 // pred_fallthru
      _
    %p479 = scmp.lt.s32.totalorder %s24, 2
    // Predicated region
    $region69: #{feature_learning_block.6} parent=5 // pred_check
      %p480 = pneg %p479
    $region70: #{feature_learning_block.6} parent=5 // pred_check_branch
      %482 = sbr.rel (%p480) target = $region72
    $region71: #{feature_learning_block.6} parent=5 // pred_region
      // Predicated region
      $region73: #{feature_learning_block.6} parent=71 // pred_check
        %p483 = pneg %p44
      $region74: #{feature_learning_block.6} parent=71 // pred_check_branch
        %485 = sbr.rel (%p483) target = $region76
      $region75: #{feature_learning_block.6} parent=71 // pred_region
        %p486 = scmp.lt.s32.totalorder %s24, 1
        %s487 = scalar_select %p486, %s24, 1
        %s488 = smul.addr %s487, 2
        %s489 = smul.addr %s488, 8
        %s490 = scalar_lea.vmem %s0, %s489
      $region76: #{feature_learning_block.6} parent=71 // pred_fallthru
        _
      // Predicated region
      $region77: #{feature_learning_block.6} parent=71 // pred_check
        %p491 = pneg %p70
      $region78: #{feature_learning_block.6} parent=71 // pred_check_branch
        %493 = sbr.rel (%p491) target = $region80
      $region79: #{feature_learning_block.6} parent=71 // pred_region
        %p494 = scmp.lt.s32.totalorder %s24, 1
        %s495 = scalar_select %p494, %s24, 1
        %s496 = smul.addr %s495, 8
        %s497 = scalar_lea.vmem %s1, %s496
      $region80: #{feature_learning_block.6} parent=71 // pred_fallthru
        _
    $region72: #{feature_learning_block.6} parent=5 // pred_fallthru
      _
    %p498 = scmp.le.s32.totalorder 1, %s24
    %p499 = scmp.lt.s32.totalorder %s24, 3
    %p500 = pnand %p498, %p499
    %p501 = pneg %p500
    // Predicated region
    $region81: #{feature_learning_block.6} parent=5 // pred_check
      _
    $region82: #{feature_learning_block.6} parent=5 // pred_check_branch
      %503 = sbr.rel (%p500) target = $region84
    $region83: #{feature_learning_block.6} parent=5 // pred_region
      %s504 = ssub.s32 %s24, 1
      %p505 = scmp.lt.s32.totalorder %s29, 1
      %s506 = scalar_select %p505, %s29, 1
      %s507 = smul.addr %s506, 2
      %s508 = smul.addr %s507, 8
      %s509 = scalar_lea.vmem %s0, %s508
      %p510 = pneg %p50
      %p511 = pneg %p47
      %p512 = scmp.lt.s32.totalorder %s29, 1
      %s513 = scalar_select %p512, %s29, 1
      %s514 = smul.addr %s513, 8
      %s515 = scalar_lea.vmem %s1, %s514
      %p516 = pneg %p76
      %p517 = pneg %p73
      %p518 = pneg %p97
      %p519 = pneg %p94
      %p520 = pneg %p118
      %p521 = pneg %p115
      %p522 = pneg %p139
      %p523 = pneg %p136
      %p524 = pneg %p160
      %p525 = pneg %p157
      %p526 = pneg %p181
      %p527 = pneg %p178
      %p528 = pneg %p202
      %p529 = pneg %p199
      %p530 = pneg %p223
      %p531 = pneg %p220
      %p532 = pneg %p244
      %p533 = pneg %p241
      %p534 = pneg %p265
      %p535 = pneg %p262
      %p536 = pneg %p286
      %p537 = pneg %p283
      %p538 = pneg %p307
      %p539 = pneg %p304
      %p540 = pneg %p328
      %p541 = pneg %p325
      %p542 = pneg %p349
      %p543 = pneg %p346
      %p544 = pneg %p370
      %p545 = pneg %p367
      %p546 = pneg %p396
      %p547 = pneg %p393
      %p548 = scmp.lt.s32.totalorder %s29, 1
      %s549 = scalar_select %p548, %s29, 1
      %s550 = smul.addr %s549, 2
      %s551 = smul.addr %s550, 8
      %s552 = scalar_lea.vmem %s16, %s551
      %p553 = pneg %p422
      %p554 = pneg %p419
      %p555 = scmp.lt.s32.totalorder %s29, 1
      %s556 = scalar_select %p555, %s29, 1
      %s557 = scalar_lea.vmem %s17, %s556
      %p558 = scmp.lt.s32.totalorder %s29, 1
      %s559 = scalar_select %p558, %s29, 1
      %s560 = smul.addr %s559, 2
      %s561 = smul.addr %s560, 8
      %s562 = scalar_lea.vmem %s0, %s561
      %p563 = scmp.lt.s32.totalorder %s29, 1
      %s564 = scalar_select %p563, %s29, 1
      %s565 = smul.addr %s564, 8
      %s566 = scalar_lea.vmem %s1, %s565
      %p567 = scmp.lt.s32.totalorder %s29, 1
      %s568 = scalar_select %p567, %s29, 1
      %s569 = smul.addr %s568, 2
      %s570 = smul.addr %s569, 8
      %s571 = scalar_lea.vmem %s16, %s570
      %p572 = scmp.lt.s32.totalorder %s29, 1
      %s573 = scalar_select %p572, %s29, 1
      %s574 = scalar_lea.vmem %s17, %s573
      %v575 = vld [vmem:[%s562] sm:$0xff]
      %v576 = vld [vmem:[%s562 + $0x8] sm:$0xff]
      %v577 = vld [vmem:[%s566] sm:$0xff]
      %v578 = vld [vmem:[%s2] sm:$0xff]
      %v579 = vld [vmem:[%s2 + $0x8] sm:$0xff]
      %v580 = vld [vmem:[%s3] sm:$0xff]
      %v581 = vld [vmem:[%s3 + $0x8] sm:$0xff]
      %v582 = vld [vmem:[%s4] sm:$0xff]
      %v583 = vld [vmem:[%s4 + $0x8] sm:$0xff]
      %vm584 = vcmask 130048
      %v586 = vsel %vm584, %v578, 0
      %v589 = vsel %vm584, %v579, 0
      %591 = vmatpush.msra.mxu0 0.0
      %592 = vmatpush.msra.mxu0 0.0
      %593 = vmatpush.msra.mxu0 0.0
      %594 = vmatpush.msra.mxu0 0.0
      %595 = vmatpush.msra.mxu0 0.0
      %596 = vmatpush.msra.mxu0 0.0
      %597 = vmatpush.msra.mxu0 0.0
      %598 = vmatpush.msra.mxu0 0.0
      %599 = vmatpush.msra.mxu0 0.0
      %600 = vmatpush.msra.mxu0 0.0
      %601 = vmatpush.msra.mxu0 0.0
      %602 = vmatpush.msra.mxu0 0.0
      %603 = vmatpush.msra.mxu0 0.0
      %604 = vmatpush.msra.mxu0 0.0
      %605 = vmatpush.msra.mxu0 %v576
      %606 = vmatpush.msra.mxu0 %v575
      %607 = vmatmul.f32.gmra.mxu0 %v586
      %v608 = vpop.f32.mrf.mxu0
      %v609 = vadd.f32 0.0, %v608
      %610 = vmatmul.f32.gmra.mxu0 %v589
      %v611 = vpop.f32.mrf.mxu0
      %v612 = vadd.f32 0.0, %v611
      %613 = vdwg.mxu0
      %v615 = vsel %vm584, %v580, 0
      %v618 = vsel %vm584, %v581, 0
      %620 = vmatpush.msra.mxu0 0.0
      %621 = vmatpush.msra.mxu0 0.0
      %622 = vmatpush.msra.mxu0 0.0
      %623 = vmatpush.msra.mxu0 0.0
      %624 = vmatpush.msra.mxu0 0.0
      %625 = vmatpush.msra.mxu0 0.0
      %626 = vmatpush.msra.mxu0 0.0
      %627 = vmatpush.msra.mxu0 0.0
      %628 = vmatpush.msra.mxu0 0.0
      %629 = vmatpush.msra.mxu0 0.0
      %630 = vmatpush.msra.mxu0 0.0
      %631 = vmatpush.msra.mxu0 0.0
      %632 = vmatpush.msra.mxu0 0.0
      %633 = vmatpush.msra.mxu0 0.0
      %634 = vmatpush.msra.mxu0 %v576
      %635 = vmatpush.msra.mxu0 %v575
      %636 = vmatmul.f32.gmra.mxu0 %v615
      %v637 = vpop.f32.mrf.mxu0
      %v638 = vadd.f32 0.0, %v637
      %639 = vmatmul.f32.gmra.mxu0 %v618
      %v640 = vpop.f32.mrf.mxu0
      %v641 = vadd.f32 0.0, %v640
      %642 = vdwg.mxu0
      %v644 = vsel %vm584, %v582, 0
      %v647 = vsel %vm584, %v583, 0
      %649 = vmatpush.msra.mxu0 0.0
      %650 = vmatpush.msra.mxu0 0.0
      %651 = vmatpush.msra.mxu0 0.0
      %652 = vmatpush.msra.mxu0 0.0
      %653 = vmatpush.msra.mxu0 0.0
      %654 = vmatpush.msra.mxu0 0.0
      %655 = vmatpush.msra.mxu0 0.0
      %656 = vmatpush.msra.mxu0 0.0
      %657 = vmatpush.msra.mxu0 0.0
      %658 = vmatpush.msra.mxu0 0.0
      %659 = vmatpush.msra.mxu0 0.0
      %660 = vmatpush.msra.mxu0 0.0
      %661 = vmatpush.msra.mxu0 0.0
      %662 = vmatpush.msra.mxu0 0.0
      %663 = vmatpush.msra.mxu0 %v576
      %664 = vmatpush.msra.mxu0 %v575
      %665 = vmatmul.f32.gmra.mxu0 %v644
      %v666 = vpop.f32.mrf.mxu0
      %v667 = vadd.f32 0.0, %v666
      %668 = vmatmul.f32.gmra.mxu0 %v647
      %v669 = vpop.f32.mrf.mxu0
      %v670 = vadd.f32 0.0, %v669
      %671 = vdwg.mxu0
      %v673 = vsel %vm584, %v609, 0
      %v676 = vsel %vm584, %v612, 0
      %v679 = vsel %vm584, %v577, 0
      %681 = vmatpush.xpose.msra.mxu0 0.0
      %682 = vmatpush.xpose.msra.mxu0 0.0
      %683 = vmatpush.xpose.msra.mxu0 0.0
      %684 = vmatpush.xpose.msra.mxu0 0.0
      %685 = vmatpush.xpose.msra.mxu0 0.0
      %686 = vmatpush.xpose.msra.mxu0 0.0
      %687 = vmatpush.xpose.msra.mxu0 0.0
      %688 = vmatpush.xpose.msra.mxu0 0.0
      %689 = vmatpush.xpose.msra.mxu0 0.0
      %690 = vmatpush.xpose.msra.mxu0 0.0
      %691 = vmatpush.xpose.msra.mxu0 0.0
      %692 = vmatpush.xpose.msra.mxu0 0.0
      %693 = vmatpush.xpose.msra.mxu0 0.0
      %694 = vmatpush.xpose.msra.mxu0 0.0
      %695 = vmatpush.xpose.msra.mxu0 0.0
      %696 = vmatpush.xpose.msra.mxu0 %v679
      %697 = vmatmul.f32.gmra.mxu0 %v673
      %v698 = vpop.f32.mrf.mxu0
      %v699 = vadd.f32 0.0, %v698
      %700 = vmatmul.f32.gmra.mxu0 %v676
      %v701 = vpop.f32.mrf.mxu0
      %v702 = vadd.f32 0.0, %v701
      %703 = vdwg.mxu0
      %704 = vxpose.xlu0.b32.start [1/16] %v699, 128
      %705 = vxpose.xlu0.b32.cont [2/16] %v702, 128
      %706 = vxpose.xlu0.b32.cont [3/16] 0.0, 128
      %707 = vxpose.xlu0.b32.cont [4/16] 0.0, 128
      %708 = vxpose.xlu0.b32.cont [5/16] 0.0, 128
      %709 = vxpose.xlu0.b32.cont [6/16] 0.0, 128
      %710 = vxpose.xlu0.b32.cont [7/16] 0.0, 128
      %711 = vxpose.xlu0.b32.cont [8/16] 0.0, 128
      %712 = vxpose.xlu0.b32.cont [9/16] 0.0, 128
      %713 = vxpose.xlu0.b32.cont [10/16] 0.0, 128
      %714 = vxpose.xlu0.b32.cont [11/16] 0.0, 128
      %715 = vxpose.xlu0.b32.cont [12/16] 0.0, 128
      %716 = vxpose.xlu0.b32.cont [13/16] 0.0, 128
      %717 = vxpose.xlu0.b32.cont [14/16] 0.0, 128
      %718 = vxpose.xlu0.b32.cont [15/16] 0.0, 128
      %719 = vxpose.xlu0.b32.end [16/16] 0.0, 128
      %v720 = vpop.trf.xlu0
      %v721 = vpop.trf.xlu0
      %v722 = vpop.trf.xlu0
      %v723 = vpop.trf.xlu0
      %v724 = vpop.trf.xlu0
      %v725 = vpop.trf.xlu0
      %v726 = vpop.trf.xlu0
      %v727 = vpop.trf.xlu0
      %v728 = vpop.trf.xlu0
      %v729 = vpop.trf.xlu0
      %v730 = vpop.trf.xlu0
      %v731 = vpop.trf.xlu0
      %v732 = vpop.trf.xlu0
      %v733 = vpop.trf.xlu0
      %v734 = vpop.trf.xlu0
      %v735 = vpop.trf.xlu0
      %v737 = vsel %vm584, %v720, 0
      %739 = vmatpush.msra.mxu0 0.0
      %740 = vmatpush.msra.mxu0 0.0
      %741 = vmatpush.msra.mxu0 0.0
      %742 = vmatpush.msra.mxu0 0.0
      %743 = vmatpush.msra.mxu0 0.0
      %744 = vmatpush.msra.mxu0 0.0
      %745 = vmatpush.msra.mxu0 0.0
      %746 = vmatpush.msra.mxu0 0.0
      %747 = vmatpush.msra.mxu0 0.0
      %748 = vmatpush.msra.mxu0 0.0
      %749 = vmatpush.msra.mxu0 0.0
      %750 = vmatpush.msra.mxu0 0.0
      %751 = vmatpush.msra.mxu0 0.0
      %752 = vmatpush.msra.mxu0 0.0
      %753 = vmatpush.msra.mxu0 %v641
      %754 = vmatpush.msra.mxu0 %v638
      %755 = vmatmul.f32.gmra.mxu0 %v737
      %v756 = vpop.f32.mrf.mxu0
      %v757 = vadd.f32 0.0, %v756
      %758 = vdwg.mxu0
      %v759 = vsel %vm584, %v757, -inf
      %760 = vmax.xlane.f32.xlu0 %v759
      %v761 = vpop.xlane.xlu0 %760
      %v762 = vsub.f32 %v757, %v761
      %v763 = vmul.f32 %v762, 1.442695
      %v764 = vpow.pop %v763
      %v765 = vsel %vm584, %v764, 0.0
      %766 = vadd.xlane.f32.xlu0 %v765
      %v767 = vpop.xlane.xlu0 %766
      %v768 = vrcp.pop %v767
      %v769 = vmul.f32 %v764, %v768
      %v771 = vsel %vm584, %v667, 0
      %v774 = vsel %vm584, %v670, 0
      %v777 = vsel %vm584, %v769, 0
      %779 = vmatpush.xpose.msra.mxu0 0.0
      %780 = vmatpush.xpose.msra.mxu0 0.0
      %781 = vmatpush.xpose.msra.mxu0 0.0
      %782 = vmatpush.xpose.msra.mxu0 0.0
      %783 = vmatpush.xpose.msra.mxu0 0.0
      %784 = vmatpush.xpose.msra.mxu0 0.0
      %785 = vmatpush.xpose.msra.mxu0 0.0
      %786 = vmatpush.xpose.msra.mxu0 0.0
      %787 = vmatpush.xpose.msra.mxu0 0.0
      %788 = vmatpush.xpose.msra.mxu0 0.0
      %789 = vmatpush.xpose.msra.mxu0 0.0
      %790 = vmatpush.xpose.msra.mxu0 0.0
      %791 = vmatpush.xpose.msra.mxu0 0.0
      %792 = vmatpush.xpose.msra.mxu0 0.0
      %793 = vmatpush.xpose.msra.mxu0 0.0
      %794 = vmatpush.xpose.msra.mxu0 %v777
      %795 = vmatmul.f32.gmra.mxu0 %v771
      %v796 = vpop.f32.mrf.mxu0
      %v797 = vadd.f32 0.0, %v796
      %798 = vmatmul.f32.gmra.mxu0 %v774
      %v799 = vpop.f32.mrf.mxu0
      %v800 = vadd.f32 0.0, %v799
      %801 = vdwg.mxu0
      %v802 = vld [vmem:[%s5] sm:$0xff]
      %v803 = vld [vmem:[%s5 + $0x8] sm:$0xff]
      %v804 = vld [vmem:[%s6] sm:$0xff]
      %v805 = vld [vmem:[%s6 + $0x8] sm:$0xff]
      %v806 = vld [vmem:[%s7] sm:$0xff]
      %v807 = vld [vmem:[%s7 + $0x8] sm:$0xff]
      %v808 = vld [vmem:[%s8] sm:$0xff]
      %v809 = vld [vmem:[%s8 + $0x8] sm:$0xff]
      %v810 = vld [vmem:[%s9] sm:$0xff]
      %v811 = vld [vmem:[%s9 + $0x8] sm:$0xff]
      %v812 = vld [vmem:[%s10] sm:$0xff]
      %v813 = vld [vmem:[%s10 + $0x8] sm:$0xff]
      %v814 = vld [vmem:[%s10 + $0x10] sm:$0xff]
      %v815 = vld [vmem:[%s10 + $0x18] sm:$0xff]
      %v816 = vld [vmem:[%s11] sm:$0xff]
      %v817 = vld [vmem:[%s11 + $0x8] sm:$0xff]
      %v818 = vld [vmem:[%s12] sm:$0xff]
      %v819 = vld [vmem:[%s12 + $0x8] sm:$0xff]
      %v820 = vld [vmem:[%s13] sm:$0xff]
      %v821 = vld [vmem:[%s13 + $0x8] sm:$0xff]
      %v823 = vsel %vm584, %v802, 0
      %v826 = vsel %vm584, %v803, 0
      %828 = vmatpush.msra.mxu0 0.0
      %829 = vmatpush.msra.mxu0 0.0
      %830 = vmatpush.msra.mxu0 0.0
      %831 = vmatpush.msra.mxu0 0.0
      %832 = vmatpush.msra.mxu0 0.0
      %833 = vmatpush.msra.mxu0 0.0
      %834 = vmatpush.msra.mxu0 0.0
      %835 = vmatpush.msra.mxu0 0.0
      %836 = vmatpush.msra.mxu0 0.0
      %837 = vmatpush.msra.mxu0 0.0
      %838 = vmatpush.msra.mxu0 0.0
      %839 = vmatpush.msra.mxu0 0.0
      %840 = vmatpush.msra.mxu0 0.0
      %841 = vmatpush.msra.mxu0 0.0
      %842 = vmatpush.msra.mxu0 %v800
      %843 = vmatpush.msra.mxu0 %v797
      %844 = vmatmul.f32.gmra.mxu0 %v823
      %v845 = vpop.f32.mrf.mxu0
      %v846 = vadd.f32 0.0, %v845
      %847 = vmatmul.f32.gmra.mxu0 %v826
      %v848 = vpop.f32.mrf.mxu0
      %v849 = vadd.f32 0.0, %v848
      %850 = vdwg.mxu0
      %v852 = vsel %vm584, %v804, 0
      %v855 = vsel %vm584, %v805, 0
      %857 = vmatpush.msra.mxu0 0.0
      %858 = vmatpush.msra.mxu0 0.0
      %859 = vmatpush.msra.mxu0 0.0
      %860 = vmatpush.msra.mxu0 0.0
      %861 = vmatpush.msra.mxu0 0.0
      %862 = vmatpush.msra.mxu0 0.0
      %863 = vmatpush.msra.mxu0 0.0
      %864 = vmatpush.msra.mxu0 0.0
      %865 = vmatpush.msra.mxu0 0.0
      %866 = vmatpush.msra.mxu0 0.0
      %867 = vmatpush.msra.mxu0 0.0
      %868 = vmatpush.msra.mxu0 0.0
      %869 = vmatpush.msra.mxu0 0.0
      %870 = vmatpush.msra.mxu0 0.0
      %871 = vmatpush.msra.mxu0 %v800
      %872 = vmatpush.msra.mxu0 %v797
      %873 = vmatmul.f32.gmra.mxu0 %v852
      %v874 = vpop.f32.mrf.mxu0
      %v875 = vadd.f32 0.0, %v874
      %876 = vmatmul.f32.gmra.mxu0 %v855
      %v877 = vpop.f32.mrf.mxu0
      %v878 = vadd.f32 0.0, %v877
      %879 = vdwg.mxu0
      %v881 = vsel %vm584, %v806, 0
      %v884 = vsel %vm584, %v807, 0
      %886 = vmatpush.msra.mxu0 0.0
      %887 = vmatpush.msra.mxu0 0.0
      %888 = vmatpush.msra.mxu0 0.0
      %889 = vmatpush.msra.mxu0 0.0
      %890 = vmatpush.msra.mxu0 0.0
      %891 = vmatpush.msra.mxu0 0.0
      %892 = vmatpush.msra.mxu0 0.0
      %893 = vmatpush.msra.mxu0 0.0
      %894 = vmatpush.msra.mxu0 0.0
      %895 = vmatpush.msra.mxu0 0.0
      %896 = vmatpush.msra.mxu0 0.0
      %897 = vmatpush.msra.mxu0 0.0
      %898 = vmatpush.msra.mxu0 0.0
      %899 = vmatpush.msra.mxu0 0.0
      %900 = vmatpush.msra.mxu0 %v800
      %901 = vmatpush.msra.mxu0 %v797
      %902 = vmatmul.f32.gmra.mxu0 %v881
      %v903 = vpop.f32.mrf.mxu0
      %v904 = vadd.f32 0.0, %v903
      %905 = vmatmul.f32.gmra.mxu0 %v884
      %v906 = vpop.f32.mrf.mxu0
      %v907 = vadd.f32 0.0, %v906
      %908 = vdwg.mxu0
      %909 = vxpose.xlu0.b32.start [1/16] %v846, 128
      %910 = vxpose.xlu0.b32.cont [2/16] 0.0, 128
      %911 = vxpose.xlu0.b32.cont [3/16] 0.0, 128
      %912 = vxpose.xlu0.b32.cont [4/16] 0.0, 128
      %913 = vxpose.xlu0.b32.cont [5/16] 0.0, 128
      %914 = vxpose.xlu0.b32.cont [6/16] 0.0, 128
      %915 = vxpose.xlu0.b32.cont [7/16] 0.0, 128
      %916 = vxpose.xlu0.b32.cont [8/16] 0.0, 128
      %917 = vxpose.xlu0.b32.cont [9/16] 0.0, 128
      %918 = vxpose.xlu0.b32.cont [10/16] 0.0, 128
      %919 = vxpose.xlu0.b32.cont [11/16] 0.0, 128
      %920 = vxpose.xlu0.b32.cont [12/16] 0.0, 128
      %921 = vxpose.xlu0.b32.cont [13/16] 0.0, 128
      %922 = vxpose.xlu0.b32.cont [14/16] 0.0, 128
      %923 = vxpose.xlu0.b32.cont [15/16] 0.0, 128
      %924 = vxpose.xlu0.b32.end [16/16] 0.0, 128
      %v925 = vpop.trf.xlu0
      %v926 = vpop.trf.xlu0
      %v927 = vpop.trf.xlu0
      %v928 = vpop.trf.xlu0
      %v929 = vpop.trf.xlu0
      %v930 = vpop.trf.xlu0
      %v931 = vpop.trf.xlu0
      %v932 = vpop.trf.xlu0
      %v933 = vpop.trf.xlu0
      %v934 = vpop.trf.xlu0
      %v935 = vpop.trf.xlu0
      %v936 = vpop.trf.xlu0
      %v937 = vpop.trf.xlu0
      %v938 = vpop.trf.xlu0
      %v939 = vpop.trf.xlu0
      %v940 = vpop.trf.xlu0
      %vm941 = vcmask 64512
      %v943 = vsel %vm941, %v925, 0
      %945 = vmatpush.msra.mxu0 0.0
      %946 = vmatpush.msra.mxu0 0.0
      %947 = vmatpush.msra.mxu0 0.0
      %948 = vmatpush.msra.mxu0 0.0
      %949 = vmatpush.msra.mxu0 0.0
      %950 = vmatpush.msra.mxu0 0.0
      %951 = vmatpush.msra.mxu0 0.0
      %952 = vmatpush.msra.mxu0 0.0
      %953 = vmatpush.msra.mxu0 0.0
      %954 = vmatpush.msra.mxu0 0.0
      %955 = vmatpush.msra.mxu0 0.0
      %956 = vmatpush.msra.mxu0 0.0
      %957 = vmatpush.msra.mxu0 0.0
      %958 = vmatpush.msra.mxu0 0.0
      %959 = vmatpush.msra.mxu0 0.0
      %960 = vmatpush.msra.mxu0 %v875
      %961 = vmatmul.f32.gmra.mxu0 %v943
      %v962 = vpop.f32.mrf.mxu0
      %v963 = vadd.f32 0.0, %v962
      %964 = vdwg.mxu0
      %v965 = vsel %vm941, %v963, -inf
      %966 = vmax.xlane.f32.xlu0 %v965
      %v967 = vpop.xlane.xlu0 %966
      %v968 = vsub.f32 %v963, %v967
      %v969 = vmul.f32 %v968, 1.442695
      %v970 = vpow.pop %v969
      %v971 = vsel %vm941, %v970, 0.0
      %972 = vadd.xlane.f32.xlu0 %v971
      %v973 = vpop.xlane.xlu0 %972
      %v974 = vrcp.pop %v973
      %v975 = vmul.f32 %v970, %v974
      %v977 = vsel %vm941, %v904, 0
      %v980 = vsel %vm941, %v975, 0
      %982 = vmatpush.xpose.msra.mxu0 0.0
      %983 = vmatpush.xpose.msra.mxu0 0.0
      %984 = vmatpush.xpose.msra.mxu0 0.0
      %985 = vmatpush.xpose.msra.mxu0 0.0
      %986 = vmatpush.xpose.msra.mxu0 0.0
      %987 = vmatpush.xpose.msra.mxu0 0.0
      %988 = vmatpush.xpose.msra.mxu0 0.0
      %989 = vmatpush.xpose.msra.mxu0 0.0
      %990 = vmatpush.xpose.msra.mxu0 0.0
      %991 = vmatpush.xpose.msra.mxu0 0.0
      %992 = vmatpush.xpose.msra.mxu0 0.0
      %993 = vmatpush.xpose.msra.mxu0 0.0
      %994 = vmatpush.xpose.msra.mxu0 0.0
      %995 = vmatpush.xpose.msra.mxu0 0.0
      %996 = vmatpush.xpose.msra.mxu0 0.0
      %997 = vmatpush.xpose.msra.mxu0 %v980
      %998 = vmatmul.f32.gmra.mxu0 %v977
      %v999 = vpop.f32.mrf.mxu0
      %v1000 = vadd.f32 0.0, %v999
      %1001 = vdwg.mxu0
      %1002 = vst.msk [vmem:[#allocation2] sm:$0xff] %vm941, %v1000
      %1003 = vxpose.xlu0.b32.start [1/16] %v849, 128
      %1004 = vxpose.xlu0.b32.cont [2/16] 0.0, 128
      %1005 = vxpose.xlu0.b32.cont [3/16] 0.0, 128
      %1006 = vxpose.xlu0.b32.cont [4/16] 0.0, 128
      %1007 = vxpose.xlu0.b32.cont [5/16] 0.0, 128
      %1008 = vxpose.xlu0.b32.cont [6/16] 0.0, 128
      %1009 = vxpose.xlu0.b32.cont [7/16] 0.0, 128
      %1010 = vxpose.xlu0.b32.cont [8/16] 0.0, 128
      %1011 = vxpose.xlu0.b32.cont [9/16] 0.0, 128
      %1012 = vxpose.xlu0.b32.cont [10/16] 0.0, 128
      %1013 = vxpose.xlu0.b32.cont [11/16] 0.0, 128
      %1014 = vxpose.xlu0.b32.cont [12/16] 0.0, 128
      %1015 = vxpose.xlu0.b32.cont [13/16] 0.0, 128
      %1016 = vxpose.xlu0.b32.cont [14/16] 0.0, 128
      %1017 = vxpose.xlu0.b32.cont [15/16] 0.0, 128
      %1018 = vxpose.xlu0.b32.end [16/16] 0.0, 128
      %v1019 = vpop.trf.xlu0
      %v1020 = vpop.trf.xlu0
      %v1021 = vpop.trf.xlu0
      %v1022 = vpop.trf.xlu0
      %v1023 = vpop.trf.xlu0
      %v1024 = vpop.trf.xlu0
      %v1025 = vpop.trf.xlu0
      %v1026 = vpop.trf.xlu0
      %v1027 = vpop.trf.xlu0
      %v1028 = vpop.trf.xlu0
      %v1029 = vpop.trf.xlu0
      %v1030 = vpop.trf.xlu0
      %v1031 = vpop.trf.xlu0
      %v1032 = vpop.trf.xlu0
      %v1033 = vpop.trf.xlu0
      %v1034 = vpop.trf.xlu0
      %v1036 = vsel %vm941, %v1019, 0
      %1038 = vmatpush.msra.mxu0 0.0
      %1039 = vmatpush.msra.mxu0 0.0
      %1040 = vmatpush.msra.mxu0 0.0
      %1041 = vmatpush.msra.mxu0 0.0
      %1042 = vmatpush.msra.mxu0 0.0
      %1043 = vmatpush.msra.mxu0 0.0
      %1044 = vmatpush.msra.mxu0 0.0
      %1045 = vmatpush.msra.mxu0 0.0
      %1046 = vmatpush.msra.mxu0 0.0
      %1047 = vmatpush.msra.mxu0 0.0
      %1048 = vmatpush.msra.mxu0 0.0
      %1049 = vmatpush.msra.mxu0 0.0
      %1050 = vmatpush.msra.mxu0 0.0
      %1051 = vmatpush.msra.mxu0 0.0
      %1052 = vmatpush.msra.mxu0 0.0
      %1053 = vmatpush.msra.mxu0 %v878
      %1054 = vmatmul.f32.gmra.mxu0 %v1036
      %v1055 = vpop.f32.mrf.mxu0
      %v1056 = vadd.f32 0.0, %v1055
      %1057 = vdwg.mxu0
      %v1058 = vsel %vm941, %v1056, -inf
      %1059 = vmax.xlane.f32.xlu0 %v1058
      %v1060 = vpop.xlane.xlu0 %1059
      %v1061 = vsub.f32 %v1056, %v1060
      %v1062 = vmul.f32 %v1061, 1.442695
      %v1063 = vpow.pop %v1062
      %v1064 = vsel %vm941, %v1063, 0.0
      %1065 = vadd.xlane.f32.xlu0 %v1064
      %v1066 = vpop.xlane.xlu0 %1065
      %v1067 = vrcp.pop %v1066
      %v1068 = vmul.f32 %v1063, %v1067
      %v1070 = vsel %vm941, %v907, 0
      %v1073 = vsel %vm941, %v1068, 0
      %1075 = vmatpush.xpose.msra.mxu0 0.0
      %1076 = vmatpush.xpose.msra.mxu0 0.0
      %1077 = vmatpush.xpose.msra.mxu0 0.0
      %1078 = vmatpush.xpose.msra.mxu0 0.0
      %1079 = vmatpush.xpose.msra.mxu0 0.0
      %1080 = vmatpush.xpose.msra.mxu0 0.0
      %1081 = vmatpush.xpose.msra.mxu0 0.0
      %1082 = vmatpush.xpose.msra.mxu0 0.0
      %1083 = vmatpush.xpose.msra.mxu0 0.0
      %1084 = vmatpush.xpose.msra.mxu0 0.0
      %1085 = vmatpush.xpose.msra.mxu0 0.0
      %1086 = vmatpush.xpose.msra.mxu0 0.0
      %1087 = vmatpush.xpose.msra.mxu0 0.0
      %1088 = vmatpush.xpose.msra.mxu0 0.0
      %1089 = vmatpush.xpose.msra.mxu0 0.0
      %1090 = vmatpush.xpose.msra.mxu0 %v1073
      %1091 = vmatmul.f32.gmra.mxu0 %v1070
      %v1092 = vpop.f32.mrf.mxu0
      %v1093 = vadd.f32 0.0, %v1092
      %1094 = vdwg.mxu0
      %1095 = vst.msk [vmem:[#allocation2 + $0x8] sm:$0xff] %vm941, %v1093
      %v1096 = vld [vmem:[#allocation2] sm:$0xff]
      %v1097 = vld [vmem:[#allocation2 + $0x8] sm:$0xff]
      %v1098 = vadd.f32 %v797, %v1096
      %v1099 = vadd.f32 %v800, %v1097
      %1101 = vset.pattern.permute.xlu0 0
      %1102 = vperm.xlu0 %1101, %v808
      %v1103 = vpop.permute.xlu0 %1102
      %1106 = vset.pattern.permute.xlu0 0
      %1107 = vperm.xlu0 %1106, %v809
      %v1108 = vpop.permute.xlu0 %1107
      %v1110 = vmul.f32 %v1098, %v1103
      %v1111 = vmul.f32 %v1099, %v1108
      %1113 = vset.pattern.permute.xlu0 0
      %1114 = vperm.xlu0 %1113, %v810
      %v1115 = vpop.permute.xlu0 %1114
      %1118 = vset.pattern.permute.xlu0 0
      %1119 = vperm.xlu0 %1118, %v811
      %v1120 = vpop.permute.xlu0 %1119
      %v1122 = vadd.f32 %v1110, %v1115
      %v1123 = vadd.f32 %v1111, %v1120
      %v1125 = vsel %vm584, %v812, 0
      %v1128 = vsel %vm584, %v813, 0
      %v1131 = vsel %vm584, %v814, 0
      %v1134 = vsel %vm584, %v815, 0
      %1136 = vmatpush.msra.mxu0 0.0
      %1137 = vmatpush.msra.mxu0 0.0
      %1138 = vmatpush.msra.mxu0 0.0
      %1139 = vmatpush.msra.mxu0 0.0
      %1140 = vmatpush.msra.mxu0 0.0
      %1141 = vmatpush.msra.mxu0 0.0
      %1142 = vmatpush.msra.mxu0 0.0
      %1143 = vmatpush.msra.mxu0 0.0
      %1144 = vmatpush.msra.mxu0 0.0
      %1145 = vmatpush.msra.mxu0 0.0
      %1146 = vmatpush.msra.mxu0 0.0
      %1147 = vmatpush.msra.mxu0 0.0
      %1148 = vmatpush.msra.mxu0 0.0
      %1149 = vmatpush.msra.mxu0 0.0
      %1150 = vmatpush.msra.mxu0 %v1123
      %1151 = vmatpush.msra.mxu0 %v1122
      %1152 = vmatmul.f32.gmra.mxu0 %v1125
      %v1153 = vpop.f32.mrf.mxu0
      %v1154 = vadd.f32 0.0, %v1153
      %1155 = vmatmul.f32.gmra.mxu0 %v1128
      %v1156 = vpop.f32.mrf.mxu0
      %v1157 = vadd.f32 0.0, %v1156
      %1158 = vmatmul.f32.gmra.mxu0 %v1131
      %v1159 = vpop.f32.mrf.mxu0
      %v1160 = vadd.f32 0.0, %v1159
      %1161 = vmatmul.f32.gmra.mxu0 %v1134
      %v1162 = vpop.f32.mrf.mxu0
      %v1163 = vadd.f32 0.0, %v1162
      %1164 = vdwg.mxu0
      %vm1165 = vcmp.ge.f32.partialorder %v1154, 0.0
      %vm1166 = vcmp.ge.f32.partialorder %v1157, 0.0
      %vm1167 = vcmp.ge.f32.partialorder %v1160, 0.0
      %vm1168 = vcmp.ge.f32.partialorder %v1163, 0.0
      %v1169 = vmul.f32 %v1154, 0.2
      %v1170 = vmul.f32 %v1157, 0.2
      %v1171 = vmul.f32 %v1160, 0.2
      %v1172 = vmul.f32 %v1163, 0.2
      %v1173 = vsel %vm1165, %v1154, %v1169
      %v1174 = vsel %vm1166, %v1157, %v1170
      %v1175 = vsel %vm1167, %v1160, %v1171
      %v1176 = vsel %vm1168, %v1163, %v1172
      %vm1177 = vcmask 261120
      %v1179 = vsel %vm1177, %v816, 0
      %v1182 = vsel %vm1177, %v817, 0
      %1184 = vmatpush.msra.mxu0 0.0
      %1185 = vmatpush.msra.mxu0 0.0
      %1186 = vmatpush.msra.mxu0 0.0
      %1187 = vmatpush.msra.mxu0 0.0
      %1188 = vmatpush.msra.mxu0 0.0
      %1189 = vmatpush.msra.mxu0 0.0
      %1190 = vmatpush.msra.mxu0 0.0
      %1191 = vmatpush.msra.mxu0 0.0
      %1192 = vmatpush.msra.mxu0 0.0
      %1193 = vmatpush.msra.mxu0 0.0
      %1194 = vmatpush.msra.mxu0 0.0
      %1195 = vmatpush.msra.mxu0 0.0
      %1196 = vmatpush.msra.mxu0 %v1176
      %1197 = vmatpush.msra.mxu0 %v1175
      %1198 = vmatpush.msra.mxu0 %v1174
      %1199 = vmatpush.msra.mxu0 %v1173
      %1200 = vmatmul.f32.gmra.mxu0 %v1179
      %v1201 = vpop.f32.mrf.mxu0
      %v1202 = vadd.f32 0.0, %v1201
      %1203 = vmatmul.f32.gmra.mxu0 %v1182
      %v1204 = vpop.f32.mrf.mxu0
      %v1205 = vadd.f32 0.0, %v1204
      %1206 = vdwg.mxu0
      %v1207 = vadd.f32 %v1122, %v1202
      %v1208 = vadd.f32 %v1123, %v1205
      %1210 = vset.pattern.permute.xlu0 0
      %1211 = vperm.xlu0 %1210, %v818
      %v1212 = vpop.permute.xlu0 %1211
      %1215 = vset.pattern.permute.xlu0 0
      %1216 = vperm.xlu0 %1215, %v819
      %v1217 = vpop.permute.xlu0 %1216
      %v1219 = vmul.f32 %v1207, %v1212
      %v1220 = vmul.f32 %v1208, %v1217
      %1222 = vset.pattern.permute.xlu0 0
      %1223 = vperm.xlu0 %1222, %v820
      %v1224 = vpop.permute.xlu0 %1223
      %1227 = vset.pattern.permute.xlu0 0
      %1228 = vperm.xlu0 %1227, %v821
      %v1229 = vpop.permute.xlu0 %1228
      %v1231 = vadd.f32 %v1219, %v1224
      %v1232 = vadd.f32 %v1220, %v1229
      %1233 = vst.msk [vmem:[%s571] sm:$0xff] %vm941, %v1231
      %1234 = vst.msk [vmem:[%s571 + $0x8] sm:$0xff] %vm941, %v1232
      %v1235 = vld [vmem:[%s14] sm:$0xff]
      %v1236 = vld [vmem:[%s14 + $0x8] sm:$0xff]
      %v1237 = vld [vmem:[%s15] sm:$0xff]
      %v1238 = vld [vmem:[%s15 + $0x8] sm:$0xff]
      %v1240 = vsel %vm584, %v1235, 0
      %v1243 = vsel %vm584, %v1236, 0
      %1245 = vmatpush.msra.mxu0 0.0
      %1246 = vmatpush.msra.mxu0 0.0
      %1247 = vmatpush.msra.mxu0 0.0
      %1248 = vmatpush.msra.mxu0 0.0
      %1249 = vmatpush.msra.mxu0 0.0
      %1250 = vmatpush.msra.mxu0 0.0
      %1251 = vmatpush.msra.mxu0 0.0
      %1252 = vmatpush.msra.mxu0 0.0
      %1253 = vmatpush.msra.mxu0 0.0
      %1254 = vmatpush.msra.mxu0 0.0
      %1255 = vmatpush.msra.mxu0 0.0
      %1256 = vmatpush.msra.mxu0 0.0
      %1257 = vmatpush.msra.mxu0 0.0
      %1258 = vmatpush.msra.mxu0 0.0
      %1259 = vmatpush.msra.mxu0 %v1232
      %1260 = vmatpush.msra.mxu0 %v1231
      %1261 = vmatmul.f32.gmra.mxu0 %v1240
      %v1262 = vpop.f32.mrf.mxu0
      %v1263 = vadd.f32 0.0, %v1262
      %1264 = vmatmul.f32.gmra.mxu0 %v1243
      %v1265 = vpop.f32.mrf.mxu0
      %v1266 = vadd.f32 0.0, %v1265
      %1267 = vdwg.mxu0
      %v1269 = vsel %vm584, %v1237, 0
      %v1272 = vsel %vm584, %v1238, 0
      %1274 = vmatpush.msra.mxu0 0.0
      %1275 = vmatpush.msra.mxu0 0.0
      %1276 = vmatpush.msra.mxu0 0.0
      %1277 = vmatpush.msra.mxu0 0.0
      %1278 = vmatpush.msra.mxu0 0.0
      %1279 = vmatpush.msra.mxu0 0.0
      %1280 = vmatpush.msra.mxu0 0.0
      %1281 = vmatpush.msra.mxu0 0.0
      %1282 = vmatpush.msra.mxu0 0.0
      %1283 = vmatpush.msra.mxu0 0.0
      %1284 = vmatpush.msra.mxu0 0.0
      %1285 = vmatpush.msra.mxu0 0.0
      %1286 = vmatpush.msra.mxu0 0.0
      %1287 = vmatpush.msra.mxu0 0.0
      %1288 = vmatpush.msra.mxu0 %v1232
      %1289 = vmatpush.msra.mxu0 %v1231
      %1290 = vmatmul.f32.gmra.mxu0 %v1269
      %v1291 = vpop.f32.mrf.mxu0
      %v1292 = vadd.f32 0.0, %v1291
      %1293 = vmatmul.f32.gmra.mxu0 %v1272
      %v1294 = vpop.f32.mrf.mxu0
      %v1295 = vadd.f32 0.0, %v1294
      %1296 = vdwg.mxu0
      %1297 = vxpose.xlu0.b32.start [1/16] %v1263, 128
      %1298 = vxpose.xlu0.b32.cont [2/16] %v1266, 128
      %1299 = vxpose.xlu0.b32.cont [3/16] 0.0, 128
      %1300 = vxpose.xlu0.b32.cont [4/16] 0.0, 128
      %1301 = vxpose.xlu0.b32.cont [5/16] 0.0, 128
      %1302 = vxpose.xlu0.b32.cont [6/16] 0.0, 128
      %1303 = vxpose.xlu0.b32.cont [7/16] 0.0, 128
      %1304 = vxpose.xlu0.b32.cont [8/16] 0.0, 128
      %1305 = vxpose.xlu0.b32.cont [9/16] 0.0, 128
      %1306 = vxpose.xlu0.b32.cont [10/16] 0.0, 128
      %1307 = vxpose.xlu0.b32.cont [11/16] 0.0, 128
      %1308 = vxpose.xlu0.b32.cont [12/16] 0.0, 128
      %1309 = vxpose.xlu0.b32.cont [13/16] 0.0, 128
      %1310 = vxpose.xlu0.b32.cont [14/16] 0.0, 128
      %1311 = vxpose.xlu0.b32.cont [15/16] 0.0, 128
      %1312 = vxpose.xlu0.b32.end [16/16] 0.0, 128
      %v1313 = vpop.trf.xlu0
      %v1314 = vpop.trf.xlu0
      %v1315 = vpop.trf.xlu0
      %v1316 = vpop.trf.xlu0
      %v1317 = vpop.trf.xlu0
      %v1318 = vpop.trf.xlu0
      %v1319 = vpop.trf.xlu0
      %v1320 = vpop.trf.xlu0
      %v1321 = vpop.trf.xlu0
      %v1322 = vpop.trf.xlu0
      %v1323 = vpop.trf.xlu0
      %v1324 = vpop.trf.xlu0
      %v1325 = vpop.trf.xlu0
      %v1326 = vpop.trf.xlu0
      %v1327 = vpop.trf.xlu0
      %v1328 = vpop.trf.xlu0
      %v1330 = vsel %vm584, %v1313, 0
      %1332 = vmatpush.msra.mxu0 0.0
      %1333 = vmatpush.msra.mxu0 0.0
      %1334 = vmatpush.msra.mxu0 0.0
      %1335 = vmatpush.msra.mxu0 0.0
      %1336 = vmatpush.msra.mxu0 0.0
      %1337 = vmatpush.msra.mxu0 0.0
      %1338 = vmatpush.msra.mxu0 0.0
      %1339 = vmatpush.msra.mxu0 0.0
      %1340 = vmatpush.msra.mxu0 0.0
      %1341 = vmatpush.msra.mxu0 0.0
      %1342 = vmatpush.msra.mxu0 0.0
      %1343 = vmatpush.msra.mxu0 0.0
      %1344 = vmatpush.msra.mxu0 0.0
      %1345 = vmatpush.msra.mxu0 0.0
      %1346 = vmatpush.msra.mxu0 %v1295
      %1347 = vmatpush.msra.mxu0 %v1292
      %1348 = vmatmul.f32.gmra.mxu0 %v1330
      %v1349 = vpop.f32.mrf.mxu0
      %v1350 = vadd.f32 0.0, %v1349
      %1351 = vdwg.mxu0
      %v1352 = vsel %vm941, %v1350, -inf
      %1353 = vmax.xlane.f32.xlu0 %v1352
      %v1354 = vpop.xlane.xlu0 %1353
      %v1355 = vsub.f32 %v1350, %v1354
      %v1356 = vmul.f32 %v1355, 1.442695
      %v1357 = vpow.pop %v1356
      %v1358 = vsel %vm941, %v1357, 0.0
      %1359 = vadd.xlane.f32.xlu0 %v1358
      %v1360 = vpop.xlane.xlu0 %1359
      %v1361 = vrcp.pop %v1360
      %v1362 = vmul.f32 %v1357, %v1361
      %v1363 = vsel %vm941, %v1362, 0.0
      %v1364 = vrot.slane %v1363, 4
      %v1365 = vadd.f32 %v1363, %v1364
      %v1366 = vrot.slane %v1365, 2
      %v1367 = vadd.f32 %v1365, %v1366
      %v1368 = vrot.slane %v1367, 1
      %v1369 = vadd.f32 %v1367, %v1368
      %vm1370 = vcmask 57344
      %1371 = vst.msk [vmem:[%s574] sm:$0x1] %vm1370, %v1369
      %p1372 = scmp.lt.s32.totalorder %s29, 1
      %s1373 = scalar_select %p1372, %s29, 1
      %s1374 = smul.addr %s1373, 2
      %s1375 = smul.addr %s1374, 8
      %s1376 = scalar_lea.vmem %s16, %s1375
      %p1377 = scmp.lt.s32.totalorder %s29, 1
      %s1378 = scalar_select %p1377, %s29, 1
      %s1379 = scalar_lea.vmem %s17, %s1378
      // Predicated region
      $region85: #{feature_learning_block.6} parent=83 // pred_check
        %p1380 = pneg %p393
      $region86: #{feature_learning_block.6} parent=83 // pred_check_branch
        %1382 = sbr.rel (%p1380) target = $region88
      $region87: #{feature_learning_block.6} parent=83 // pred_region
        _
      $region88: #{feature_learning_block.6} parent=83 // pred_fallthru
        _
      // Predicated region
      $region89: #{feature_learning_block.6} parent=83 // pred_check
        %p1383 = pneg %p419
      $region90: #{feature_learning_block.6} parent=83 // pred_check_branch
        %1385 = sbr.rel (%p1383) target = $region92
      $region91: #{feature_learning_block.6} parent=83 // pred_region
        _
      $region92: #{feature_learning_block.6} parent=83 // pred_fallthru
        _
    $region84: #{feature_learning_block.6} parent=5 // pred_fallthru
      _
    %p1386 = scmp.le.s32.totalorder 2, %s24
    // Predicated region
    $region93: #{feature_learning_block.6} parent=5 // pred_check
      %p1387 = pneg %p1386
    $region94: #{feature_learning_block.6} parent=5 // pred_check_branch
      %1389 = sbr.rel (%p1387) target = $region96
    $region95: #{feature_learning_block.6} parent=5 // pred_region
      %s1390 = ssub.s32 %s24, 2
      // Predicated region
      $region97: #{feature_learning_block.6} parent=95 // pred_check
        %p1391 = pneg %p399
      $region98: #{feature_learning_block.6} parent=95 // pred_check_branch
        %1393 = sbr.rel (%p1391) target = $region100
      $region99: #{feature_learning_block.6} parent=95 // pred_region
        %p1394 = scmp.lt.s32.totalorder %s30, 1
        %s1395 = scalar_select %p1394, %s30, 1
        %s1396 = smul.addr %s1395, 2
        %s1397 = smul.addr %s1396, 8
        %s1398 = scalar_lea.vmem %s16, %s1397
      $region100: #{feature_learning_block.6} parent=95 // pred_fallthru
        _
      // Predicated region
      $region101: #{feature_learning_block.6} parent=95 // pred_check
        %p1399 = pneg %p425
      $region102: #{feature_learning_block.6} parent=95 // pred_check_branch
        %1401 = sbr.rel (%p1399) target = $region104
      $region103: #{feature_learning_block.6} parent=95 // pred_region
        %p1402 = scmp.lt.s32.totalorder %s30, 1
        %s1403 = scalar_select %p1402, %s30, 1
        %s1404 = scalar_lea.vmem %s17, %s1403
      $region104: #{feature_learning_block.6} parent=95 // pred_fallthru
        _
    $region96: #{feature_learning_block.6} parent=5 // pred_fallthru
      _
  $region6: #{feature_learning_block.6} parent=0 // loop_footer
    %s28 = sadd.s32 1, %s24
  $region7: #{feature_learning_block.6} parent=0 // loop_footer_branch
    %23 = sbr.rel target = $region3
  $region8: #{feature_learning_block.6} parent=0 // loop_exit
    _

// kernel: feature_learning_block.7
$region0: #{feature_learning_block.7}
  #allocation0 [shape = 'u32[]', space=smem, size = 0x4, offset = 0x4, fixed_abs, tag = 'smem constant byte address 0x4 - core index']
  #allocation1 [shape = 'u32[72,128]{1,0:T(1,128)}', space=vmem, size = 0x9000, scoped, tag = 'internal scratch']
  #allocation2 [shape = 'f32[16,16]{1,0:T(8,128)}', space=vmem, size = 0x2000, scoped, tag = 'scratch operand']
  %s0 = inlined_call_operand.smem [shape: u32[42], index: -1, kind: input, shape index: {}]
  %s1 = sld [smem:[%s0]]
  %s2 = scalar_lea.smem %s0, 1
  %s3 = sld [smem:[%s2]]
  %s4 = scalar_lea.smem %s0, 2
  %s5 = sld [smem:[%s4]]
  %s6 = scalar_lea.smem %s0, 3
  %s7 = sld [smem:[%s6]]
  %s8 = scalar_lea.smem %s0, 4
  %s9 = sld [smem:[%s8]]
  %s10 = scalar_lea.smem %s0, 5
  %s11 = sld [smem:[%s10]]
  %s12 = scalar_lea.smem %s0, 6
  %s13 = sld [smem:[%s12]]
  %s14 = scalar_lea.smem %s0, 7
  %s15 = sld [smem:[%s14]]
  %s16 = scalar_lea.smem %s0, 8
  %s17 = sld [smem:[%s16]]
  %s18 = scalar_lea.smem %s0, 9
  %s19 = sld [smem:[%s18]]
  %s20 = scalar_lea.smem %s0, 10
  %s21 = sld [smem:[%s20]]
  %s22 = scalar_lea.smem %s0, 11
  %s23 = sld [smem:[%s22]]
  %s24 = scalar_lea.smem %s0, 12
  %s25 = sld [smem:[%s24]]
  %s26 = scalar_lea.smem %s0, 13
  %s27 = sld [smem:[%s26]]
  %s28 = scalar_lea.smem %s0, 14
  %s29 = sld [smem:[%s28]]
  %s30 = scalar_lea.smem %s0, 15
  %s31 = sld [smem:[%s30]]
  %s32 = scalar_lea.smem %s0, 16
  %s33 = sld [smem:[%s32]]
  %s34 = scalar_lea.smem %s0, 17
  %s35 = sld [smem:[%s34]]
  %s36 = scalar_lea.smem %s0, 18
  %s37 = sld [smem:[%s36]]
  %s38 = scalar_lea.smem %s0, 19
  %s39 = sld [smem:[%s38]]
  %s40 = scalar_lea.smem %s0, 20
  %s41 = sld [smem:[%s40]]
  %s42 = scalar_lea.smem %s0, 21
  %s43 = sld [smem:[%s42]]
  %s44 = scalar_lea.smem %s0, 22
  %s45 = sld [smem:[%s44]]
  %s46 = scalar_lea.smem %s0, 23
  %s47 = sld [smem:[%s46]]
  %s48 = scalar_lea.smem %s0, 24
  %s49 = sld [smem:[%s48]]
  %s50 = scalar_lea.smem %s0, 25
  %s51 = sld [smem:[%s50]]
  %s52 = scalar_lea.smem %s0, 26
  %s53 = sld [smem:[%s52]]
  %s54 = scalar_lea.smem %s0, 27
  %s55 = sld [smem:[%s54]]
  %s56 = scalar_lea.smem %s0, 28
  %s57 = sld [smem:[%s56]]
  %s58 = scalar_lea.smem %s0, 29
  %s59 = sld [smem:[%s58]]
  %s60 = scalar_lea.smem %s0, 30
  %s61 = sld [smem:[%s60]]
  %s62 = scalar_lea.smem %s0, 31
  %s63 = sld [smem:[%s62]]
  %s64 = scalar_lea.smem %s0, 32
  %s65 = sld [smem:[%s64]]
  %s66 = scalar_lea.smem %s0, 33
  %s67 = sld [smem:[%s66]]
  %s68 = scalar_lea.smem %s0, 34
  %s69 = sld [smem:[%s68]]
  %s70 = scalar_lea.smem %s0, 35
  %s71 = sld [smem:[%s70]]
  %s72 = scalar_lea.smem %s0, 36
  %s73 = sld [smem:[%s72]]
  %s74 = scalar_lea.smem %s0, 37
  %s75 = sld [smem:[%s74]]
  %s76 = scalar_lea.smem %s0, 38
  %s77 = sld [smem:[%s76]]
  %s78 = scalar_lea.smem %s0, 39
  %s79 = sld [smem:[%s78]]
  %s80 = scalar_lea.smem %s0, 40
  %s81 = sld [smem:[%s80]]
  %s82 = scalar_lea.smem %s0, 41
  %s83 = sld [smem:[%s82]]
  %s84 = sld [smem:[#allocation0]]
  $region213: #{feature_learning_block.7} parent=0
    _
  %s86 = ssub.s32 1, %s84
  %s87 = scalar_select 0, %s86, %s84
  $region1: #{feature_learning_block.7} parent=0
    #allocation3 [shape = 'u8[8192]{0}', space=vmem, size = 0x2000, scoped, tag = 'input window, operand 32, single buffered']
    #allocation4 [shape = 's32[2]{0}', space=sflag, size = 0x8, scoped, tag = 'scoped memory for feature_learning_block.7']
    #allocation5 [shape = 's32[2]{0}', space=sflag, size = 0x8, scoped, tag = 'scoped memory for feature_learning_block.7']
    #allocation6 [shape = 'u8[8192]{0}', space=vmem, size = 0x2000, scoped, tag = 'input window, operand 33, single buffered']
    #allocation7 [shape = 's32[1]{0}', space=sflag, size = 0x4, scoped, tag = 'scoped memory for feature_learning_block.7']
    #allocation8 [shape = 'u8[8192]{0}', space=vmem, size = 0x2000, scoped, tag = 'input window, operand 34, single buffered']
    #allocation9 [shape = 'u8[8192]{0}', space=vmem, size = 0x2000, scoped, tag = 'input window, operand 38, single buffered']
    #allocation10 [shape = 's32[1]{0}', space=sflag, size = 0x4, scoped, tag = 'scoped memory for feature_learning_block.7']
    #allocation11 [shape = 'u8[16384]{0}', space=vmem, size = 0x4000, scoped, tag = 'output window, operand 0']
    %88 = vsyncpa [#allocation4], 0
    %89 = vsyncpa [#allocation7], 0
    %90 = vsyncpa [#allocation10], 0
    %91 = vsyncpa [#allocation5], 0
    %s92 = scalar_lea.sflag [#allocation5], 1
    %93 = vsyncpa %s92, 0
    loop: start=0, step=1, limit=4
    $region2: #{feature_learning_block.7} parent=1 // loop_pre_header
      _
    $region3: #{feature_learning_block.7} parent=1 // loop_header
      %s95 = sphi 0, %s99
      %p96 = scmp.ge.s32.totalorder %s95, 4
      %s105 = sphi 0, %s107
      %s108 = sphi 0, %s105
      %s109 = sphi 0, %s108
      %s125 = sphi 0, %s109
      %s131 = sphi 0, %s133
      %s134 = sphi 0, %s131
      %s135 = sphi 0, %s134
      %s151 = sphi 0, %s135
      %s157 = sphi 0, %s159
      %s160 = sphi 0, %s157
      %s161 = sphi 0, %s160
      %s177 = sphi 0, %s161
      %s181 = sphi 0, %s181
      %s183 = sphi 0, %s181
      %s184 = sphi 0, %s183
      %s198 = sphi 0, %s184
      %s202 = sphi 0, %s202
      %s204 = sphi 0, %s202
      %s205 = sphi 0, %s204
      %s219 = sphi 0, %s205
      %s223 = sphi 0, %s223
      %s225 = sphi 0, %s223
      %s226 = sphi 0, %s225
      %s240 = sphi 0, %s226
      %s244 = sphi 0, %s244
      %s246 = sphi 0, %s244
      %s247 = sphi 0, %s246
      %s261 = sphi 0, %s247
      %s265 = sphi 0, %s265
      %s267 = sphi 0, %s265
      %s268 = sphi 0, %s267
      %s282 = sphi 0, %s268
      %s286 = sphi 0, %s286
      %s288 = sphi 0, %s286
      %s289 = sphi 0, %s288
      %s303 = sphi 0, %s289
      %s307 = sphi 0, %s307
      %s309 = sphi 0, %s307
      %s310 = sphi 0, %s309
      %s324 = sphi 0, %s310
      %s328 = sphi 0, %s328
      %s330 = sphi 0, %s328
      %s331 = sphi 0, %s330
      %s345 = sphi 0, %s331
      %s349 = sphi 0, %s349
      %s351 = sphi 0, %s349
      %s352 = sphi 0, %s351
      %s366 = sphi 0, %s352
      %s370 = sphi 0, %s370
      %s372 = sphi 0, %s370
      %s373 = sphi 0, %s372
      %s387 = sphi 0, %s373
      %s391 = sphi 0, %s391
      %s393 = sphi 0, %s391
      %s394 = sphi 0, %s393
      %s408 = sphi 0, %s394
      %s412 = sphi 0, %s412
      %s414 = sphi 0, %s412
      %s415 = sphi 0, %s414
      %s429 = sphi 0, %s415
      %s433 = sphi 0, %s433
      %s435 = sphi 0, %s433
      %s436 = sphi 0, %s435
      %s450 = sphi 0, %s436
      %s454 = sphi 0, %s454
      %s456 = sphi 0, %s454
      %s457 = sphi 0, %s456
      %s471 = sphi 0, %s457
      %s475 = sphi 0, %s475
      %s477 = sphi 0, %s475
      %s478 = sphi 0, %s477
      %s492 = sphi 0, %s478
      %s496 = sphi 0, %s496
      %s498 = sphi 0, %s496
      %s499 = sphi 0, %s498
      %s513 = sphi 0, %s499
      %s517 = sphi 0, %s517
      %s519 = sphi 0, %s517
      %s520 = sphi 0, %s519
      %s534 = sphi 0, %s520
      %s538 = sphi 0, %s538
      %s540 = sphi 0, %s538
      %s541 = sphi 0, %s540
      %s555 = sphi 0, %s541
      %s559 = sphi 0, %s559
      %s561 = sphi 0, %s559
      %s562 = sphi 0, %s561
      %s576 = sphi 0, %s562
      %s580 = sphi 0, %s580
      %s582 = sphi 0, %s580
      %s583 = sphi 0, %s582
      %s597 = sphi 0, %s583
      %s601 = sphi 0, %s601
      %s603 = sphi 0, %s601
      %s604 = sphi 0, %s603
      %s618 = sphi 0, %s604
      %s622 = sphi 0, %s622
      %s624 = sphi 0, %s622
      %s625 = sphi 0, %s624
      %s639 = sphi 0, %s625
      %s643 = sphi 0, %s643
      %s645 = sphi 0, %s643
      %s646 = sphi 0, %s645
      %s660 = sphi 0, %s646
      %s664 = sphi 0, %s664
      %s666 = sphi 0, %s664
      %s667 = sphi 0, %s666
      %s681 = sphi 0, %s667
      %s685 = sphi 0, %s685
      %s687 = sphi 0, %s685
      %s688 = sphi 0, %s687
      %s702 = sphi 0, %s688
      %s706 = sphi 0, %s706
      %s708 = sphi 0, %s706
      %s709 = sphi 0, %s708
      %s723 = sphi 0, %s709
      %s727 = sphi 0, %s727
      %s729 = sphi 0, %s727
      %s730 = sphi 0, %s729
      %s744 = sphi 0, %s730
      %s748 = sphi 0, %s748
      %s750 = sphi 0, %s748
      %s751 = sphi 0, %s750
      %s765 = sphi 0, %s751
      %s769 = sphi 0, %s769
      %s771 = sphi 0, %s769
      %s772 = sphi 0, %s771
      %s786 = sphi 0, %s772
      %s790 = sphi 0, %s790
      %s792 = sphi 0, %s790
      %s793 = sphi 0, %s792
      %s807 = sphi 0, %s793
      %s811 = sphi 0, %s811
      %s813 = sphi 0, %s811
      %s814 = sphi 0, %s813
      %s828 = sphi 0, %s814
      %s832 = sphi 0, %s832
      %s834 = sphi 0, %s832
      %s835 = sphi 0, %s834
      %s849 = sphi 0, %s835
      %s853 = sphi 0, %s853
      %s855 = sphi 0, %s853
      %s856 = sphi 0, %s855
      %s870 = sphi 0, %s856
      %s874 = sphi 0, %s874
      %s876 = sphi 0, %s874
      %s877 = sphi 0, %s876
      %s891 = sphi 0, %s877
      %s895 = sphi 0, %s895
      %s897 = sphi 0, %s895
      %s898 = sphi 0, %s897
      %s912 = sphi 0, %s898
      %s916 = sphi 0, %s916
      %s918 = sphi 0, %s916
      %s919 = sphi 0, %s918
      %s933 = sphi 0, %s919
      %s937 = sphi 0, %s937
      %s939 = sphi 0, %s937
      %s940 = sphi 0, %s939
      %s954 = sphi 0, %s940
      %s958 = sphi 0, %s958
      %s960 = sphi 0, %s958
      %s961 = sphi 0, %s960
      %s975 = sphi 0, %s961
      %s981 = sphi 0, %s983
      %s984 = sphi 0, %s981
      %s985 = sphi 0, %s984
      %s1001 = sphi 0, %s985
    $region4: #{feature_learning_block.7} parent=1 // loop_header_branch
      %98 = sbr.rel (%p96) target = $region8
    $region5: #{feature_learning_block.7} parent=1 // loop_body
      %s100 = ssub.s32 %s95, 1
      %s101 = ssub.s32 %s95, 2
      %s102 = sadd.s32 %s95, 1
      %s103 = ssub.s32 %s95, %s102
      %p104 = scmp.eq.s32.totalorder %s103, 0
      %s106 = sadd.s32 %s105, 1
      %s107 = scalar_select %p104, %s105, %s106
      %p110 = pneg %p104
      %p111 = scmp.eq.s32.totalorder %s95, 1
      %p112 = por %p110, %p111
      %p113 = scmp.ne.s32.totalorder %s105, %s108
      %p114 = scmp.eq.s32.totalorder %s95, 0
      %p115 = por %p113, %p114
      %p116 = scmp.ne.s32.totalorder %s105, %s108
      %p117 = scmp.eq.s32.totalorder %s100, 1
      %p118 = por %p116, %p117
      %p119 = scmp.ne.s32.totalorder %s108, %s109
      %p120 = scmp.eq.s32.totalorder %s100, 0
      %p121 = por %p119, %p120
      %p122 = scmp.ne.s32.totalorder %s108, %s109
      %p123 = scmp.eq.s32.totalorder %s101, 1
      %p124 = por %p122, %p123
      %p126 = scmp.ne.s32.totalorder %s109, %s125
      %p127 = scmp.eq.s32.totalorder %s101, 0
      %p128 = por %p126, %p127
      %s129 = ssub.s32 %s95, %s102
      %p130 = scmp.eq.s32.totalorder %s129, 0
      %s132 = sadd.s32 %s131, 1
      %s133 = scalar_select %p130, %s131, %s132
      %p136 = pneg %p130
      %p137 = scmp.eq.s32.totalorder %s95, 1
      %p138 = por %p136, %p137
      %p139 = scmp.ne.s32.totalorder %s131, %s134
      %p140 = scmp.eq.s32.totalorder %s95, 0
      %p141 = por %p139, %p140
      %p142 = scmp.ne.s32.totalorder %s131, %s134
      %p143 = scmp.eq.s32.totalorder %s100, 1
      %p144 = por %p142, %p143
      %p145 = scmp.ne.s32.totalorder %s134, %s135
      %p146 = scmp.eq.s32.totalorder %s100, 0
      %p147 = por %p145, %p146
      %p148 = scmp.ne.s32.totalorder %s134, %s135
      %p149 = scmp.eq.s32.totalorder %s101, 1
      %p150 = por %p148, %p149
      %p152 = scmp.ne.s32.totalorder %s135, %s151
      %p153 = scmp.eq.s32.totalorder %s101, 0
      %p154 = por %p152, %p153
      %s155 = ssub.s32 %s95, %s102
      %p156 = scmp.eq.s32.totalorder %s155, 0
      %s158 = sadd.s32 %s157, 1
      %s159 = scalar_select %p156, %s157, %s158
      %p162 = pneg %p156
      %p163 = scmp.eq.s32.totalorder %s95, 1
      %p164 = por %p162, %p163
      %p165 = scmp.ne.s32.totalorder %s157, %s160
      %p166 = scmp.eq.s32.totalorder %s95, 0
      %p167 = por %p165, %p166
      %p168 = scmp.ne.s32.totalorder %s157, %s160
      %p169 = scmp.eq.s32.totalorder %s100, 1
      %p170 = por %p168, %p169
      %p171 = scmp.ne.s32.totalorder %s160, %s161
      %p172 = scmp.eq.s32.totalorder %s100, 0
      %p173 = por %p171, %p172
      %p174 = scmp.ne.s32.totalorder %s160, %s161
      %p175 = scmp.eq.s32.totalorder %s101, 1
      %p176 = por %p174, %p175
      %p178 = scmp.ne.s32.totalorder %s161, %s177
      %p179 = scmp.eq.s32.totalorder %s101, 0
      %p180 = por %p178, %p179
      %s182 = sadd.s32 %s181, 1
      %p185 = scmp.eq.s32.totalorder %s95, 1
      %p186 = scmp.ne.s32.totalorder %s181, %s183
      %p187 = scmp.eq.s32.totalorder %s95, 0
      %p188 = por %p186, %p187
      %p189 = scmp.ne.s32.totalorder %s181, %s183
      %p190 = scmp.eq.s32.totalorder %s100, 1
      %p191 = por %p189, %p190
      %p192 = scmp.ne.s32.totalorder %s183, %s184
      %p193 = scmp.eq.s32.totalorder %s100, 0
      %p194 = por %p192, %p193
      %p195 = scmp.ne.s32.totalorder %s183, %s184
      %p196 = scmp.eq.s32.totalorder %s101, 1
      %p197 = por %p195, %p196
      %p199 = scmp.ne.s32.totalorder %s184, %s198
      %p200 = scmp.eq.s32.totalorder %s101, 0
      %p201 = por %p199, %p200
      %s203 = sadd.s32 %s202, 1
      %p206 = scmp.eq.s32.totalorder %s95, 1
      %p207 = scmp.ne.s32.totalorder %s202, %s204
      %p208 = scmp.eq.s32.totalorder %s95, 0
      %p209 = por %p207, %p208
      %p210 = scmp.ne.s32.totalorder %s202, %s204
      %p211 = scmp.eq.s32.totalorder %s100, 1
      %p212 = por %p210, %p211
      %p213 = scmp.ne.s32.totalorder %s204, %s205
      %p214 = scmp.eq.s32.totalorder %s100, 0
      %p215 = por %p213, %p214
      %p216 = scmp.ne.s32.totalorder %s204, %s205
      %p217 = scmp.eq.s32.totalorder %s101, 1
      %p218 = por %p216, %p217
      %p220 = scmp.ne.s32.totalorder %s205, %s219
      %p221 = scmp.eq.s32.totalorder %s101, 0
      %p222 = por %p220, %p221
      %s224 = sadd.s32 %s223, 1
      %p227 = scmp.eq.s32.totalorder %s95, 1
      %p228 = scmp.ne.s32.totalorder %s223, %s225
      %p229 = scmp.eq.s32.totalorder %s95, 0
      %p230 = por %p228, %p229
      %p231 = scmp.ne.s32.totalorder %s223, %s225
      %p232 = scmp.eq.s32.totalorder %s100, 1
      %p233 = por %p231, %p232
      %p234 = scmp.ne.s32.totalorder %s225, %s226
      %p235 = scmp.eq.s32.totalorder %s100, 0
      %p236 = por %p234, %p235
      %p237 = scmp.ne.s32.totalorder %s225, %s226
      %p238 = scmp.eq.s32.totalorder %s101, 1
      %p239 = por %p237, %p238
      %p241 = scmp.ne.s32.totalorder %s226, %s240
      %p242 = scmp.eq.s32.totalorder %s101, 0
      %p243 = por %p241, %p242
      %s245 = sadd.s32 %s244, 1
      %p248 = scmp.eq.s32.totalorder %s95, 1
      %p249 = scmp.ne.s32.totalorder %s244, %s246
      %p250 = scmp.eq.s32.totalorder %s95, 0
      %p251 = por %p249, %p250
      %p252 = scmp.ne.s32.totalorder %s244, %s246
      %p253 = scmp.eq.s32.totalorder %s100, 1
      %p254 = por %p252, %p253
      %p255 = scmp.ne.s32.totalorder %s246, %s247
      %p256 = scmp.eq.s32.totalorder %s100, 0
      %p257 = por %p255, %p256
      %p258 = scmp.ne.s32.totalorder %s246, %s247
      %p259 = scmp.eq.s32.totalorder %s101, 1
      %p260 = por %p258, %p259
      %p262 = scmp.ne.s32.totalorder %s247, %s261
      %p263 = scmp.eq.s32.totalorder %s101, 0
      %p264 = por %p262, %p263
      %s266 = sadd.s32 %s265, 1
      %p269 = scmp.eq.s32.totalorder %s95, 1
      %p270 = scmp.ne.s32.totalorder %s265, %s267
      %p271 = scmp.eq.s32.totalorder %s95, 0
      %p272 = por %p270, %p271
      %p273 = scmp.ne.s32.totalorder %s265, %s267
      %p274 = scmp.eq.s32.totalorder %s100, 1
      %p275 = por %p273, %p274
      %p276 = scmp.ne.s32.totalorder %s267, %s268
      %p277 = scmp.eq.s32.totalorder %s100, 0
      %p278 = por %p276, %p277
      %p279 = scmp.ne.s32.totalorder %s267, %s268
      %p280 = scmp.eq.s32.totalorder %s101, 1
      %p281 = por %p279, %p280
      %p283 = scmp.ne.s32.totalorder %s268, %s282
      %p284 = scmp.eq.s32.totalorder %s101, 0
      %p285 = por %p283, %p284
      %s287 = sadd.s32 %s286, 1
      %p290 = scmp.eq.s32.totalorder %s95, 1
      %p291 = scmp.ne.s32.totalorder %s286, %s288
      %p292 = scmp.eq.s32.totalorder %s95, 0
      %p293 = por %p291, %p292
      %p294 = scmp.ne.s32.totalorder %s286, %s288
      %p295 = scmp.eq.s32.totalorder %s100, 1
      %p296 = por %p294, %p295
      %p297 = scmp.ne.s32.totalorder %s288, %s289
      %p298 = scmp.eq.s32.totalorder %s100, 0
      %p299 = por %p297, %p298
      %p300 = scmp.ne.s32.totalorder %s288, %s289
      %p301 = scmp.eq.s32.totalorder %s101, 1
      %p302 = por %p300, %p301
      %p304 = scmp.ne.s32.totalorder %s289, %s303
      %p305 = scmp.eq.s32.totalorder %s101, 0
      %p306 = por %p304, %p305
      %s308 = sadd.s32 %s307, 1
      %p311 = scmp.eq.s32.totalorder %s95, 1
      %p312 = scmp.ne.s32.totalorder %s307, %s309
      %p313 = scmp.eq.s32.totalorder %s95, 0
      %p314 = por %p312, %p313
      %p315 = scmp.ne.s32.totalorder %s307, %s309
      %p316 = scmp.eq.s32.totalorder %s100, 1
      %p317 = por %p315, %p316
      %p318 = scmp.ne.s32.totalorder %s309, %s310
      %p319 = scmp.eq.s32.totalorder %s100, 0
      %p320 = por %p318, %p319
      %p321 = scmp.ne.s32.totalorder %s309, %s310
      %p322 = scmp.eq.s32.totalorder %s101, 1
      %p323 = por %p321, %p322
      %p325 = scmp.ne.s32.totalorder %s310, %s324
      %p326 = scmp.eq.s32.totalorder %s101, 0
      %p327 = por %p325, %p326
      %s329 = sadd.s32 %s328, 1
      %p332 = scmp.eq.s32.totalorder %s95, 1
      %p333 = scmp.ne.s32.totalorder %s328, %s330
      %p334 = scmp.eq.s32.totalorder %s95, 0
      %p335 = por %p333, %p334
      %p336 = scmp.ne.s32.totalorder %s328, %s330
      %p337 = scmp.eq.s32.totalorder %s100, 1
      %p338 = por %p336, %p337
      %p339 = scmp.ne.s32.totalorder %s330, %s331
      %p340 = scmp.eq.s32.totalorder %s100, 0
      %p341 = por %p339, %p340
      %p342 = scmp.ne.s32.totalorder %s330, %s331
      %p343 = scmp.eq.s32.totalorder %s101, 1
      %p344 = por %p342, %p343
      %p346 = scmp.ne.s32.totalorder %s331, %s345
      %p347 = scmp.eq.s32.totalorder %s101, 0
      %p348 = por %p346, %p347
      %s350 = sadd.s32 %s349, 1
      %p353 = scmp.eq.s32.totalorder %s95, 1
      %p354 = scmp.ne.s32.totalorder %s349, %s351
      %p355 = scmp.eq.s32.totalorder %s95, 0
      %p356 = por %p354, %p355
      %p357 = scmp.ne.s32.totalorder %s349, %s351
      %p358 = scmp.eq.s32.totalorder %s100, 1
      %p359 = por %p357, %p358
      %p360 = scmp.ne.s32.totalorder %s351, %s352
      %p361 = scmp.eq.s32.totalorder %s100, 0
      %p362 = por %p360, %p361
      %p363 = scmp.ne.s32.totalorder %s351, %s352
      %p364 = scmp.eq.s32.totalorder %s101, 1
      %p365 = por %p363, %p364
      %p367 = scmp.ne.s32.totalorder %s352, %s366
      %p368 = scmp.eq.s32.totalorder %s101, 0
      %p369 = por %p367, %p368
      %s371 = sadd.s32 %s370, 1
      %p374 = scmp.eq.s32.totalorder %s95, 1
      %p375 = scmp.ne.s32.totalorder %s370, %s372
      %p376 = scmp.eq.s32.totalorder %s95, 0
      %p377 = por %p375, %p376
      %p378 = scmp.ne.s32.totalorder %s370, %s372
      %p379 = scmp.eq.s32.totalorder %s100, 1
      %p380 = por %p378, %p379
      %p381 = scmp.ne.s32.totalorder %s372, %s373
      %p382 = scmp.eq.s32.totalorder %s100, 0
      %p383 = por %p381, %p382
      %p384 = scmp.ne.s32.totalorder %s372, %s373
      %p385 = scmp.eq.s32.totalorder %s101, 1
      %p386 = por %p384, %p385
      %p388 = scmp.ne.s32.totalorder %s373, %s387
      %p389 = scmp.eq.s32.totalorder %s101, 0
      %p390 = por %p388, %p389
      %s392 = sadd.s32 %s391, 1
      %p395 = scmp.eq.s32.totalorder %s95, 1
      %p396 = scmp.ne.s32.totalorder %s391, %s393
      %p397 = scmp.eq.s32.totalorder %s95, 0
      %p398 = por %p396, %p397
      %p399 = scmp.ne.s32.totalorder %s391, %s393
      %p400 = scmp.eq.s32.totalorder %s100, 1
      %p401 = por %p399, %p400
      %p402 = scmp.ne.s32.totalorder %s393, %s394
      %p403 = scmp.eq.s32.totalorder %s100, 0
      %p404 = por %p402, %p403
      %p405 = scmp.ne.s32.totalorder %s393, %s394
      %p406 = scmp.eq.s32.totalorder %s101, 1
      %p407 = por %p405, %p406
      %p409 = scmp.ne.s32.totalorder %s394, %s408
      %p410 = scmp.eq.s32.totalorder %s101, 0
      %p411 = por %p409, %p410
      %s413 = sadd.s32 %s412, 1
      %p416 = scmp.eq.s32.totalorder %s95, 1
      %p417 = scmp.ne.s32.totalorder %s412, %s414
      %p418 = scmp.eq.s32.totalorder %s95, 0
      %p419 = por %p417, %p418
      %p420 = scmp.ne.s32.totalorder %s412, %s414
      %p421 = scmp.eq.s32.totalorder %s100, 1
      %p422 = por %p420, %p421
      %p423 = scmp.ne.s32.totalorder %s414, %s415
      %p424 = scmp.eq.s32.totalorder %s100, 0
      %p425 = por %p423, %p424
      %p426 = scmp.ne.s32.totalorder %s414, %s415
      %p427 = scmp.eq.s32.totalorder %s101, 1
      %p428 = por %p426, %p427
      %p430 = scmp.ne.s32.totalorder %s415, %s429
      %p431 = scmp.eq.s32.totalorder %s101, 0
      %p432 = por %p430, %p431
      %s434 = sadd.s32 %s433, 1
      %p437 = scmp.eq.s32.totalorder %s95, 1
      %p438 = scmp.ne.s32.totalorder %s433, %s435
      %p439 = scmp.eq.s32.totalorder %s95, 0
      %p440 = por %p438, %p439
      %p441 = scmp.ne.s32.totalorder %s433, %s435
      %p442 = scmp.eq.s32.totalorder %s100, 1
      %p443 = por %p441, %p442
      %p444 = scmp.ne.s32.totalorder %s435, %s436
      %p445 = scmp.eq.s32.totalorder %s100, 0
      %p446 = por %p444, %p445
      %p447 = scmp.ne.s32.totalorder %s435, %s436
      %p448 = scmp.eq.s32.totalorder %s101, 1
      %p449 = por %p447, %p448
      %p451 = scmp.ne.s32.totalorder %s436, %s450
      %p452 = scmp.eq.s32.totalorder %s101, 0
      %p453 = por %p451, %p452
      %s455 = sadd.s32 %s454, 1
      %p458 = scmp.eq.s32.totalorder %s95, 1
      %p459 = scmp.ne.s32.totalorder %s454, %s456
      %p460 = scmp.eq.s32.totalorder %s95, 0
      %p461 = por %p459, %p460
      %p462 = scmp.ne.s32.totalorder %s454, %s456
      %p463 = scmp.eq.s32.totalorder %s100, 1
      %p464 = por %p462, %p463
      %p465 = scmp.ne.s32.totalorder %s456, %s457
      %p466 = scmp.eq.s32.totalorder %s100, 0
      %p467 = por %p465, %p466
      %p468 = scmp.ne.s32.totalorder %s456, %s457
      %p469 = scmp.eq.s32.totalorder %s101, 1
      %p470 = por %p468, %p469
      %p472 = scmp.ne.s32.totalorder %s457, %s471
      %p473 = scmp.eq.s32.totalorder %s101, 0
      %p474 = por %p472, %p473
      %s476 = sadd.s32 %s475, 1
      %p479 = scmp.eq.s32.totalorder %s95, 1
      %p480 = scmp.ne.s32.totalorder %s475, %s477
      %p481 = scmp.eq.s32.totalorder %s95, 0
      %p482 = por %p480, %p481
      %p483 = scmp.ne.s32.totalorder %s475, %s477
      %p484 = scmp.eq.s32.totalorder %s100, 1
      %p485 = por %p483, %p484
      %p486 = scmp.ne.s32.totalorder %s477, %s478
      %p487 = scmp.eq.s32.totalorder %s100, 0
      %p488 = por %p486, %p487
      %p489 = scmp.ne.s32.totalorder %s477, %s478
      %p490 = scmp.eq.s32.totalorder %s101, 1
      %p491 = por %p489, %p490
      %p493 = scmp.ne.s32.totalorder %s478, %s492
      %p494 = scmp.eq.s32.totalorder %s101, 0
      %p495 = por %p493, %p494
      %s497 = sadd.s32 %s496, 1
      %p500 = scmp.eq.s32.totalorder %s95, 1
      %p501 = scmp.ne.s32.totalorder %s496, %s498
      %p502 = scmp.eq.s32.totalorder %s95, 0
      %p503 = por %p501, %p502
      %p504 = scmp.ne.s32.totalorder %s496, %s498
      %p505 = scmp.eq.s32.totalorder %s100, 1
      %p506 = por %p504, %p505
      %p507 = scmp.ne.s32.totalorder %s498, %s499
      %p508 = scmp.eq.s32.totalorder %s100, 0
      %p509 = por %p507, %p508
      %p510 = scmp.ne.s32.totalorder %s498, %s499
      %p511 = scmp.eq.s32.totalorder %s101, 1
      %p512 = por %p510, %p511
      %p514 = scmp.ne.s32.totalorder %s499, %s513
      %p515 = scmp.eq.s32.totalorder %s101, 0
      %p516 = por %p514, %p515
      %s518 = sadd.s32 %s517, 1
      %p521 = scmp.eq.s32.totalorder %s95, 1
      %p522 = scmp.ne.s32.totalorder %s517, %s519
      %p523 = scmp.eq.s32.totalorder %s95, 0
      %p524 = por %p522, %p523
      %p525 = scmp.ne.s32.totalorder %s517, %s519
      %p526 = scmp.eq.s32.totalorder %s100, 1
      %p527 = por %p525, %p526
      %p528 = scmp.ne.s32.totalorder %s519, %s520
      %p529 = scmp.eq.s32.totalorder %s100, 0
      %p530 = por %p528, %p529
      %p531 = scmp.ne.s32.totalorder %s519, %s520
      %p532 = scmp.eq.s32.totalorder %s101, 1
      %p533 = por %p531, %p532
      %p535 = scmp.ne.s32.totalorder %s520, %s534
      %p536 = scmp.eq.s32.totalorder %s101, 0
      %p537 = por %p535, %p536
      %s539 = sadd.s32 %s538, 1
      %p542 = scmp.eq.s32.totalorder %s95, 1
      %p543 = scmp.ne.s32.totalorder %s538, %s540
      %p544 = scmp.eq.s32.totalorder %s95, 0
      %p545 = por %p543, %p544
      %p546 = scmp.ne.s32.totalorder %s538, %s540
      %p547 = scmp.eq.s32.totalorder %s100, 1
      %p548 = por %p546, %p547
      %p549 = scmp.ne.s32.totalorder %s540, %s541
      %p550 = scmp.eq.s32.totalorder %s100, 0
      %p551 = por %p549, %p550
      %p552 = scmp.ne.s32.totalorder %s540, %s541
      %p553 = scmp.eq.s32.totalorder %s101, 1
      %p554 = por %p552, %p553
      %p556 = scmp.ne.s32.totalorder %s541, %s555
      %p557 = scmp.eq.s32.totalorder %s101, 0
      %p558 = por %p556, %p557
      %s560 = sadd.s32 %s559, 1
      %p563 = scmp.eq.s32.totalorder %s95, 1
      %p564 = scmp.ne.s32.totalorder %s559, %s561
      %p565 = scmp.eq.s32.totalorder %s95, 0
      %p566 = por %p564, %p565
      %p567 = scmp.ne.s32.totalorder %s559, %s561
      %p568 = scmp.eq.s32.totalorder %s100, 1
      %p569 = por %p567, %p568
      %p570 = scmp.ne.s32.totalorder %s561, %s562
      %p571 = scmp.eq.s32.totalorder %s100, 0
      %p572 = por %p570, %p571
      %p573 = scmp.ne.s32.totalorder %s561, %s562
      %p574 = scmp.eq.s32.totalorder %s101, 1
      %p575 = por %p573, %p574
      %p577 = scmp.ne.s32.totalorder %s562, %s576
      %p578 = scmp.eq.s32.totalorder %s101, 0
      %p579 = por %p577, %p578
      %s581 = sadd.s32 %s580, 1
      %p584 = scmp.eq.s32.totalorder %s95, 1
      %p585 = scmp.ne.s32.totalorder %s580, %s582
      %p586 = scmp.eq.s32.totalorder %s95, 0
      %p587 = por %p585, %p586
      %p588 = scmp.ne.s32.totalorder %s580, %s582
      %p589 = scmp.eq.s32.totalorder %s100, 1
      %p590 = por %p588, %p589
      %p591 = scmp.ne.s32.totalorder %s582, %s583
      %p592 = scmp.eq.s32.totalorder %s100, 0
      %p593 = por %p591, %p592
      %p594 = scmp.ne.s32.totalorder %s582, %s583
      %p595 = scmp.eq.s32.totalorder %s101, 1
      %p596 = por %p594, %p595
      %p598 = scmp.ne.s32.totalorder %s583, %s597
      %p599 = scmp.eq.s32.totalorder %s101, 0
      %p600 = por %p598, %p599
      %s602 = sadd.s32 %s601, 1
      %p605 = scmp.eq.s32.totalorder %s95, 1
      %p606 = scmp.ne.s32.totalorder %s601, %s603
      %p607 = scmp.eq.s32.totalorder %s95, 0
      %p608 = por %p606, %p607
      %p609 = scmp.ne.s32.totalorder %s601, %s603
      %p610 = scmp.eq.s32.totalorder %s100, 1
      %p611 = por %p609, %p610
      %p612 = scmp.ne.s32.totalorder %s603, %s604
      %p613 = scmp.eq.s32.totalorder %s100, 0
      %p614 = por %p612, %p613
      %p615 = scmp.ne.s32.totalorder %s603, %s604
      %p616 = scmp.eq.s32.totalorder %s101, 1
      %p617 = por %p615, %p616
      %p619 = scmp.ne.s32.totalorder %s604, %s618
      %p620 = scmp.eq.s32.totalorder %s101, 0
      %p621 = por %p619, %p620
      %s623 = sadd.s32 %s622, 1
      %p626 = scmp.eq.s32.totalorder %s95, 1
      %p627 = scmp.ne.s32.totalorder %s622, %s624
      %p628 = scmp.eq.s32.totalorder %s95, 0
      %p629 = por %p627, %p628
      %p630 = scmp.ne.s32.totalorder %s622, %s624
      %p631 = scmp.eq.s32.totalorder %s100, 1
      %p632 = por %p630, %p631
      %p633 = scmp.ne.s32.totalorder %s624, %s625
      %p634 = scmp.eq.s32.totalorder %s100, 0
      %p635 = por %p633, %p634
      %p636 = scmp.ne.s32.totalorder %s624, %s625
      %p637 = scmp.eq.s32.totalorder %s101, 1
      %p638 = por %p636, %p637
      %p640 = scmp.ne.s32.totalorder %s625, %s639
      %p641 = scmp.eq.s32.totalorder %s101, 0
      %p642 = por %p640, %p641
      %s644 = sadd.s32 %s643, 1
      %p647 = scmp.eq.s32.totalorder %s95, 1
      %p648 = scmp.ne.s32.totalorder %s643, %s645
      %p649 = scmp.eq.s32.totalorder %s95, 0
      %p650 = por %p648, %p649
      %p651 = scmp.ne.s32.totalorder %s643, %s645
      %p652 = scmp.eq.s32.totalorder %s100, 1
      %p653 = por %p651, %p652
      %p654 = scmp.ne.s32.totalorder %s645, %s646
      %p655 = scmp.eq.s32.totalorder %s100, 0
      %p656 = por %p654, %p655
      %p657 = scmp.ne.s32.totalorder %s645, %s646
      %p658 = scmp.eq.s32.totalorder %s101, 1
      %p659 = por %p657, %p658
      %p661 = scmp.ne.s32.totalorder %s646, %s660
      %p662 = scmp.eq.s32.totalorder %s101, 0
      %p663 = por %p661, %p662
      %s665 = sadd.s32 %s664, 1
      %p668 = scmp.eq.s32.totalorder %s95, 1
      %p669 = scmp.ne.s32.totalorder %s664, %s666
      %p670 = scmp.eq.s32.totalorder %s95, 0
      %p671 = por %p669, %p670
      %p672 = scmp.ne.s32.totalorder %s664, %s666
      %p673 = scmp.eq.s32.totalorder %s100, 1
      %p674 = por %p672, %p673
      %p675 = scmp.ne.s32.totalorder %s666, %s667
      %p676 = scmp.eq.s32.totalorder %s100, 0
      %p677 = por %p675, %p676
      %p678 = scmp.ne.s32.totalorder %s666, %s667
      %p679 = scmp.eq.s32.totalorder %s101, 1
      %p680 = por %p678, %p679
      %p682 = scmp.ne.s32.totalorder %s667, %s681
      %p683 = scmp.eq.s32.totalorder %s101, 0
      %p684 = por %p682, %p683
      %s686 = sadd.s32 %s685, 1
      %p689 = scmp.eq.s32.totalorder %s95, 1
      %p690 = scmp.ne.s32.totalorder %s685, %s687
      %p691 = scmp.eq.s32.totalorder %s95, 0
      %p692 = por %p690, %p691
      %p693 = scmp.ne.s32.totalorder %s685, %s687
      %p694 = scmp.eq.s32.totalorder %s100, 1
      %p695 = por %p693, %p694
      %p696 = scmp.ne.s32.totalorder %s687, %s688
      %p697 = scmp.eq.s32.totalorder %s100, 0
      %p698 = por %p696, %p697
      %p699 = scmp.ne.s32.totalorder %s687, %s688
      %p700 = scmp.eq.s32.totalorder %s101, 1
      %p701 = por %p699, %p700
      %p703 = scmp.ne.s32.totalorder %s688, %s702
      %p704 = scmp.eq.s32.totalorder %s101, 0
      %p705 = por %p703, %p704
      %s707 = sadd.s32 %s706, 1
      %p710 = scmp.eq.s32.totalorder %s95, 1
      %p711 = scmp.ne.s32.totalorder %s706, %s708
      %p712 = scmp.eq.s32.totalorder %s95, 0
      %p713 = por %p711, %p712
      %p714 = scmp.ne.s32.totalorder %s706, %s708
      %p715 = scmp.eq.s32.totalorder %s100, 1
      %p716 = por %p714, %p715
      %p717 = scmp.ne.s32.totalorder %s708, %s709
      %p718 = scmp.eq.s32.totalorder %s100, 0
      %p719 = por %p717, %p718
      %p720 = scmp.ne.s32.totalorder %s708, %s709
      %p721 = scmp.eq.s32.totalorder %s101, 1
      %p722 = por %p720, %p721
      %p724 = scmp.ne.s32.totalorder %s709, %s723
      %p725 = scmp.eq.s32.totalorder %s101, 0
      %p726 = por %p724, %p725
      %s728 = sadd.s32 %s727, 1
      %p731 = scmp.eq.s32.totalorder %s95, 1
      %p732 = scmp.ne.s32.totalorder %s727, %s729
      %p733 = scmp.eq.s32.totalorder %s95, 0
      %p734 = por %p732, %p733
      %p735 = scmp.ne.s32.totalorder %s727, %s729
      %p736 = scmp.eq.s32.totalorder %s100, 1
      %p737 = por %p735, %p736
      %p738 = scmp.ne.s32.totalorder %s729, %s730
      %p739 = scmp.eq.s32.totalorder %s100, 0
      %p740 = por %p738, %p739
      %p741 = scmp.ne.s32.totalorder %s729, %s730
      %p742 = scmp.eq.s32.totalorder %s101, 1
      %p743 = por %p741, %p742
      %p745 = scmp.ne.s32.totalorder %s730, %s744
      %p746 = scmp.eq.s32.totalorder %s101, 0
      %p747 = por %p745, %p746
      %s749 = sadd.s32 %s748, 1
      %p752 = scmp.eq.s32.totalorder %s95, 1
      %p753 = scmp.ne.s32.totalorder %s748, %s750
      %p754 = scmp.eq.s32.totalorder %s95, 0
      %p755 = por %p753, %p754
      %p756 = scmp.ne.s32.totalorder %s748, %s750
      %p757 = scmp.eq.s32.totalorder %s100, 1
      %p758 = por %p756, %p757
      %p759 = scmp.ne.s32.totalorder %s750, %s751
      %p760 = scmp.eq.s32.totalorder %s100, 0
      %p761 = por %p759, %p760
      %p762 = scmp.ne.s32.totalorder %s750, %s751
      %p763 = scmp.eq.s32.totalorder %s101, 1
      %p764 = por %p762, %p763
      %p766 = scmp.ne.s32.totalorder %s751, %s765
      %p767 = scmp.eq.s32.totalorder %s101, 0
      %p768 = por %p766, %p767
      %s770 = sadd.s32 %s769, 1
      %p773 = scmp.eq.s32.totalorder %s95, 1
      %p774 = scmp.ne.s32.totalorder %s769, %s771
      %p775 = scmp.eq.s32.totalorder %s95, 0
      %p776 = por %p774, %p775
      %p777 = scmp.ne.s32.totalorder %s769, %s771
      %p778 = scmp.eq.s32.totalorder %s100, 1
      %p779 = por %p777, %p778
      %p780 = scmp.ne.s32.totalorder %s771, %s772
      %p781 = scmp.eq.s32.totalorder %s100, 0
      %p782 = por %p780, %p781
      %p783 = scmp.ne.s32.totalorder %s771, %s772
      %p784 = scmp.eq.s32.totalorder %s101, 1
      %p785 = por %p783, %p784
      %p787 = scmp.ne.s32.totalorder %s772, %s786
      %p788 = scmp.eq.s32.totalorder %s101, 0
      %p789 = por %p787, %p788
      %s791 = sadd.s32 %s790, 1
      %p794 = scmp.eq.s32.totalorder %s95, 1
      %p795 = scmp.ne.s32.totalorder %s790, %s792
      %p796 = scmp.eq.s32.totalorder %s95, 0
      %p797 = por %p795, %p796
      %p798 = scmp.ne.s32.totalorder %s790, %s792
      %p799 = scmp.eq.s32.totalorder %s100, 1
      %p800 = por %p798, %p799
      %p801 = scmp.ne.s32.totalorder %s792, %s793
      %p802 = scmp.eq.s32.totalorder %s100, 0
      %p803 = por %p801, %p802
      %p804 = scmp.ne.s32.totalorder %s792, %s793
      %p805 = scmp.eq.s32.totalorder %s101, 1
      %p806 = por %p804, %p805
      %p808 = scmp.ne.s32.totalorder %s793, %s807
      %p809 = scmp.eq.s32.totalorder %s101, 0
      %p810 = por %p808, %p809
      %s812 = sadd.s32 %s811, 1
      %p815 = scmp.eq.s32.totalorder %s95, 1
      %p816 = scmp.ne.s32.totalorder %s811, %s813
      %p817 = scmp.eq.s32.totalorder %s95, 0
      %p818 = por %p816, %p817
      %p819 = scmp.ne.s32.totalorder %s811, %s813
      %p820 = scmp.eq.s32.totalorder %s100, 1
      %p821 = por %p819, %p820
      %p822 = scmp.ne.s32.totalorder %s813, %s814
      %p823 = scmp.eq.s32.totalorder %s100, 0
      %p824 = por %p822, %p823
      %p825 = scmp.ne.s32.totalorder %s813, %s814
      %p826 = scmp.eq.s32.totalorder %s101, 1
      %p827 = por %p825, %p826
      %p829 = scmp.ne.s32.totalorder %s814, %s828
      %p830 = scmp.eq.s32.totalorder %s101, 0
      %p831 = por %p829, %p830
      %s833 = sadd.s32 %s832, 1
      %p836 = scmp.eq.s32.totalorder %s95, 1
      %p837 = scmp.ne.s32.totalorder %s832, %s834
      %p838 = scmp.eq.s32.totalorder %s95, 0
      %p839 = por %p837, %p838
      %p840 = scmp.ne.s32.totalorder %s832, %s834
      %p841 = scmp.eq.s32.totalorder %s100, 1
      %p842 = por %p840, %p841
      %p843 = scmp.ne.s32.totalorder %s834, %s835
      %p844 = scmp.eq.s32.totalorder %s100, 0
      %p845 = por %p843, %p844
      %p846 = scmp.ne.s32.totalorder %s834, %s835
      %p847 = scmp.eq.s32.totalorder %s101, 1
      %p848 = por %p846, %p847
      %p850 = scmp.ne.s32.totalorder %s835, %s849
      %p851 = scmp.eq.s32.totalorder %s101, 0
      %p852 = por %p850, %p851
      %s854 = sadd.s32 %s853, 1
      %p857 = scmp.eq.s32.totalorder %s95, 1
      %p858 = scmp.ne.s32.totalorder %s853, %s855
      %p859 = scmp.eq.s32.totalorder %s95, 0
      %p860 = por %p858, %p859
      %p861 = scmp.ne.s32.totalorder %s853, %s855
      %p862 = scmp.eq.s32.totalorder %s100, 1
      %p863 = por %p861, %p862
      %p864 = scmp.ne.s32.totalorder %s855, %s856
      %p865 = scmp.eq.s32.totalorder %s100, 0
      %p866 = por %p864, %p865
      %p867 = scmp.ne.s32.totalorder %s855, %s856
      %p868 = scmp.eq.s32.totalorder %s101, 1
      %p869 = por %p867, %p868
      %p871 = scmp.ne.s32.totalorder %s856, %s870
      %p872 = scmp.eq.s32.totalorder %s101, 0
      %p873 = por %p871, %p872
      %s875 = sadd.s32 %s874, 1
      %p878 = scmp.eq.s32.totalorder %s95, 1
      %p879 = scmp.ne.s32.totalorder %s874, %s876
      %p880 = scmp.eq.s32.totalorder %s95, 0
      %p881 = por %p879, %p880
      %p882 = scmp.ne.s32.totalorder %s874, %s876
      %p883 = scmp.eq.s32.totalorder %s100, 1
      %p884 = por %p882, %p883
      %p885 = scmp.ne.s32.totalorder %s876, %s877
      %p886 = scmp.eq.s32.totalorder %s100, 0
      %p887 = por %p885, %p886
      %p888 = scmp.ne.s32.totalorder %s876, %s877
      %p889 = scmp.eq.s32.totalorder %s101, 1
      %p890 = por %p888, %p889
      %p892 = scmp.ne.s32.totalorder %s877, %s891
      %p893 = scmp.eq.s32.totalorder %s101, 0
      %p894 = por %p892, %p893
      %s896 = sadd.s32 %s895, 1
      %p899 = scmp.eq.s32.totalorder %s95, 1
      %p900 = scmp.ne.s32.totalorder %s895, %s897
      %p901 = scmp.eq.s32.totalorder %s95, 0
      %p902 = por %p900, %p901
      %p903 = scmp.ne.s32.totalorder %s895, %s897
      %p904 = scmp.eq.s32.totalorder %s100, 1
      %p905 = por %p903, %p904
      %p906 = scmp.ne.s32.totalorder %s897, %s898
      %p907 = scmp.eq.s32.totalorder %s100, 0
      %p908 = por %p906, %p907
      %p909 = scmp.ne.s32.totalorder %s897, %s898
      %p910 = scmp.eq.s32.totalorder %s101, 1
      %p911 = por %p909, %p910
      %p913 = scmp.ne.s32.totalorder %s898, %s912
      %p914 = scmp.eq.s32.totalorder %s101, 0
      %p915 = por %p913, %p914
      %s917 = sadd.s32 %s916, 1
      %p920 = scmp.eq.s32.totalorder %s95, 1
      %p921 = scmp.ne.s32.totalorder %s916, %s918
      %p922 = scmp.eq.s32.totalorder %s95, 0
      %p923 = por %p921, %p922
      %p924 = scmp.ne.s32.totalorder %s916, %s918
      %p925 = scmp.eq.s32.totalorder %s100, 1
      %p926 = por %p924, %p925
      %p927 = scmp.ne.s32.totalorder %s918, %s919
      %p928 = scmp.eq.s32.totalorder %s100, 0
      %p929 = por %p927, %p928
      %p930 = scmp.ne.s32.totalorder %s918, %s919
      %p931 = scmp.eq.s32.totalorder %s101, 1
      %p932 = por %p930, %p931
      %p934 = scmp.ne.s32.totalorder %s919, %s933
      %p935 = scmp.eq.s32.totalorder %s101, 0
      %p936 = por %p934, %p935
      %s938 = sadd.s32 %s937, 1
      %p941 = scmp.eq.s32.totalorder %s95, 1
      %p942 = scmp.ne.s32.totalorder %s937, %s939
      %p943 = scmp.eq.s32.totalorder %s95, 0
      %p944 = por %p942, %p943
      %p945 = scmp.ne.s32.totalorder %s937, %s939
      %p946 = scmp.eq.s32.totalorder %s100, 1
      %p947 = por %p945, %p946
      %p948 = scmp.ne.s32.totalorder %s939, %s940
      %p949 = scmp.eq.s32.totalorder %s100, 0
      %p950 = por %p948, %p949
      %p951 = scmp.ne.s32.totalorder %s939, %s940
      %p952 = scmp.eq.s32.totalorder %s101, 1
      %p953 = por %p951, %p952
      %p955 = scmp.ne.s32.totalorder %s940, %s954
      %p956 = scmp.eq.s32.totalorder %s101, 0
      %p957 = por %p955, %p956
      %s959 = sadd.s32 %s958, 1
      %p962 = scmp.eq.s32.totalorder %s95, 1
      %p963 = scmp.ne.s32.totalorder %s958, %s960
      %p964 = scmp.eq.s32.totalorder %s95, 0
      %p965 = por %p963, %p964
      %p966 = scmp.ne.s32.totalorder %s958, %s960
      %p967 = scmp.eq.s32.totalorder %s100, 1
      %p968 = por %p966, %p967
      %p969 = scmp.ne.s32.totalorder %s960, %s961
      %p970 = scmp.eq.s32.totalorder %s100, 0
      %p971 = por %p969, %p970
      %p972 = scmp.ne.s32.totalorder %s960, %s961
      %p973 = scmp.eq.s32.totalorder %s101, 1
      %p974 = por %p972, %p973
      %p976 = scmp.ne.s32.totalorder %s961, %s975
      %p977 = scmp.eq.s32.totalorder %s101, 0
      %p978 = por %p976, %p977
      %s979 = ssub.s32 %s95, %s102
      %p980 = scmp.eq.s32.totalorder %s979, 0
      %s982 = sadd.s32 %s981, 1
      %s983 = scalar_select %p980, %s981, %s982
      %p986 = pneg %p980
      %p987 = scmp.eq.s32.totalorder %s95, 1
      %p988 = por %p986, %p987
      %p989 = scmp.ne.s32.totalorder %s981, %s984
      %p990 = scmp.eq.s32.totalorder %s95, 0
      %p991 = por %p989, %p990
      %p992 = scmp.ne.s32.totalorder %s981, %s984
      %p993 = scmp.eq.s32.totalorder %s100, 1
      %p994 = por %p992, %p993
      %p995 = scmp.ne.s32.totalorder %s984, %s985
      %p996 = scmp.eq.s32.totalorder %s100, 0
      %p997 = por %p995, %p996
      %p998 = scmp.ne.s32.totalorder %s984, %s985
      %p999 = scmp.eq.s32.totalorder %s101, 1
      %p1000 = por %p998, %p999
      %p1002 = scmp.ne.s32.totalorder %s985, %s1001
      %p1003 = scmp.eq.s32.totalorder %s101, 0
      %p1004 = por %p1002, %p1003
      %p1005 = scmp.le.s32.totalorder 1, %s95
      %p1006 = scmp.lt.s32.totalorder %s95, 3
      %p1007 = pnand %p1005, %p1006
      %p1008 = pneg %p1007
      // Predicated region
      $region9: #{feature_learning_block.7} parent=5 // pred_check
        _
      $region10: #{feature_learning_block.7} parent=5 // pred_check_branch
        %1010 = sbr.rel (%p1007) target = $region12
      $region11: #{feature_learning_block.7} parent=5 // pred_region
        %s1011 = ssub.s32 %s95, 1
        // Predicated region
        $region13: #{feature_learning_block.7} parent=11 // pred_check
          %p1012 = pneg %p194
        $region14: #{feature_learning_block.7} parent=11 // pred_check_branch
          %1014 = sbr.rel (%p1012) target = $region16
        $region15: #{feature_learning_block.7} parent=11 // pred_region
          _
        $region16: #{feature_learning_block.7} parent=11 // pred_fallthru
          _
        // Predicated region
        $region17: #{feature_learning_block.7} parent=11 // pred_check
          %p1015 = pneg %p215
        $region18: #{feature_learning_block.7} parent=11 // pred_check_branch
          %1017 = sbr.rel (%p1015) target = $region20
        $region19: #{feature_learning_block.7} parent=11 // pred_region
          _
        $region20: #{feature_learning_block.7} parent=11 // pred_fallthru
          _
        // Predicated region
        $region21: #{feature_learning_block.7} parent=11 // pred_check
          %p1018 = pneg %p236
        $region22: #{feature_learning_block.7} parent=11 // pred_check_branch
          %1020 = sbr.rel (%p1018) target = $region24
        $region23: #{feature_learning_block.7} parent=11 // pred_region
          _
        $region24: #{feature_learning_block.7} parent=11 // pred_fallthru
          _
        // Predicated region
        $region25: #{feature_learning_block.7} parent=11 // pred_check
          %p1021 = pneg %p257
        $region26: #{feature_learning_block.7} parent=11 // pred_check_branch
          %1023 = sbr.rel (%p1021) target = $region28
        $region27: #{feature_learning_block.7} parent=11 // pred_region
          _
        $region28: #{feature_learning_block.7} parent=11 // pred_fallthru
          _
        // Predicated region
        $region29: #{feature_learning_block.7} parent=11 // pred_check
          %p1024 = pneg %p278
        $region30: #{feature_learning_block.7} parent=11 // pred_check_branch
          %1026 = sbr.rel (%p1024) target = $region32
        $region31: #{feature_learning_block.7} parent=11 // pred_region
          _
        $region32: #{feature_learning_block.7} parent=11 // pred_fallthru
          _
        // Predicated region
        $region33: #{feature_learning_block.7} parent=11 // pred_check
          %p1027 = pneg %p299
        $region34: #{feature_learning_block.7} parent=11 // pred_check_branch
          %1029 = sbr.rel (%p1027) target = $region36
        $region35: #{feature_learning_block.7} parent=11 // pred_region
          _
        $region36: #{feature_learning_block.7} parent=11 // pred_fallthru
          _
        // Predicated region
        $region37: #{feature_learning_block.7} parent=11 // pred_check
          %p1030 = pneg %p320
        $region38: #{feature_learning_block.7} parent=11 // pred_check_branch
          %1032 = sbr.rel (%p1030) target = $region40
        $region39: #{feature_learning_block.7} parent=11 // pred_region
          _
        $region40: #{feature_learning_block.7} parent=11 // pred_fallthru
          _
        // Predicated region
        $region41: #{feature_learning_block.7} parent=11 // pred_check
          %p1033 = pneg %p341
        $region42: #{feature_learning_block.7} parent=11 // pred_check_branch
          %1035 = sbr.rel (%p1033) target = $region44
        $region43: #{feature_learning_block.7} parent=11 // pred_region
          _
        $region44: #{feature_learning_block.7} parent=11 // pred_fallthru
          _
        // Predicated region
        $region45: #{feature_learning_block.7} parent=11 // pred_check
          %p1036 = pneg %p362
        $region46: #{feature_learning_block.7} parent=11 // pred_check_branch
          %1038 = sbr.rel (%p1036) target = $region48
        $region47: #{feature_learning_block.7} parent=11 // pred_region
          _
        $region48: #{feature_learning_block.7} parent=11 // pred_fallthru
          _
        // Predicated region
        $region49: #{feature_learning_block.7} parent=11 // pred_check
          %p1039 = pneg %p383
        $region50: #{feature_learning_block.7} parent=11 // pred_check_branch
          %1041 = sbr.rel (%p1039) target = $region52
        $region51: #{feature_learning_block.7} parent=11 // pred_region
          _
        $region52: #{feature_learning_block.7} parent=11 // pred_fallthru
          _
        // Predicated region
        $region53: #{feature_learning_block.7} parent=11 // pred_check
          %p1042 = pneg %p404
        $region54: #{feature_learning_block.7} parent=11 // pred_check_branch
          %1044 = sbr.rel (%p1042) target = $region56
        $region55: #{feature_learning_block.7} parent=11 // pred_region
          _
        $region56: #{feature_learning_block.7} parent=11 // pred_fallthru
          _
        // Predicated region
        $region57: #{feature_learning_block.7} parent=11 // pred_check
          %p1045 = pneg %p425
        $region58: #{feature_learning_block.7} parent=11 // pred_check_branch
          %1047 = sbr.rel (%p1045) target = $region60
        $region59: #{feature_learning_block.7} parent=11 // pred_region
          _
        $region60: #{feature_learning_block.7} parent=11 // pred_fallthru
          _
        // Predicated region
        $region61: #{feature_learning_block.7} parent=11 // pred_check
          %p1048 = pneg %p446
        $region62: #{feature_learning_block.7} parent=11 // pred_check_branch
          %1050 = sbr.rel (%p1048) target = $region64
        $region63: #{feature_learning_block.7} parent=11 // pred_region
          _
        $region64: #{feature_learning_block.7} parent=11 // pred_fallthru
          _
        // Predicated region
        $region65: #{feature_learning_block.7} parent=11 // pred_check
          %p1051 = pneg %p467
        $region66: #{feature_learning_block.7} parent=11 // pred_check_branch
          %1053 = sbr.rel (%p1051) target = $region68
        $region67: #{feature_learning_block.7} parent=11 // pred_region
          _
        $region68: #{feature_learning_block.7} parent=11 // pred_fallthru
          _
        // Predicated region
        $region69: #{feature_learning_block.7} parent=11 // pred_check
          %p1054 = pneg %p488
        $region70: #{feature_learning_block.7} parent=11 // pred_check_branch
          %1056 = sbr.rel (%p1054) target = $region72
        $region71: #{feature_learning_block.7} parent=11 // pred_region
          _
        $region72: #{feature_learning_block.7} parent=11 // pred_fallthru
          _
        // Predicated region
        $region73: #{feature_learning_block.7} parent=11 // pred_check
          %p1057 = pneg %p509
        $region74: #{feature_learning_block.7} parent=11 // pred_check_branch
          %1059 = sbr.rel (%p1057) target = $region76
        $region75: #{feature_learning_block.7} parent=11 // pred_region
          _
        $region76: #{feature_learning_block.7} parent=11 // pred_fallthru
          _
        // Predicated region
        $region77: #{feature_learning_block.7} parent=11 // pred_check
          %p1060 = pneg %p530
        $region78: #{feature_learning_block.7} parent=11 // pred_check_branch
          %1062 = sbr.rel (%p1060) target = $region80
        $region79: #{feature_learning_block.7} parent=11 // pred_region
          _
        $region80: #{feature_learning_block.7} parent=11 // pred_fallthru
          _
        // Predicated region
        $region81: #{feature_learning_block.7} parent=11 // pred_check
          %p1063 = pneg %p551
        $region82: #{feature_learning_block.7} parent=11 // pred_check_branch
          %1065 = sbr.rel (%p1063) target = $region84
        $region83: #{feature_learning_block.7} parent=11 // pred_region
          _
        $region84: #{feature_learning_block.7} parent=11 // pred_fallthru
          _
        // Predicated region
        $region85: #{feature_learning_block.7} parent=11 // pred_check
          %p1066 = pneg %p572
        $region86: #{feature_learning_block.7} parent=11 // pred_check_branch
          %1068 = sbr.rel (%p1066) target = $region88
        $region87: #{feature_learning_block.7} parent=11 // pred_region
          _
        $region88: #{feature_learning_block.7} parent=11 // pred_fallthru
          _
        // Predicated region
        $region89: #{feature_learning_block.7} parent=11 // pred_check
          %p1069 = pneg %p593
        $region90: #{feature_learning_block.7} parent=11 // pred_check_branch
          %1071 = sbr.rel (%p1069) target = $region92
        $region91: #{feature_learning_block.7} parent=11 // pred_region
          _
        $region92: #{feature_learning_block.7} parent=11 // pred_fallthru
          _
        // Predicated region
        $region93: #{feature_learning_block.7} parent=11 // pred_check
          %p1072 = pneg %p614
        $region94: #{feature_learning_block.7} parent=11 // pred_check_branch
          %1074 = sbr.rel (%p1072) target = $region96
        $region95: #{feature_learning_block.7} parent=11 // pred_region
          _
        $region96: #{feature_learning_block.7} parent=11 // pred_fallthru
          _
        // Predicated region
        $region97: #{feature_learning_block.7} parent=11 // pred_check
          %p1075 = pneg %p635
        $region98: #{feature_learning_block.7} parent=11 // pred_check_branch
          %1077 = sbr.rel (%p1075) target = $region100
        $region99: #{feature_learning_block.7} parent=11 // pred_region
          _
        $region100: #{feature_learning_block.7} parent=11 // pred_fallthru
          _
        // Predicated region
        $region101: #{feature_learning_block.7} parent=11 // pred_check
          %p1078 = pneg %p656
        $region102: #{feature_learning_block.7} parent=11 // pred_check_branch
          %1080 = sbr.rel (%p1078) target = $region104
        $region103: #{feature_learning_block.7} parent=11 // pred_region
          _
        $region104: #{feature_learning_block.7} parent=11 // pred_fallthru
          _
        // Predicated region
        $region105: #{feature_learning_block.7} parent=11 // pred_check
          %p1081 = pneg %p677
        $region106: #{feature_learning_block.7} parent=11 // pred_check_branch
          %1083 = sbr.rel (%p1081) target = $region108
        $region107: #{feature_learning_block.7} parent=11 // pred_region
          _
        $region108: #{feature_learning_block.7} parent=11 // pred_fallthru
          _
        // Predicated region
        $region109: #{feature_learning_block.7} parent=11 // pred_check
          %p1084 = pneg %p698
        $region110: #{feature_learning_block.7} parent=11 // pred_check_branch
          %1086 = sbr.rel (%p1084) target = $region112
        $region111: #{feature_learning_block.7} parent=11 // pred_region
          _
        $region112: #{feature_learning_block.7} parent=11 // pred_fallthru
          _
        // Predicated region
        $region113: #{feature_learning_block.7} parent=11 // pred_check
          %p1087 = pneg %p719
        $region114: #{feature_learning_block.7} parent=11 // pred_check_branch
          %1089 = sbr.rel (%p1087) target = $region116
        $region115: #{feature_learning_block.7} parent=11 // pred_region
          _
        $region116: #{feature_learning_block.7} parent=11 // pred_fallthru
          _
        // Predicated region
        $region117: #{feature_learning_block.7} parent=11 // pred_check
          %p1090 = pneg %p740
        $region118: #{feature_learning_block.7} parent=11 // pred_check_branch
          %1092 = sbr.rel (%p1090) target = $region120
        $region119: #{feature_learning_block.7} parent=11 // pred_region
          _
        $region120: #{feature_learning_block.7} parent=11 // pred_fallthru
          _
        // Predicated region
        $region121: #{feature_learning_block.7} parent=11 // pred_check
          %p1093 = pneg %p761
        $region122: #{feature_learning_block.7} parent=11 // pred_check_branch
          %1095 = sbr.rel (%p1093) target = $region124
        $region123: #{feature_learning_block.7} parent=11 // pred_region
          _
        $region124: #{feature_learning_block.7} parent=11 // pred_fallthru
          _
        // Predicated region
        $region125: #{feature_learning_block.7} parent=11 // pred_check
          %p1096 = pneg %p782
        $region126: #{feature_learning_block.7} parent=11 // pred_check_branch
          %1098 = sbr.rel (%p1096) target = $region128
        $region127: #{feature_learning_block.7} parent=11 // pred_region
          _
        $region128: #{feature_learning_block.7} parent=11 // pred_fallthru
          _
        // Predicated region
        $region129: #{feature_learning_block.7} parent=11 // pred_check
          %p1099 = pneg %p803
        $region130: #{feature_learning_block.7} parent=11 // pred_check_branch
          %1101 = sbr.rel (%p1099) target = $region132
        $region131: #{feature_learning_block.7} parent=11 // pred_region
          %1103 = vsyncadd [#allocation4], 0
          %s1104 = sshll.u32 %s65, 4
          %s1105 = int_to_ptr.hbm [resolvable:$true] %s1104
          %s1106 = sshll.u32 [#allocation3], 4
          %s1107 = int_to_ptr.vmem [resolvable:$true] %s1106
          %1112 = dma.hbm_to_vmem [thread:$0]  %s1105, 256, %s1107, [#allocation4], 128, 128, 8
        $region132: #{feature_learning_block.7} parent=11 // pred_fallthru
          _
        // Predicated region
        $region133: #{feature_learning_block.7} parent=11 // pred_check
          %p1113 = pneg %p824
        $region134: #{feature_learning_block.7} parent=11 // pred_check_branch
          %1115 = sbr.rel (%p1113) target = $region136
        $region135: #{feature_learning_block.7} parent=11 // pred_region
          %1117 = vsyncadd [#allocation7], 0
          %s1118 = sshll.u32 %s67, 4
          %s1119 = int_to_ptr.hbm [resolvable:$true] %s1118
          %s1120 = sshll.u32 [#allocation6], 4
          %s1121 = int_to_ptr.vmem [resolvable:$true] %s1120
          %1126 = dma.hbm_to_vmem [thread:$0]  %s1119, 256, %s1121, [#allocation7], 128, 128, 8
        $region136: #{feature_learning_block.7} parent=11 // pred_fallthru
          _
        // Predicated region
        $region137: #{feature_learning_block.7} parent=11 // pred_check
          %p1127 = pneg %p845
        $region138: #{feature_learning_block.7} parent=11 // pred_check_branch
          %1129 = sbr.rel (%p1127) target = $region140
        $region139: #{feature_learning_block.7} parent=11 // pred_region
          %1131 = vsyncadd [#allocation7], 0
          %s1132 = sshll.u32 %s69, 4
          %s1133 = int_to_ptr.hbm [resolvable:$true] %s1132
          %s1134 = sshll.u32 [#allocation8], 4
          %s1135 = int_to_ptr.vmem [resolvable:$true] %s1134
          %1140 = dma.hbm_to_vmem [thread:$0]  %s1133, 256, %s1135, [#allocation7], 128, 128, 8
        $region140: #{feature_learning_block.7} parent=11 // pred_fallthru
          _
        // Predicated region
        $region141: #{feature_learning_block.7} parent=11 // pred_check
          %p1141 = pneg %p866
        $region142: #{feature_learning_block.7} parent=11 // pred_check_branch
          %1143 = sbr.rel (%p1141) target = $region144
        $region143: #{feature_learning_block.7} parent=11 // pred_region
          _
        $region144: #{feature_learning_block.7} parent=11 // pred_fallthru
          _
        // Predicated region
        $region145: #{feature_learning_block.7} parent=11 // pred_check
          %p1144 = pneg %p887
        $region146: #{feature_learning_block.7} parent=11 // pred_check_branch
          %1146 = sbr.rel (%p1144) target = $region148
        $region147: #{feature_learning_block.7} parent=11 // pred_region
          _
        $region148: #{feature_learning_block.7} parent=11 // pred_fallthru
          _
        // Predicated region
        $region149: #{feature_learning_block.7} parent=11 // pred_check
          %p1147 = pneg %p908
        $region150: #{feature_learning_block.7} parent=11 // pred_check_branch
          %1149 = sbr.rel (%p1147) target = $region152
        $region151: #{feature_learning_block.7} parent=11 // pred_region
          _
        $region152: #{feature_learning_block.7} parent=11 // pred_fallthru
          _
        // Predicated region
        $region153: #{feature_learning_block.7} parent=11 // pred_check
          %p1150 = pneg %p929
        $region154: #{feature_learning_block.7} parent=11 // pred_check_branch
          %1152 = sbr.rel (%p1150) target = $region156
        $region155: #{feature_learning_block.7} parent=11 // pred_region
          %1154 = vsyncadd [#allocation10], 0
          %s1155 = sshll.u32 %s77, 4
          %s1156 = int_to_ptr.hbm [resolvable:$true] %s1155
          %s1157 = sshll.u32 [#allocation9], 4
          %s1158 = int_to_ptr.vmem [resolvable:$true] %s1157
          %1163 = dma.hbm_to_vmem [thread:$0]  %s1156, 256, %s1158, [#allocation10], 128, 128, 8
        $region156: #{feature_learning_block.7} parent=11 // pred_fallthru
          _
        // Predicated region
        $region157: #{feature_learning_block.7} parent=11 // pred_check
          %p1164 = pneg %p950
        $region158: #{feature_learning_block.7} parent=11 // pred_check_branch
          %1166 = sbr.rel (%p1164) target = $region160
        $region159: #{feature_learning_block.7} parent=11 // pred_region
          _
        $region160: #{feature_learning_block.7} parent=11 // pred_fallthru
          _
        // Predicated region
        $region161: #{feature_learning_block.7} parent=11 // pred_check
          %p1167 = pneg %p971
        $region162: #{feature_learning_block.7} parent=11 // pred_check_branch
          %1169 = sbr.rel (%p1167) target = $region164
        $region163: #{feature_learning_block.7} parent=11 // pred_region
          _
        $region164: #{feature_learning_block.7} parent=11 // pred_fallthru
          _
      $region12: #{feature_learning_block.7} parent=5 // pred_fallthru
        _
      %p1170 = scmp.lt.s32.totalorder %s95, 2
      // Predicated region
      $region165: #{feature_learning_block.7} parent=5 // pred_check
        %p1171 = pneg %p1170
      $region166: #{feature_learning_block.7} parent=5 // pred_check_branch
        %1173 = sbr.rel (%p1171) target = $region168
      $region167: #{feature_learning_block.7} parent=5 // pred_region
        // Predicated region
        $region169: #{feature_learning_block.7} parent=167 // pred_check
          %p1174 = pneg %p115
        $region170: #{feature_learning_block.7} parent=167 // pred_check_branch
          %1176 = sbr.rel (%p1174) target = $region172
        $region171: #{feature_learning_block.7} parent=167 // pred_region
          %p1177 = scmp.lt.s32.totalorder %s95, 1
          %s1178 = scalar_select %p1177, %s95, 1
          %s1179 = smul.addr %s1178, 2
          %s1180 = smul.addr %s1179, 8
          %s1181 = scalar_lea.vmem %s1, %s1180
        $region172: #{feature_learning_block.7} parent=167 // pred_fallthru
          _
        // Predicated region
        $region173: #{feature_learning_block.7} parent=167 // pred_check
          %p1182 = pneg %p141
        $region174: #{feature_learning_block.7} parent=167 // pred_check_branch
          %1184 = sbr.rel (%p1182) target = $region176
        $region175: #{feature_learning_block.7} parent=167 // pred_region
          %p1185 = scmp.lt.s32.totalorder %s95, 1
          %s1186 = scalar_select %p1185, %s95, 1
          %s1187 = smul.addr %s1186, 2
          %s1188 = smul.addr %s1187, 8
          %s1189 = scalar_lea.vmem %s3, %s1188
        $region176: #{feature_learning_block.7} parent=167 // pred_fallthru
          _
        // Predicated region
        $region177: #{feature_learning_block.7} parent=167 // pred_check
          %p1190 = pneg %p167
        $region178: #{feature_learning_block.7} parent=167 // pred_check_branch
          %1192 = sbr.rel (%p1190) target = $region180
        $region179: #{feature_learning_block.7} parent=167 // pred_region
          %p1193 = scmp.lt.s32.totalorder %s95, 1
          %s1194 = scalar_select %p1193, %s95, 1
          %s1195 = smul.addr %s1194, 4
          %s1196 = scalar_lea.vmem %s5, %s1195
        $region180: #{feature_learning_block.7} parent=167 // pred_fallthru
          _
      $region168: #{feature_learning_block.7} parent=5 // pred_fallthru
        _
      %p1197 = scmp.le.s32.totalorder 1, %s95
      %p1198 = scmp.lt.s32.totalorder %s95, 3
      %p1199 = pnand %p1197, %p1198
      %p1200 = pneg %p1199
      // Predicated region
      $region181: #{feature_learning_block.7} parent=5 // pred_check
        _
      $region182: #{feature_learning_block.7} parent=5 // pred_check_branch
        %1202 = sbr.rel (%p1199) target = $region184
      $region183: #{feature_learning_block.7} parent=5 // pred_region
        %s1203 = ssub.s32 %s95, 1
        // Predicated region
        $region185: #{feature_learning_block.7} parent=183 // pred_check
          %p1204 = pneg %p803
        $region186: #{feature_learning_block.7} parent=183 // pred_check_branch
          %1206 = sbr.rel (%p1204) target = $region188
        $region187: #{feature_learning_block.7} parent=183 // pred_region
          %1208 = dma.done [#allocation4], 256
        $region188: #{feature_learning_block.7} parent=183 // pred_fallthru
          _
        // Predicated region
        $region189: #{feature_learning_block.7} parent=183 // pred_check
          %p1209 = pneg %p824
        $region190: #{feature_learning_block.7} parent=183 // pred_check_branch
          %1211 = sbr.rel (%p1209) target = $region192
        $region191: #{feature_learning_block.7} parent=183 // pred_region
          %1213 = dma.done [#allocation7], 256
        $region192: #{feature_learning_block.7} parent=183 // pred_fallthru
          _
        // Predicated region
        $region193: #{feature_learning_block.7} parent=183 // pred_check
          %p1214 = pneg %p845
        $region194: #{feature_learning_block.7} parent=183 // pred_check_branch
          %1216 = sbr.rel (%p1214) target = $region196
        $region195: #{feature_learning_block.7} parent=183 // pred_region
          %1218 = dma.done [#allocation7], 256
        $region196: #{feature_learning_block.7} parent=183 // pred_fallthru
          _
        // Predicated region
        $region197: #{feature_learning_block.7} parent=183 // pred_check
          %p1219 = pneg %p929
        $region198: #{feature_learning_block.7} parent=183 // pred_check_branch
          %1221 = sbr.rel (%p1219) target = $region200
        $region199: #{feature_learning_block.7} parent=183 // pred_region
          %1223 = dma.done [#allocation10], 256
        $region200: #{feature_learning_block.7} parent=183 // pred_fallthru
          _
        %p1224 = scmp.lt.s32.totalorder %s100, 1
        %s1225 = scalar_select %p1224, %s100, 1
        %s1226 = smul.addr %s1225, 2
        %s1227 = smul.addr %s1226, 8
        %s1228 = scalar_lea.vmem %s1, %s1227
        %p1229 = pneg %p121
        %p1230 = pneg %p118
        %p1231 = scmp.lt.s32.totalorder %s100, 1
        %s1232 = scalar_select %p1231, %s100, 1
        %s1233 = smul.addr %s1232, 2
        %s1234 = smul.addr %s1233, 8
        %s1235 = scalar_lea.vmem %s3, %s1234
        %p1236 = pneg %p147
        %p1237 = pneg %p144
        %p1238 = scmp.lt.s32.totalorder %s100, 1
        %s1239 = scalar_select %p1238, %s100, 1
        %s1240 = smul.addr %s1239, 4
        %s1241 = scalar_lea.vmem %s5, %s1240
        %p1242 = pneg %p173
        %p1243 = pneg %p170
        %p1244 = pneg %p194
        %p1245 = pneg %p191
        %p1246 = pneg %p215
        %p1247 = pneg %p212
        %p1248 = pneg %p236
        %p1249 = pneg %p233
        %p1250 = pneg %p257
        %p1251 = pneg %p254
        %p1252 = pneg %p278
        %p1253 = pneg %p275
        %p1254 = pneg %p299
        %p1255 = pneg %p296
        %p1256 = pneg %p320
        %p1257 = pneg %p317
        %p1258 = pneg %p341
        %p1259 = pneg %p338
        %p1260 = pneg %p362
        %p1261 = pneg %p359
        %p1262 = pneg %p383
        %p1263 = pneg %p380
        %p1264 = pneg %p404
        %p1265 = pneg %p401
        %p1266 = pneg %p425
        %p1267 = pneg %p422
        %p1268 = pneg %p446
        %p1269 = pneg %p443
        %p1270 = pneg %p467
        %p1271 = pneg %p464
        %p1272 = pneg %p488
        %p1273 = pneg %p485
        %p1274 = pneg %p509
        %p1275 = pneg %p506
        %p1276 = pneg %p530
        %p1277 = pneg %p527
        %p1278 = pneg %p551
        %p1279 = pneg %p548
        %p1280 = pneg %p572
        %p1281 = pneg %p569
        %p1282 = pneg %p593
        %p1283 = pneg %p590
        %p1284 = pneg %p614
        %p1285 = pneg %p611
        %p1286 = pneg %p635
        %p1287 = pneg %p632
        %p1288 = pneg %p656
        %p1289 = pneg %p653
        %p1290 = pneg %p677
        %p1291 = pneg %p674
        %p1292 = pneg %p698
        %p1293 = pneg %p695
        %p1294 = pneg %p719
        %p1295 = pneg %p716
        %p1296 = pneg %p740
        %p1297 = pneg %p737
        %p1298 = pneg %p761
        %p1299 = pneg %p758
        %p1300 = pneg %p782
        %p1301 = pneg %p779
        %p1302 = pneg %p803
        %p1303 = pneg %p800
        %p1304 = pneg %p824
        %p1305 = pneg %p821
        %p1306 = pneg %p845
        %p1307 = pneg %p842
        %p1308 = pneg %p866
        %p1309 = pneg %p863
        %p1310 = pneg %p887
        %p1311 = pneg %p884
        %p1312 = pneg %p908
        %p1313 = pneg %p905
        %p1314 = pneg %p929
        %p1315 = pneg %p926
        %p1316 = pneg %p950
        %p1317 = pneg %p947
        %p1318 = pneg %p971
        %p1319 = pneg %p968
        %p1320 = pneg %p997
        %p1321 = pneg %p994
        %s1322 = sand.u32 %s984, 1
        %s1323 = scalar_lea.sflag [#allocation5], %s1322
        %s1324 = sand.u32 %s984, 1
        %s1325 = smul.addr %s1324, 16
        %s1326 = scalar_lea.vmem [#allocation11], %s1325
        %p1327 = scmp.lt.s32.totalorder %s100, 1
        %s1328 = scalar_select %p1327, %s100, 1
        %s1329 = smul.addr %s1328, 2
        %s1330 = smul.addr %s1329, 8
        %s1331 = scalar_lea.vmem %s1, %s1330
        %p1332 = scmp.lt.s32.totalorder %s100, 1
        %s1333 = scalar_select %p1332, %s100, 1
        %s1334 = smul.addr %s1333, 2
        %s1335 = smul.addr %s1334, 8
        %s1336 = scalar_lea.vmem %s3, %s1335
        %p1337 = scmp.lt.s32.totalorder %s100, 1
        %s1338 = scalar_select %p1337, %s100, 1
        %s1339 = smul.addr %s1338, 4
        %s1340 = scalar_lea.vmem %s5, %s1339
        %v1341 = vld [vmem:[%s1331] sm:$0xff]
        %v1342 = vld [vmem:[%s1331 + $0x8] sm:$0xff]
        %v1343 = vld [vmem:[%s1336] sm:$0xff]
        %v1344 = vld [vmem:[%s1336 + $0x8] sm:$0xff]
        %v1345 = vld [vmem:[%s1340] sm:$0xf]
        %v1346 = vld [vmem:[%s7] sm:$0xff]
        %v1347 = vld [vmem:[%s7 + $0x8] sm:$0xff]
        %v1348 = vld [vmem:[%s9] sm:$0xff]
        %v1349 = vld [vmem:[%s9 + $0x8] sm:$0xff]
        %v1350 = vld [vmem:[%s11] sm:$0xff]
        %v1351 = vld [vmem:[%s11 + $0x8] sm:$0xff]
        %vm1352 = vcmask 130048
        %v1354 = vsel %vm1352, %v1346, 0
        %v1357 = vsel %vm1352, %v1347, 0
        %1359 = vmatpush.msra.mxu0 0.0
        %1360 = vmatpush.msra.mxu0 0.0
        %1361 = vmatpush.msra.mxu0 0.0
        %1362 = vmatpush.msra.mxu0 0.0
        %1363 = vmatpush.msra.mxu0 0.0
        %1364 = vmatpush.msra.mxu0 0.0
        %1365 = vmatpush.msra.mxu0 0.0
        %1366 = vmatpush.msra.mxu0 0.0
        %1367 = vmatpush.msra.mxu0 0.0
        %1368 = vmatpush.msra.mxu0 0.0
        %1369 = vmatpush.msra.mxu0 0.0
        %1370 = vmatpush.msra.mxu0 0.0
        %1371 = vmatpush.msra.mxu0 0.0
        %1372 = vmatpush.msra.mxu0 0.0
        %1373 = vmatpush.msra.mxu0 %v1344
        %1374 = vmatpush.msra.mxu0 %v1343
        %1375 = vmatmul.f32.gmra.mxu0 %v1354
        %v1376 = vpop.f32.mrf.mxu0
        %v1377 = vadd.f32 0.0, %v1376
        %1378 = vmatmul.f32.gmra.mxu0 %v1357
        %v1379 = vpop.f32.mrf.mxu0
        %v1380 = vadd.f32 0.0, %v1379
        %1381 = vdwg.mxu0
        %v1383 = vsel %vm1352, %v1348, 0
        %v1386 = vsel %vm1352, %v1349, 0
        %1388 = vmatpush.msra.mxu0 0.0
        %1389 = vmatpush.msra.mxu0 0.0
        %1390 = vmatpush.msra.mxu0 0.0
        %1391 = vmatpush.msra.mxu0 0.0
        %1392 = vmatpush.msra.mxu0 0.0
        %1393 = vmatpush.msra.mxu0 0.0
        %1394 = vmatpush.msra.mxu0 0.0
        %1395 = vmatpush.msra.mxu0 0.0
        %1396 = vmatpush.msra.mxu0 0.0
        %1397 = vmatpush.msra.mxu0 0.0
        %1398 = vmatpush.msra.mxu0 0.0
        %1399 = vmatpush.msra.mxu0 0.0
        %1400 = vmatpush.msra.mxu0 0.0
        %1401 = vmatpush.msra.mxu0 0.0
        %1402 = vmatpush.msra.mxu0 %v1344
        %1403 = vmatpush.msra.mxu0 %v1343
        %1404 = vmatmul.f32.gmra.mxu0 %v1383
        %v1405 = vpop.f32.mrf.mxu0
        %v1406 = vadd.f32 0.0, %v1405
        %1407 = vmatmul.f32.gmra.mxu0 %v1386
        %v1408 = vpop.f32.mrf.mxu0
        %v1409 = vadd.f32 0.0, %v1408
        %1410 = vdwg.mxu0
        %v1412 = vsel %vm1352, %v1350, 0
        %v1415 = vsel %vm1352, %v1351, 0
        %1417 = vmatpush.msra.mxu0 0.0
        %1418 = vmatpush.msra.mxu0 0.0
        %1419 = vmatpush.msra.mxu0 0.0
        %1420 = vmatpush.msra.mxu0 0.0
        %1421 = vmatpush.msra.mxu0 0.0
        %1422 = vmatpush.msra.mxu0 0.0
        %1423 = vmatpush.msra.mxu0 0.0
        %1424 = vmatpush.msra.mxu0 0.0
        %1425 = vmatpush.msra.mxu0 0.0
        %1426 = vmatpush.msra.mxu0 0.0
        %1427 = vmatpush.msra.mxu0 0.0
        %1428 = vmatpush.msra.mxu0 0.0
        %1429 = vmatpush.msra.mxu0 0.0
        %1430 = vmatpush.msra.mxu0 0.0
        %1431 = vmatpush.msra.mxu0 %v1344
        %1432 = vmatpush.msra.mxu0 %v1343
        %1433 = vmatmul.f32.gmra.mxu0 %v1412
        %v1434 = vpop.f32.mrf.mxu0
        %v1435 = vadd.f32 0.0, %v1434
        %1436 = vmatmul.f32.gmra.mxu0 %v1415
        %v1437 = vpop.f32.mrf.mxu0
        %v1438 = vadd.f32 0.0, %v1437
        %1439 = vdwg.mxu0
        %vm1440 = vcmask 64512
        %v1442 = vsel %vm1440, %v1377, 0
        %v1445 = vsel %vm1440, %v1380, 0
        %v1448 = vsel %vm1440, %v1345, 0
        %1450 = vmatpush.xpose.msra.mxu0 0.0
        %1451 = vmatpush.xpose.msra.mxu0 0.0
        %1452 = vmatpush.xpose.msra.mxu0 0.0
        %1453 = vmatpush.xpose.msra.mxu0 0.0
        %1454 = vmatpush.xpose.msra.mxu0 0.0
        %1455 = vmatpush.xpose.msra.mxu0 0.0
        %1456 = vmatpush.xpose.msra.mxu0 0.0
        %1457 = vmatpush.xpose.msra.mxu0 0.0
        %1458 = vmatpush.xpose.msra.mxu0 0.0
        %1459 = vmatpush.xpose.msra.mxu0 0.0
        %1460 = vmatpush.xpose.msra.mxu0 0.0
        %1461 = vmatpush.xpose.msra.mxu0 0.0
        %1462 = vmatpush.xpose.msra.mxu0 0.0
        %1463 = vmatpush.xpose.msra.mxu0 0.0
        %1464 = vmatpush.xpose.msra.mxu0 0.0
        %1465 = vmatpush.xpose.msra.mxu0 %v1448
        %1466 = vmatmul.f32.gmra.mxu0 %v1442
        %v1467 = vpop.f32.mrf.mxu0
        %v1468 = vadd.f32 0.0, %v1467
        %1469 = vmatmul.f32.gmra.mxu0 %v1445
        %v1470 = vpop.f32.mrf.mxu0
        %v1471 = vadd.f32 0.0, %v1470
        %1472 = vdwg.mxu0
        %1473 = vxpose.xlu0.b32.start [1/16] %v1468, 128
        %1474 = vxpose.xlu0.b32.cont [2/16] %v1471, 128
        %1475 = vxpose.xlu0.b32.cont [3/16] 0.0, 128
        %1476 = vxpose.xlu0.b32.cont [4/16] 0.0, 128
        %1477 = vxpose.xlu0.b32.cont [5/16] 0.0, 128
        %1478 = vxpose.xlu0.b32.cont [6/16] 0.0, 128
        %1479 = vxpose.xlu0.b32.cont [7/16] 0.0, 128
        %1480 = vxpose.xlu0.b32.cont [8/16] 0.0, 128
        %1481 = vxpose.xlu0.b32.cont [9/16] 0.0, 128
        %1482 = vxpose.xlu0.b32.cont [10/16] 0.0, 128
        %1483 = vxpose.xlu0.b32.cont [11/16] 0.0, 128
        %1484 = vxpose.xlu0.b32.cont [12/16] 0.0, 128
        %1485 = vxpose.xlu0.b32.cont [13/16] 0.0, 128
        %1486 = vxpose.xlu0.b32.cont [14/16] 0.0, 128
        %1487 = vxpose.xlu0.b32.cont [15/16] 0.0, 128
        %1488 = vxpose.xlu0.b32.end [16/16] 0.0, 128
        %v1489 = vpop.trf.xlu0
        %v1490 = vpop.trf.xlu0
        %v1491 = vpop.trf.xlu0
        %v1492 = vpop.trf.xlu0
        %v1493 = vpop.trf.xlu0
        %v1494 = vpop.trf.xlu0
        %v1495 = vpop.trf.xlu0
        %v1496 = vpop.trf.xlu0
        %v1497 = vpop.trf.xlu0
        %v1498 = vpop.trf.xlu0
        %v1499 = vpop.trf.xlu0
        %v1500 = vpop.trf.xlu0
        %v1501 = vpop.trf.xlu0
        %v1502 = vpop.trf.xlu0
        %v1503 = vpop.trf.xlu0
        %v1504 = vpop.trf.xlu0
        %v1506 = vsel %vm1352, %v1489, 0
        %1508 = vmatpush.msra.mxu0 0.0
        %1509 = vmatpush.msra.mxu0 0.0
        %1510 = vmatpush.msra.mxu0 0.0
        %1511 = vmatpush.msra.mxu0 0.0
        %1512 = vmatpush.msra.mxu0 0.0
        %1513 = vmatpush.msra.mxu0 0.0
        %1514 = vmatpush.msra.mxu0 0.0
        %1515 = vmatpush.msra.mxu0 0.0
        %1516 = vmatpush.msra.mxu0 0.0
        %1517 = vmatpush.msra.mxu0 0.0
        %1518 = vmatpush.msra.mxu0 0.0
        %1519 = vmatpush.msra.mxu0 0.0
        %1520 = vmatpush.msra.mxu0 0.0
        %1521 = vmatpush.msra.mxu0 0.0
        %1522 = vmatpush.msra.mxu0 %v1409
        %1523 = vmatpush.msra.mxu0 %v1406
        %1524 = vmatmul.f32.gmra.mxu0 %v1506
        %v1525 = vpop.f32.mrf.mxu0
        %v1526 = vadd.f32 0.0, %v1525
        %1527 = vdwg.mxu0
        %vm1528 = vcmask 60416
        %v1529 = vsel %vm1528, %v1526, -inf
        %1530 = vmax.xlane.f32.xlu0 %v1529
        %v1531 = vpop.xlane.xlu0 %1530
        %v1532 = vsub.f32 %v1526, %v1531
        %v1533 = vmul.f32 %v1532, 1.442695
        %v1534 = vpow.pop %v1533
        %v1535 = vsel %vm1528, %v1534, 0.0
        %1536 = vadd.xlane.f32.xlu0 %v1535
        %v1537 = vpop.xlane.xlu0 %1536
        %v1538 = vrcp.pop %v1537
        %v1539 = vmul.f32 %v1534, %v1538
        %v1541 = vsel %vm1440, %v1435, 0
        %v1544 = vsel %vm1440, %v1438, 0
        %v1547 = vsel %vm1440, %v1539, 0
        %1549 = vmatpush.xpose.msra.mxu0 0.0
        %1550 = vmatpush.xpose.msra.mxu0 0.0
        %1551 = vmatpush.xpose.msra.mxu0 0.0
        %1552 = vmatpush.xpose.msra.mxu0 0.0
        %1553 = vmatpush.xpose.msra.mxu0 0.0
        %1554 = vmatpush.xpose.msra.mxu0 0.0
        %1555 = vmatpush.xpose.msra.mxu0 0.0
        %1556 = vmatpush.xpose.msra.mxu0 0.0
        %1557 = vmatpush.xpose.msra.mxu0 0.0
        %1558 = vmatpush.xpose.msra.mxu0 0.0
        %1559 = vmatpush.xpose.msra.mxu0 0.0
        %1560 = vmatpush.xpose.msra.mxu0 0.0
        %1561 = vmatpush.xpose.msra.mxu0 0.0
        %1562 = vmatpush.xpose.msra.mxu0 0.0
        %1563 = vmatpush.xpose.msra.mxu0 0.0
        %1564 = vmatpush.xpose.msra.mxu0 %v1547
        %1565 = vmatmul.f32.gmra.mxu0 %v1541
        %v1566 = vpop.f32.mrf.mxu0
        %v1567 = vadd.f32 0.0, %v1566
        %1568 = vmatmul.f32.gmra.mxu0 %v1544
        %v1569 = vpop.f32.mrf.mxu0
        %v1570 = vadd.f32 0.0, %v1569
        %1571 = vdwg.mxu0
        %v1572 = vld [vmem:[%s13] sm:$0xff]
        %v1573 = vld [vmem:[%s13 + $0x8] sm:$0xff]
        %v1574 = vld [vmem:[%s15] sm:$0xff]
        %v1575 = vld [vmem:[%s15 + $0x8] sm:$0xff]
        %v1576 = vld [vmem:[%s17] sm:$0xff]
        %v1577 = vld [vmem:[%s17 + $0x8] sm:$0xff]
        %v1578 = vld [vmem:[%s19] sm:$0xff]
        %v1579 = vld [vmem:[%s19 + $0x8] sm:$0xff]
        %v1580 = vld [vmem:[%s21] sm:$0xff]
        %v1581 = vld [vmem:[%s21 + $0x8] sm:$0xff]
        %v1582 = vld [vmem:[%s23] sm:$0xff]
        %v1583 = vld [vmem:[%s23 + $0x8] sm:$0xff]
        %v1584 = vld [vmem:[%s23 + $0x10] sm:$0xff]
        %v1585 = vld [vmem:[%s23 + $0x18] sm:$0xff]
        %v1586 = vld [vmem:[%s25] sm:$0xff]
        %v1587 = vld [vmem:[%s25 + $0x8] sm:$0xff]
        %v1588 = vld [vmem:[%s27] sm:$0xff]
        %v1589 = vld [vmem:[%s27 + $0x8] sm:$0xff]
        %v1590 = vld [vmem:[%s29] sm:$0xff]
        %v1591 = vld [vmem:[%s29 + $0x8] sm:$0xff]
        %v1593 = vsel %vm1352, %v1572, 0
        %v1596 = vsel %vm1352, %v1573, 0
        %1598 = vmatpush.msra.mxu0 0.0
        %1599 = vmatpush.msra.mxu0 0.0
        %1600 = vmatpush.msra.mxu0 0.0
        %1601 = vmatpush.msra.mxu0 0.0
        %1602 = vmatpush.msra.mxu0 0.0
        %1603 = vmatpush.msra.mxu0 0.0
        %1604 = vmatpush.msra.mxu0 0.0
        %1605 = vmatpush.msra.mxu0 0.0
        %1606 = vmatpush.msra.mxu0 0.0
        %1607 = vmatpush.msra.mxu0 0.0
        %1608 = vmatpush.msra.mxu0 0.0
        %1609 = vmatpush.msra.mxu0 0.0
        %1610 = vmatpush.msra.mxu0 0.0
        %1611 = vmatpush.msra.mxu0 0.0
        %1612 = vmatpush.msra.mxu0 %v1570
        %1613 = vmatpush.msra.mxu0 %v1567
        %1614 = vmatmul.f32.gmra.mxu0 %v1593
        %v1615 = vpop.f32.mrf.mxu0
        %v1616 = vadd.f32 0.0, %v1615
        %1617 = vmatmul.f32.gmra.mxu0 %v1596
        %v1618 = vpop.f32.mrf.mxu0
        %v1619 = vadd.f32 0.0, %v1618
        %1620 = vdwg.mxu0
        %v1622 = vsel %vm1352, %v1574, 0
        %v1625 = vsel %vm1352, %v1575, 0
        %1627 = vmatpush.msra.mxu0 0.0
        %1628 = vmatpush.msra.mxu0 0.0
        %1629 = vmatpush.msra.mxu0 0.0
        %1630 = vmatpush.msra.mxu0 0.0
        %1631 = vmatpush.msra.mxu0 0.0
        %1632 = vmatpush.msra.mxu0 0.0
        %1633 = vmatpush.msra.mxu0 0.0
        %1634 = vmatpush.msra.mxu0 0.0
        %1635 = vmatpush.msra.mxu0 0.0
        %1636 = vmatpush.msra.mxu0 0.0
        %1637 = vmatpush.msra.mxu0 0.0
        %1638 = vmatpush.msra.mxu0 0.0
        %1639 = vmatpush.msra.mxu0 0.0
        %1640 = vmatpush.msra.mxu0 0.0
        %1641 = vmatpush.msra.mxu0 %v1570
        %1642 = vmatpush.msra.mxu0 %v1567
        %1643 = vmatmul.f32.gmra.mxu0 %v1622
        %v1644 = vpop.f32.mrf.mxu0
        %v1645 = vadd.f32 0.0, %v1644
        %1646 = vmatmul.f32.gmra.mxu0 %v1625
        %v1647 = vpop.f32.mrf.mxu0
        %v1648 = vadd.f32 0.0, %v1647
        %1649 = vdwg.mxu0
        %v1651 = vsel %vm1352, %v1576, 0
        %v1654 = vsel %vm1352, %v1577, 0
        %1656 = vmatpush.msra.mxu0 0.0
        %1657 = vmatpush.msra.mxu0 0.0
        %1658 = vmatpush.msra.mxu0 0.0
        %1659 = vmatpush.msra.mxu0 0.0
        %1660 = vmatpush.msra.mxu0 0.0
        %1661 = vmatpush.msra.mxu0 0.0
        %1662 = vmatpush.msra.mxu0 0.0
        %1663 = vmatpush.msra.mxu0 0.0
        %1664 = vmatpush.msra.mxu0 0.0
        %1665 = vmatpush.msra.mxu0 0.0
        %1666 = vmatpush.msra.mxu0 0.0
        %1667 = vmatpush.msra.mxu0 0.0
        %1668 = vmatpush.msra.mxu0 0.0
        %1669 = vmatpush.msra.mxu0 0.0
        %1670 = vmatpush.msra.mxu0 %v1570
        %1671 = vmatpush.msra.mxu0 %v1567
        %1672 = vmatmul.f32.gmra.mxu0 %v1651
        %v1673 = vpop.f32.mrf.mxu0
        %v1674 = vadd.f32 0.0, %v1673
        %1675 = vmatmul.f32.gmra.mxu0 %v1654
        %v1676 = vpop.f32.mrf.mxu0
        %v1677 = vadd.f32 0.0, %v1676
        %1678 = vdwg.mxu0
        %1679 = vxpose.xlu0.b32.start [1/16] %v1616, 128
        %1680 = vxpose.xlu0.b32.cont [2/16] 0.0, 128
        %1681 = vxpose.xlu0.b32.cont [3/16] 0.0, 128
        %1682 = vxpose.xlu0.b32.cont [4/16] 0.0, 128
        %1683 = vxpose.xlu0.b32.cont [5/16] 0.0, 128
        %1684 = vxpose.xlu0.b32.cont [6/16] 0.0, 128
        %1685 = vxpose.xlu0.b32.cont [7/16] 0.0, 128
        %1686 = vxpose.xlu0.b32.cont [8/16] 0.0, 128
        %1687 = vxpose.xlu0.b32.cont [9/16] 0.0, 128
        %1688 = vxpose.xlu0.b32.cont [10/16] 0.0, 128
        %1689 = vxpose.xlu0.b32.cont [11/16] 0.0, 128
        %1690 = vxpose.xlu0.b32.cont [12/16] 0.0, 128
        %1691 = vxpose.xlu0.b32.cont [13/16] 0.0, 128
        %1692 = vxpose.xlu0.b32.cont [14/16] 0.0, 128
        %1693 = vxpose.xlu0.b32.cont [15/16] 0.0, 128
        %1694 = vxpose.xlu0.b32.end [16/16] 0.0, 128
        %v1695 = vpop.trf.xlu0
        %v1696 = vpop.trf.xlu0
        %v1697 = vpop.trf.xlu0
        %v1698 = vpop.trf.xlu0
        %v1699 = vpop.trf.xlu0
        %v1700 = vpop.trf.xlu0
        %v1701 = vpop.trf.xlu0
        %v1702 = vpop.trf.xlu0
        %v1703 = vpop.trf.xlu0
        %v1704 = vpop.trf.xlu0
        %v1705 = vpop.trf.xlu0
        %v1706 = vpop.trf.xlu0
        %v1707 = vpop.trf.xlu0
        %v1708 = vpop.trf.xlu0
        %v1709 = vpop.trf.xlu0
        %v1710 = vpop.trf.xlu0
        %v1712 = vsel %vm1440, %v1695, 0
        %1714 = vmatpush.msra.mxu0 0.0
        %1715 = vmatpush.msra.mxu0 0.0
        %1716 = vmatpush.msra.mxu0 0.0
        %1717 = vmatpush.msra.mxu0 0.0
        %1718 = vmatpush.msra.mxu0 0.0
        %1719 = vmatpush.msra.mxu0 0.0
        %1720 = vmatpush.msra.mxu0 0.0
        %1721 = vmatpush.msra.mxu0 0.0
        %1722 = vmatpush.msra.mxu0 0.0
        %1723 = vmatpush.msra.mxu0 0.0
        %1724 = vmatpush.msra.mxu0 0.0
        %1725 = vmatpush.msra.mxu0 0.0
        %1726 = vmatpush.msra.mxu0 0.0
        %1727 = vmatpush.msra.mxu0 0.0
        %1728 = vmatpush.msra.mxu0 0.0
        %1729 = vmatpush.msra.mxu0 %v1645
        %1730 = vmatmul.f32.gmra.mxu0 %v1712
        %v1731 = vpop.f32.mrf.mxu0
        %v1732 = vadd.f32 0.0, %v1731
        %1733 = vdwg.mxu0
        %vm1734 = vcmask 27648
        %v1735 = vsel %vm1734, %v1732, -inf
        %1736 = vmax.xlane.f32.xlu0 %v1735
        %v1737 = vpop.xlane.xlu0 %1736
        %v1738 = vsub.f32 %v1732, %v1737
        %v1739 = vmul.f32 %v1738, 1.442695
        %v1740 = vpow.pop %v1739
        %v1741 = vsel %vm1734, %v1740, 0.0
        %1742 = vadd.xlane.f32.xlu0 %v1741
        %v1743 = vpop.xlane.xlu0 %1742
        %v1744 = vrcp.pop %v1743
        %v1745 = vmul.f32 %v1740, %v1744
        %vm1746 = vcmask 31744
        %v1748 = vsel %vm1746, %v1674, 0
        %v1751 = vsel %vm1746, %v1745, 0
        %1753 = vmatpush.xpose.msra.mxu0 0.0
        %1754 = vmatpush.xpose.msra.mxu0 0.0
        %1755 = vmatpush.xpose.msra.mxu0 0.0
        %1756 = vmatpush.xpose.msra.mxu0 0.0
        %1757 = vmatpush.xpose.msra.mxu0 0.0
        %1758 = vmatpush.xpose.msra.mxu0 0.0
        %1759 = vmatpush.xpose.msra.mxu0 0.0
        %1760 = vmatpush.xpose.msra.mxu0 0.0
        %1761 = vmatpush.xpose.msra.mxu0 0.0
        %1762 = vmatpush.xpose.msra.mxu0 0.0
        %1763 = vmatpush.xpose.msra.mxu0 0.0
        %1764 = vmatpush.xpose.msra.mxu0 0.0
        %1765 = vmatpush.xpose.msra.mxu0 0.0
        %1766 = vmatpush.xpose.msra.mxu0 0.0
        %1767 = vmatpush.xpose.msra.mxu0 0.0
        %1768 = vmatpush.xpose.msra.mxu0 %v1751
        %1769 = vmatmul.f32.gmra.mxu0 %v1748
        %v1770 = vpop.f32.mrf.mxu0
        %v1771 = vadd.f32 0.0, %v1770
        %1772 = vdwg.mxu0
        %1773 = vst.msk [vmem:[#allocation2] sm:$0xff] %vm1746, %v1771
        %1774 = vxpose.xlu0.b32.start [1/16] %v1619, 128
        %1775 = vxpose.xlu0.b32.cont [2/16] 0.0, 128
        %1776 = vxpose.xlu0.b32.cont [3/16] 0.0, 128
        %1777 = vxpose.xlu0.b32.cont [4/16] 0.0, 128
        %1778 = vxpose.xlu0.b32.cont [5/16] 0.0, 128
        %1779 = vxpose.xlu0.b32.cont [6/16] 0.0, 128
        %1780 = vxpose.xlu0.b32.cont [7/16] 0.0, 128
        %1781 = vxpose.xlu0.b32.cont [8/16] 0.0, 128
        %1782 = vxpose.xlu0.b32.cont [9/16] 0.0, 128
        %1783 = vxpose.xlu0.b32.cont [10/16] 0.0, 128
        %1784 = vxpose.xlu0.b32.cont [11/16] 0.0, 128
        %1785 = vxpose.xlu0.b32.cont [12/16] 0.0, 128
        %1786 = vxpose.xlu0.b32.cont [13/16] 0.0, 128
        %1787 = vxpose.xlu0.b32.cont [14/16] 0.0, 128
        %1788 = vxpose.xlu0.b32.cont [15/16] 0.0, 128
        %1789 = vxpose.xlu0.b32.end [16/16] 0.0, 128
        %v1790 = vpop.trf.xlu0
        %v1791 = vpop.trf.xlu0
        %v1792 = vpop.trf.xlu0
        %v1793 = vpop.trf.xlu0
        %v1794 = vpop.trf.xlu0
        %v1795 = vpop.trf.xlu0
        %v1796 = vpop.trf.xlu0
        %v1797 = vpop.trf.xlu0
        %v1798 = vpop.trf.xlu0
        %v1799 = vpop.trf.xlu0
        %v1800 = vpop.trf.xlu0
        %v1801 = vpop.trf.xlu0
        %v1802 = vpop.trf.xlu0
        %v1803 = vpop.trf.xlu0
        %v1804 = vpop.trf.xlu0
        %v1805 = vpop.trf.xlu0
        %v1807 = vsel %vm1440, %v1790, 0
        %1809 = vmatpush.msra.mxu0 0.0
        %1810 = vmatpush.msra.mxu0 0.0
        %1811 = vmatpush.msra.mxu0 0.0
        %1812 = vmatpush.msra.mxu0 0.0
        %1813 = vmatpush.msra.mxu0 0.0
        %1814 = vmatpush.msra.mxu0 0.0
        %1815 = vmatpush.msra.mxu0 0.0
        %1816 = vmatpush.msra.mxu0 0.0
        %1817 = vmatpush.msra.mxu0 0.0
        %1818 = vmatpush.msra.mxu0 0.0
        %1819 = vmatpush.msra.mxu0 0.0
        %1820 = vmatpush.msra.mxu0 0.0
        %1821 = vmatpush.msra.mxu0 0.0
        %1822 = vmatpush.msra.mxu0 0.0
        %1823 = vmatpush.msra.mxu0 0.0
        %1824 = vmatpush.msra.mxu0 %v1648
        %1825 = vmatmul.f32.gmra.mxu0 %v1807
        %v1826 = vpop.f32.mrf.mxu0
        %v1827 = vadd.f32 0.0, %v1826
        %1828 = vdwg.mxu0
        %v1829 = vsel %vm1734, %v1827, -inf
        %1830 = vmax.xlane.f32.xlu0 %v1829
        %v1831 = vpop.xlane.xlu0 %1830
        %v1832 = vsub.f32 %v1827, %v1831
        %v1833 = vmul.f32 %v1832, 1.442695
        %v1834 = vpow.pop %v1833
        %v1835 = vsel %vm1734, %v1834, 0.0
        %1836 = vadd.xlane.f32.xlu0 %v1835
        %v1837 = vpop.xlane.xlu0 %1836
        %v1838 = vrcp.pop %v1837
        %v1839 = vmul.f32 %v1834, %v1838
        %v1841 = vsel %vm1746, %v1677, 0
        %v1844 = vsel %vm1746, %v1839, 0
        %1846 = vmatpush.xpose.msra.mxu0 0.0
        %1847 = vmatpush.xpose.msra.mxu0 0.0
        %1848 = vmatpush.xpose.msra.mxu0 0.0
        %1849 = vmatpush.xpose.msra.mxu0 0.0
        %1850 = vmatpush.xpose.msra.mxu0 0.0
        %1851 = vmatpush.xpose.msra.mxu0 0.0
        %1852 = vmatpush.xpose.msra.mxu0 0.0
        %1853 = vmatpush.xpose.msra.mxu0 0.0
        %1854 = vmatpush.xpose.msra.mxu0 0.0
        %1855 = vmatpush.xpose.msra.mxu0 0.0
        %1856 = vmatpush.xpose.msra.mxu0 0.0
        %1857 = vmatpush.xpose.msra.mxu0 0.0
        %1858 = vmatpush.xpose.msra.mxu0 0.0
        %1859 = vmatpush.xpose.msra.mxu0 0.0
        %1860 = vmatpush.xpose.msra.mxu0 0.0
        %1861 = vmatpush.xpose.msra.mxu0 %v1844
        %1862 = vmatmul.f32.gmra.mxu0 %v1841
        %v1863 = vpop.f32.mrf.mxu0
        %v1864 = vadd.f32 0.0, %v1863
        %1865 = vdwg.mxu0
        %1866 = vst.msk [vmem:[#allocation2 + $0x8] sm:$0xff] %vm1746, %v1864
        %v1867 = vld [vmem:[#allocation2] sm:$0xff]
        %v1868 = vld [vmem:[#allocation2 + $0x8] sm:$0xff]
        %v1869 = vadd.f32 %v1567, %v1867
        %v1870 = vadd.f32 %v1570, %v1868
        %1872 = vset.pattern.permute.xlu0 0
        %1873 = vperm.xlu0 %1872, %v1578
        %v1874 = vpop.permute.xlu0 %1873
        %1877 = vset.pattern.permute.xlu0 0
        %1878 = vperm.xlu0 %1877, %v1579
        %v1879 = vpop.permute.xlu0 %1878
        %v1881 = vmul.f32 %v1869, %v1874
        %v1882 = vmul.f32 %v1870, %v1879
        %1884 = vset.pattern.permute.xlu0 0
        %1885 = vperm.xlu0 %1884, %v1580
        %v1886 = vpop.permute.xlu0 %1885
        %1889 = vset.pattern.permute.xlu0 0
        %1890 = vperm.xlu0 %1889, %v1581
        %v1891 = vpop.permute.xlu0 %1890
        %v1893 = vadd.f32 %v1881, %v1886
        %v1894 = vadd.f32 %v1882, %v1891
        %v1896 = vsel %vm1352, %v1582, 0
        %v1899 = vsel %vm1352, %v1583, 0
        %v1902 = vsel %vm1352, %v1584, 0
        %v1905 = vsel %vm1352, %v1585, 0
        %1907 = vmatpush.msra.mxu0 0.0
        %1908 = vmatpush.msra.mxu0 0.0
        %1909 = vmatpush.msra.mxu0 0.0
        %1910 = vmatpush.msra.mxu0 0.0
        %1911 = vmatpush.msra.mxu0 0.0
        %1912 = vmatpush.msra.mxu0 0.0
        %1913 = vmatpush.msra.mxu0 0.0
        %1914 = vmatpush.msra.mxu0 0.0
        %1915 = vmatpush.msra.mxu0 0.0
        %1916 = vmatpush.msra.mxu0 0.0
        %1917 = vmatpush.msra.mxu0 0.0
        %1918 = vmatpush.msra.mxu0 0.0
        %1919 = vmatpush.msra.mxu0 0.0
        %1920 = vmatpush.msra.mxu0 0.0
        %1921 = vmatpush.msra.mxu0 %v1894
        %1922 = vmatpush.msra.mxu0 %v1893
        %1923 = vmatmul.f32.gmra.mxu0 %v1896
        %v1924 = vpop.f32.mrf.mxu0
        %v1925 = vadd.f32 0.0, %v1924
        %1926 = vmatmul.f32.gmra.mxu0 %v1899
        %v1927 = vpop.f32.mrf.mxu0
        %v1928 = vadd.f32 0.0, %v1927
        %1929 = vmatmul.f32.gmra.mxu0 %v1902
        %v1930 = vpop.f32.mrf.mxu0
        %v1931 = vadd.f32 0.0, %v1930
        %1932 = vmatmul.f32.gmra.mxu0 %v1905
        %v1933 = vpop.f32.mrf.mxu0
        %v1934 = vadd.f32 0.0, %v1933
        %1935 = vdwg.mxu0
        %vm1936 = vcmp.ge.f32.partialorder %v1925, 0.0
        %vm1937 = vcmp.ge.f32.partialorder %v1928, 0.0
        %vm1938 = vcmp.ge.f32.partialorder %v1931, 0.0
        %vm1939 = vcmp.ge.f32.partialorder %v1934, 0.0
        %v1940 = vmul.f32 %v1925, 0.2
        %v1941 = vmul.f32 %v1928, 0.2
        %v1942 = vmul.f32 %v1931, 0.2
        %v1943 = vmul.f32 %v1934, 0.2
        %v1944 = vsel %vm1936, %v1925, %v1940
        %v1945 = vsel %vm1937, %v1928, %v1941
        %v1946 = vsel %vm1938, %v1931, %v1942
        %v1947 = vsel %vm1939, %v1934, %v1943
        %vm1948 = vcmask 261120
        %v1950 = vsel %vm1948, %v1586, 0
        %v1953 = vsel %vm1948, %v1587, 0
        %1955 = vmatpush.msra.mxu0 0.0
        %1956 = vmatpush.msra.mxu0 0.0
        %1957 = vmatpush.msra.mxu0 0.0
        %1958 = vmatpush.msra.mxu0 0.0
        %1959 = vmatpush.msra.mxu0 0.0
        %1960 = vmatpush.msra.mxu0 0.0
        %1961 = vmatpush.msra.mxu0 0.0
        %1962 = vmatpush.msra.mxu0 0.0
        %1963 = vmatpush.msra.mxu0 0.0
        %1964 = vmatpush.msra.mxu0 0.0
        %1965 = vmatpush.msra.mxu0 0.0
        %1966 = vmatpush.msra.mxu0 0.0
        %1967 = vmatpush.msra.mxu0 %v1947
        %1968 = vmatpush.msra.mxu0 %v1946
        %1969 = vmatpush.msra.mxu0 %v1945
        %1970 = vmatpush.msra.mxu0 %v1944
        %1971 = vmatmul.f32.gmra.mxu0 %v1950
        %v1972 = vpop.f32.mrf.mxu0
        %v1973 = vadd.f32 0.0, %v1972
        %1974 = vmatmul.f32.gmra.mxu0 %v1953
        %v1975 = vpop.f32.mrf.mxu0
        %v1976 = vadd.f32 0.0, %v1975
        %1977 = vdwg.mxu0
        %v1978 = vadd.f32 %v1893, %v1973
        %v1979 = vadd.f32 %v1894, %v1976
        %1981 = vset.pattern.permute.xlu0 0
        %1982 = vperm.xlu0 %1981, %v1588
        %v1983 = vpop.permute.xlu0 %1982
        %1986 = vset.pattern.permute.xlu0 0
        %1987 = vperm.xlu0 %1986, %v1589
        %v1988 = vpop.permute.xlu0 %1987
        %v1990 = vmul.f32 %v1978, %v1983
        %v1991 = vmul.f32 %v1979, %v1988
        %1993 = vset.pattern.permute.xlu0 0
        %1994 = vperm.xlu0 %1993, %v1590
        %v1995 = vpop.permute.xlu0 %1994
        %1998 = vset.pattern.permute.xlu0 0
        %1999 = vperm.xlu0 %1998, %v1591
        %v2000 = vpop.permute.xlu0 %1999
        %v2002 = vadd.f32 %v1990, %v1995
        %v2003 = vadd.f32 %v1991, %v2000
        %v2004 = vld [vmem:[%s31] sm:$0xff]
        %v2005 = vld [vmem:[%s31 + $0x8] sm:$0xff]
        %v2006 = vld [vmem:[%s33] sm:$0xff]
        %v2007 = vld [vmem:[%s33 + $0x8] sm:$0xff]
        %v2008 = vld [vmem:[%s35] sm:$0xff]
        %v2009 = vld [vmem:[%s35 + $0x8] sm:$0xff]
        %v2010 = vld [vmem:[%s37] sm:$0xff]
        %v2011 = vld [vmem:[%s37 + $0x8] sm:$0xff]
        %v2013 = vsel %vm1352, %v2004, 0
        %v2016 = vsel %vm1352, %v2005, 0
        %2018 = vmatpush.msra.mxu0 0.0
        %2019 = vmatpush.msra.mxu0 0.0
        %2020 = vmatpush.msra.mxu0 0.0
        %2021 = vmatpush.msra.mxu0 0.0
        %2022 = vmatpush.msra.mxu0 0.0
        %2023 = vmatpush.msra.mxu0 0.0
        %2024 = vmatpush.msra.mxu0 0.0
        %2025 = vmatpush.msra.mxu0 0.0
        %2026 = vmatpush.msra.mxu0 0.0
        %2027 = vmatpush.msra.mxu0 0.0
        %2028 = vmatpush.msra.mxu0 0.0
        %2029 = vmatpush.msra.mxu0 0.0
        %2030 = vmatpush.msra.mxu0 0.0
        %2031 = vmatpush.msra.mxu0 0.0
        %2032 = vmatpush.msra.mxu0 %v1344
        %2033 = vmatpush.msra.mxu0 %v1343
        %2034 = vmatmul.f32.gmra.mxu0 %v2013
        %v2035 = vpop.f32.mrf.mxu0
        %v2036 = vadd.f32 0.0, %v2035
        %2037 = vmatmul.f32.gmra.mxu0 %v2016
        %v2038 = vpop.f32.mrf.mxu0
        %v2039 = vadd.f32 0.0, %v2038
        %2040 = vdwg.mxu0
        %v2042 = vsel %vm1352, %v2006, 0
        %v2045 = vsel %vm1352, %v2007, 0
        %2047 = vmatpush.msra.mxu0 0.0
        %2048 = vmatpush.msra.mxu0 0.0
        %2049 = vmatpush.msra.mxu0 0.0
        %2050 = vmatpush.msra.mxu0 0.0
        %2051 = vmatpush.msra.mxu0 0.0
        %2052 = vmatpush.msra.mxu0 0.0
        %2053 = vmatpush.msra.mxu0 0.0
        %2054 = vmatpush.msra.mxu0 0.0
        %2055 = vmatpush.msra.mxu0 0.0
        %2056 = vmatpush.msra.mxu0 0.0
        %2057 = vmatpush.msra.mxu0 0.0
        %2058 = vmatpush.msra.mxu0 0.0
        %2059 = vmatpush.msra.mxu0 0.0
        %2060 = vmatpush.msra.mxu0 0.0
        %2061 = vmatpush.msra.mxu0 %v2003
        %2062 = vmatpush.msra.mxu0 %v2002
        %2063 = vmatmul.f32.gmra.mxu0 %v2042
        %v2064 = vpop.f32.mrf.mxu0
        %v2065 = vadd.f32 0.0, %v2064
        %2066 = vmatmul.f32.gmra.mxu0 %v2045
        %v2067 = vpop.f32.mrf.mxu0
        %v2068 = vadd.f32 0.0, %v2067
        %2069 = vdwg.mxu0
        %v2071 = vsel %vm1352, %v2008, 0
        %v2074 = vsel %vm1352, %v2009, 0
        %2076 = vmatpush.msra.mxu0 0.0
        %2077 = vmatpush.msra.mxu0 0.0
        %2078 = vmatpush.msra.mxu0 0.0
        %2079 = vmatpush.msra.mxu0 0.0
        %2080 = vmatpush.msra.mxu0 0.0
        %2081 = vmatpush.msra.mxu0 0.0
        %2082 = vmatpush.msra.mxu0 0.0
        %2083 = vmatpush.msra.mxu0 0.0
        %2084 = vmatpush.msra.mxu0 0.0
        %2085 = vmatpush.msra.mxu0 0.0
        %2086 = vmatpush.msra.mxu0 0.0
        %2087 = vmatpush.msra.mxu0 0.0
        %2088 = vmatpush.msra.mxu0 0.0
        %2089 = vmatpush.msra.mxu0 0.0
        %2090 = vmatpush.msra.mxu0 %v2003
        %2091 = vmatpush.msra.mxu0 %v2002
        %2092 = vmatmul.f32.gmra.mxu0 %v2071
        %v2093 = vpop.f32.mrf.mxu0
        %v2094 = vadd.f32 0.0, %v2093
        %2095 = vmatmul.f32.gmra.mxu0 %v2074
        %v2096 = vpop.f32.mrf.mxu0
        %v2097 = vadd.f32 0.0, %v2096
        %2098 = vdwg.mxu0
        %2099 = vxpose.xlu0.b32.start [1/16] %v2036, 128
        %2100 = vxpose.xlu0.b32.cont [2/16] %v2039, 128
        %2101 = vxpose.xlu0.b32.cont [3/16] 0.0, 128
        %2102 = vxpose.xlu0.b32.cont [4/16] 0.0, 128
        %2103 = vxpose.xlu0.b32.cont [5/16] 0.0, 128
        %2104 = vxpose.xlu0.b32.cont [6/16] 0.0, 128
        %2105 = vxpose.xlu0.b32.cont [7/16] 0.0, 128
        %2106 = vxpose.xlu0.b32.cont [8/16] 0.0, 128
        %2107 = vxpose.xlu0.b32.cont [9/16] 0.0, 128
        %2108 = vxpose.xlu0.b32.cont [10/16] 0.0, 128
        %2109 = vxpose.xlu0.b32.cont [11/16] 0.0, 128
        %2110 = vxpose.xlu0.b32.cont [12/16] 0.0, 128
        %2111 = vxpose.xlu0.b32.cont [13/16] 0.0, 128
        %2112 = vxpose.xlu0.b32.cont [14/16] 0.0, 128
        %2113 = vxpose.xlu0.b32.cont [15/16] 0.0, 128
        %2114 = vxpose.xlu0.b32.end [16/16] 0.0, 128
        %v2115 = vpop.trf.xlu0
        %v2116 = vpop.trf.xlu0
        %v2117 = vpop.trf.xlu0
        %v2118 = vpop.trf.xlu0
        %v2119 = vpop.trf.xlu0
        %v2120 = vpop.trf.xlu0
        %v2121 = vpop.trf.xlu0
        %v2122 = vpop.trf.xlu0
        %v2123 = vpop.trf.xlu0
        %v2124 = vpop.trf.xlu0
        %v2125 = vpop.trf.xlu0
        %v2126 = vpop.trf.xlu0
        %v2127 = vpop.trf.xlu0
        %v2128 = vpop.trf.xlu0
        %v2129 = vpop.trf.xlu0
        %v2130 = vpop.trf.xlu0
        %v2132 = vsel %vm1352, %v2115, 0
        %2134 = vmatpush.msra.mxu0 0.0
        %2135 = vmatpush.msra.mxu0 0.0
        %2136 = vmatpush.msra.mxu0 0.0
        %2137 = vmatpush.msra.mxu0 0.0
        %2138 = vmatpush.msra.mxu0 0.0
        %2139 = vmatpush.msra.mxu0 0.0
        %2140 = vmatpush.msra.mxu0 0.0
        %2141 = vmatpush.msra.mxu0 0.0
        %2142 = vmatpush.msra.mxu0 0.0
        %2143 = vmatpush.msra.mxu0 0.0
        %2144 = vmatpush.msra.mxu0 0.0
        %2145 = vmatpush.msra.mxu0 0.0
        %2146 = vmatpush.msra.mxu0 0.0
        %2147 = vmatpush.msra.mxu0 0.0
        %2148 = vmatpush.msra.mxu0 %v2068
        %2149 = vmatpush.msra.mxu0 %v2065
        %2150 = vmatmul.f32.gmra.mxu0 %v2132
        %v2151 = vpop.f32.mrf.mxu0
        %v2152 = vadd.f32 0.0, %v2151
        %2153 = vdwg.mxu0
        %v2154 = vsel %vm1746, %v2152, -inf
        %2155 = vmax.xlane.f32.xlu0 %v2154
        %v2156 = vpop.xlane.xlu0 %2155
        %v2157 = vsub.f32 %v2152, %v2156
        %v2158 = vmul.f32 %v2157, 1.442695
        %v2159 = vpow.pop %v2158
        %v2160 = vsel %vm1746, %v2159, 0.0
        %2161 = vadd.xlane.f32.xlu0 %v2160
        %v2162 = vpop.xlane.xlu0 %2161
        %v2163 = vrcp.pop %v2162
        %v2164 = vmul.f32 %v2159, %v2163
        %v2166 = vsel %vm1746, %v2094, 0
        %v2169 = vsel %vm1746, %v2097, 0
        %v2172 = vsel %vm1746, %v2164, 0
        %2174 = vmatpush.xpose.msra.mxu0 0.0
        %2175 = vmatpush.xpose.msra.mxu0 0.0
        %2176 = vmatpush.xpose.msra.mxu0 0.0
        %2177 = vmatpush.xpose.msra.mxu0 0.0
        %2178 = vmatpush.xpose.msra.mxu0 0.0
        %2179 = vmatpush.xpose.msra.mxu0 0.0
        %2180 = vmatpush.xpose.msra.mxu0 0.0
        %2181 = vmatpush.xpose.msra.mxu0 0.0
        %2182 = vmatpush.xpose.msra.mxu0 0.0
        %2183 = vmatpush.xpose.msra.mxu0 0.0
        %2184 = vmatpush.xpose.msra.mxu0 0.0
        %2185 = vmatpush.xpose.msra.mxu0 0.0
        %2186 = vmatpush.xpose.msra.mxu0 0.0
        %2187 = vmatpush.xpose.msra.mxu0 0.0
        %2188 = vmatpush.xpose.msra.mxu0 0.0
        %2189 = vmatpush.xpose.msra.mxu0 %v2172
        %2190 = vmatmul.f32.gmra.mxu0 %v2166
        %v2191 = vpop.f32.mrf.mxu0
        %v2192 = vadd.f32 0.0, %v2191
        %2193 = vmatmul.f32.gmra.mxu0 %v2169
        %v2194 = vpop.f32.mrf.mxu0
        %v2195 = vadd.f32 0.0, %v2194
        %2196 = vdwg.mxu0
        %v2198 = vsel %vm1352, %v2010, 0
        %v2201 = vsel %vm1352, %v2011, 0
        %2203 = vmatpush.msra.mxu0 0.0
        %2204 = vmatpush.msra.mxu0 0.0
        %2205 = vmatpush.msra.mxu0 0.0
        %2206 = vmatpush.msra.mxu0 0.0
        %2207 = vmatpush.msra.mxu0 0.0
        %2208 = vmatpush.msra.mxu0 0.0
        %2209 = vmatpush.msra.mxu0 0.0
        %2210 = vmatpush.msra.mxu0 0.0
        %2211 = vmatpush.msra.mxu0 0.0
        %2212 = vmatpush.msra.mxu0 0.0
        %2213 = vmatpush.msra.mxu0 0.0
        %2214 = vmatpush.msra.mxu0 0.0
        %2215 = vmatpush.msra.mxu0 0.0
        %2216 = vmatpush.msra.mxu0 0.0
        %2217 = vmatpush.msra.mxu0 %v1344
        %2218 = vmatpush.msra.mxu0 %v1343
        %2219 = vmatmul.f32.gmra.mxu0 %v2198
        %v2220 = vpop.f32.mrf.mxu0
        %v2221 = vadd.f32 %v2192, %v2220
        %2222 = vmatmul.f32.gmra.mxu0 %v2201
        %v2223 = vpop.f32.mrf.mxu0
        %v2224 = vadd.f32 %v2195, %v2223
        %2225 = vdwg.mxu0
        %v2226 = vld [vmem:[%s39] sm:$0xff]
        %v2227 = vld [vmem:[%s39 + $0x8] sm:$0xff]
        %v2228 = vld [vmem:[%s41] sm:$0xff]
        %v2229 = vld [vmem:[%s41 + $0x8] sm:$0xff]
        %v2230 = vld [vmem:[%s43] sm:$0xff]
        %v2231 = vld [vmem:[%s43 + $0x8] sm:$0xff]
        %v2232 = vld [vmem:[%s45] sm:$0xff]
        %v2233 = vld [vmem:[%s45 + $0x8] sm:$0xff]
        %v2234 = vld [vmem:[%s47] sm:$0xff]
        %v2235 = vld [vmem:[%s47 + $0x8] sm:$0xff]
        %v2236 = vld [vmem:[%s49] sm:$0xff]
        %v2237 = vld [vmem:[%s49 + $0x8] sm:$0xff]
        %v2238 = vld [vmem:[%s49 + $0x10] sm:$0xff]
        %v2239 = vld [vmem:[%s49 + $0x18] sm:$0xff]
        %v2240 = vld [vmem:[%s51] sm:$0xff]
        %v2241 = vld [vmem:[%s51 + $0x8] sm:$0xff]
        %v2242 = vld [vmem:[%s53] sm:$0xff]
        %v2243 = vld [vmem:[%s53 + $0x8] sm:$0xff]
        %v2244 = vld [vmem:[%s55] sm:$0xff]
        %v2245 = vld [vmem:[%s55 + $0x8] sm:$0xff]
        %v2247 = vsel %vm1352, %v2226, 0
        %v2250 = vsel %vm1352, %v2227, 0
        %2252 = vmatpush.msra.mxu0 0.0
        %2253 = vmatpush.msra.mxu0 0.0
        %2254 = vmatpush.msra.mxu0 0.0
        %2255 = vmatpush.msra.mxu0 0.0
        %2256 = vmatpush.msra.mxu0 0.0
        %2257 = vmatpush.msra.mxu0 0.0
        %2258 = vmatpush.msra.mxu0 0.0
        %2259 = vmatpush.msra.mxu0 0.0
        %2260 = vmatpush.msra.mxu0 0.0
        %2261 = vmatpush.msra.mxu0 0.0
        %2262 = vmatpush.msra.mxu0 0.0
        %2263 = vmatpush.msra.mxu0 0.0
        %2264 = vmatpush.msra.mxu0 0.0
        %2265 = vmatpush.msra.mxu0 0.0
        %2266 = vmatpush.msra.mxu0 %v2224
        %2267 = vmatpush.msra.mxu0 %v2221
        %2268 = vmatmul.f32.gmra.mxu0 %v2247
        %v2269 = vpop.f32.mrf.mxu0
        %v2270 = vadd.f32 0.0, %v2269
        %2271 = vmatmul.f32.gmra.mxu0 %v2250
        %v2272 = vpop.f32.mrf.mxu0
        %v2273 = vadd.f32 0.0, %v2272
        %2274 = vdwg.mxu0
        %v2276 = vsel %vm1352, %v2228, 0
        %v2279 = vsel %vm1352, %v2229, 0
        %2281 = vmatpush.msra.mxu0 0.0
        %2282 = vmatpush.msra.mxu0 0.0
        %2283 = vmatpush.msra.mxu0 0.0
        %2284 = vmatpush.msra.mxu0 0.0
        %2285 = vmatpush.msra.mxu0 0.0
        %2286 = vmatpush.msra.mxu0 0.0
        %2287 = vmatpush.msra.mxu0 0.0
        %2288 = vmatpush.msra.mxu0 0.0
        %2289 = vmatpush.msra.mxu0 0.0
        %2290 = vmatpush.msra.mxu0 0.0
        %2291 = vmatpush.msra.mxu0 0.0
        %2292 = vmatpush.msra.mxu0 0.0
        %2293 = vmatpush.msra.mxu0 0.0
        %2294 = vmatpush.msra.mxu0 0.0
        %2295 = vmatpush.msra.mxu0 %v2224
        %2296 = vmatpush.msra.mxu0 %v2221
        %2297 = vmatmul.f32.gmra.mxu0 %v2276
        %v2298 = vpop.f32.mrf.mxu0
        %v2299 = vadd.f32 0.0, %v2298
        %2300 = vmatmul.f32.gmra.mxu0 %v2279
        %v2301 = vpop.f32.mrf.mxu0
        %v2302 = vadd.f32 0.0, %v2301
        %2303 = vdwg.mxu0
        %v2305 = vsel %vm1352, %v2230, 0
        %v2308 = vsel %vm1352, %v2231, 0
        %2310 = vmatpush.msra.mxu0 0.0
        %2311 = vmatpush.msra.mxu0 0.0
        %2312 = vmatpush.msra.mxu0 0.0
        %2313 = vmatpush.msra.mxu0 0.0
        %2314 = vmatpush.msra.mxu0 0.0
        %2315 = vmatpush.msra.mxu0 0.0
        %2316 = vmatpush.msra.mxu0 0.0
        %2317 = vmatpush.msra.mxu0 0.0
        %2318 = vmatpush.msra.mxu0 0.0
        %2319 = vmatpush.msra.mxu0 0.0
        %2320 = vmatpush.msra.mxu0 0.0
        %2321 = vmatpush.msra.mxu0 0.0
        %2322 = vmatpush.msra.mxu0 0.0
        %2323 = vmatpush.msra.mxu0 0.0
        %2324 = vmatpush.msra.mxu0 %v2224
        %2325 = vmatpush.msra.mxu0 %v2221
        %2326 = vmatmul.f32.gmra.mxu0 %v2305
        %v2327 = vpop.f32.mrf.mxu0
        %v2328 = vadd.f32 0.0, %v2327
        %2329 = vmatmul.f32.gmra.mxu0 %v2308
        %v2330 = vpop.f32.mrf.mxu0
        %v2331 = vadd.f32 0.0, %v2330
        %2332 = vdwg.mxu0
        %2333 = vxpose.xlu0.b32.start [1/16] %v2270, 128
        %2334 = vxpose.xlu0.b32.cont [2/16] 0.0, 128
        %2335 = vxpose.xlu0.b32.cont [3/16] 0.0, 128
        %2336 = vxpose.xlu0.b32.cont [4/16] 0.0, 128
        %2337 = vxpose.xlu0.b32.cont [5/16] 0.0, 128
        %2338 = vxpose.xlu0.b32.cont [6/16] 0.0, 128
        %2339 = vxpose.xlu0.b32.cont [7/16] 0.0, 128
        %2340 = vxpose.xlu0.b32.cont [8/16] 0.0, 128
        %2341 = vxpose.xlu0.b32.cont [9/16] 0.0, 128
        %2342 = vxpose.xlu0.b32.cont [10/16] 0.0, 128
        %2343 = vxpose.xlu0.b32.cont [11/16] 0.0, 128
        %2344 = vxpose.xlu0.b32.cont [12/16] 0.0, 128
        %2345 = vxpose.xlu0.b32.cont [13/16] 0.0, 128
        %2346 = vxpose.xlu0.b32.cont [14/16] 0.0, 128
        %2347 = vxpose.xlu0.b32.cont [15/16] 0.0, 128
        %2348 = vxpose.xlu0.b32.end [16/16] 0.0, 128
        %v2349 = vpop.trf.xlu0
        %v2350 = vpop.trf.xlu0
        %v2351 = vpop.trf.xlu0
        %v2352 = vpop.trf.xlu0
        %v2353 = vpop.trf.xlu0
        %v2354 = vpop.trf.xlu0
        %v2355 = vpop.trf.xlu0
        %v2356 = vpop.trf.xlu0
        %v2357 = vpop.trf.xlu0
        %v2358 = vpop.trf.xlu0
        %v2359 = vpop.trf.xlu0
        %v2360 = vpop.trf.xlu0
        %v2361 = vpop.trf.xlu0
        %v2362 = vpop.trf.xlu0
        %v2363 = vpop.trf.xlu0
        %v2364 = vpop.trf.xlu0
        %v2366 = vsel %vm1440, %v2349, 0
        %2368 = vmatpush.msra.mxu0 0.0
        %2369 = vmatpush.msra.mxu0 0.0
        %2370 = vmatpush.msra.mxu0 0.0
        %2371 = vmatpush.msra.mxu0 0.0
        %2372 = vmatpush.msra.mxu0 0.0
        %2373 = vmatpush.msra.mxu0 0.0
        %2374 = vmatpush.msra.mxu0 0.0
        %2375 = vmatpush.msra.mxu0 0.0
        %2376 = vmatpush.msra.mxu0 0.0
        %2377 = vmatpush.msra.mxu0 0.0
        %2378 = vmatpush.msra.mxu0 0.0
        %2379 = vmatpush.msra.mxu0 0.0
        %2380 = vmatpush.msra.mxu0 0.0
        %2381 = vmatpush.msra.mxu0 0.0
        %2382 = vmatpush.msra.mxu0 0.0
        %2383 = vmatpush.msra.mxu0 %v2299
        %2384 = vmatmul.f32.gmra.mxu0 %v2366
        %v2385 = vpop.f32.mrf.mxu0
        %v2386 = vadd.f32 0.0, %v2385
        %2387 = vdwg.mxu0
        %v2388 = vsel %vm1440, %v2386, -inf
        %2389 = vmax.xlane.f32.xlu0 %v2388
        %v2390 = vpop.xlane.xlu0 %2389
        %v2391 = vsub.f32 %v2386, %v2390
        %v2392 = vmul.f32 %v2391, 1.442695
        %v2393 = vpow.pop %v2392
        %v2394 = vsel %vm1440, %v2393, 0.0
        %2395 = vadd.xlane.f32.xlu0 %v2394
        %v2396 = vpop.xlane.xlu0 %2395
        %v2397 = vrcp.pop %v2396
        %v2398 = vmul.f32 %v2393, %v2397
        %v2400 = vsel %vm1440, %v2328, 0
        %v2403 = vsel %vm1440, %v2398, 0
        %2405 = vmatpush.xpose.msra.mxu0 0.0
        %2406 = vmatpush.xpose.msra.mxu0 0.0
        %2407 = vmatpush.xpose.msra.mxu0 0.0
        %2408 = vmatpush.xpose.msra.mxu0 0.0
        %2409 = vmatpush.xpose.msra.mxu0 0.0
        %2410 = vmatpush.xpose.msra.mxu0 0.0
        %2411 = vmatpush.xpose.msra.mxu0 0.0
        %2412 = vmatpush.xpose.msra.mxu0 0.0
        %2413 = vmatpush.xpose.msra.mxu0 0.0
        %2414 = vmatpush.xpose.msra.mxu0 0.0
        %2415 = vmatpush.xpose.msra.mxu0 0.0
        %2416 = vmatpush.xpose.msra.mxu0 0.0
        %2417 = vmatpush.xpose.msra.mxu0 0.0
        %2418 = vmatpush.xpose.msra.mxu0 0.0
        %2419 = vmatpush.xpose.msra.mxu0 0.0
        %2420 = vmatpush.xpose.msra.mxu0 %v2403
        %2421 = vmatmul.f32.gmra.mxu0 %v2400
        %v2422 = vpop.f32.mrf.mxu0
        %v2423 = vadd.f32 0.0, %v2422
        %2424 = vdwg.mxu0
        %2425 = vst.msk [vmem:[#allocation2] sm:$0xff] %vm1440, %v2423
        %2426 = vxpose.xlu0.b32.start [1/16] %v2273, 128
        %2427 = vxpose.xlu0.b32.cont [2/16] 0.0, 128
        %2428 = vxpose.xlu0.b32.cont [3/16] 0.0, 128
        %2429 = vxpose.xlu0.b32.cont [4/16] 0.0, 128
        %2430 = vxpose.xlu0.b32.cont [5/16] 0.0, 128
        %2431 = vxpose.xlu0.b32.cont [6/16] 0.0, 128
        %2432 = vxpose.xlu0.b32.cont [7/16] 0.0, 128
        %2433 = vxpose.xlu0.b32.cont [8/16] 0.0, 128
        %2434 = vxpose.xlu0.b32.cont [9/16] 0.0, 128
        %2435 = vxpose.xlu0.b32.cont [10/16] 0.0, 128
        %2436 = vxpose.xlu0.b32.cont [11/16] 0.0, 128
        %2437 = vxpose.xlu0.b32.cont [12/16] 0.0, 128
        %2438 = vxpose.xlu0.b32.cont [13/16] 0.0, 128
        %2439 = vxpose.xlu0.b32.cont [14/16] 0.0, 128
        %2440 = vxpose.xlu0.b32.cont [15/16] 0.0, 128
        %2441 = vxpose.xlu0.b32.end [16/16] 0.0, 128
        %v2442 = vpop.trf.xlu0
        %v2443 = vpop.trf.xlu0
        %v2444 = vpop.trf.xlu0
        %v2445 = vpop.trf.xlu0
        %v2446 = vpop.trf.xlu0
        %v2447 = vpop.trf.xlu0
        %v2448 = vpop.trf.xlu0
        %v2449 = vpop.trf.xlu0
        %v2450 = vpop.trf.xlu0
        %v2451 = vpop.trf.xlu0
        %v2452 = vpop.trf.xlu0
        %v2453 = vpop.trf.xlu0
        %v2454 = vpop.trf.xlu0
        %v2455 = vpop.trf.xlu0
        %v2456 = vpop.trf.xlu0
        %v2457 = vpop.trf.xlu0
        %v2459 = vsel %vm1440, %v2442, 0
        %2461 = vmatpush.msra.mxu0 0.0
        %2462 = vmatpush.msra.mxu0 0.0
        %2463 = vmatpush.msra.mxu0 0.0
        %2464 = vmatpush.msra.mxu0 0.0
        %2465 = vmatpush.msra.mxu0 0.0
        %2466 = vmatpush.msra.mxu0 0.0
        %2467 = vmatpush.msra.mxu0 0.0
        %2468 = vmatpush.msra.mxu0 0.0
        %2469 = vmatpush.msra.mxu0 0.0
        %2470 = vmatpush.msra.mxu0 0.0
        %2471 = vmatpush.msra.mxu0 0.0
        %2472 = vmatpush.msra.mxu0 0.0
        %2473 = vmatpush.msra.mxu0 0.0
        %2474 = vmatpush.msra.mxu0 0.0
        %2475 = vmatpush.msra.mxu0 0.0
        %2476 = vmatpush.msra.mxu0 %v2302
        %2477 = vmatmul.f32.gmra.mxu0 %v2459
        %v2478 = vpop.f32.mrf.mxu0
        %v2479 = vadd.f32 0.0, %v2478
        %2480 = vdwg.mxu0
        %v2481 = vsel %vm1440, %v2479, -inf
        %2482 = vmax.xlane.f32.xlu0 %v2481
        %v2483 = vpop.xlane.xlu0 %2482
        %v2484 = vsub.f32 %v2479, %v2483
        %v2485 = vmul.f32 %v2484, 1.442695
        %v2486 = vpow.pop %v2485
        %v2487 = vsel %vm1440, %v2486, 0.0
        %2488 = vadd.xlane.f32.xlu0 %v2487
        %v2489 = vpop.xlane.xlu0 %2488
        %v2490 = vrcp.pop %v2489
        %v2491 = vmul.f32 %v2486, %v2490
        %v2493 = vsel %vm1440, %v2331, 0
        %v2496 = vsel %vm1440, %v2491, 0
        %2498 = vmatpush.xpose.msra.mxu0 0.0
        %2499 = vmatpush.xpose.msra.mxu0 0.0
        %2500 = vmatpush.xpose.msra.mxu0 0.0
        %2501 = vmatpush.xpose.msra.mxu0 0.0
        %2502 = vmatpush.xpose.msra.mxu0 0.0
        %2503 = vmatpush.xpose.msra.mxu0 0.0
        %2504 = vmatpush.xpose.msra.mxu0 0.0
        %2505 = vmatpush.xpose.msra.mxu0 0.0
        %2506 = vmatpush.xpose.msra.mxu0 0.0
        %2507 = vmatpush.xpose.msra.mxu0 0.0
        %2508 = vmatpush.xpose.msra.mxu0 0.0
        %2509 = vmatpush.xpose.msra.mxu0 0.0
        %2510 = vmatpush.xpose.msra.mxu0 0.0
        %2511 = vmatpush.xpose.msra.mxu0 0.0
        %2512 = vmatpush.xpose.msra.mxu0 0.0
        %2513 = vmatpush.xpose.msra.mxu0 %v2496
        %2514 = vmatmul.f32.gmra.mxu0 %v2493
        %v2515 = vpop.f32.mrf.mxu0
        %v2516 = vadd.f32 0.0, %v2515
        %2517 = vdwg.mxu0
        %2518 = vst.msk [vmem:[#allocation2 + $0x8] sm:$0xff] %vm1440, %v2516
        %v2519 = vld [vmem:[#allocation2] sm:$0xff]
        %v2520 = vld [vmem:[#allocation2 + $0x8] sm:$0xff]
        %v2521 = vadd.f32 %v2221, %v2519
        %v2522 = vadd.f32 %v2224, %v2520
        %2524 = vset.pattern.permute.xlu0 0
        %2525 = vperm.xlu0 %2524, %v2232
        %v2526 = vpop.permute.xlu0 %2525
        %2529 = vset.pattern.permute.xlu0 0
        %2530 = vperm.xlu0 %2529, %v2233
        %v2531 = vpop.permute.xlu0 %2530
        %v2533 = vmul.f32 %v2521, %v2526
        %v2534 = vmul.f32 %v2522, %v2531
        %2536 = vset.pattern.permute.xlu0 0
        %2537 = vperm.xlu0 %2536, %v2234
        %v2538 = vpop.permute.xlu0 %2537
        %2541 = vset.pattern.permute.xlu0 0
        %2542 = vperm.xlu0 %2541, %v2235
        %v2543 = vpop.permute.xlu0 %2542
        %v2545 = vadd.f32 %v2533, %v2538
        %v2546 = vadd.f32 %v2534, %v2543
        %v2548 = vsel %vm1352, %v2236, 0
        %v2551 = vsel %vm1352, %v2237, 0
        %v2554 = vsel %vm1352, %v2238, 0
        %v2557 = vsel %vm1352, %v2239, 0
        %2559 = vmatpush.msra.mxu0 0.0
        %2560 = vmatpush.msra.mxu0 0.0
        %2561 = vmatpush.msra.mxu0 0.0
        %2562 = vmatpush.msra.mxu0 0.0
        %2563 = vmatpush.msra.mxu0 0.0
        %2564 = vmatpush.msra.mxu0 0.0
        %2565 = vmatpush.msra.mxu0 0.0
        %2566 = vmatpush.msra.mxu0 0.0
        %2567 = vmatpush.msra.mxu0 0.0
        %2568 = vmatpush.msra.mxu0 0.0
        %2569 = vmatpush.msra.mxu0 0.0
        %2570 = vmatpush.msra.mxu0 0.0
        %2571 = vmatpush.msra.mxu0 0.0
        %2572 = vmatpush.msra.mxu0 0.0
        %2573 = vmatpush.msra.mxu0 %v2546
        %2574 = vmatpush.msra.mxu0 %v2545
        %2575 = vmatmul.f32.gmra.mxu0 %v2548
        %v2576 = vpop.f32.mrf.mxu0
        %v2577 = vadd.f32 0.0, %v2576
        %2578 = vmatmul.f32.gmra.mxu0 %v2551
        %v2579 = vpop.f32.mrf.mxu0
        %v2580 = vadd.f32 0.0, %v2579
        %2581 = vmatmul.f32.gmra.mxu0 %v2554
        %v2582 = vpop.f32.mrf.mxu0
        %v2583 = vadd.f32 0.0, %v2582
        %2584 = vmatmul.f32.gmra.mxu0 %v2557
        %v2585 = vpop.f32.mrf.mxu0
        %v2586 = vadd.f32 0.0, %v2585
        %2587 = vdwg.mxu0
        %vm2588 = vcmp.ge.f32.partialorder %v2577, 0.0
        %vm2589 = vcmp.ge.f32.partialorder %v2580, 0.0
        %vm2590 = vcmp.ge.f32.partialorder %v2583, 0.0
        %vm2591 = vcmp.ge.f32.partialorder %v2586, 0.0
        %v2592 = vmul.f32 %v2577, 0.2
        %v2593 = vmul.f32 %v2580, 0.2
        %v2594 = vmul.f32 %v2583, 0.2
        %v2595 = vmul.f32 %v2586, 0.2
        %v2596 = vsel %vm2588, %v2577, %v2592
        %v2597 = vsel %vm2589, %v2580, %v2593
        %v2598 = vsel %vm2590, %v2583, %v2594
        %v2599 = vsel %vm2591, %v2586, %v2595
        %v2601 = vsel %vm1948, %v2240, 0
        %v2604 = vsel %vm1948, %v2241, 0
        %2606 = vmatpush.msra.mxu0 0.0
        %2607 = vmatpush.msra.mxu0 0.0
        %2608 = vmatpush.msra.mxu0 0.0
        %2609 = vmatpush.msra.mxu0 0.0
        %2610 = vmatpush.msra.mxu0 0.0
        %2611 = vmatpush.msra.mxu0 0.0
        %2612 = vmatpush.msra.mxu0 0.0
        %2613 = vmatpush.msra.mxu0 0.0
        %2614 = vmatpush.msra.mxu0 0.0
        %2615 = vmatpush.msra.mxu0 0.0
        %2616 = vmatpush.msra.mxu0 0.0
        %2617 = vmatpush.msra.mxu0 0.0
        %2618 = vmatpush.msra.mxu0 %v2599
        %2619 = vmatpush.msra.mxu0 %v2598
        %2620 = vmatpush.msra.mxu0 %v2597
        %2621 = vmatpush.msra.mxu0 %v2596
        %2622 = vmatmul.f32.gmra.mxu0 %v2601
        %v2623 = vpop.f32.mrf.mxu0
        %v2624 = vadd.f32 0.0, %v2623
        %2625 = vmatmul.f32.gmra.mxu0 %v2604
        %v2626 = vpop.f32.mrf.mxu0
        %v2627 = vadd.f32 0.0, %v2626
        %2628 = vdwg.mxu0
        %v2629 = vadd.f32 %v2545, %v2624
        %v2630 = vadd.f32 %v2546, %v2627
        %2632 = vset.pattern.permute.xlu0 0
        %2633 = vperm.xlu0 %2632, %v2242
        %v2634 = vpop.permute.xlu0 %2633
        %2637 = vset.pattern.permute.xlu0 0
        %2638 = vperm.xlu0 %2637, %v2243
        %v2639 = vpop.permute.xlu0 %2638
        %v2641 = vmul.f32 %v2629, %v2634
        %v2642 = vmul.f32 %v2630, %v2639
        %2644 = vset.pattern.permute.xlu0 0
        %2645 = vperm.xlu0 %2644, %v2244
        %v2646 = vpop.permute.xlu0 %2645
        %2649 = vset.pattern.permute.xlu0 0
        %2650 = vperm.xlu0 %2649, %v2245
        %v2651 = vpop.permute.xlu0 %2650
        %v2653 = vadd.f32 %v2641, %v2646
        %v2654 = vadd.f32 %v2642, %v2651
        %v2655 = vld [vmem:[%s57] sm:$0xff]
        %v2656 = vld [vmem:[%s57 + $0x8] sm:$0xff]
        %v2657 = vld [vmem:[%s59] sm:$0xff]
        %v2658 = vld [vmem:[%s59 + $0x8] sm:$0xff]
        %v2659 = vld [vmem:[%s61] sm:$0xff]
        %v2660 = vld [vmem:[%s61 + $0x8] sm:$0xff]
        %v2661 = vld [vmem:[%s63] sm:$0xff]
        %v2662 = vld [vmem:[%s63 + $0x8] sm:$0xff]
        %v2664 = vsel %vm1352, %v2655, 0
        %v2667 = vsel %vm1352, %v2656, 0
        %2669 = vmatpush.msra.mxu0 0.0
        %2670 = vmatpush.msra.mxu0 0.0
        %2671 = vmatpush.msra.mxu0 0.0
        %2672 = vmatpush.msra.mxu0 0.0
        %2673 = vmatpush.msra.mxu0 0.0
        %2674 = vmatpush.msra.mxu0 0.0
        %2675 = vmatpush.msra.mxu0 0.0
        %2676 = vmatpush.msra.mxu0 0.0
        %2677 = vmatpush.msra.mxu0 0.0
        %2678 = vmatpush.msra.mxu0 0.0
        %2679 = vmatpush.msra.mxu0 0.0
        %2680 = vmatpush.msra.mxu0 0.0
        %2681 = vmatpush.msra.mxu0 0.0
        %2682 = vmatpush.msra.mxu0 0.0
        %2683 = vmatpush.msra.mxu0 %v1342
        %2684 = vmatpush.msra.mxu0 %v1341
        %2685 = vmatmul.f32.gmra.mxu0 %v2664
        %v2686 = vpop.f32.mrf.mxu0
        %v2687 = vadd.f32 0.0, %v2686
        %2688 = vmatmul.f32.gmra.mxu0 %v2667
        %v2689 = vpop.f32.mrf.mxu0
        %v2690 = vadd.f32 0.0, %v2689
        %2691 = vdwg.mxu0
        %v2693 = vsel %vm1352, %v2657, 0
        %v2696 = vsel %vm1352, %v2658, 0
        %2698 = vmatpush.msra.mxu0 0.0
        %2699 = vmatpush.msra.mxu0 0.0
        %2700 = vmatpush.msra.mxu0 0.0
        %2701 = vmatpush.msra.mxu0 0.0
        %2702 = vmatpush.msra.mxu0 0.0
        %2703 = vmatpush.msra.mxu0 0.0
        %2704 = vmatpush.msra.mxu0 0.0
        %2705 = vmatpush.msra.mxu0 0.0
        %2706 = vmatpush.msra.mxu0 0.0
        %2707 = vmatpush.msra.mxu0 0.0
        %2708 = vmatpush.msra.mxu0 0.0
        %2709 = vmatpush.msra.mxu0 0.0
        %2710 = vmatpush.msra.mxu0 0.0
        %2711 = vmatpush.msra.mxu0 0.0
        %2712 = vmatpush.msra.mxu0 %v2654
        %2713 = vmatpush.msra.mxu0 %v2653
        %2714 = vmatmul.f32.gmra.mxu0 %v2693
        %v2715 = vpop.f32.mrf.mxu0
        %v2716 = vadd.f32 0.0, %v2715
        %2717 = vmatmul.f32.gmra.mxu0 %v2696
        %v2718 = vpop.f32.mrf.mxu0
        %v2719 = vadd.f32 0.0, %v2718
        %2720 = vdwg.mxu0
        %v2722 = vsel %vm1352, %v2659, 0
        %v2725 = vsel %vm1352, %v2660, 0
        %2727 = vmatpush.msra.mxu0 0.0
        %2728 = vmatpush.msra.mxu0 0.0
        %2729 = vmatpush.msra.mxu0 0.0
        %2730 = vmatpush.msra.mxu0 0.0
        %2731 = vmatpush.msra.mxu0 0.0
        %2732 = vmatpush.msra.mxu0 0.0
        %2733 = vmatpush.msra.mxu0 0.0
        %2734 = vmatpush.msra.mxu0 0.0
        %2735 = vmatpush.msra.mxu0 0.0
        %2736 = vmatpush.msra.mxu0 0.0
        %2737 = vmatpush.msra.mxu0 0.0
        %2738 = vmatpush.msra.mxu0 0.0
        %2739 = vmatpush.msra.mxu0 0.0
        %2740 = vmatpush.msra.mxu0 0.0
        %2741 = vmatpush.msra.mxu0 %v2654
        %2742 = vmatpush.msra.mxu0 %v2653
        %2743 = vmatmul.f32.gmra.mxu0 %v2722
        %v2744 = vpop.f32.mrf.mxu0
        %v2745 = vadd.f32 0.0, %v2744
        %2746 = vmatmul.f32.gmra.mxu0 %v2725
        %v2747 = vpop.f32.mrf.mxu0
        %v2748 = vadd.f32 0.0, %v2747
        %2749 = vdwg.mxu0
        %2750 = vxpose.xlu0.b32.start [1/16] %v2687, 128
        %2751 = vxpose.xlu0.b32.cont [2/16] %v2690, 128
        %2752 = vxpose.xlu0.b32.cont [3/16] 0.0, 128
        %2753 = vxpose.xlu0.b32.cont [4/16] 0.0, 128
        %2754 = vxpose.xlu0.b32.cont [5/16] 0.0, 128
        %2755 = vxpose.xlu0.b32.cont [6/16] 0.0, 128
        %2756 = vxpose.xlu0.b32.cont [7/16] 0.0, 128
        %2757 = vxpose.xlu0.b32.cont [8/16] 0.0, 128
        %2758 = vxpose.xlu0.b32.cont [9/16] 0.0, 128
        %2759 = vxpose.xlu0.b32.cont [10/16] 0.0, 128
        %2760 = vxpose.xlu0.b32.cont [11/16] 0.0, 128
        %2761 = vxpose.xlu0.b32.cont [12/16] 0.0, 128
        %2762 = vxpose.xlu0.b32.cont [13/16] 0.0, 128
        %2763 = vxpose.xlu0.b32.cont [14/16] 0.0, 128
        %2764 = vxpose.xlu0.b32.cont [15/16] 0.0, 128
        %2765 = vxpose.xlu0.b32.end [16/16] 0.0, 128
        %v2766 = vpop.trf.xlu0
        %v2767 = vpop.trf.xlu0
        %v2768 = vpop.trf.xlu0
        %v2769 = vpop.trf.xlu0
        %v2770 = vpop.trf.xlu0
        %v2771 = vpop.trf.xlu0
        %v2772 = vpop.trf.xlu0
        %v2773 = vpop.trf.xlu0
        %v2774 = vpop.trf.xlu0
        %v2775 = vpop.trf.xlu0
        %v2776 = vpop.trf.xlu0
        %v2777 = vpop.trf.xlu0
        %v2778 = vpop.trf.xlu0
        %v2779 = vpop.trf.xlu0
        %v2780 = vpop.trf.xlu0
        %v2781 = vpop.trf.xlu0
        %v2783 = vsel %vm1352, %v2766, 0
        %v2786 = vsel %vm1352, %v2767, 0
        %2788 = vmatpush.msra.mxu0 0.0
        %2789 = vmatpush.msra.mxu0 0.0
        %2790 = vmatpush.msra.mxu0 0.0
        %2791 = vmatpush.msra.mxu0 0.0
        %2792 = vmatpush.msra.mxu0 0.0
        %2793 = vmatpush.msra.mxu0 0.0
        %2794 = vmatpush.msra.mxu0 0.0
        %2795 = vmatpush.msra.mxu0 0.0
        %2796 = vmatpush.msra.mxu0 0.0
        %2797 = vmatpush.msra.mxu0 0.0
        %2798 = vmatpush.msra.mxu0 0.0
        %2799 = vmatpush.msra.mxu0 0.0
        %2800 = vmatpush.msra.mxu0 0.0
        %2801 = vmatpush.msra.mxu0 0.0
        %2802 = vmatpush.msra.mxu0 %v2719
        %2803 = vmatpush.msra.mxu0 %v2716
        %2804 = vmatmul.f32.gmra.mxu0 %v2783
        %v2805 = vpop.f32.mrf.mxu0
        %v2806 = vadd.f32 0.0, %v2805
        %2807 = vmatmul.f32.gmra.mxu0 %v2786
        %v2808 = vpop.f32.mrf.mxu0
        %v2809 = vadd.f32 0.0, %v2808
        %2810 = vdwg.mxu0
        %v2811 = vsel %vm1440, %v2806, -inf
        %2812 = vmax.xlane.f32.xlu0 %v2811
        %v2813 = vpop.xlane.xlu0 %2812
        %v2814 = vsel %vm1440, %v2809, -inf
        %2815 = vmax.xlane.f32.xlu0 %v2814
        %v2816 = vpop.xlane.xlu0 %2815
        %v2817 = vsub.f32 %v2806, %v2813
        %v2818 = vsub.f32 %v2809, %v2816
        %v2819 = vmul.f32 %v2817, 1.442695
        %v2820 = vpow.pop %v2819
        %v2821 = vmul.f32 %v2818, 1.442695
        %v2822 = vpow.pop %v2821
        %v2823 = vsel %vm1440, %v2820, 0.0
        %2824 = vadd.xlane.f32.xlu0 %v2823
        %v2825 = vpop.xlane.xlu0 %2824
        %v2826 = vsel %vm1440, %v2822, 0.0
        %2827 = vadd.xlane.f32.xlu0 %v2826
        %v2828 = vpop.xlane.xlu0 %2827
        %v2829 = vrcp.pop %v2825
        %v2830 = vrcp.pop %v2828
        %v2831 = vmul.f32 %v2820, %v2829
        %v2832 = vmul.f32 %v2822, %v2830
        %v2834 = vsel %vm1440, %v2745, 0
        %v2837 = vsel %vm1440, %v2748, 0
        %v2840 = vsel %vm1440, %v2831, 0
        %v2843 = vsel %vm1440, %v2832, 0
        %2845 = vmatpush.xpose.msra.mxu0 0.0
        %2846 = vmatpush.xpose.msra.mxu0 0.0
        %2847 = vmatpush.xpose.msra.mxu0 0.0
        %2848 = vmatpush.xpose.msra.mxu0 0.0
        %2849 = vmatpush.xpose.msra.mxu0 0.0
        %2850 = vmatpush.xpose.msra.mxu0 0.0
        %2851 = vmatpush.xpose.msra.mxu0 0.0
        %2852 = vmatpush.xpose.msra.mxu0 0.0
        %2853 = vmatpush.xpose.msra.mxu0 0.0
        %2854 = vmatpush.xpose.msra.mxu0 0.0
        %2855 = vmatpush.xpose.msra.mxu0 0.0
        %2856 = vmatpush.xpose.msra.mxu0 0.0
        %2857 = vmatpush.xpose.msra.mxu0 0.0
        %2858 = vmatpush.xpose.msra.mxu0 0.0
        %2859 = vmatpush.xpose.msra.mxu0 %v2843
        %2860 = vmatpush.xpose.msra.mxu0 %v2840
        %2861 = vmatmul.f32.gmra.mxu0 %v2834
        %v2862 = vpop.f32.mrf.mxu0
        %v2863 = vadd.f32 0.0, %v2862
        %2864 = vmatmul.f32.gmra.mxu0 %v2837
        %v2865 = vpop.f32.mrf.mxu0
        %v2866 = vadd.f32 0.0, %v2865
        %2867 = vdwg.mxu0
        %v2869 = vsel %vm1352, %v2661, 0
        %v2872 = vsel %vm1352, %v2662, 0
        %2874 = vmatpush.msra.mxu0 0.0
        %2875 = vmatpush.msra.mxu0 0.0
        %2876 = vmatpush.msra.mxu0 0.0
        %2877 = vmatpush.msra.mxu0 0.0
        %2878 = vmatpush.msra.mxu0 0.0
        %2879 = vmatpush.msra.mxu0 0.0
        %2880 = vmatpush.msra.mxu0 0.0
        %2881 = vmatpush.msra.mxu0 0.0
        %2882 = vmatpush.msra.mxu0 0.0
        %2883 = vmatpush.msra.mxu0 0.0
        %2884 = vmatpush.msra.mxu0 0.0
        %2885 = vmatpush.msra.mxu0 0.0
        %2886 = vmatpush.msra.mxu0 0.0
        %2887 = vmatpush.msra.mxu0 0.0
        %2888 = vmatpush.msra.mxu0 %v1342
        %2889 = vmatpush.msra.mxu0 %v1341
        %2890 = vmatmul.f32.gmra.mxu0 %v2869
        %v2891 = vpop.f32.mrf.mxu0
        %v2892 = vadd.f32 %v2863, %v2891
        %2893 = vmatmul.f32.gmra.mxu0 %v2872
        %v2894 = vpop.f32.mrf.mxu0
        %v2895 = vadd.f32 %v2866, %v2894
        %2896 = vdwg.mxu0
        %v2897 = vld [vmem:[#allocation3] sm:$0xff]
        %v2898 = vld [vmem:[#allocation3 + $0x8] sm:$0xff]
        %v2899 = vld [vmem:[#allocation6] sm:$0xff]
        %v2900 = vld [vmem:[#allocation6 + $0x8] sm:$0xff]
        %v2901 = vld [vmem:[#allocation8] sm:$0xff]
        %v2902 = vld [vmem:[#allocation8 + $0x8] sm:$0xff]
        %v2903 = vld [vmem:[%s71] sm:$0xff]
        %v2904 = vld [vmem:[%s71 + $0x8] sm:$0xff]
        %v2905 = vld [vmem:[%s73] sm:$0xff]
        %v2906 = vld [vmem:[%s73 + $0x8] sm:$0xff]
        %v2907 = vld [vmem:[%s75] sm:$0xff]
        %v2908 = vld [vmem:[%s75 + $0x8] sm:$0xff]
        %v2909 = vld [vmem:[%s75 + $0x10] sm:$0xff]
        %v2910 = vld [vmem:[%s75 + $0x18] sm:$0xff]
        %v2911 = vld [vmem:[#allocation9] sm:$0xff]
        %v2912 = vld [vmem:[#allocation9 + $0x8] sm:$0xff]
        %v2913 = vld [vmem:[%s79] sm:$0xff]
        %v2914 = vld [vmem:[%s79 + $0x8] sm:$0xff]
        %v2915 = vld [vmem:[%s81] sm:$0xff]
        %v2916 = vld [vmem:[%s81 + $0x8] sm:$0xff]
        %v2918 = vsel %vm1352, %v2897, 0
        %v2921 = vsel %vm1352, %v2898, 0
        %2923 = vmatpush.msra.mxu0 0.0
        %2924 = vmatpush.msra.mxu0 0.0
        %2925 = vmatpush.msra.mxu0 0.0
        %2926 = vmatpush.msra.mxu0 0.0
        %2927 = vmatpush.msra.mxu0 0.0
        %2928 = vmatpush.msra.mxu0 0.0
        %2929 = vmatpush.msra.mxu0 0.0
        %2930 = vmatpush.msra.mxu0 0.0
        %2931 = vmatpush.msra.mxu0 0.0
        %2932 = vmatpush.msra.mxu0 0.0
        %2933 = vmatpush.msra.mxu0 0.0
        %2934 = vmatpush.msra.mxu0 0.0
        %2935 = vmatpush.msra.mxu0 0.0
        %2936 = vmatpush.msra.mxu0 0.0
        %2937 = vmatpush.msra.mxu0 %v2895
        %2938 = vmatpush.msra.mxu0 %v2892
        %2939 = vmatmul.f32.gmra.mxu0 %v2918
        %v2940 = vpop.f32.mrf.mxu0
        %v2941 = vadd.f32 0.0, %v2940
        %2942 = vmatmul.f32.gmra.mxu0 %v2921
        %v2943 = vpop.f32.mrf.mxu0
        %v2944 = vadd.f32 0.0, %v2943
        %2945 = vdwg.mxu0
        %v2947 = vsel %vm1352, %v2899, 0
        %v2950 = vsel %vm1352, %v2900, 0
        %2952 = vmatpush.msra.mxu0 0.0
        %2953 = vmatpush.msra.mxu0 0.0
        %2954 = vmatpush.msra.mxu0 0.0
        %2955 = vmatpush.msra.mxu0 0.0
        %2956 = vmatpush.msra.mxu0 0.0
        %2957 = vmatpush.msra.mxu0 0.0
        %2958 = vmatpush.msra.mxu0 0.0
        %2959 = vmatpush.msra.mxu0 0.0
        %2960 = vmatpush.msra.mxu0 0.0
        %2961 = vmatpush.msra.mxu0 0.0
        %2962 = vmatpush.msra.mxu0 0.0
        %2963 = vmatpush.msra.mxu0 0.0
        %2964 = vmatpush.msra.mxu0 0.0
        %2965 = vmatpush.msra.mxu0 0.0
        %2966 = vmatpush.msra.mxu0 %v2895
        %2967 = vmatpush.msra.mxu0 %v2892
        %2968 = vmatmul.f32.gmra.mxu0 %v2947
        %v2969 = vpop.f32.mrf.mxu0
        %v2970 = vadd.f32 0.0, %v2969
        %2971 = vmatmul.f32.gmra.mxu0 %v2950
        %v2972 = vpop.f32.mrf.mxu0
        %v2973 = vadd.f32 0.0, %v2972
        %2974 = vdwg.mxu0
        %v2976 = vsel %vm1352, %v2901, 0
        %v2979 = vsel %vm1352, %v2902, 0
        %2981 = vmatpush.msra.mxu0 0.0
        %2982 = vmatpush.msra.mxu0 0.0
        %2983 = vmatpush.msra.mxu0 0.0
        %2984 = vmatpush.msra.mxu0 0.0
        %2985 = vmatpush.msra.mxu0 0.0
        %2986 = vmatpush.msra.mxu0 0.0
        %2987 = vmatpush.msra.mxu0 0.0
        %2988 = vmatpush.msra.mxu0 0.0
        %2989 = vmatpush.msra.mxu0 0.0
        %2990 = vmatpush.msra.mxu0 0.0
        %2991 = vmatpush.msra.mxu0 0.0
        %2992 = vmatpush.msra.mxu0 0.0
        %2993 = vmatpush.msra.mxu0 0.0
        %2994 = vmatpush.msra.mxu0 0.0
        %2995 = vmatpush.msra.mxu0 %v2895
        %2996 = vmatpush.msra.mxu0 %v2892
        %2997 = vmatmul.f32.gmra.mxu0 %v2976
        %v2998 = vpop.f32.mrf.mxu0
        %v2999 = vadd.f32 0.0, %v2998
        %3000 = vmatmul.f32.gmra.mxu0 %v2979
        %v3001 = vpop.f32.mrf.mxu0
        %v3002 = vadd.f32 0.0, %v3001
        %3003 = vdwg.mxu0
        %3004 = vxpose.xlu0.b32.start [1/16] %v2941, 128
        %3005 = vxpose.xlu0.b32.cont [2/16] 0.0, 128
        %3006 = vxpose.xlu0.b32.cont [3/16] 0.0, 128
        %3007 = vxpose.xlu0.b32.cont [4/16] 0.0, 128
        %3008 = vxpose.xlu0.b32.cont [5/16] 0.0, 128
        %3009 = vxpose.xlu0.b32.cont [6/16] 0.0, 128
        %3010 = vxpose.xlu0.b32.cont [7/16] 0.0, 128
        %3011 = vxpose.xlu0.b32.cont [8/16] 0.0, 128
        %3012 = vxpose.xlu0.b32.cont [9/16] 0.0, 128
        %3013 = vxpose.xlu0.b32.cont [10/16] 0.0, 128
        %3014 = vxpose.xlu0.b32.cont [11/16] 0.0, 128
        %3015 = vxpose.xlu0.b32.cont [12/16] 0.0, 128
        %3016 = vxpose.xlu0.b32.cont [13/16] 0.0, 128
        %3017 = vxpose.xlu0.b32.cont [14/16] 0.0, 128
        %3018 = vxpose.xlu0.b32.cont [15/16] 0.0, 128
        %3019 = vxpose.xlu0.b32.end [16/16] 0.0, 128
        %v3020 = vpop.trf.xlu0
        %v3021 = vpop.trf.xlu0
        %v3022 = vpop.trf.xlu0
        %v3023 = vpop.trf.xlu0
        %v3024 = vpop.trf.xlu0
        %v3025 = vpop.trf.xlu0
        %v3026 = vpop.trf.xlu0
        %v3027 = vpop.trf.xlu0
        %v3028 = vpop.trf.xlu0
        %v3029 = vpop.trf.xlu0
        %v3030 = vpop.trf.xlu0
        %v3031 = vpop.trf.xlu0
        %v3032 = vpop.trf.xlu0
        %v3033 = vpop.trf.xlu0
        %v3034 = vpop.trf.xlu0
        %v3035 = vpop.trf.xlu0
        %v3037 = vsel %vm1440, %v3020, 0
        %v3040 = vsel %vm1440, %v3021, 0
        %3042 = vmatpush.msra.mxu0 0.0
        %3043 = vmatpush.msra.mxu0 0.0
        %3044 = vmatpush.msra.mxu0 0.0
        %3045 = vmatpush.msra.mxu0 0.0
        %3046 = vmatpush.msra.mxu0 0.0
        %3047 = vmatpush.msra.mxu0 0.0
        %3048 = vmatpush.msra.mxu0 0.0
        %3049 = vmatpush.msra.mxu0 0.0
        %3050 = vmatpush.msra.mxu0 0.0
        %3051 = vmatpush.msra.mxu0 0.0
        %3052 = vmatpush.msra.mxu0 0.0
        %3053 = vmatpush.msra.mxu0 0.0
        %3054 = vmatpush.msra.mxu0 0.0
        %3055 = vmatpush.msra.mxu0 0.0
        %3056 = vmatpush.msra.mxu0 0.0
        %3057 = vmatpush.msra.mxu0 %v2970
        %3058 = vmatmul.f32.gmra.mxu0 %v3037
        %v3059 = vpop.f32.mrf.mxu0
        %v3060 = vadd.f32 0.0, %v3059
        %3061 = vmatmul.f32.gmra.mxu0 %v3040
        %v3062 = vpop.f32.mrf.mxu0
        %v3063 = vadd.f32 0.0, %v3062
        %3064 = vdwg.mxu0
        %v3065 = vsel %vm1352, %v3060, -inf
        %3066 = vmax.xlane.f32.xlu0 %v3065
        %v3067 = vpop.xlane.xlu0 %3066
        %v3068 = vsel %vm1352, %v3063, -inf
        %3069 = vmax.xlane.f32.xlu0 %v3068
        %v3070 = vpop.xlane.xlu0 %3069
        %v3071 = vsub.f32 %v3060, %v3067
        %v3072 = vsub.f32 %v3063, %v3070
        %v3073 = vmul.f32 %v3071, 1.442695
        %v3074 = vpow.pop %v3073
        %v3075 = vmul.f32 %v3072, 1.442695
        %v3076 = vpow.pop %v3075
        %v3077 = vsel %vm1352, %v3074, 0.0
        %3078 = vadd.xlane.f32.xlu0 %v3077
        %v3079 = vpop.xlane.xlu0 %3078
        %v3080 = vsel %vm1352, %v3076, 0.0
        %3081 = vadd.xlane.f32.xlu0 %v3080
        %v3082 = vpop.xlane.xlu0 %3081
        %v3083 = vrcp.pop %v3079
        %v3084 = vrcp.pop %v3082
        %v3085 = vmul.f32 %v3074, %v3083
        %v3086 = vmul.f32 %v3076, %v3084
        %v3088 = vsel %vm1352, %v2999, 0
        %v3091 = vsel %vm1352, %v3085, 0
        %v3094 = vsel %vm1352, %v3086, 0
        %3096 = vmatpush.xpose.msra.mxu0 0.0
        %3097 = vmatpush.xpose.msra.mxu0 0.0
        %3098 = vmatpush.xpose.msra.mxu0 0.0
        %3099 = vmatpush.xpose.msra.mxu0 0.0
        %3100 = vmatpush.xpose.msra.mxu0 0.0
        %3101 = vmatpush.xpose.msra.mxu0 0.0
        %3102 = vmatpush.xpose.msra.mxu0 0.0
        %3103 = vmatpush.xpose.msra.mxu0 0.0
        %3104 = vmatpush.xpose.msra.mxu0 0.0
        %3105 = vmatpush.xpose.msra.mxu0 0.0
        %3106 = vmatpush.xpose.msra.mxu0 0.0
        %3107 = vmatpush.xpose.msra.mxu0 0.0
        %3108 = vmatpush.xpose.msra.mxu0 0.0
        %3109 = vmatpush.xpose.msra.mxu0 0.0
        %3110 = vmatpush.xpose.msra.mxu0 %v3094
        %3111 = vmatpush.xpose.msra.mxu0 %v3091
        %3112 = vmatmul.f32.gmra.mxu0 %v3088
        %v3113 = vpop.f32.mrf.mxu0
        %v3114 = vadd.f32 0.0, %v3113
        %3115 = vdwg.mxu0
        %3116 = vst.msk [vmem:[#allocation2] sm:$0xff] %vm1352, %v3114
        %3117 = vxpose.xlu0.b32.start [1/16] %v2944, 128
        %3118 = vxpose.xlu0.b32.cont [2/16] 0.0, 128
        %3119 = vxpose.xlu0.b32.cont [3/16] 0.0, 128
        %3120 = vxpose.xlu0.b32.cont [4/16] 0.0, 128
        %3121 = vxpose.xlu0.b32.cont [5/16] 0.0, 128
        %3122 = vxpose.xlu0.b32.cont [6/16] 0.0, 128
        %3123 = vxpose.xlu0.b32.cont [7/16] 0.0, 128
        %3124 = vxpose.xlu0.b32.cont [8/16] 0.0, 128
        %3125 = vxpose.xlu0.b32.cont [9/16] 0.0, 128
        %3126 = vxpose.xlu0.b32.cont [10/16] 0.0, 128
        %3127 = vxpose.xlu0.b32.cont [11/16] 0.0, 128
        %3128 = vxpose.xlu0.b32.cont [12/16] 0.0, 128
        %3129 = vxpose.xlu0.b32.cont [13/16] 0.0, 128
        %3130 = vxpose.xlu0.b32.cont [14/16] 0.0, 128
        %3131 = vxpose.xlu0.b32.cont [15/16] 0.0, 128
        %3132 = vxpose.xlu0.b32.end [16/16] 0.0, 128
        %v3133 = vpop.trf.xlu0
        %v3134 = vpop.trf.xlu0
        %v3135 = vpop.trf.xlu0
        %v3136 = vpop.trf.xlu0
        %v3137 = vpop.trf.xlu0
        %v3138 = vpop.trf.xlu0
        %v3139 = vpop.trf.xlu0
        %v3140 = vpop.trf.xlu0
        %v3141 = vpop.trf.xlu0
        %v3142 = vpop.trf.xlu0
        %v3143 = vpop.trf.xlu0
        %v3144 = vpop.trf.xlu0
        %v3145 = vpop.trf.xlu0
        %v3146 = vpop.trf.xlu0
        %v3147 = vpop.trf.xlu0
        %v3148 = vpop.trf.xlu0
        %v3150 = vsel %vm1440, %v3133, 0
        %v3153 = vsel %vm1440, %v3134, 0
        %3155 = vmatpush.msra.mxu0 0.0
        %3156 = vmatpush.msra.mxu0 0.0
        %3157 = vmatpush.msra.mxu0 0.0
        %3158 = vmatpush.msra.mxu0 0.0
        %3159 = vmatpush.msra.mxu0 0.0
        %3160 = vmatpush.msra.mxu0 0.0
        %3161 = vmatpush.msra.mxu0 0.0
        %3162 = vmatpush.msra.mxu0 0.0
        %3163 = vmatpush.msra.mxu0 0.0
        %3164 = vmatpush.msra.mxu0 0.0
        %3165 = vmatpush.msra.mxu0 0.0
        %3166 = vmatpush.msra.mxu0 0.0
        %3167 = vmatpush.msra.mxu0 0.0
        %3168 = vmatpush.msra.mxu0 0.0
        %3169 = vmatpush.msra.mxu0 0.0
        %3170 = vmatpush.msra.mxu0 %v2973
        %3171 = vmatmul.f32.gmra.mxu0 %v3150
        %v3172 = vpop.f32.mrf.mxu0
        %v3173 = vadd.f32 0.0, %v3172
        %3174 = vmatmul.f32.gmra.mxu0 %v3153
        %v3175 = vpop.f32.mrf.mxu0
        %v3176 = vadd.f32 0.0, %v3175
        %3177 = vdwg.mxu0
        %v3178 = vsel %vm1352, %v3173, -inf
        %3179 = vmax.xlane.f32.xlu0 %v3178
        %v3180 = vpop.xlane.xlu0 %3179
        %v3181 = vsel %vm1352, %v3176, -inf
        %3182 = vmax.xlane.f32.xlu0 %v3181
        %v3183 = vpop.xlane.xlu0 %3182
        %v3184 = vsub.f32 %v3173, %v3180
        %v3185 = vsub.f32 %v3176, %v3183
        %v3186 = vmul.f32 %v3184, 1.442695
        %v3187 = vpow.pop %v3186
        %v3188 = vmul.f32 %v3185, 1.442695
        %v3189 = vpow.pop %v3188
        %v3190 = vsel %vm1352, %v3187, 0.0
        %3191 = vadd.xlane.f32.xlu0 %v3190
        %v3192 = vpop.xlane.xlu0 %3191
        %v3193 = vsel %vm1352, %v3189, 0.0
        %3194 = vadd.xlane.f32.xlu0 %v3193
        %v3195 = vpop.xlane.xlu0 %3194
        %v3196 = vrcp.pop %v3192
        %v3197 = vrcp.pop %v3195
        %v3198 = vmul.f32 %v3187, %v3196
        %v3199 = vmul.f32 %v3189, %v3197
        %v3201 = vsel %vm1352, %v3002, 0
        %v3204 = vsel %vm1352, %v3198, 0
        %v3207 = vsel %vm1352, %v3199, 0
        %3209 = vmatpush.xpose.msra.mxu0 0.0
        %3210 = vmatpush.xpose.msra.mxu0 0.0
        %3211 = vmatpush.xpose.msra.mxu0 0.0
        %3212 = vmatpush.xpose.msra.mxu0 0.0
        %3213 = vmatpush.xpose.msra.mxu0 0.0
        %3214 = vmatpush.xpose.msra.mxu0 0.0
        %3215 = vmatpush.xpose.msra.mxu0 0.0
        %3216 = vmatpush.xpose.msra.mxu0 0.0
        %3217 = vmatpush.xpose.msra.mxu0 0.0
        %3218 = vmatpush.xpose.msra.mxu0 0.0
        %3219 = vmatpush.xpose.msra.mxu0 0.0
        %3220 = vmatpush.xpose.msra.mxu0 0.0
        %3221 = vmatpush.xpose.msra.mxu0 0.0
        %3222 = vmatpush.xpose.msra.mxu0 0.0
        %3223 = vmatpush.xpose.msra.mxu0 %v3207
        %3224 = vmatpush.xpose.msra.mxu0 %v3204
        %3225 = vmatmul.f32.gmra.mxu0 %v3201
        %v3226 = vpop.f32.mrf.mxu0
        %v3227 = vadd.f32 0.0, %v3226
        %3228 = vdwg.mxu0
        %3229 = vst.msk [vmem:[#allocation2 + $0x8] sm:$0xff] %vm1352, %v3227
        %v3230 = vld [vmem:[#allocation2] sm:$0xff]
        %v3231 = vld [vmem:[#allocation2 + $0x8] sm:$0xff]
        %v3232 = vadd.f32 %v2892, %v3230
        %v3233 = vadd.f32 %v2895, %v3231
        %3235 = vset.pattern.permute.xlu0 0
        %3236 = vperm.xlu0 %3235, %v2903
        %v3237 = vpop.permute.xlu0 %3236
        %3240 = vset.pattern.permute.xlu0 0
        %3241 = vperm.xlu0 %3240, %v2904
        %v3242 = vpop.permute.xlu0 %3241
        %v3244 = vmul.f32 %v3232, %v3237
        %v3245 = vmul.f32 %v3233, %v3242
        %3247 = vset.pattern.permute.xlu0 0
        %3248 = vperm.xlu0 %3247, %v2905
        %v3249 = vpop.permute.xlu0 %3248
        %3252 = vset.pattern.permute.xlu0 0
        %3253 = vperm.xlu0 %3252, %v2906
        %v3254 = vpop.permute.xlu0 %3253
        %v3256 = vadd.f32 %v3244, %v3249
        %v3257 = vadd.f32 %v3245, %v3254
        %v3259 = vsel %vm1352, %v2907, 0
        %v3262 = vsel %vm1352, %v2908, 0
        %v3265 = vsel %vm1352, %v2909, 0
        %v3268 = vsel %vm1352, %v2910, 0
        %3270 = vmatpush.msra.mxu0 0.0
        %3271 = vmatpush.msra.mxu0 0.0
        %3272 = vmatpush.msra.mxu0 0.0
        %3273 = vmatpush.msra.mxu0 0.0
        %3274 = vmatpush.msra.mxu0 0.0
        %3275 = vmatpush.msra.mxu0 0.0
        %3276 = vmatpush.msra.mxu0 0.0
        %3277 = vmatpush.msra.mxu0 0.0
        %3278 = vmatpush.msra.mxu0 0.0
        %3279 = vmatpush.msra.mxu0 0.0
        %3280 = vmatpush.msra.mxu0 0.0
        %3281 = vmatpush.msra.mxu0 0.0
        %3282 = vmatpush.msra.mxu0 0.0
        %3283 = vmatpush.msra.mxu0 0.0
        %3284 = vmatpush.msra.mxu0 %v3257
        %3285 = vmatpush.msra.mxu0 %v3256
        %3286 = vmatmul.f32.gmra.mxu0 %v3259
        %v3287 = vpop.f32.mrf.mxu0
        %v3288 = vadd.f32 0.0, %v3287
        %3289 = vmatmul.f32.gmra.mxu0 %v3262
        %v3290 = vpop.f32.mrf.mxu0
        %v3291 = vadd.f32 0.0, %v3290
        %3292 = vmatmul.f32.gmra.mxu0 %v3265
        %v3293 = vpop.f32.mrf.mxu0
        %v3294 = vadd.f32 0.0, %v3293
        %3295 = vmatmul.f32.gmra.mxu0 %v3268
        %v3296 = vpop.f32.mrf.mxu0
        %v3297 = vadd.f32 0.0, %v3296
        %3298 = vdwg.mxu0
        %vm3299 = vcmp.ge.f32.partialorder %v3288, 0.0
        %vm3300 = vcmp.ge.f32.partialorder %v3291, 0.0
        %vm3301 = vcmp.ge.f32.partialorder %v3294, 0.0
        %vm3302 = vcmp.ge.f32.partialorder %v3297, 0.0
        %v3303 = vmul.f32 %v3288, 0.2
        %v3304 = vmul.f32 %v3291, 0.2
        %v3305 = vmul.f32 %v3294, 0.2
        %v3306 = vmul.f32 %v3297, 0.2
        %v3307 = vsel %vm3299, %v3288, %v3303
        %v3308 = vsel %vm3300, %v3291, %v3304
        %v3309 = vsel %vm3301, %v3294, %v3305
        %v3310 = vsel %vm3302, %v3297, %v3306
        %v3312 = vsel %vm1948, %v2911, 0
        %v3315 = vsel %vm1948, %v2912, 0
        %3317 = vmatpush.msra.mxu0 0.0
        %3318 = vmatpush.msra.mxu0 0.0
        %3319 = vmatpush.msra.mxu0 0.0
        %3320 = vmatpush.msra.mxu0 0.0
        %3321 = vmatpush.msra.mxu0 0.0
        %3322 = vmatpush.msra.mxu0 0.0
        %3323 = vmatpush.msra.mxu0 0.0
        %3324 = vmatpush.msra.mxu0 0.0
        %3325 = vmatpush.msra.mxu0 0.0
        %3326 = vmatpush.msra.mxu0 0.0
        %3327 = vmatpush.msra.mxu0 0.0
        %3328 = vmatpush.msra.mxu0 0.0
        %3329 = vmatpush.msra.mxu0 %v3310
        %3330 = vmatpush.msra.mxu0 %v3309
        %3331 = vmatpush.msra.mxu0 %v3308
        %3332 = vmatpush.msra.mxu0 %v3307
        %3333 = vmatmul.f32.gmra.mxu0 %v3312
        %v3334 = vpop.f32.mrf.mxu0
        %v3335 = vadd.f32 0.0, %v3334
        %3336 = vmatmul.f32.gmra.mxu0 %v3315
        %v3337 = vpop.f32.mrf.mxu0
        %v3338 = vadd.f32 0.0, %v3337
        %3339 = vdwg.mxu0
        %v3340 = vadd.f32 %v3256, %v3335
        %v3341 = vadd.f32 %v3257, %v3338
        %3343 = vset.pattern.permute.xlu0 0
        %3344 = vperm.xlu0 %3343, %v2913
        %v3345 = vpop.permute.xlu0 %3344
        %3348 = vset.pattern.permute.xlu0 0
        %3349 = vperm.xlu0 %3348, %v2914
        %v3350 = vpop.permute.xlu0 %3349
        %v3352 = vmul.f32 %v3340, %v3345
        %v3353 = vmul.f32 %v3341, %v3350
        %3355 = vset.pattern.permute.xlu0 0
        %3356 = vperm.xlu0 %3355, %v2915
        %v3357 = vpop.permute.xlu0 %3356
        %3360 = vset.pattern.permute.xlu0 0
        %3361 = vperm.xlu0 %3360, %v2916
        %v3362 = vpop.permute.xlu0 %3361
        %v3364 = vadd.f32 %v3352, %v3357
        %v3365 = vadd.f32 %v3353, %v3362
        %3366 = vst.msk [vmem:[%s1326] sm:$0xff] %vm1352, %v3364
        %3367 = vst.msk [vmem:[%s1326 + $0x8] sm:$0xff] %vm1352, %v3365
        %s3368 = sand.u32 %s984, 1
        %s3369 = scalar_lea.sflag [#allocation5], %s3368
        %s3370 = sand.u32 %s984, 1
        %s3371 = smul.addr %s3370, 16
        %s3372 = scalar_lea.vmem [#allocation11], %s3371
        // Predicated region
        $region201: #{feature_learning_block.7} parent=183 // pred_check
          %p3373 = pneg %p994
        $region202: #{feature_learning_block.7} parent=183 // pred_check_branch
          %3375 = sbr.rel (%p3373) target = $region204
        $region203: #{feature_learning_block.7} parent=183 // pred_region
          %3377 = vsyncadd %s3369, 0
          %s3378 = smul.addr %s100, 2
          %s3379 = smul.addr %s3378, 8
          %s3380 = scalar_lea.hbm %s83, %s3379
          %s3381 = sshll.u32 %s3372, 4
          %s3382 = int_to_ptr.vmem [resolvable:$true] %s3381
          %s3383 = sshll.u32 %s3380, 4
          %s3384 = int_to_ptr.hbm [resolvable:$true] %s3383
          %3389 = dma.vmem_to_hbm [thread:$0]  %s3382, 256, %s3384, %s3369, 128, 128, 8
        $region204: #{feature_learning_block.7} parent=183 // pred_fallthru
          _
      $region184: #{feature_learning_block.7} parent=5 // pred_fallthru
        _
      %p3390 = scmp.le.s32.totalorder 2, %s95
      // Predicated region
      $region205: #{feature_learning_block.7} parent=5 // pred_check
        %p3391 = pneg %p3390
      $region206: #{feature_learning_block.7} parent=5 // pred_check_branch
        %3393 = sbr.rel (%p3391) target = $region208
      $region207: #{feature_learning_block.7} parent=5 // pred_region
        %s3394 = ssub.s32 %s95, 2
        // Predicated region
        $region209: #{feature_learning_block.7} parent=207 // pred_check
          %p3395 = pneg %p1000
        $region210: #{feature_learning_block.7} parent=207 // pred_check_branch
          %3397 = sbr.rel (%p3395) target = $region212
        $region211: #{feature_learning_block.7} parent=207 // pred_region
          %s3398 = sand.u32 %s985, 1
          %s3399 = scalar_lea.sflag [#allocation5], %s3398
          %s3400 = sand.u32 %s985, 1
          %s3401 = smul.addr %s3400, 16
          %s3402 = scalar_lea.vmem [#allocation11], %s3401
          %3404 = dma.done %s3399, 256
        $region212: #{feature_learning_block.7} parent=207 // pred_fallthru
          _
      $region208: #{feature_learning_block.7} parent=5 // pred_fallthru
        _
    $region6: #{feature_learning_block.7} parent=1 // loop_footer
      %s99 = sadd.s32 1, %s95
    $region7: #{feature_learning_block.7} parent=1 // loop_footer_branch
      %94 = sbr.rel target = $region3
    $region8: #{feature_learning_block.7} parent=1 // loop_exit
      _
    %3405 = vsyncpa [#allocation4], 1
    %s3406 = scalar_lea.sflag [#allocation4], 1
    %3407 = vsyncpa %s3406, 1
    %3408 = vsyncpa [#allocation7], 1
    %3409 = vsyncpa [#allocation10], 1
    %3410 = vsyncpa [#allocation5], 1
    %s3411 = scalar_lea.sflag [#allocation5], 1
    %3412 = vsyncpa %s3411, 1

</llo_original>
